<compile_context>
chip_gen: v7x
topology: tpu7x:2x2x1
jax: 0.10.0
libtpu: 0.0.40
codegen_flags: <defaults>
</compile_context>

<pallas_src>
import jax
import jax.numpy as jnp
from jax import lax
from jax.experimental import pallas as pl
from jax.experimental.pallas import tpu as pltpu

DIMENSION = 2
JOINT = 21 * 2 + 25            # 67
POSE = JOINT * DIMENSION       # 134
HIDDEN = 32
GATES = 4 * HIDDEN             # 128

P_PAD = 256                    # POSE padded to a lane-dense width (2 x 128)
K_IN = 2 * P_PAD + 128         # 640: [ inp(256) | vel(256) | ctx-block(128) ]
K_OUT = 128 + 128 + P_PAD      # 512: [ h-block(128) | ctx-block(128) | inp(256) ]

# ---- row offsets inside the packed parameter slab (all multiples of 8) ----
R_ENC_WIH = 0                       # (P_PAD, GATES)
R_ENC_WHH = R_ENC_WIH + P_PAD       # (HIDDEN, GATES)
R_ENC_B   = R_ENC_WHH + HIDDEN      # (1, GATES)
R_WA_E    = R_ENC_B + 8             # (HIDDEN, HIDDEN)
R_WA_H    = R_WA_E + HIDDEN         # (HIDDEN, HIDDEN)
R_V_ATT   = R_WA_H + HIDDEN         # (HIDDEN, 1)
R_W_IN    = R_V_ATT + HIDDEN        # (K_IN, GATES)   fused [wi_in; wi_vel; wi_ctx]
R_WHH_D   = R_W_IN + K_IN           # (HIDDEN, GATES)
R_B_D     = R_WHH_D + HIDDEN        # (1, GATES)
R_W_OUT   = R_B_D + 8               # (K_OUT, P_PAD)  fused [wo_h; wo_c; wo_in]
R_B_O     = R_W_OUT + K_OUT         # (1, P_PAD)
SLAB_ROWS = R_B_O + 8               # 1592
SLAB_COLS = P_PAD                   # 256


# ----------------------------------------------------------------------------
# shared LSTM-cell math (PyTorch gate order: i, f, g, o); bias pre-added to xg
# ----------------------------------------------------------------------------
def _lstm_step(xg, h, c, w_hh):
    gates = xg + jnp.dot(h, w_hh, preferred_element_type=jnp.float32)
    sig = jax.nn.sigmoid(gates)                    # one EUP pass for i, f, o
    i = sig[:, 0 * HIDDEN:1 * HIDDEN]
    f = sig[:, 1 * HIDDEN:2 * HIDDEN]
    o = sig[:, 3 * HIDDEN:4 * HIDDEN]
    g = jnp.tanh(gates[:, 2 * HIDDEN:3 * HIDDEN])  # one tanh for g
    c_new = f * c + i * g
    h_new = o * jnp.tanh(c_new)
    return h_new, c_new


# ----------------------------------------------------------------------------
# fused encoder + autoregressive decoder kernel
# ----------------------------------------------------------------------------
def text2sign_kernel(src_ref, tgt_ref, slab_ref, out_ref,
                     xg_ref, enc_ref, xin_ref, xout_ref):
    S = src_ref.shape[0]
    T = tgt_ref.shape[0]

    # ---- carve the packed parameter slab (static slices, loaded once) ----
    enc_w_ih = slab_ref[pl.ds(R_ENC_WIH, P_PAD), pl.ds(0, GATES)]
    enc_w_hh = slab_ref[pl.ds(R_ENC_WHH, HIDDEN), pl.ds(0, GATES)]
    enc_b    = slab_ref[pl.ds(R_ENC_B, 1), pl.ds(0, GATES)]
    wa_e     = slab_ref[pl.ds(R_WA_E, HIDDEN), pl.ds(0, HIDDEN)]
    wa_h     = slab_ref[pl.ds(R_WA_H, HIDDEN), pl.ds(0, HIDDEN)]
    v_att    = slab_ref[pl.ds(R_V_ATT, HIDDEN), pl.ds(0, 1)]
    w_in     = slab_ref[pl.ds(R_W_IN, K_IN), pl.ds(0, GATES)]
    whh_d    = slab_ref[pl.ds(R_WHH_D, HIDDEN), pl.ds(0, GATES)]
    b_d      = slab_ref[pl.ds(R_B_D, 1), pl.ds(0, GATES)]
    w_out    = slab_ref[pl.ds(R_W_OUT, K_OUT), pl.ds(0, P_PAD)]
    b_o      = slab_ref[pl.ds(R_B_O, 1), pl.ds(0, P_PAD)]

    # ================================ encoder ================================
    # hoisted input projection: one (S, 256) x (256, 128) MXU matmul + bias
    xg_ref[...] = (jnp.dot(src_ref[...], enc_w_ih,
                           preferred_element_type=jnp.float32) + enc_b)

    def enc_body(t, carry):
        h, c = carry
        h, c = _lstm_step(xg_ref[pl.ds(t, 1), :], h, c, enc_w_hh)
        enc_ref[pl.ds(t, 1), :] = h
        return h, c

    h0 = jnp.zeros((1, HIDDEN), jnp.float32)
    c0 = jnp.zeros((1, HIDDEN), jnp.float32)
    h, c = lax.fori_loop(0, S, enc_body, (h0, c0), unroll=True)

    # ================================ decoder ================================
    enc = enc_ref[...]                                               # (S, H)
    enc_proj = jnp.dot(enc, wa_e, preferred_element_type=jnp.float32)

    # zero the concat scratches once (pad lanes must not hold VMEM garbage)
    xin_ref[...] = jnp.zeros((1, K_IN), jnp.float32)
    xout_ref[...] = jnp.zeros((1, K_OUT), jnp.float32)

    inp0 = tgt_ref[pl.ds(0, 1), :]                                   # (1, P_PAD)
    vel0 = jnp.zeros((1, P_PAD), jnp.float32)

    def dec_body(t, carry):
        inp, vel, h, c = carry

        # --- Bahdanau attention over encoder outputs ---
        energy = jnp.tanh(
            enc_proj + jnp.dot(h, wa_h, preferred_element_type=jnp.float32))
        scores = jnp.dot(energy, v_att, preferred_element_type=jnp.float32)   # (S,1)
        scores = scores - jnp.max(scores, axis=0, keepdims=True)
        e = jnp.exp(scores)
        attn = e * pl.reciprocal(jnp.sum(e, axis=0, keepdims=True), approx=True)
        ctx = jnp.sum(attn * enc, axis=0, keepdims=True)                       # (1,H)

        # --- LSTM cell on concatenated [inp | vel | ctx]: a single MXU dot ---
        xin_ref[:, pl.ds(0, P_PAD)] = inp
        xin_ref[:, pl.ds(P_PAD, P_PAD)] = vel
        xin_ref[:, pl.ds(2 * P_PAD, HIDDEN)] = ctx
        xg = jnp.dot(xin_ref[...], w_in, preferred_element_type=jnp.float32) + b_d
        h, c = _lstm_step(xg, h, c, whh_d)

        # --- pose projection from [h | ctx | inp]: a single MXU dot ---
        xout_ref[:, pl.ds(0, HIDDEN)] = h
        xout_ref[:, pl.ds(128, HIDDEN)] = ctx
        xout_ref[:, pl.ds(256, P_PAD)] = inp
        out = (jnp.dot(xout_ref[...], w_out, preferred_element_type=jnp.float32)
               + b_o)                                                          # (1,P_PAD)
        out_ref[pl.ds(t - 1, 1), :] = out

        # teacher_forcing_ratio = 0.0 -> always autoregressive
        return out, out - inp, h, c

    lax.fori_loop(1, T, dec_body, (inp0, vel0, h, c), unroll=True)


# ----------------------------------------------------------------------------
# wrapper around the single pallas_call
# ----------------------------------------------------------------------------
_VMEM = pl.BlockSpec(memory_space=pltpu.MemorySpace.VMEM)


def text2sign_forward(text, target, gloss_db, params_slab,
                      teacher_forcing_ratio=0.0):
    """text: (1, n_words) int32; target: (1, trg_len, JOINT, DIMENSION) f32.

    Returns (1, trg_len - 1, JOINT, DIMENSION) — matching the PyTorch module.
    """
    del teacher_forcing_ratio  # fixed to 0.0 (deterministic); see TODO above.
    text = text[0]                                              # squeeze(0)
    trg_len = target.shape[1]
    tgt = target.reshape(trg_len, POSE)                         # (T, 134), B=1
    tgt_pad = jnp.pad(tgt, ((0, 0), (0, P_PAD - POSE)))         # lane-dense

    # word -> gloss database lookup + concatenation (glue, plain JAX gather)
    glosses = gloss_db[text]                                    # (n_words, F, 134)
    src = glosses.reshape(-1, POSE)                             # (S, 134)
    src_pad = jnp.pad(src, ((0, 0), (0, P_PAD - POSE)))
    S = src_pad.shape[0]

    out_pad = pl.pallas_call(
        text2sign_kernel,
        out_shape=jax.ShapeDtypeStruct((trg_len - 1, P_PAD), jnp.float32),
        in_specs=[_VMEM, _VMEM, _VMEM],
        out_specs=_VMEM,
        scratch_shapes=[
            pltpu.VMEM((S, GATES), jnp.float32),    # hoisted encoder gate pre-acts
            pltpu.VMEM((S, HIDDEN), jnp.float32),   # encoder outputs (stay in VMEM)
            pltpu.VMEM((1, K_IN), jnp.float32),     # decoder LSTM concat input
            pltpu.VMEM((1, K_OUT), jnp.float32),    # output-projection concat input
        ],
    )(src_pad, tgt_pad, params_slab)

    outs = out_pad[:, :POSE]                                    # drop lane padding
    outs = outs.reshape(trg_len - 1, 1, JOINT, DIMENSION)
    return jnp.transpose(outs, (1, 0, 2, 3))                    # (1, T-1, 67, 2)


# ----------------------------------------------------------------------------
# deterministic parameter init + packing into the single VMEM slab
# ----------------------------------------------------------------------------
def init_params(key):
    ks = jax.random.split(key, 16)
    s = 0.05

    def w(k, shape):
        return (s * jax.random.normal(k, shape)).astype(jnp.float32)

    return {
        # encoder LSTM (single bias = b_ih + b_hh for real checkpoints)
        "enc_w_ih": w(ks[0], (POSE, GATES)),
        "enc_w_hh": w(ks[1], (HIDDEN, GATES)),
        "enc_b":    jnp.zeros((1, GATES), jnp.float32),
        # decoder attention
        "wa_h":  w(ks[2], (HIDDEN, HIDDEN)),
        "wa_e":  w(ks[3], (HIDDEN, HIDDEN)),
        "v_att": w(ks[4], (HIDDEN, 1)),
        # decoder LSTM cell (block-partitioned input weight)
        "wi_in":  w(ks[5], (POSE, GATES)),
        "wi_vel": w(ks[6], (POSE, GATES)),
        "wi_ctx": w(ks[7], (HIDDEN, GATES)),
        "whh_d":  w(ks[8], (HIDDEN, GATES)),
        "b_d":    jnp.zeros((1, GATES), jnp.float32),
        # decoder output projection
        "wo_h":  w(ks[9], (HIDDEN, POSE)),
        "wo_c":  w(ks[10], (HIDDEN, POSE)),
        "wo_in": w(ks[11], (POSE, POSE)),
        "b_o":   jnp.zeros((1, POSE), jnp.float32),
    }


def pack_params(p):
    """Pack all weights/biases into one zero-padded f32 slab (SLAB_ROWS, 256)."""
    slab = jnp.zeros((SLAB_ROWS, SLAB_COLS), jnp.float32)

    def put(s, row, x):
        x = jnp.asarray(x, jnp.float32)
        return s.at[row:row + x.shape[0], :x.shape[1]].set(x)

    slab = put(slab, R_ENC_WIH, p["enc_w_ih"])        # rows 134:256 stay zero
    slab = put(slab, R_ENC_WHH, p["enc_w_hh"])
    slab = put(slab, R_ENC_B,   p["enc_b"])
    slab = put(slab, R_WA_E,    p["wa_e"])
    slab = put(slab, R_WA_H,    p["wa_h"])
    slab = put(slab, R_V_ATT,   p["v_att"])
    # fused decoder-LSTM input weight: K layout [ inp(256) | vel(256) | ctx(128) ]
    slab = put(slab, R_W_IN + 0,         p["wi_in"])
    slab = put(slab, R_W_IN + P_PAD,     p["wi_vel"])
    slab = put(slab, R_W_IN + 2 * P_PAD, p["wi_ctx"])
    slab = put(slab, R_WHH_D, p["whh_d"])
    slab = put(slab, R_B_D,   p["b_d"])
    # fused output-projection weight: K layout [ h(128) | ctx(128) | inp(256) ]
    slab = put(slab, R_W_OUT + 0,   p["wo_h"])
    slab = put(slab, R_W_OUT + 128, p["wo_c"])
    slab = put(slab, R_W_OUT + 256, p["wo_in"])
    slab = put(slab, R_B_O, p["b_o"])
    return slab


if __name__ == "__main__":
    key = jax.random.PRNGKey(0)
    k_par, k_db, k_tgt = jax.random.split(key, 3)

    params = init_params(k_par)
    slab = pack_params(params)

    vocab, frames_per_gloss = 16, 4
    gloss_db = (0.1 * jax.random.normal(
        k_db, (vocab, frames_per_gloss, POSE))).astype(jnp.float32)

    n_words, trg_len = 3, 8
    text = jnp.array([[2, 7, 11]], dtype=jnp.int32)              # (1, n_words)
    target = (0.1 * jax.random.normal(
        k_tgt, (1, trg_len, JOINT, DIMENSION))).astype(jnp.float32)

    out = text2sign_forward(text, target, gloss_db, slab)
    out = jax.block_until_ready(out)

    assert out.shape == (1, trg_len - 1, JOINT, DIMENSION), out.shape
    assert jnp.all(jnp.isfinite(out))
    print("KERNEL_OK")
</pallas_src>

<mosaic_0001>
module attributes {stable_mosaic.version = 11 : i64} {
  func.func @text2sign_kernel(%arg0: memref<12x256xf32, #tpu.memory_space<vmem>>, %arg1: memref<8x256xf32, #tpu.memory_space<vmem>>, %arg2: memref<1592x256xf32, #tpu.memory_space<vmem>>, %arg3: memref<7x256xf32, #tpu.memory_space<vmem>>, %arg4: memref<12x128xf32, #tpu.memory_space<vmem>>, %arg5: memref<12x32xf32, #tpu.memory_space<vmem>>, %arg6: memref<1x640xf32, #tpu.memory_space<vmem>>, %arg7: memref<1x512xf32, #tpu.memory_space<vmem>>) attributes {dimension_semantics = [], scalar_prefetch = 0 : i64, scratch_operands = 4 : i64, tpu.core_type = #tpu.core_type<tc>} {
    %c0 = arith.constant 0 : index
    %c0_0 = arith.constant 0 : index
    %0 = vector.load %arg2[%c0, %c0_0] : memref<1592x256xf32, #tpu.memory_space<vmem>>, vector<256x128xf32>
    %c256 = arith.constant 256 : index
    %c0_1 = arith.constant 0 : index
    %1 = vector.load %arg2[%c256, %c0_1] : memref<1592x256xf32, #tpu.memory_space<vmem>>, vector<32x128xf32>
    %c288 = arith.constant 288 : index
    %c0_2 = arith.constant 0 : index
    %2 = vector.load %arg2[%c288, %c0_2] : memref<1592x256xf32, #tpu.memory_space<vmem>>, vector<1x128xf32>
    %c296 = arith.constant 296 : index
    %c0_3 = arith.constant 0 : index
    %3 = vector.load %arg2[%c296, %c0_3] : memref<1592x256xf32, #tpu.memory_space<vmem>>, vector<32x32xf32>
    %c328 = arith.constant 328 : index
    %c0_4 = arith.constant 0 : index
    %4 = vector.load %arg2[%c328, %c0_4] : memref<1592x256xf32, #tpu.memory_space<vmem>>, vector<32x32xf32>
    %c360 = arith.constant 360 : index
    %c0_5 = arith.constant 0 : index
    %5 = vector.load %arg2[%c360, %c0_5] : memref<1592x256xf32, #tpu.memory_space<vmem>>, vector<32x1xf32>
    %c392 = arith.constant 392 : index
    %c0_6 = arith.constant 0 : index
    %6 = vector.load %arg2[%c392, %c0_6] : memref<1592x256xf32, #tpu.memory_space<vmem>>, vector<640x128xf32>
    %c1032 = arith.constant 1032 : index
    %c0_7 = arith.constant 0 : index
    %7 = vector.load %arg2[%c1032, %c0_7] : memref<1592x256xf32, #tpu.memory_space<vmem>>, vector<32x128xf32>
    %c1064 = arith.constant 1064 : index
    %c0_8 = arith.constant 0 : index
    %8 = vector.load %arg2[%c1064, %c0_8] : memref<1592x256xf32, #tpu.memory_space<vmem>>, vector<1x128xf32>
    %c1072 = arith.constant 1072 : index
    %c0_9 = arith.constant 0 : index
    %9 = vector.load %arg2[%c1072, %c0_9] : memref<1592x256xf32, #tpu.memory_space<vmem>>, vector<512x256xf32>
    %c1584 = arith.constant 1584 : index
    %c0_10 = arith.constant 0 : index
    %10 = vector.load %arg2[%c1584, %c0_10] : memref<1592x256xf32, #tpu.memory_space<vmem>>, vector<1x256xf32>
    %c0_11 = arith.constant 0 : index
    %c0_12 = arith.constant 0 : index
    %11 = vector.load %arg0[%c0_11, %c0_12] : memref<12x256xf32, #tpu.memory_space<vmem>>, vector<12x256xf32>
    %cst = arith.constant dense<0.000000e+00> : vector<12x128xf32>
    %12 = tpu.matmul %11, %0, %cst {dimension_numbers = #tpu.dot_dimension_numbers<[1], [0], [0], [1], [0, 0, 1, 1], [], []>} : vector<12x256xf32>, vector<256x128xf32>, vector<12x128xf32> -> vector<12x128xf32>
    %13 = vector.broadcast %2 : vector<1x128xf32> to vector<12x128xf32>
    %14 = arith.addf %12, %13 : vector<12x128xf32>
    %c0_13 = arith.constant 0 : index
    %c0_14 = arith.constant 0 : index
    %15 = vector.load %arg4[%c0_13, %c0_14] : memref<12x128xf32, #tpu.memory_space<vmem>>, vector<12x128xf32>
    tpu.vector_store %arg4[%c0_13, %c0_14], %14 {strides = array<i32>} : memref<12x128xf32, #tpu.memory_space<vmem>>, vector<12x128xf32>,
    %cst_15 = arith.constant 0.000000e+00 : f32
    %16 = vector.broadcast %cst_15 : f32 to vector<1x32xf32>
    %cst_16 = arith.constant 0.000000e+00 : f32
    %17 = vector.broadcast %cst_16 : f32 to vector<1x32xf32>
    %c0_i32 = arith.constant 0 : i32
    %18 = arith.index_cast %c0_i32 : i32 to index
    %c0_17 = arith.constant 0 : index
    %19 = vector.load %arg4[%18, %c0_17] : memref<12x128xf32, #tpu.memory_space<vmem>>, vector<1x128xf32>
    %cst_18 = arith.constant dense<0.000000e+00> : vector<1x128xf32>
    %20 = tpu.matmul %16, %1, %cst_18 {dimension_numbers = #tpu.dot_dimension_numbers<[1], [0], [0], [1], [0, 0, 1, 1], [], []>} : vector<1x32xf32>, vector<32x128xf32>, vector<1x128xf32> -> vector<1x128xf32>
    %21 = arith.addf %19, %20 : vector<1x128xf32>
    %22 = arith.negf %21 : vector<1x128xf32>
    %23 = math.exp %22 : vector<1x128xf32>
    %cst_19 = arith.constant 1.000000e+00 : f32
    %24 = vector.broadcast %cst_19 : f32 to vector<1x128xf32>
    %25 = arith.addf %24, %23 : vector<1x128xf32>
    %26 = arith.divf %24, %25 : vector<1x128xf32>
    %27 = vector.extract_strided_slice %26 {offsets = [0, 0], sizes = [1, 32], strides = [1, 1]} : vector<1x128xf32> to vector<1x32xf32>
    %28 = vector.extract_strided_slice %26 {offsets = [0, 32], sizes = [1, 32], strides = [1, 1]} : vector<1x128xf32> to vector<1x32xf32>
    %29 = vector.extract_strided_slice %26 {offsets = [0, 96], sizes = [1, 32], strides = [1, 1]} : vector<1x128xf32> to vector<1x32xf32>
    %30 = vector.extract_strided_slice %21 {offsets = [0, 64], sizes = [1, 32], strides = [1, 1]} : vector<1x128xf32> to vector<1x32xf32>
    %31 = math.tanh %30 : vector<1x32xf32>
    %32 = arith.mulf %28, %17 : vector<1x32xf32>
    %33 = arith.mulf %27, %31 : vector<1x32xf32>
    %34 = arith.addf %32, %33 : vector<1x32xf32>
    %35 = math.tanh %34 : vector<1x32xf32>
    %36 = arith.mulf %29, %35 : vector<1x32xf32>
    %37 = arith.index_cast %c0_i32 : i32 to index
    %c0_20 = arith.constant 0 : index
    %38 = vector.load %arg5[%37, %c0_20] : memref<12x32xf32, #tpu.memory_space<vmem>>, vector<1x32xf32>
    tpu.vector_store %arg5[%37, %c0_20], %36 {strides = array<i32>} : memref<12x32xf32, #tpu.memory_space<vmem>>, vector<1x32xf32>,
    %c1_i32 = arith.constant 1 : i32
    %39 = arith.index_cast %c1_i32 : i32 to index
    %c0_21 = arith.constant 0 : index
    %40 = vector.load %arg4[%39, %c0_21] : memref<12x128xf32, #tpu.memory_space<vmem>>, vector<1x128xf32>
    %cst_22 = arith.constant dense<0.000000e+00> : vector<1x128xf32>
    %41 = tpu.matmul %36, %1, %cst_22 {dimension_numbers = #tpu.dot_dimension_numbers<[1], [0], [0], [1], [0, 0, 1, 1], [], []>} : vector<1x32xf32>, vector<32x128xf32>, vector<1x128xf32> -> vector<1x128xf32>
    %42 = arith.addf %40, %41 : vector<1x128xf32>
    %43 = arith.negf %42 : vector<1x128xf32>
    %44 = math.exp %43 : vector<1x128xf32>
    %cst_23 = arith.constant 1.000000e+00 : f32
    %45 = vector.broadcast %cst_23 : f32 to vector<1x128xf32>
    %46 = arith.addf %45, %44 : vector<1x128xf32>
    %47 = arith.divf %45, %46 : vector<1x128xf32>
    %48 = vector.extract_strided_slice %47 {offsets = [0, 0], sizes = [1, 32], strides = [1, 1]} : vector<1x128xf32> to vector<1x32xf32>
    %49 = vector.extract_strided_slice %47 {offsets = [0, 32], sizes = [1, 32], strides = [1, 1]} : vector<1x128xf32> to vector<1x32xf32>
    %50 = vector.extract_strided_slice %47 {offsets = [0, 96], sizes = [1, 32], strides = [1, 1]} : vector<1x128xf32> to vector<1x32xf32>
    %51 = vector.extract_strided_slice %42 {offsets = [0, 64], sizes = [1, 32], strides = [1, 1]} : vector<1x128xf32> to vector<1x32xf32>
    %52 = math.tanh %51 : vector<1x32xf32>
    %53 = arith.mulf %49, %34 : vector<1x32xf32>
    %54 = arith.mulf %48, %52 : vector<1x32xf32>
    %55 = arith.addf %53, %54 : vector<1x32xf32>
    %56 = math.tanh %55 : vector<1x32xf32>
    %57 = arith.mulf %50, %56 : vector<1x32xf32>
    %58 = arith.index_cast %c1_i32 : i32 to index
    %c0_24 = arith.constant 0 : index
    %59 = vector.load %arg5[%58, %c0_24] : memref<12x32xf32, #tpu.memory_space<vmem>>, vector<1x32xf32>
    tpu.vector_store %arg5[%58, %c0_24], %57 {strides = array<i32>} : memref<12x32xf32, #tpu.memory_space<vmem>>, vector<1x32xf32>,
    %c2_i32 = arith.constant 2 : i32
    %60 = arith.index_cast %c2_i32 : i32 to index
    %c0_25 = arith.constant 0 : index
    %61 = vector.load %arg4[%60, %c0_25] : memref<12x128xf32, #tpu.memory_space<vmem>>, vector<1x128xf32>
    %cst_26 = arith.constant dense<0.000000e+00> : vector<1x128xf32>
    %62 = tpu.matmul %57, %1, %cst_26 {dimension_numbers = #tpu.dot_dimension_numbers<[1], [0], [0], [1], [0, 0, 1, 1], [], []>} : vector<1x32xf32>, vector<32x128xf32>, vector<1x128xf32> -> vector<1x128xf32>
    %63 = arith.addf %61, %62 : vector<1x128xf32>
    %64 = arith.negf %63 : vector<1x128xf32>
    %65 = math.exp %64 : vector<1x128xf32>
    %cst_27 = arith.constant 1.000000e+00 : f32
    %66 = vector.broadcast %cst_27 : f32 to vector<1x128xf32>
    %67 = arith.addf %66, %65 : vector<1x128xf32>
    %68 = arith.divf %66, %67 : vector<1x128xf32>
    %69 = vector.extract_strided_slice %68 {offsets = [0, 0], sizes = [1, 32], strides = [1, 1]} : vector<1x128xf32> to vector<1x32xf32>
    %70 = vector.extract_strided_slice %68 {offsets = [0, 32], sizes = [1, 32], strides = [1, 1]} : vector<1x128xf32> to vector<1x32xf32>
    %71 = vector.extract_strided_slice %68 {offsets = [0, 96], sizes = [1, 32], strides = [1, 1]} : vector<1x128xf32> to vector<1x32xf32>
    %72 = vector.extract_strided_slice %63 {offsets = [0, 64], sizes = [1, 32], strides = [1, 1]} : vector<1x128xf32> to vector<1x32xf32>
    %73 = math.tanh %72 : vector<1x32xf32>
    %74 = arith.mulf %70, %55 : vector<1x32xf32>
    %75 = arith.mulf %69, %73 : vector<1x32xf32>
    %76 = arith.addf %74, %75 : vector<1x32xf32>
    %77 = math.tanh %76 : vector<1x32xf32>
    %78 = arith.mulf %71, %77 : vector<1x32xf32>
    %79 = arith.index_cast %c2_i32 : i32 to index
    %c0_28 = arith.constant 0 : index
    %80 = vector.load %arg5[%79, %c0_28] : memref<12x32xf32, #tpu.memory_space<vmem>>, vector<1x32xf32>
    tpu.vector_store %arg5[%79, %c0_28], %78 {strides = array<i32>} : memref<12x32xf32, #tpu.memory_space<vmem>>, vector<1x32xf32>,
    %c3_i32 = arith.constant 3 : i32
    %81 = arith.index_cast %c3_i32 : i32 to index
    %c0_29 = arith.constant 0 : index
    %82 = vector.load %arg4[%81, %c0_29] : memref<12x128xf32, #tpu.memory_space<vmem>>, vector<1x128xf32>
    %cst_30 = arith.constant dense<0.000000e+00> : vector<1x128xf32>
    %83 = tpu.matmul %78, %1, %cst_30 {dimension_numbers = #tpu.dot_dimension_numbers<[1], [0], [0], [1], [0, 0, 1, 1], [], []>} : vector<1x32xf32>, vector<32x128xf32>, vector<1x128xf32> -> vector<1x128xf32>
    %84 = arith.addf %82, %83 : vector<1x128xf32>
    %85 = arith.negf %84 : vector<1x128xf32>
    %86 = math.exp %85 : vector<1x128xf32>
    %cst_31 = arith.constant 1.000000e+00 : f32
    %87 = vector.broadcast %cst_31 : f32 to vector<1x128xf32>
    %88 = arith.addf %87, %86 : vector<1x128xf32>
    %89 = arith.divf %87, %88 : vector<1x128xf32>
    %90 = vector.extract_strided_slice %89 {offsets = [0, 0], sizes = [1, 32], strides = [1, 1]} : vector<1x128xf32> to vector<1x32xf32>
    %91 = vector.extract_strided_slice %89 {offsets = [0, 32], sizes = [1, 32], strides = [1, 1]} : vector<1x128xf32> to vector<1x32xf32>
    %92 = vector.extract_strided_slice %89 {offsets = [0, 96], sizes = [1, 32], strides = [1, 1]} : vector<1x128xf32> to vector<1x32xf32>
    %93 = vector.extract_strided_slice %84 {offsets = [0, 64], sizes = [1, 32], strides = [1, 1]} : vector<1x128xf32> to vector<1x32xf32>
    %94 = math.tanh %93 : vector<1x32xf32>
    %95 = arith.mulf %91, %76 : vector<1x32xf32>
    %96 = arith.mulf %90, %94 : vector<1x32xf32>
    %97 = arith.addf %95, %96 : vector<1x32xf32>
    %98 = math.tanh %97 : vector<1x32xf32>
    %99 = arith.mulf %92, %98 : vector<1x32xf32>
    %100 = arith.index_cast %c3_i32 : i32 to index
    %c0_32 = arith.constant 0 : index
    %101 = vector.load %arg5[%100, %c0_32] : memref<12x32xf32, #tpu.memory_space<vmem>>, vector<1x32xf32>
    tpu.vector_store %arg5[%100, %c0_32], %99 {strides = array<i32>} : memref<12x32xf32, #tpu.memory_space<vmem>>, vector<1x32xf32>,
    %c4_i32 = arith.constant 4 : i32
    %102 = arith.index_cast %c4_i32 : i32 to index
    %c0_33 = arith.constant 0 : index
    %103 = vector.load %arg4[%102, %c0_33] : memref<12x128xf32, #tpu.memory_space<vmem>>, vector<1x128xf32>
    %cst_34 = arith.constant dense<0.000000e+00> : vector<1x128xf32>
    %104 = tpu.matmul %99, %1, %cst_34 {dimension_numbers = #tpu.dot_dimension_numbers<[1], [0], [0], [1], [0, 0, 1, 1], [], []>} : vector<1x32xf32>, vector<32x128xf32>, vector<1x128xf32> -> vector<1x128xf32>
    %105 = arith.addf %103, %104 : vector<1x128xf32>
    %106 = arith.negf %105 : vector<1x128xf32>
    %107 = math.exp %106 : vector<1x128xf32>
    %cst_35 = arith.constant 1.000000e+00 : f32
    %108 = vector.broadcast %cst_35 : f32 to vector<1x128xf32>
    %109 = arith.addf %108, %107 : vector<1x128xf32>
    %110 = arith.divf %108, %109 : vector<1x128xf32>
    %111 = vector.extract_strided_slice %110 {offsets = [0, 0], sizes = [1, 32], strides = [1, 1]} : vector<1x128xf32> to vector<1x32xf32>
    %112 = vector.extract_strided_slice %110 {offsets = [0, 32], sizes = [1, 32], strides = [1, 1]} : vector<1x128xf32> to vector<1x32xf32>
    %113 = vector.extract_strided_slice %110 {offsets = [0, 96], sizes = [1, 32], strides = [1, 1]} : vector<1x128xf32> to vector<1x32xf32>
    %114 = vector.extract_strided_slice %105 {offsets = [0, 64], sizes = [1, 32], strides = [1, 1]} : vector<1x128xf32> to vector<1x32xf32>
    %115 = math.tanh %114 : vector<1x32xf32>
    %116 = arith.mulf %112, %97 : vector<1x32xf32>
    %117 = arith.mulf %111, %115 : vector<1x32xf32>
    %118 = arith.addf %116, %117 : vector<1x32xf32>
    %119 = math.tanh %118 : vector<1x32xf32>
    %120 = arith.mulf %113, %119 : vector<1x32xf32>
    %121 = arith.index_cast %c4_i32 : i32 to index
    %c0_36 = arith.constant 0 : index
    %122 = vector.load %arg5[%121, %c0_36] : memref<12x32xf32, #tpu.memory_space<vmem>>, vector<1x32xf32>
    tpu.vector_store %arg5[%121, %c0_36], %120 {strides = array<i32>} : memref<12x32xf32, #tpu.memory_space<vmem>>, vector<1x32xf32>,
    %c5_i32 = arith.constant 5 : i32
    %123 = arith.index_cast %c5_i32 : i32 to index
    %c0_37 = arith.constant 0 : index
    %124 = vector.load %arg4[%123, %c0_37] : memref<12x128xf32, #tpu.memory_space<vmem>>, vector<1x128xf32>
    %cst_38 = arith.constant dense<0.000000e+00> : vector<1x128xf32>
    %125 = tpu.matmul %120, %1, %cst_38 {dimension_numbers = #tpu.dot_dimension_numbers<[1], [0], [0], [1], [0, 0, 1, 1], [], []>} : vector<1x32xf32>, vector<32x128xf32>, vector<1x128xf32> -> vector<1x128xf32>
    %126 = arith.addf %124, %125 : vector<1x128xf32>
    %127 = arith.negf %126 : vector<1x128xf32>
    %128 = math.exp %127 : vector<1x128xf32>
    %cst_39 = arith.constant 1.000000e+00 : f32
    %129 = vector.broadcast %cst_39 : f32 to vector<1x128xf32>
    %130 = arith.addf %129, %128 : vector<1x128xf32>
    %131 = arith.divf %129, %130 : vector<1x128xf32>
    %132 = vector.extract_strided_slice %131 {offsets = [0, 0], sizes = [1, 32], strides = [1, 1]} : vector<1x128xf32> to vector<1x32xf32>
    %133 = vector.extract_strided_slice %131 {offsets = [0, 32], sizes = [1, 32], strides = [1, 1]} : vector<1x128xf32> to vector<1x32xf32>
    %134 = vector.extract_strided_slice %131 {offsets = [0, 96], sizes = [1, 32], strides = [1, 1]} : vector<1x128xf32> to vector<1x32xf32>
    %135 = vector.extract_strided_slice %126 {offsets = [0, 64], sizes = [1, 32], strides = [1, 1]} : vector<1x128xf32> to vector<1x32xf32>
    %136 = math.tanh %135 : vector<1x32xf32>
    %137 = arith.mulf %133, %118 : vector<1x32xf32>
    %138 = arith.mulf %132, %136 : vector<1x32xf32>
    %139 = arith.addf %137, %138 : vector<1x32xf32>
    %140 = math.tanh %139 : vector<1x32xf32>
    %141 = arith.mulf %134, %140 : vector<1x32xf32>
    %142 = arith.index_cast %c5_i32 : i32 to index
    %c0_40 = arith.constant 0 : index
    %143 = vector.load %arg5[%142, %c0_40] : memref<12x32xf32, #tpu.memory_space<vmem>>, vector<1x32xf32>
    tpu.vector_store %arg5[%142, %c0_40], %141 {strides = array<i32>} : memref<12x32xf32, #tpu.memory_space<vmem>>, vector<1x32xf32>,
    %c6_i32 = arith.constant 6 : i32
    %144 = arith.index_cast %c6_i32 : i32 to index
    %c0_41 = arith.constant 0 : index
    %145 = vector.load %arg4[%144, %c0_41] : memref<12x128xf32, #tpu.memory_space<vmem>>, vector<1x128xf32>
    %cst_42 = arith.constant dense<0.000000e+00> : vector<1x128xf32>
    %146 = tpu.matmul %141, %1, %cst_42 {dimension_numbers = #tpu.dot_dimension_numbers<[1], [0], [0], [1], [0, 0, 1, 1], [], []>} : vector<1x32xf32>, vector<32x128xf32>, vector<1x128xf32> -> vector<1x128xf32>
    %147 = arith.addf %145, %146 : vector<1x128xf32>
    %148 = arith.negf %147 : vector<1x128xf32>
    %149 = math.exp %148 : vector<1x128xf32>
    %cst_43 = arith.constant 1.000000e+00 : f32
    %150 = vector.broadcast %cst_43 : f32 to vector<1x128xf32>
    %151 = arith.addf %150, %149 : vector<1x128xf32>
    %152 = arith.divf %150, %151 : vector<1x128xf32>
    %153 = vector.extract_strided_slice %152 {offsets = [0, 0], sizes = [1, 32], strides = [1, 1]} : vector<1x128xf32> to vector<1x32xf32>
    %154 = vector.extract_strided_slice %152 {offsets = [0, 32], sizes = [1, 32], strides = [1, 1]} : vector<1x128xf32> to vector<1x32xf32>
    %155 = vector.extract_strided_slice %152 {offsets = [0, 96], sizes = [1, 32], strides = [1, 1]} : vector<1x128xf32> to vector<1x32xf32>
    %156 = vector.extract_strided_slice %147 {offsets = [0, 64], sizes = [1, 32], strides = [1, 1]} : vector<1x128xf32> to vector<1x32xf32>
    %157 = math.tanh %156 : vector<1x32xf32>
    %158 = arith.mulf %154, %139 : vector<1x32xf32>
    %159 = arith.mulf %153, %157 : vector<1x32xf32>
    %160 = arith.addf %158, %159 : vector<1x32xf32>
    %161 = math.tanh %160 : vector<1x32xf32>
    %162 = arith.mulf %155, %161 : vector<1x32xf32>
    %163 = arith.index_cast %c6_i32 : i32 to index
    %c0_44 = arith.constant 0 : index
    %164 = vector.load %arg5[%163, %c0_44] : memref<12x32xf32, #tpu.memory_space<vmem>>, vector<1x32xf32>
    tpu.vector_store %arg5[%163, %c0_44], %162 {strides = array<i32>} : memref<12x32xf32, #tpu.memory_space<vmem>>, vector<1x32xf32>,
    %c7_i32 = arith.constant 7 : i32
    %165 = arith.index_cast %c7_i32 : i32 to index
    %c0_45 = arith.constant 0 : index
    %166 = vector.load %arg4[%165, %c0_45] : memref<12x128xf32, #tpu.memory_space<vmem>>, vector<1x128xf32>
    %cst_46 = arith.constant dense<0.000000e+00> : vector<1x128xf32>
    %167 = tpu.matmul %162, %1, %cst_46 {dimension_numbers = #tpu.dot_dimension_numbers<[1], [0], [0], [1], [0, 0, 1, 1], [], []>} : vector<1x32xf32>, vector<32x128xf32>, vector<1x128xf32> -> vector<1x128xf32>
    %168 = arith.addf %166, %167 : vector<1x128xf32>
    %169 = arith.negf %168 : vector<1x128xf32>
    %170 = math.exp %169 : vector<1x128xf32>
    %cst_47 = arith.constant 1.000000e+00 : f32
    %171 = vector.broadcast %cst_47 : f32 to vector<1x128xf32>
    %172 = arith.addf %171, %170 : vector<1x128xf32>
    %173 = arith.divf %171, %172 : vector<1x128xf32>
    %174 = vector.extract_strided_slice %173 {offsets = [0, 0], sizes = [1, 32], strides = [1, 1]} : vector<1x128xf32> to vector<1x32xf32>
    %175 = vector.extract_strided_slice %173 {offsets = [0, 32], sizes = [1, 32], strides = [1, 1]} : vector<1x128xf32> to vector<1x32xf32>
    %176 = vector.extract_strided_slice %173 {offsets = [0, 96], sizes = [1, 32], strides = [1, 1]} : vector<1x128xf32> to vector<1x32xf32>
    %177 = vector.extract_strided_slice %168 {offsets = [0, 64], sizes = [1, 32], strides = [1, 1]} : vector<1x128xf32> to vector<1x32xf32>
    %178 = math.tanh %177 : vector<1x32xf32>
    %179 = arith.mulf %175, %160 : vector<1x32xf32>
    %180 = arith.mulf %174, %178 : vector<1x32xf32>
    %181 = arith.addf %179, %180 : vector<1x32xf32>
    %182 = math.tanh %181 : vector<1x32xf32>
    %183 = arith.mulf %176, %182 : vector<1x32xf32>
    %184 = arith.index_cast %c7_i32 : i32 to index
    %c0_48 = arith.constant 0 : index
    %185 = vector.load %arg5[%184, %c0_48] : memref<12x32xf32, #tpu.memory_space<vmem>>, vector<1x32xf32>
    tpu.vector_store %arg5[%184, %c0_48], %183 {strides = array<i32>} : memref<12x32xf32, #tpu.memory_space<vmem>>, vector<1x32xf32>,
    %c8_i32 = arith.constant 8 : i32
    %186 = arith.index_cast %c8_i32 : i32 to index
    %c0_49 = arith.constant 0 : index
    %187 = vector.load %arg4[%186, %c0_49] : memref<12x128xf32, #tpu.memory_space<vmem>>, vector<1x128xf32>
    %cst_50 = arith.constant dense<0.000000e+00> : vector<1x128xf32>
    %188 = tpu.matmul %183, %1, %cst_50 {dimension_numbers = #tpu.dot_dimension_numbers<[1], [0], [0], [1], [0, 0, 1, 1], [], []>} : vector<1x32xf32>, vector<32x128xf32>, vector<1x128xf32> -> vector<1x128xf32>
    %189 = arith.addf %187, %188 : vector<1x128xf32>
    %190 = arith.negf %189 : vector<1x128xf32>
    %191 = math.exp %190 : vector<1x128xf32>
    %cst_51 = arith.constant 1.000000e+00 : f32
    %192 = vector.broadcast %cst_51 : f32 to vector<1x128xf32>
    %193 = arith.addf %192, %191 : vector<1x128xf32>
    %194 = arith.divf %192, %193 : vector<1x128xf32>
    %195 = vector.extract_strided_slice %194 {offsets = [0, 0], sizes = [1, 32], strides = [1, 1]} : vector<1x128xf32> to vector<1x32xf32>
    %196 = vector.extract_strided_slice %194 {offsets = [0, 32], sizes = [1, 32], strides = [1, 1]} : vector<1x128xf32> to vector<1x32xf32>
    %197 = vector.extract_strided_slice %194 {offsets = [0, 96], sizes = [1, 32], strides = [1, 1]} : vector<1x128xf32> to vector<1x32xf32>
    %198 = vector.extract_strided_slice %189 {offsets = [0, 64], sizes = [1, 32], strides = [1, 1]} : vector<1x128xf32> to vector<1x32xf32>
    %199 = math.tanh %198 : vector<1x32xf32>
    %200 = arith.mulf %196, %181 : vector<1x32xf32>
    %201 = arith.mulf %195, %199 : vector<1x32xf32>
    %202 = arith.addf %200, %201 : vector<1x32xf32>
    %203 = math.tanh %202 : vector<1x32xf32>
    %204 = arith.mulf %197, %203 : vector<1x32xf32>
    %205 = arith.index_cast %c8_i32 : i32 to index
    %c0_52 = arith.constant 0 : index
    %206 = vector.load %arg5[%205, %c0_52] : memref<12x32xf32, #tpu.memory_space<vmem>>, vector<1x32xf32>
    tpu.vector_store %arg5[%205, %c0_52], %204 {strides = array<i32>} : memref<12x32xf32, #tpu.memory_space<vmem>>, vector<1x32xf32>,
    %c9_i32 = arith.constant 9 : i32
    %207 = arith.index_cast %c9_i32 : i32 to index
    %c0_53 = arith.constant 0 : index
    %208 = vector.load %arg4[%207, %c0_53] : memref<12x128xf32, #tpu.memory_space<vmem>>, vector<1x128xf32>
    %cst_54 = arith.constant dense<0.000000e+00> : vector<1x128xf32>
    %209 = tpu.matmul %204, %1, %cst_54 {dimension_numbers = #tpu.dot_dimension_numbers<[1], [0], [0], [1], [0, 0, 1, 1], [], []>} : vector<1x32xf32>, vector<32x128xf32>, vector<1x128xf32> -> vector<1x128xf32>
    %210 = arith.addf %208, %209 : vector<1x128xf32>
    %211 = arith.negf %210 : vector<1x128xf32>
    %212 = math.exp %211 : vector<1x128xf32>
    %cst_55 = arith.constant 1.000000e+00 : f32
    %213 = vector.broadcast %cst_55 : f32 to vector<1x128xf32>
    %214 = arith.addf %213, %212 : vector<1x128xf32>
    %215 = arith.divf %213, %214 : vector<1x128xf32>
    %216 = vector.extract_strided_slice %215 {offsets = [0, 0], sizes = [1, 32], strides = [1, 1]} : vector<1x128xf32> to vector<1x32xf32>
    %217 = vector.extract_strided_slice %215 {offsets = [0, 32], sizes = [1, 32], strides = [1, 1]} : vector<1x128xf32> to vector<1x32xf32>
    %218 = vector.extract_strided_slice %215 {offsets = [0, 96], sizes = [1, 32], strides = [1, 1]} : vector<1x128xf32> to vector<1x32xf32>
    %219 = vector.extract_strided_slice %210 {offsets = [0, 64], sizes = [1, 32], strides = [1, 1]} : vector<1x128xf32> to vector<1x32xf32>
    %220 = math.tanh %219 : vector<1x32xf32>
    %221 = arith.mulf %217, %202 : vector<1x32xf32>
    %222 = arith.mulf %216, %220 : vector<1x32xf32>
    %223 = arith.addf %221, %222 : vector<1x32xf32>
    %224 = math.tanh %223 : vector<1x32xf32>
    %225 = arith.mulf %218, %224 : vector<1x32xf32>
    %226 = arith.index_cast %c9_i32 : i32 to index
    %c0_56 = arith.constant 0 : index
    %227 = vector.load %arg5[%226, %c0_56] : memref<12x32xf32, #tpu.memory_space<vmem>>, vector<1x32xf32>
    tpu.vector_store %arg5[%226, %c0_56], %225 {strides = array<i32>} : memref<12x32xf32, #tpu.memory_space<vmem>>, vector<1x32xf32>,
    %c10_i32 = arith.constant 10 : i32
    %228 = arith.index_cast %c10_i32 : i32 to index
    %c0_57 = arith.constant 0 : index
    %229 = vector.load %arg4[%228, %c0_57] : memref<12x128xf32, #tpu.memory_space<vmem>>, vector<1x128xf32>
    %cst_58 = arith.constant dense<0.000000e+00> : vector<1x128xf32>
    %230 = tpu.matmul %225, %1, %cst_58 {dimension_numbers = #tpu.dot_dimension_numbers<[1], [0], [0], [1], [0, 0, 1, 1], [], []>} : vector<1x32xf32>, vector<32x128xf32>, vector<1x128xf32> -> vector<1x128xf32>
    %231 = arith.addf %229, %230 : vector<1x128xf32>
    %232 = arith.negf %231 : vector<1x128xf32>
    %233 = math.exp %232 : vector<1x128xf32>
    %cst_59 = arith.constant 1.000000e+00 : f32
    %234 = vector.broadcast %cst_59 : f32 to vector<1x128xf32>
    %235 = arith.addf %234, %233 : vector<1x128xf32>
    %236 = arith.divf %234, %235 : vector<1x128xf32>
    %237 = vector.extract_strided_slice %236 {offsets = [0, 0], sizes = [1, 32], strides = [1, 1]} : vector<1x128xf32> to vector<1x32xf32>
    %238 = vector.extract_strided_slice %236 {offsets = [0, 32], sizes = [1, 32], strides = [1, 1]} : vector<1x128xf32> to vector<1x32xf32>
    %239 = vector.extract_strided_slice %236 {offsets = [0, 96], sizes = [1, 32], strides = [1, 1]} : vector<1x128xf32> to vector<1x32xf32>
    %240 = vector.extract_strided_slice %231 {offsets = [0, 64], sizes = [1, 32], strides = [1, 1]} : vector<1x128xf32> to vector<1x32xf32>
    %241 = math.tanh %240 : vector<1x32xf32>
    %242 = arith.mulf %238, %223 : vector<1x32xf32>
    %243 = arith.mulf %237, %241 : vector<1x32xf32>
    %244 = arith.addf %242, %243 : vector<1x32xf32>
    %245 = math.tanh %244 : vector<1x32xf32>
    %246 = arith.mulf %239, %245 : vector<1x32xf32>
    %247 = arith.index_cast %c10_i32 : i32 to index
    %c0_60 = arith.constant 0 : index
    %248 = vector.load %arg5[%247, %c0_60] : memref<12x32xf32, #tpu.memory_space<vmem>>, vector<1x32xf32>
    tpu.vector_store %arg5[%247, %c0_60], %246 {strides = array<i32>} : memref<12x32xf32, #tpu.memory_space<vmem>>, vector<1x32xf32>,
    %c11_i32 = arith.constant 11 : i32
    %249 = arith.index_cast %c11_i32 : i32 to index
    %c0_61 = arith.constant 0 : index
    %250 = vector.load %arg4[%249, %c0_61] : memref<12x128xf32, #tpu.memory_space<vmem>>, vector<1x128xf32>
    %cst_62 = arith.constant dense<0.000000e+00> : vector<1x128xf32>
    %251 = tpu.matmul %246, %1, %cst_62 {dimension_numbers = #tpu.dot_dimension_numbers<[1], [0], [0], [1], [0, 0, 1, 1], [], []>} : vector<1x32xf32>, vector<32x128xf32>, vector<1x128xf32> -> vector<1x128xf32>
    %252 = arith.addf %250, %251 : vector<1x128xf32>
    %253 = arith.negf %252 : vector<1x128xf32>
    %254 = math.exp %253 : vector<1x128xf32>
    %cst_63 = arith.constant 1.000000e+00 : f32
    %255 = vector.broadcast %cst_63 : f32 to vector<1x128xf32>
    %256 = arith.addf %255, %254 : vector<1x128xf32>
    %257 = arith.divf %255, %256 : vector<1x128xf32>
    %258 = vector.extract_strided_slice %257 {offsets = [0, 0], sizes = [1, 32], strides = [1, 1]} : vector<1x128xf32> to vector<1x32xf32>
    %259 = vector.extract_strided_slice %257 {offsets = [0, 32], sizes = [1, 32], strides = [1, 1]} : vector<1x128xf32> to vector<1x32xf32>
    %260 = vector.extract_strided_slice %257 {offsets = [0, 96], sizes = [1, 32], strides = [1, 1]} : vector<1x128xf32> to vector<1x32xf32>
    %261 = vector.extract_strided_slice %252 {offsets = [0, 64], sizes = [1, 32], strides = [1, 1]} : vector<1x128xf32> to vector<1x32xf32>
    %262 = math.tanh %261 : vector<1x32xf32>
    %263 = arith.mulf %259, %244 : vector<1x32xf32>
    %264 = arith.mulf %258, %262 : vector<1x32xf32>
    %265 = arith.addf %263, %264 : vector<1x32xf32>
    %266 = math.tanh %265 : vector<1x32xf32>
    %267 = arith.mulf %260, %266 : vector<1x32xf32>
    %268 = arith.index_cast %c11_i32 : i32 to index
    %c0_64 = arith.constant 0 : index
    %269 = vector.load %arg5[%268, %c0_64] : memref<12x32xf32, #tpu.memory_space<vmem>>, vector<1x32xf32>
    tpu.vector_store %arg5[%268, %c0_64], %267 {strides = array<i32>} : memref<12x32xf32, #tpu.memory_space<vmem>>, vector<1x32xf32>,
    %c12_i32 = arith.constant 12 : i32
    %c0_65 = arith.constant 0 : index
    %c0_66 = arith.constant 0 : index
    %270 = vector.load %arg5[%c0_65, %c0_66] : memref<12x32xf32, #tpu.memory_space<vmem>>, vector<12x32xf32>
    %cst_67 = arith.constant dense<0.000000e+00> : vector<12x32xf32>
    %271 = tpu.matmul %270, %3, %cst_67 {dimension_numbers = #tpu.dot_dimension_numbers<[1], [0], [0], [1], [0, 0, 1, 1], [], []>} : vector<12x32xf32>, vector<32x32xf32>, vector<12x32xf32> -> vector<12x32xf32>
    %cst_68 = arith.constant 0.000000e+00 : f32
    %272 = vector.broadcast %cst_68 : f32 to vector<1x640xf32>
    %c0_69 = arith.constant 0 : index
    %c0_70 = arith.constant 0 : index
    %273 = vector.load %arg6[%c0_69, %c0_70] : memref<1x640xf32, #tpu.memory_space<vmem>>, vector<1x640xf32>
    tpu.vector_store %arg6[%c0_69, %c0_70], %272 {strides = array<i32>} : memref<1x640xf32, #tpu.memory_space<vmem>>, vector<1x640xf32>,
    %cst_71 = arith.constant 0.000000e+00 : f32
    %274 = vector.broadcast %cst_71 : f32 to vector<1x512xf32>
    %c0_72 = arith.constant 0 : index
    %c0_73 = arith.constant 0 : index
    %275 = vector.load %arg7[%c0_72, %c0_73] : memref<1x512xf32, #tpu.memory_space<vmem>>, vector<1x512xf32>
    tpu.vector_store %arg7[%c0_72, %c0_73], %274 {strides = array<i32>} : memref<1x512xf32, #tpu.memory_space<vmem>>, vector<1x512xf32>,
    %c0_74 = arith.constant 0 : index
    %c0_75 = arith.constant 0 : index
    %276 = vector.load %arg1[%c0_74, %c0_75] : memref<8x256xf32, #tpu.memory_space<vmem>>, vector<1x256xf32>
    %cst_76 = arith.constant 0.000000e+00 : f32
    %277 = vector.broadcast %cst_76 : f32 to vector<1x256xf32>
    %c1_i32_77 = arith.constant 1 : i32
    %cst_78 = arith.constant dense<0.000000e+00> : vector<1x32xf32>
    %278 = tpu.matmul %267, %4, %cst_78 {dimension_numbers = #tpu.dot_dimension_numbers<[1], [0], [0], [1], [0, 0, 1, 1], [], []>} : vector<1x32xf32>, vector<32x32xf32>, vector<1x32xf32> -> vector<1x32xf32>
    %279 = vector.broadcast %278 : vector<1x32xf32> to vector<12x32xf32>
    %280 = arith.addf %271, %279 : vector<12x32xf32>
    %281 = math.tanh %280 : vector<12x32xf32>
    %cst_79 = arith.constant dense<0.000000e+00> : vector<12x1xf32>
    %282 = tpu.matmul %281, %5, %cst_79 {dimension_numbers = #tpu.dot_dimension_numbers<[1], [0], [0], [1], [0, 0, 1, 1], [], []>} : vector<12x32xf32>, vector<32x1xf32>, vector<12x1xf32> -> vector<12x1xf32>
    %cst_80 = arith.constant dense<0xFF800000> : vector<1xf32>
    %283 = vector.multi_reduction <maximumf>, %282, %cst_80 [0] : vector<12x1xf32> to vector<1xf32>
    %284 = vector.shape_cast %283 : vector<1xf32> to vector<1x1xf32>
    %285 = vector.broadcast %284 : vector<1x1xf32> to vector<12x1xf32>
    %286 = arith.subf %282, %285 : vector<12x1xf32>
    %287 = math.exp %286 : vector<12x1xf32>
    %cst_81 = arith.constant dense<0.000000e+00> : vector<1xf32>
    %288 = vector.multi_reduction <add>, %287, %cst_81 [0] : vector<12x1xf32> to vector<1xf32>
    %289 = vector.shape_cast %288 : vector<1xf32> to vector<1x1xf32>
    %290 = tpu.reciprocal %289 {approx = true} : vector<1x1xf32> -> vector<1x1xf32>
    %291 = vector.broadcast %290 : vector<1x1xf32> to vector<12x1xf32>
    %292 = arith.mulf %287, %291 : vector<12x1xf32>
    %293 = vector.broadcast %292 : vector<12x1xf32> to vector<12x32xf32>
    %294 = arith.mulf %293, %270 : vector<12x32xf32>
    %cst_82 = arith.constant dense<0.000000e+00> : vector<32xf32>
    %295 = vector.multi_reduction <add>, %294, %cst_82 [0] : vector<12x32xf32> to vector<32xf32>
    %296 = vector.shape_cast %295 : vector<32xf32> to vector<1x32xf32>
    %c0_83 = arith.constant 0 : index
    %c0_84 = arith.constant 0 : index
    %297 = vector.load %arg6[%c0_83, %c0_84] : memref<1x640xf32, #tpu.memory_space<vmem>>, vector<1x256xf32>
    tpu.vector_store %arg6[%c0_83, %c0_84], %276 {strides = array<i32>} : memref<1x640xf32, #tpu.memory_space<vmem>>, vector<1x256xf32>,
    %c0_85 = arith.constant 0 : index
    %c256_86 = arith.constant 256 : index
    %298 = vector.load %arg6[%c0_85, %c256_86] : memref<1x640xf32, #tpu.memory_space<vmem>>, vector<1x256xf32>
    tpu.vector_store %arg6[%c0_85, %c256_86], %277 {strides = array<i32>} : memref<1x640xf32, #tpu.memory_space<vmem>>, vector<1x256xf32>,
    %c0_87 = arith.constant 0 : index
    %c512 = arith.constant 512 : index
    %299 = vector.load %arg6[%c0_87, %c512] : memref<1x640xf32, #tpu.memory_space<vmem>>, vector<1x32xf32>
    tpu.vector_store %arg6[%c0_87, %c512], %296 {strides = array<i32>} : memref<1x640xf32, #tpu.memory_space<vmem>>, vector<1x32xf32>,
    %c0_88 = arith.constant 0 : index
    %c0_89 = arith.constant 0 : index
    %300 = vector.load %arg6[%c0_88, %c0_89] : memref<1x640xf32, #tpu.memory_space<vmem>>, vector<1x640xf32>
    %cst_90 = arith.constant dense<0.000000e+00> : vector<1x128xf32>
    %301 = tpu.matmul %300, %6, %cst_90 {dimension_numbers = #tpu.dot_dimension_numbers<[1], [0], [0], [1], [0, 0, 1, 1], [], []>} : vector<1x640xf32>, vector<640x128xf32>, vector<1x128xf32> -> vector<1x128xf32>
    %302 = arith.addf %301, %8 : vector<1x128xf32>
    %cst_91 = arith.constant dense<0.000000e+00> : vector<1x128xf32>
    %303 = tpu.matmul %267, %7, %cst_91 {dimension_numbers = #tpu.dot_dimension_numbers<[1], [0], [0], [1], [0, 0, 1, 1], [], []>} : vector<1x32xf32>, vector<32x128xf32>, vector<1x128xf32> -> vector<1x128xf32>
    %304 = arith.addf %302, %303 : vector<1x128xf32>
    %305 = arith.negf %304 : vector<1x128xf32>
    %306 = math.exp %305 : vector<1x128xf32>
    %cst_92 = arith.constant 1.000000e+00 : f32
    %307 = vector.broadcast %cst_92 : f32 to vector<1x128xf32>
    %308 = arith.addf %307, %306 : vector<1x128xf32>
    %309 = arith.divf %307, %308 : vector<1x128xf32>
    %310 = vector.extract_strided_slice %309 {offsets = [0, 0], sizes = [1, 32], strides = [1, 1]} : vector<1x128xf32> to vector<1x32xf32>
    %311 = vector.extract_strided_slice %309 {offsets = [0, 32], sizes = [1, 32], strides = [1, 1]} : vector<1x128xf32> to vector<1x32xf32>
    %312 = vector.extract_strided_slice %309 {offsets = [0, 96], sizes = [1, 32], strides = [1, 1]} : vector<1x128xf32> to vector<1x32xf32>
    %313 = vector.extract_strided_slice %304 {offsets = [0, 64], sizes = [1, 32], strides = [1, 1]} : vector<1x128xf32> to vector<1x32xf32>
    %314 = math.tanh %313 : vector<1x32xf32>
    %315 = arith.mulf %311, %265 : vector<1x32xf32>
    %316 = arith.mulf %310, %314 : vector<1x32xf32>
    %317 = arith.addf %315, %316 : vector<1x32xf32>
    %318 = math.tanh %317 : vector<1x32xf32>
    %319 = arith.mulf %312, %318 : vector<1x32xf32>
    %c0_93 = arith.constant 0 : index
    %c0_94 = arith.constant 0 : index
    %320 = vector.load %arg7[%c0_93, %c0_94] : memref<1x512xf32, #tpu.memory_space<vmem>>, vector<1x32xf32>
    tpu.vector_store %arg7[%c0_93, %c0_94], %319 {strides = array<i32>} : memref<1x512xf32, #tpu.memory_space<vmem>>, vector<1x32xf32>,
    %c0_95 = arith.constant 0 : index
    %c128 = arith.constant 128 : index
    %321 = vector.load %arg7[%c0_95, %c128] : memref<1x512xf32, #tpu.memory_space<vmem>>, vector<1x32xf32>
    tpu.vector_store %arg7[%c0_95, %c128], %296 {strides = array<i32>} : memref<1x512xf32, #tpu.memory_space<vmem>>, vector<1x32xf32>,
    %c0_96 = arith.constant 0 : index
    %c256_97 = arith.constant 256 : index
    %322 = vector.load %arg7[%c0_96, %c256_97] : memref<1x512xf32, #tpu.memory_space<vmem>>, vector<1x256xf32>
    tpu.vector_store %arg7[%c0_96, %c256_97], %276 {strides = array<i32>} : memref<1x512xf32, #tpu.memory_space<vmem>>, vector<1x256xf32>,
    %c0_98 = arith.constant 0 : index
    %c0_99 = arith.constant 0 : index
    %323 = vector.load %arg7[%c0_98, %c0_99] : memref<1x512xf32, #tpu.memory_space<vmem>>, vector<1x512xf32>
    %cst_100 = arith.constant dense<0.000000e+00> : vector<1x256xf32>
    %324 = tpu.matmul %323, %9, %cst_100 {dimension_numbers = #tpu.dot_dimension_numbers<[1], [0], [0], [1], [0, 0, 1, 1], [], []>} : vector<1x512xf32>, vector<512x256xf32>, vector<1x256xf32> -> vector<1x256xf32>
    %325 = arith.addf %324, %10 : vector<1x256xf32>
    %c1_i32_101 = arith.constant 1 : i32
    %326 = arith.subi %c1_i32_77, %c1_i32_101 : i32
    %327 = arith.index_cast %326 : i32 to index
    %c0_102 = arith.constant 0 : index
    %328 = vector.load %arg3[%327, %c0_102] : memref<7x256xf32, #tpu.memory_space<vmem>>, vector<1x256xf32>
    tpu.vector_store %arg3[%327, %c0_102], %325 {strides = array<i32>} : memref<7x256xf32, #tpu.memory_space<vmem>>, vector<1x256xf32>,
    %329 = arith.subf %325, %276 : vector<1x256xf32>
    %c2_i32_103 = arith.constant 2 : i32
    %cst_104 = arith.constant dense<0.000000e+00> : vector<1x32xf32>
    %330 = tpu.matmul %319, %4, %cst_104 {dimension_numbers = #tpu.dot_dimension_numbers<[1], [0], [0], [1], [0, 0, 1, 1], [], []>} : vector<1x32xf32>, vector<32x32xf32>, vector<1x32xf32> -> vector<1x32xf32>
    %331 = vector.broadcast %330 : vector<1x32xf32> to vector<12x32xf32>
    %332 = arith.addf %271, %331 : vector<12x32xf32>
    %333 = math.tanh %332 : vector<12x32xf32>
    %cst_105 = arith.constant dense<0.000000e+00> : vector<12x1xf32>
    %334 = tpu.matmul %333, %5, %cst_105 {dimension_numbers = #tpu.dot_dimension_numbers<[1], [0], [0], [1], [0, 0, 1, 1], [], []>} : vector<12x32xf32>, vector<32x1xf32>, vector<12x1xf32> -> vector<12x1xf32>
    %cst_106 = arith.constant dense<0xFF800000> : vector<1xf32>
    %335 = vector.multi_reduction <maximumf>, %334, %cst_106 [0] : vector<12x1xf32> to vector<1xf32>
    %336 = vector.shape_cast %335 : vector<1xf32> to vector<1x1xf32>
    %337 = vector.broadcast %336 : vector<1x1xf32> to vector<12x1xf32>
    %338 = arith.subf %334, %337 : vector<12x1xf32>
    %339 = math.exp %338 : vector<12x1xf32>
    %cst_107 = arith.constant dense<0.000000e+00> : vector<1xf32>
    %340 = vector.multi_reduction <add>, %339, %cst_107 [0] : vector<12x1xf32> to vector<1xf32>
    %341 = vector.shape_cast %340 : vector<1xf32> to vector<1x1xf32>
    %342 = tpu.reciprocal %341 {approx = true} : vector<1x1xf32> -> vector<1x1xf32>
    %343 = vector.broadcast %342 : vector<1x1xf32> to vector<12x1xf32>
    %344 = arith.mulf %339, %343 : vector<12x1xf32>
    %345 = vector.broadcast %344 : vector<12x1xf32> to vector<12x32xf32>
    %346 = arith.mulf %345, %270 : vector<12x32xf32>
    %cst_108 = arith.constant dense<0.000000e+00> : vector<32xf32>
    %347 = vector.multi_reduction <add>, %346, %cst_108 [0] : vector<12x32xf32> to vector<32xf32>
    %348 = vector.shape_cast %347 : vector<32xf32> to vector<1x32xf32>
    %c0_109 = arith.constant 0 : index
    %c0_110 = arith.constant 0 : index
    %349 = vector.load %arg6[%c0_109, %c0_110] : memref<1x640xf32, #tpu.memory_space<vmem>>, vector<1x256xf32>
    tpu.vector_store %arg6[%c0_109, %c0_110], %325 {strides = array<i32>} : memref<1x640xf32, #tpu.memory_space<vmem>>, vector<1x256xf32>,
    %c0_111 = arith.constant 0 : index
    %c256_112 = arith.constant 256 : index
    %350 = vector.load %arg6[%c0_111, %c256_112] : memref<1x640xf32, #tpu.memory_space<vmem>>, vector<1x256xf32>
    tpu.vector_store %arg6[%c0_111, %c256_112], %329 {strides = array<i32>} : memref<1x640xf32, #tpu.memory_space<vmem>>, vector<1x256xf32>,
    %c0_113 = arith.constant 0 : index
    %c512_114 = arith.constant 512 : index
    %351 = vector.load %arg6[%c0_113, %c512_114] : memref<1x640xf32, #tpu.memory_space<vmem>>, vector<1x32xf32>
    tpu.vector_store %arg6[%c0_113, %c512_114], %348 {strides = array<i32>} : memref<1x640xf32, #tpu.memory_space<vmem>>, vector<1x32xf32>,
    %c0_115 = arith.constant 0 : index
    %c0_116 = arith.constant 0 : index
    %352 = vector.load %arg6[%c0_115, %c0_116] : memref<1x640xf32, #tpu.memory_space<vmem>>, vector<1x640xf32>
    %cst_117 = arith.constant dense<0.000000e+00> : vector<1x128xf32>
    %353 = tpu.matmul %352, %6, %cst_117 {dimension_numbers = #tpu.dot_dimension_numbers<[1], [0], [0], [1], [0, 0, 1, 1], [], []>} : vector<1x640xf32>, vector<640x128xf32>, vector<1x128xf32> -> vector<1x128xf32>
    %354 = arith.addf %353, %8 : vector<1x128xf32>
    %cst_118 = arith.constant dense<0.000000e+00> : vector<1x128xf32>
    %355 = tpu.matmul %319, %7, %cst_118 {dimension_numbers = #tpu.dot_dimension_numbers<[1], [0], [0], [1], [0, 0, 1, 1], [], []>} : vector<1x32xf32>, vector<32x128xf32>, vector<1x128xf32> -> vector<1x128xf32>
    %356 = arith.addf %354, %355 : vector<1x128xf32>
    %357 = arith.negf %356 : vector<1x128xf32>
    %358 = math.exp %357 : vector<1x128xf32>
    %cst_119 = arith.constant 1.000000e+00 : f32
    %359 = vector.broadcast %cst_119 : f32 to vector<1x128xf32>
    %360 = arith.addf %359, %358 : vector<1x128xf32>
    %361 = arith.divf %359, %360 : vector<1x128xf32>
    %362 = vector.extract_strided_slice %361 {offsets = [0, 0], sizes = [1, 32], strides = [1, 1]} : vector<1x128xf32> to vector<1x32xf32>
    %363 = vector.extract_strided_slice %361 {offsets = [0, 32], sizes = [1, 32], strides = [1, 1]} : vector<1x128xf32> to vector<1x32xf32>
    %364 = vector.extract_strided_slice %361 {offsets = [0, 96], sizes = [1, 32], strides = [1, 1]} : vector<1x128xf32> to vector<1x32xf32>
    %365 = vector.extract_strided_slice %356 {offsets = [0, 64], sizes = [1, 32], strides = [1, 1]} : vector<1x128xf32> to vector<1x32xf32>
    %366 = math.tanh %365 : vector<1x32xf32>
    %367 = arith.mulf %363, %317 : vector<1x32xf32>
    %368 = arith.mulf %362, %366 : vector<1x32xf32>
    %369 = arith.addf %367, %368 : vector<1x32xf32>
    %370 = math.tanh %369 : vector<1x32xf32>
    %371 = arith.mulf %364, %370 : vector<1x32xf32>
    %c0_120 = arith.constant 0 : index
    %c0_121 = arith.constant 0 : index
    %372 = vector.load %arg7[%c0_120, %c0_121] : memref<1x512xf32, #tpu.memory_space<vmem>>, vector<1x32xf32>
    tpu.vector_store %arg7[%c0_120, %c0_121], %371 {strides = array<i32>} : memref<1x512xf32, #tpu.memory_space<vmem>>, vector<1x32xf32>,
    %c0_122 = arith.constant 0 : index
    %c128_123 = arith.constant 128 : index
    %373 = vector.load %arg7[%c0_122, %c128_123] : memref<1x512xf32, #tpu.memory_space<vmem>>, vector<1x32xf32>
    tpu.vector_store %arg7[%c0_122, %c128_123], %348 {strides = array<i32>} : memref<1x512xf32, #tpu.memory_space<vmem>>, vector<1x32xf32>,
    %c0_124 = arith.constant 0 : index
    %c256_125 = arith.constant 256 : index
    %374 = vector.load %arg7[%c0_124, %c256_125] : memref<1x512xf32, #tpu.memory_space<vmem>>, vector<1x256xf32>
    tpu.vector_store %arg7[%c0_124, %c256_125], %325 {strides = array<i32>} : memref<1x512xf32, #tpu.memory_space<vmem>>, vector<1x256xf32>,
    %c0_126 = arith.constant 0 : index
    %c0_127 = arith.constant 0 : index
    %375 = vector.load %arg7[%c0_126, %c0_127] : memref<1x512xf32, #tpu.memory_space<vmem>>, vector<1x512xf32>
    %cst_128 = arith.constant dense<0.000000e+00> : vector<1x256xf32>
    %376 = tpu.matmul %375, %9, %cst_128 {dimension_numbers = #tpu.dot_dimension_numbers<[1], [0], [0], [1], [0, 0, 1, 1], [], []>} : vector<1x512xf32>, vector<512x256xf32>, vector<1x256xf32> -> vector<1x256xf32>
    %377 = arith.addf %376, %10 : vector<1x256xf32>
    %c1_i32_129 = arith.constant 1 : i32
    %378 = arith.subi %c2_i32_103, %c1_i32_129 : i32
    %379 = arith.index_cast %378 : i32 to index
    %c0_130 = arith.constant 0 : index
    %380 = vector.load %arg3[%379, %c0_130] : memref<7x256xf32, #tpu.memory_space<vmem>>, vector<1x256xf32>
    tpu.vector_store %arg3[%379, %c0_130], %377 {strides = array<i32>} : memref<7x256xf32, #tpu.memory_space<vmem>>, vector<1x256xf32>,
    %381 = arith.subf %377, %325 : vector<1x256xf32>
    %c3_i32_131 = arith.constant 3 : i32
    %cst_132 = arith.constant dense<0.000000e+00> : vector<1x32xf32>
    %382 = tpu.matmul %371, %4, %cst_132 {dimension_numbers = #tpu.dot_dimension_numbers<[1], [0], [0], [1], [0, 0, 1, 1], [], []>} : vector<1x32xf32>, vector<32x32xf32>, vector<1x32xf32> -> vector<1x32xf32>
    %383 = vector.broadcast %382 : vector<1x32xf32> to vector<12x32xf32>
    %384 = arith.addf %271, %383 : vector<12x32xf32>
    %385 = math.tanh %384 : vector<12x32xf32>
    %cst_133 = arith.constant dense<0.000000e+00> : vector<12x1xf32>
    %386 = tpu.matmul %385, %5, %cst_133 {dimension_numbers = #tpu.dot_dimension_numbers<[1], [0], [0], [1], [0, 0, 1, 1], [], []>} : vector<12x32xf32>, vector<32x1xf32>, vector<12x1xf32> -> vector<12x1xf32>
    %cst_134 = arith.constant dense<0xFF800000> : vector<1xf32>
    %387 = vector.multi_reduction <maximumf>, %386, %cst_134 [0] : vector<12x1xf32> to vector<1xf32>
    %388 = vector.shape_cast %387 : vector<1xf32> to vector<1x1xf32>
    %389 = vector.broadcast %388 : vector<1x1xf32> to vector<12x1xf32>
    %390 = arith.subf %386, %389 : vector<12x1xf32>
    %391 = math.exp %390 : vector<12x1xf32>
    %cst_135 = arith.constant dense<0.000000e+00> : vector<1xf32>
    %392 = vector.multi_reduction <add>, %391, %cst_135 [0] : vector<12x1xf32> to vector<1xf32>
    %393 = vector.shape_cast %392 : vector<1xf32> to vector<1x1xf32>
    %394 = tpu.reciprocal %393 {approx = true} : vector<1x1xf32> -> vector<1x1xf32>
    %395 = vector.broadcast %394 : vector<1x1xf32> to vector<12x1xf32>
    %396 = arith.mulf %391, %395 : vector<12x1xf32>
    %397 = vector.broadcast %396 : vector<12x1xf32> to vector<12x32xf32>
    %398 = arith.mulf %397, %270 : vector<12x32xf32>
    %cst_136 = arith.constant dense<0.000000e+00> : vector<32xf32>
    %399 = vector.multi_reduction <add>, %398, %cst_136 [0] : vector<12x32xf32> to vector<32xf32>
    %400 = vector.shape_cast %399 : vector<32xf32> to vector<1x32xf32>
    %c0_137 = arith.constant 0 : index
    %c0_138 = arith.constant 0 : index
    %401 = vector.load %arg6[%c0_137, %c0_138] : memref<1x640xf32, #tpu.memory_space<vmem>>, vector<1x256xf32>
    tpu.vector_store %arg6[%c0_137, %c0_138], %377 {strides = array<i32>} : memref<1x640xf32, #tpu.memory_space<vmem>>, vector<1x256xf32>,
    %c0_139 = arith.constant 0 : index
    %c256_140 = arith.constant 256 : index
    %402 = vector.load %arg6[%c0_139, %c256_140] : memref<1x640xf32, #tpu.memory_space<vmem>>, vector<1x256xf32>
    tpu.vector_store %arg6[%c0_139, %c256_140], %381 {strides = array<i32>} : memref<1x640xf32, #tpu.memory_space<vmem>>, vector<1x256xf32>,
    %c0_141 = arith.constant 0 : index
    %c512_142 = arith.constant 512 : index
    %403 = vector.load %arg6[%c0_141, %c512_142] : memref<1x640xf32, #tpu.memory_space<vmem>>, vector<1x32xf32>
    tpu.vector_store %arg6[%c0_141, %c512_142], %400 {strides = array<i32>} : memref<1x640xf32, #tpu.memory_space<vmem>>, vector<1x32xf32>,
    %c0_143 = arith.constant 0 : index
    %c0_144 = arith.constant 0 : index
    %404 = vector.load %arg6[%c0_143, %c0_144] : memref<1x640xf32, #tpu.memory_space<vmem>>, vector<1x640xf32>
    %cst_145 = arith.constant dense<0.000000e+00> : vector<1x128xf32>
    %405 = tpu.matmul %404, %6, %cst_145 {dimension_numbers = #tpu.dot_dimension_numbers<[1], [0], [0], [1], [0, 0, 1, 1], [], []>} : vector<1x640xf32>, vector<640x128xf32>, vector<1x128xf32> -> vector<1x128xf32>
    %406 = arith.addf %405, %8 : vector<1x128xf32>
    %cst_146 = arith.constant dense<0.000000e+00> : vector<1x128xf32>
    %407 = tpu.matmul %371, %7, %cst_146 {dimension_numbers = #tpu.dot_dimension_numbers<[1], [0], [0], [1], [0, 0, 1, 1], [], []>} : vector<1x32xf32>, vector<32x128xf32>, vector<1x128xf32> -> vector<1x128xf32>
    %408 = arith.addf %406, %407 : vector<1x128xf32>
    %409 = arith.negf %408 : vector<1x128xf32>
    %410 = math.exp %409 : vector<1x128xf32>
    %cst_147 = arith.constant 1.000000e+00 : f32
    %411 = vector.broadcast %cst_147 : f32 to vector<1x128xf32>
    %412 = arith.addf %411, %410 : vector<1x128xf32>
    %413 = arith.divf %411, %412 : vector<1x128xf32>
    %414 = vector.extract_strided_slice %413 {offsets = [0, 0], sizes = [1, 32], strides = [1, 1]} : vector<1x128xf32> to vector<1x32xf32>
    %415 = vector.extract_strided_slice %413 {offsets = [0, 32], sizes = [1, 32], strides = [1, 1]} : vector<1x128xf32> to vector<1x32xf32>
    %416 = vector.extract_strided_slice %413 {offsets = [0, 96], sizes = [1, 32], strides = [1, 1]} : vector<1x128xf32> to vector<1x32xf32>
    %417 = vector.extract_strided_slice %408 {offsets = [0, 64], sizes = [1, 32], strides = [1, 1]} : vector<1x128xf32> to vector<1x32xf32>
    %418 = math.tanh %417 : vector<1x32xf32>
    %419 = arith.mulf %415, %369 : vector<1x32xf32>
    %420 = arith.mulf %414, %418 : vector<1x32xf32>
    %421 = arith.addf %419, %420 : vector<1x32xf32>
    %422 = math.tanh %421 : vector<1x32xf32>
    %423 = arith.mulf %416, %422 : vector<1x32xf32>
    %c0_148 = arith.constant 0 : index
    %c0_149 = arith.constant 0 : index
    %424 = vector.load %arg7[%c0_148, %c0_149] : memref<1x512xf32, #tpu.memory_space<vmem>>, vector<1x32xf32>
    tpu.vector_store %arg7[%c0_148, %c0_149], %423 {strides = array<i32>} : memref<1x512xf32, #tpu.memory_space<vmem>>, vector<1x32xf32>,
    %c0_150 = arith.constant 0 : index
    %c128_151 = arith.constant 128 : index
    %425 = vector.load %arg7[%c0_150, %c128_151] : memref<1x512xf32, #tpu.memory_space<vmem>>, vector<1x32xf32>
    tpu.vector_store %arg7[%c0_150, %c128_151], %400 {strides = array<i32>} : memref<1x512xf32, #tpu.memory_space<vmem>>, vector<1x32xf32>,
    %c0_152 = arith.constant 0 : index
    %c256_153 = arith.constant 256 : index
    %426 = vector.load %arg7[%c0_152, %c256_153] : memref<1x512xf32, #tpu.memory_space<vmem>>, vector<1x256xf32>
    tpu.vector_store %arg7[%c0_152, %c256_153], %377 {strides = array<i32>} : memref<1x512xf32, #tpu.memory_space<vmem>>, vector<1x256xf32>,
    %c0_154 = arith.constant 0 : index
    %c0_155 = arith.constant 0 : index
    %427 = vector.load %arg7[%c0_154, %c0_155] : memref<1x512xf32, #tpu.memory_space<vmem>>, vector<1x512xf32>
    %cst_156 = arith.constant dense<0.000000e+00> : vector<1x256xf32>
    %428 = tpu.matmul %427, %9, %cst_156 {dimension_numbers = #tpu.dot_dimension_numbers<[1], [0], [0], [1], [0, 0, 1, 1], [], []>} : vector<1x512xf32>, vector<512x256xf32>, vector<1x256xf32> -> vector<1x256xf32>
    %429 = arith.addf %428, %10 : vector<1x256xf32>
    %c1_i32_157 = arith.constant 1 : i32
    %430 = arith.subi %c3_i32_131, %c1_i32_157 : i32
    %431 = arith.index_cast %430 : i32 to index
    %c0_158 = arith.constant 0 : index
    %432 = vector.load %arg3[%431, %c0_158] : memref<7x256xf32, #tpu.memory_space<vmem>>, vector<1x256xf32>
    tpu.vector_store %arg3[%431, %c0_158], %429 {strides = array<i32>} : memref<7x256xf32, #tpu.memory_space<vmem>>, vector<1x256xf32>,
    %433 = arith.subf %429, %377 : vector<1x256xf32>
    %c4_i32_159 = arith.constant 4 : i32
    %cst_160 = arith.constant dense<0.000000e+00> : vector<1x32xf32>
    %434 = tpu.matmul %423, %4, %cst_160 {dimension_numbers = #tpu.dot_dimension_numbers<[1], [0], [0], [1], [0, 0, 1, 1], [], []>} : vector<1x32xf32>, vector<32x32xf32>, vector<1x32xf32> -> vector<1x32xf32>
    %435 = vector.broadcast %434 : vector<1x32xf32> to vector<12x32xf32>
    %436 = arith.addf %271, %435 : vector<12x32xf32>
    %437 = math.tanh %436 : vector<12x32xf32>
    %cst_161 = arith.constant dense<0.000000e+00> : vector<12x1xf32>
    %438 = tpu.matmul %437, %5, %cst_161 {dimension_numbers = #tpu.dot_dimension_numbers<[1], [0], [0], [1], [0, 0, 1, 1], [], []>} : vector<12x32xf32>, vector<32x1xf32>, vector<12x1xf32> -> vector<12x1xf32>
    %cst_162 = arith.constant dense<0xFF800000> : vector<1xf32>
    %439 = vector.multi_reduction <maximumf>, %438, %cst_162 [0] : vector<12x1xf32> to vector<1xf32>
    %440 = vector.shape_cast %439 : vector<1xf32> to vector<1x1xf32>
    %441 = vector.broadcast %440 : vector<1x1xf32> to vector<12x1xf32>
    %442 = arith.subf %438, %441 : vector<12x1xf32>
    %443 = math.exp %442 : vector<12x1xf32>
    %cst_163 = arith.constant dense<0.000000e+00> : vector<1xf32>
    %444 = vector.multi_reduction <add>, %443, %cst_163 [0] : vector<12x1xf32> to vector<1xf32>
    %445 = vector.shape_cast %444 : vector<1xf32> to vector<1x1xf32>
    %446 = tpu.reciprocal %445 {approx = true} : vector<1x1xf32> -> vector<1x1xf32>
    %447 = vector.broadcast %446 : vector<1x1xf32> to vector<12x1xf32>
    %448 = arith.mulf %443, %447 : vector<12x1xf32>
    %449 = vector.broadcast %448 : vector<12x1xf32> to vector<12x32xf32>
    %450 = arith.mulf %449, %270 : vector<12x32xf32>
    %cst_164 = arith.constant dense<0.000000e+00> : vector<32xf32>
    %451 = vector.multi_reduction <add>, %450, %cst_164 [0] : vector<12x32xf32> to vector<32xf32>
    %452 = vector.shape_cast %451 : vector<32xf32> to vector<1x32xf32>
    %c0_165 = arith.constant 0 : index
    %c0_166 = arith.constant 0 : index
    %453 = vector.load %arg6[%c0_165, %c0_166] : memref<1x640xf32, #tpu.memory_space<vmem>>, vector<1x256xf32>
    tpu.vector_store %arg6[%c0_165, %c0_166], %429 {strides = array<i32>} : memref<1x640xf32, #tpu.memory_space<vmem>>, vector<1x256xf32>,
    %c0_167 = arith.constant 0 : index
    %c256_168 = arith.constant 256 : index
    %454 = vector.load %arg6[%c0_167, %c256_168] : memref<1x640xf32, #tpu.memory_space<vmem>>, vector<1x256xf32>
    tpu.vector_store %arg6[%c0_167, %c256_168], %433 {strides = array<i32>} : memref<1x640xf32, #tpu.memory_space<vmem>>, vector<1x256xf32>,
    %c0_169 = arith.constant 0 : index
    %c512_170 = arith.constant 512 : index
    %455 = vector.load %arg6[%c0_169, %c512_170] : memref<1x640xf32, #tpu.memory_space<vmem>>, vector<1x32xf32>
    tpu.vector_store %arg6[%c0_169, %c512_170], %452 {strides = array<i32>} : memref<1x640xf32, #tpu.memory_space<vmem>>, vector<1x32xf32>,
    %c0_171 = arith.constant 0 : index
    %c0_172 = arith.constant 0 : index
    %456 = vector.load %arg6[%c0_171, %c0_172] : memref<1x640xf32, #tpu.memory_space<vmem>>, vector<1x640xf32>
    %cst_173 = arith.constant dense<0.000000e+00> : vector<1x128xf32>
    %457 = tpu.matmul %456, %6, %cst_173 {dimension_numbers = #tpu.dot_dimension_numbers<[1], [0], [0], [1], [0, 0, 1, 1], [], []>} : vector<1x640xf32>, vector<640x128xf32>, vector<1x128xf32> -> vector<1x128xf32>
    %458 = arith.addf %457, %8 : vector<1x128xf32>
    %cst_174 = arith.constant dense<0.000000e+00> : vector<1x128xf32>
    %459 = tpu.matmul %423, %7, %cst_174 {dimension_numbers = #tpu.dot_dimension_numbers<[1], [0], [0], [1], [0, 0, 1, 1], [], []>} : vector<1x32xf32>, vector<32x128xf32>, vector<1x128xf32> -> vector<1x128xf32>
    %460 = arith.addf %458, %459 : vector<1x128xf32>
    %461 = arith.negf %460 : vector<1x128xf32>
    %462 = math.exp %461 : vector<1x128xf32>
    %cst_175 = arith.constant 1.000000e+00 : f32
    %463 = vector.broadcast %cst_175 : f32 to vector<1x128xf32>
    %464 = arith.addf %463, %462 : vector<1x128xf32>
    %465 = arith.divf %463, %464 : vector<1x128xf32>
    %466 = vector.extract_strided_slice %465 {offsets = [0, 0], sizes = [1, 32], strides = [1, 1]} : vector<1x128xf32> to vector<1x32xf32>
    %467 = vector.extract_strided_slice %465 {offsets = [0, 32], sizes = [1, 32], strides = [1, 1]} : vector<1x128xf32> to vector<1x32xf32>
    %468 = vector.extract_strided_slice %465 {offsets = [0, 96], sizes = [1, 32], strides = [1, 1]} : vector<1x128xf32> to vector<1x32xf32>
    %469 = vector.extract_strided_slice %460 {offsets = [0, 64], sizes = [1, 32], strides = [1, 1]} : vector<1x128xf32> to vector<1x32xf32>
    %470 = math.tanh %469 : vector<1x32xf32>
    %471 = arith.mulf %467, %421 : vector<1x32xf32>
    %472 = arith.mulf %466, %470 : vector<1x32xf32>
    %473 = arith.addf %471, %472 : vector<1x32xf32>
    %474 = math.tanh %473 : vector<1x32xf32>
    %475 = arith.mulf %468, %474 : vector<1x32xf32>
    %c0_176 = arith.constant 0 : index
    %c0_177 = arith.constant 0 : index
    %476 = vector.load %arg7[%c0_176, %c0_177] : memref<1x512xf32, #tpu.memory_space<vmem>>, vector<1x32xf32>
    tpu.vector_store %arg7[%c0_176, %c0_177], %475 {strides = array<i32>} : memref<1x512xf32, #tpu.memory_space<vmem>>, vector<1x32xf32>,
    %c0_178 = arith.constant 0 : index
    %c128_179 = arith.constant 128 : index
    %477 = vector.load %arg7[%c0_178, %c128_179] : memref<1x512xf32, #tpu.memory_space<vmem>>, vector<1x32xf32>
    tpu.vector_store %arg7[%c0_178, %c128_179], %452 {strides = array<i32>} : memref<1x512xf32, #tpu.memory_space<vmem>>, vector<1x32xf32>,
    %c0_180 = arith.constant 0 : index
    %c256_181 = arith.constant 256 : index
    %478 = vector.load %arg7[%c0_180, %c256_181] : memref<1x512xf32, #tpu.memory_space<vmem>>, vector<1x256xf32>
    tpu.vector_store %arg7[%c0_180, %c256_181], %429 {strides = array<i32>} : memref<1x512xf32, #tpu.memory_space<vmem>>, vector<1x256xf32>,
    %c0_182 = arith.constant 0 : index
    %c0_183 = arith.constant 0 : index
    %479 = vector.load %arg7[%c0_182, %c0_183] : memref<1x512xf32, #tpu.memory_space<vmem>>, vector<1x512xf32>
    %cst_184 = arith.constant dense<0.000000e+00> : vector<1x256xf32>
    %480 = tpu.matmul %479, %9, %cst_184 {dimension_numbers = #tpu.dot_dimension_numbers<[1], [0], [0], [1], [0, 0, 1, 1], [], []>} : vector<1x512xf32>, vector<512x256xf32>, vector<1x256xf32> -> vector<1x256xf32>
    %481 = arith.addf %480, %10 : vector<1x256xf32>
    %c1_i32_185 = arith.constant 1 : i32
    %482 = arith.subi %c4_i32_159, %c1_i32_185 : i32
    %483 = arith.index_cast %482 : i32 to index
    %c0_186 = arith.constant 0 : index
    %484 = vector.load %arg3[%483, %c0_186] : memref<7x256xf32, #tpu.memory_space<vmem>>, vector<1x256xf32>
    tpu.vector_store %arg3[%483, %c0_186], %481 {strides = array<i32>} : memref<7x256xf32, #tpu.memory_space<vmem>>, vector<1x256xf32>,
    %485 = arith.subf %481, %429 : vector<1x256xf32>
    %c5_i32_187 = arith.constant 5 : i32
    %cst_188 = arith.constant dense<0.000000e+00> : vector<1x32xf32>
    %486 = tpu.matmul %475, %4, %cst_188 {dimension_numbers = #tpu.dot_dimension_numbers<[1], [0], [0], [1], [0, 0, 1, 1], [], []>} : vector<1x32xf32>, vector<32x32xf32>, vector<1x32xf32> -> vector<1x32xf32>
    %487 = vector.broadcast %486 : vector<1x32xf32> to vector<12x32xf32>
    %488 = arith.addf %271, %487 : vector<12x32xf32>
    %489 = math.tanh %488 : vector<12x32xf32>
    %cst_189 = arith.constant dense<0.000000e+00> : vector<12x1xf32>
    %490 = tpu.matmul %489, %5, %cst_189 {dimension_numbers = #tpu.dot_dimension_numbers<[1], [0], [0], [1], [0, 0, 1, 1], [], []>} : vector<12x32xf32>, vector<32x1xf32>, vector<12x1xf32> -> vector<12x1xf32>
    %cst_190 = arith.constant dense<0xFF800000> : vector<1xf32>
    %491 = vector.multi_reduction <maximumf>, %490, %cst_190 [0] : vector<12x1xf32> to vector<1xf32>
    %492 = vector.shape_cast %491 : vector<1xf32> to vector<1x1xf32>
    %493 = vector.broadcast %492 : vector<1x1xf32> to vector<12x1xf32>
    %494 = arith.subf %490, %493 : vector<12x1xf32>
    %495 = math.exp %494 : vector<12x1xf32>
    %cst_191 = arith.constant dense<0.000000e+00> : vector<1xf32>
    %496 = vector.multi_reduction <add>, %495, %cst_191 [0] : vector<12x1xf32> to vector<1xf32>
    %497 = vector.shape_cast %496 : vector<1xf32> to vector<1x1xf32>
    %498 = tpu.reciprocal %497 {approx = true} : vector<1x1xf32> -> vector<1x1xf32>
    %499 = vector.broadcast %498 : vector<1x1xf32> to vector<12x1xf32>
    %500 = arith.mulf %495, %499 : vector<12x1xf32>
    %501 = vector.broadcast %500 : vector<12x1xf32> to vector<12x32xf32>
    %502 = arith.mulf %501, %270 : vector<12x32xf32>
    %cst_192 = arith.constant dense<0.000000e+00> : vector<32xf32>
    %503 = vector.multi_reduction <add>, %502, %cst_192 [0] : vector<12x32xf32> to vector<32xf32>
    %504 = vector.shape_cast %503 : vector<32xf32> to vector<1x32xf32>
    %c0_193 = arith.constant 0 : index
    %c0_194 = arith.constant 0 : index
    %505 = vector.load %arg6[%c0_193, %c0_194] : memref<1x640xf32, #tpu.memory_space<vmem>>, vector<1x256xf32>
    tpu.vector_store %arg6[%c0_193, %c0_194], %481 {strides = array<i32>} : memref<1x640xf32, #tpu.memory_space<vmem>>, vector<1x256xf32>,
    %c0_195 = arith.constant 0 : index
    %c256_196 = arith.constant 256 : index
    %506 = vector.load %arg6[%c0_195, %c256_196] : memref<1x640xf32, #tpu.memory_space<vmem>>, vector<1x256xf32>
    tpu.vector_store %arg6[%c0_195, %c256_196], %485 {strides = array<i32>} : memref<1x640xf32, #tpu.memory_space<vmem>>, vector<1x256xf32>,
    %c0_197 = arith.constant 0 : index
    %c512_198 = arith.constant 512 : index
    %507 = vector.load %arg6[%c0_197, %c512_198] : memref<1x640xf32, #tpu.memory_space<vmem>>, vector<1x32xf32>
    tpu.vector_store %arg6[%c0_197, %c512_198], %504 {strides = array<i32>} : memref<1x640xf32, #tpu.memory_space<vmem>>, vector<1x32xf32>,
    %c0_199 = arith.constant 0 : index
    %c0_200 = arith.constant 0 : index
    %508 = vector.load %arg6[%c0_199, %c0_200] : memref<1x640xf32, #tpu.memory_space<vmem>>, vector<1x640xf32>
    %cst_201 = arith.constant dense<0.000000e+00> : vector<1x128xf32>
    %509 = tpu.matmul %508, %6, %cst_201 {dimension_numbers = #tpu.dot_dimension_numbers<[1], [0], [0], [1], [0, 0, 1, 1], [], []>} : vector<1x640xf32>, vector<640x128xf32>, vector<1x128xf32> -> vector<1x128xf32>
    %510 = arith.addf %509, %8 : vector<1x128xf32>
    %cst_202 = arith.constant dense<0.000000e+00> : vector<1x128xf32>
    %511 = tpu.matmul %475, %7, %cst_202 {dimension_numbers = #tpu.dot_dimension_numbers<[1], [0], [0], [1], [0, 0, 1, 1], [], []>} : vector<1x32xf32>, vector<32x128xf32>, vector<1x128xf32> -> vector<1x128xf32>
    %512 = arith.addf %510, %511 : vector<1x128xf32>
    %513 = arith.negf %512 : vector<1x128xf32>
    %514 = math.exp %513 : vector<1x128xf32>
    %cst_203 = arith.constant 1.000000e+00 : f32
    %515 = vector.broadcast %cst_203 : f32 to vector<1x128xf32>
    %516 = arith.addf %515, %514 : vector<1x128xf32>
    %517 = arith.divf %515, %516 : vector<1x128xf32>
    %518 = vector.extract_strided_slice %517 {offsets = [0, 0], sizes = [1, 32], strides = [1, 1]} : vector<1x128xf32> to vector<1x32xf32>
    %519 = vector.extract_strided_slice %517 {offsets = [0, 32], sizes = [1, 32], strides = [1, 1]} : vector<1x128xf32> to vector<1x32xf32>
    %520 = vector.extract_strided_slice %517 {offsets = [0, 96], sizes = [1, 32], strides = [1, 1]} : vector<1x128xf32> to vector<1x32xf32>
    %521 = vector.extract_strided_slice %512 {offsets = [0, 64], sizes = [1, 32], strides = [1, 1]} : vector<1x128xf32> to vector<1x32xf32>
    %522 = math.tanh %521 : vector<1x32xf32>
    %523 = arith.mulf %519, %473 : vector<1x32xf32>
    %524 = arith.mulf %518, %522 : vector<1x32xf32>
    %525 = arith.addf %523, %524 : vector<1x32xf32>
    %526 = math.tanh %525 : vector<1x32xf32>
    %527 = arith.mulf %520, %526 : vector<1x32xf32>
    %c0_204 = arith.constant 0 : index
    %c0_205 = arith.constant 0 : index
    %528 = vector.load %arg7[%c0_204, %c0_205] : memref<1x512xf32, #tpu.memory_space<vmem>>, vector<1x32xf32>
    tpu.vector_store %arg7[%c0_204, %c0_205], %527 {strides = array<i32>} : memref<1x512xf32, #tpu.memory_space<vmem>>, vector<1x32xf32>,
    %c0_206 = arith.constant 0 : index
    %c128_207 = arith.constant 128 : index
    %529 = vector.load %arg7[%c0_206, %c128_207] : memref<1x512xf32, #tpu.memory_space<vmem>>, vector<1x32xf32>
    tpu.vector_store %arg7[%c0_206, %c128_207], %504 {strides = array<i32>} : memref<1x512xf32, #tpu.memory_space<vmem>>, vector<1x32xf32>,
    %c0_208 = arith.constant 0 : index
    %c256_209 = arith.constant 256 : index
    %530 = vector.load %arg7[%c0_208, %c256_209] : memref<1x512xf32, #tpu.memory_space<vmem>>, vector<1x256xf32>
    tpu.vector_store %arg7[%c0_208, %c256_209], %481 {strides = array<i32>} : memref<1x512xf32, #tpu.memory_space<vmem>>, vector<1x256xf32>,
    %c0_210 = arith.constant 0 : index
    %c0_211 = arith.constant 0 : index
    %531 = vector.load %arg7[%c0_210, %c0_211] : memref<1x512xf32, #tpu.memory_space<vmem>>, vector<1x512xf32>
    %cst_212 = arith.constant dense<0.000000e+00> : vector<1x256xf32>
    %532 = tpu.matmul %531, %9, %cst_212 {dimension_numbers = #tpu.dot_dimension_numbers<[1], [0], [0], [1], [0, 0, 1, 1], [], []>} : vector<1x512xf32>, vector<512x256xf32>, vector<1x256xf32> -> vector<1x256xf32>
    %533 = arith.addf %532, %10 : vector<1x256xf32>
    %c1_i32_213 = arith.constant 1 : i32
    %534 = arith.subi %c5_i32_187, %c1_i32_213 : i32
    %535 = arith.index_cast %534 : i32 to index
    %c0_214 = arith.constant 0 : index
    %536 = vector.load %arg3[%535, %c0_214] : memref<7x256xf32, #tpu.memory_space<vmem>>, vector<1x256xf32>
    tpu.vector_store %arg3[%535, %c0_214], %533 {strides = array<i32>} : memref<7x256xf32, #tpu.memory_space<vmem>>, vector<1x256xf32>,
    %537 = arith.subf %533, %481 : vector<1x256xf32>
    %c6_i32_215 = arith.constant 6 : i32
    %cst_216 = arith.constant dense<0.000000e+00> : vector<1x32xf32>
    %538 = tpu.matmul %527, %4, %cst_216 {dimension_numbers = #tpu.dot_dimension_numbers<[1], [0], [0], [1], [0, 0, 1, 1], [], []>} : vector<1x32xf32>, vector<32x32xf32>, vector<1x32xf32> -> vector<1x32xf32>
    %539 = vector.broadcast %538 : vector<1x32xf32> to vector<12x32xf32>
    %540 = arith.addf %271, %539 : vector<12x32xf32>
    %541 = math.tanh %540 : vector<12x32xf32>
    %cst_217 = arith.constant dense<0.000000e+00> : vector<12x1xf32>
    %542 = tpu.matmul %541, %5, %cst_217 {dimension_numbers = #tpu.dot_dimension_numbers<[1], [0], [0], [1], [0, 0, 1, 1], [], []>} : vector<12x32xf32>, vector<32x1xf32>, vector<12x1xf32> -> vector<12x1xf32>
    %cst_218 = arith.constant dense<0xFF800000> : vector<1xf32>
    %543 = vector.multi_reduction <maximumf>, %542, %cst_218 [0] : vector<12x1xf32> to vector<1xf32>
    %544 = vector.shape_cast %543 : vector<1xf32> to vector<1x1xf32>
    %545 = vector.broadcast %544 : vector<1x1xf32> to vector<12x1xf32>
    %546 = arith.subf %542, %545 : vector<12x1xf32>
    %547 = math.exp %546 : vector<12x1xf32>
    %cst_219 = arith.constant dense<0.000000e+00> : vector<1xf32>
    %548 = vector.multi_reduction <add>, %547, %cst_219 [0] : vector<12x1xf32> to vector<1xf32>
    %549 = vector.shape_cast %548 : vector<1xf32> to vector<1x1xf32>
    %550 = tpu.reciprocal %549 {approx = true} : vector<1x1xf32> -> vector<1x1xf32>
    %551 = vector.broadcast %550 : vector<1x1xf32> to vector<12x1xf32>
    %552 = arith.mulf %547, %551 : vector<12x1xf32>
    %553 = vector.broadcast %552 : vector<12x1xf32> to vector<12x32xf32>
    %554 = arith.mulf %553, %270 : vector<12x32xf32>
    %cst_220 = arith.constant dense<0.000000e+00> : vector<32xf32>
    %555 = vector.multi_reduction <add>, %554, %cst_220 [0] : vector<12x32xf32> to vector<32xf32>
    %556 = vector.shape_cast %555 : vector<32xf32> to vector<1x32xf32>
    %c0_221 = arith.constant 0 : index
    %c0_222 = arith.constant 0 : index
    %557 = vector.load %arg6[%c0_221, %c0_222] : memref<1x640xf32, #tpu.memory_space<vmem>>, vector<1x256xf32>
    tpu.vector_store %arg6[%c0_221, %c0_222], %533 {strides = array<i32>} : memref<1x640xf32, #tpu.memory_space<vmem>>, vector<1x256xf32>,
    %c0_223 = arith.constant 0 : index
    %c256_224 = arith.constant 256 : index
    %558 = vector.load %arg6[%c0_223, %c256_224] : memref<1x640xf32, #tpu.memory_space<vmem>>, vector<1x256xf32>
    tpu.vector_store %arg6[%c0_223, %c256_224], %537 {strides = array<i32>} : memref<1x640xf32, #tpu.memory_space<vmem>>, vector<1x256xf32>,
    %c0_225 = arith.constant 0 : index
    %c512_226 = arith.constant 512 : index
    %559 = vector.load %arg6[%c0_225, %c512_226] : memref<1x640xf32, #tpu.memory_space<vmem>>, vector<1x32xf32>
    tpu.vector_store %arg6[%c0_225, %c512_226], %556 {strides = array<i32>} : memref<1x640xf32, #tpu.memory_space<vmem>>, vector<1x32xf32>,
    %c0_227 = arith.constant 0 : index
    %c0_228 = arith.constant 0 : index
    %560 = vector.load %arg6[%c0_227, %c0_228] : memref<1x640xf32, #tpu.memory_space<vmem>>, vector<1x640xf32>
    %cst_229 = arith.constant dense<0.000000e+00> : vector<1x128xf32>
    %561 = tpu.matmul %560, %6, %cst_229 {dimension_numbers = #tpu.dot_dimension_numbers<[1], [0], [0], [1], [0, 0, 1, 1], [], []>} : vector<1x640xf32>, vector<640x128xf32>, vector<1x128xf32> -> vector<1x128xf32>
    %562 = arith.addf %561, %8 : vector<1x128xf32>
    %cst_230 = arith.constant dense<0.000000e+00> : vector<1x128xf32>
    %563 = tpu.matmul %527, %7, %cst_230 {dimension_numbers = #tpu.dot_dimension_numbers<[1], [0], [0], [1], [0, 0, 1, 1], [], []>} : vector<1x32xf32>, vector<32x128xf32>, vector<1x128xf32> -> vector<1x128xf32>
    %564 = arith.addf %562, %563 : vector<1x128xf32>
    %565 = arith.negf %564 : vector<1x128xf32>
    %566 = math.exp %565 : vector<1x128xf32>
    %cst_231 = arith.constant 1.000000e+00 : f32
    %567 = vector.broadcast %cst_231 : f32 to vector<1x128xf32>
    %568 = arith.addf %567, %566 : vector<1x128xf32>
    %569 = arith.divf %567, %568 : vector<1x128xf32>
    %570 = vector.extract_strided_slice %569 {offsets = [0, 0], sizes = [1, 32], strides = [1, 1]} : vector<1x128xf32> to vector<1x32xf32>
    %571 = vector.extract_strided_slice %569 {offsets = [0, 32], sizes = [1, 32], strides = [1, 1]} : vector<1x128xf32> to vector<1x32xf32>
    %572 = vector.extract_strided_slice %569 {offsets = [0, 96], sizes = [1, 32], strides = [1, 1]} : vector<1x128xf32> to vector<1x32xf32>
    %573 = vector.extract_strided_slice %564 {offsets = [0, 64], sizes = [1, 32], strides = [1, 1]} : vector<1x128xf32> to vector<1x32xf32>
    %574 = math.tanh %573 : vector<1x32xf32>
    %575 = arith.mulf %571, %525 : vector<1x32xf32>
    %576 = arith.mulf %570, %574 : vector<1x32xf32>
    %577 = arith.addf %575, %576 : vector<1x32xf32>
    %578 = math.tanh %577 : vector<1x32xf32>
    %579 = arith.mulf %572, %578 : vector<1x32xf32>
    %c0_232 = arith.constant 0 : index
    %c0_233 = arith.constant 0 : index
    %580 = vector.load %arg7[%c0_232, %c0_233] : memref<1x512xf32, #tpu.memory_space<vmem>>, vector<1x32xf32>
    tpu.vector_store %arg7[%c0_232, %c0_233], %579 {strides = array<i32>} : memref<1x512xf32, #tpu.memory_space<vmem>>, vector<1x32xf32>,
    %c0_234 = arith.constant 0 : index
    %c128_235 = arith.constant 128 : index
    %581 = vector.load %arg7[%c0_234, %c128_235] : memref<1x512xf32, #tpu.memory_space<vmem>>, vector<1x32xf32>
    tpu.vector_store %arg7[%c0_234, %c128_235], %556 {strides = array<i32>} : memref<1x512xf32, #tpu.memory_space<vmem>>, vector<1x32xf32>,
    %c0_236 = arith.constant 0 : index
    %c256_237 = arith.constant 256 : index
    %582 = vector.load %arg7[%c0_236, %c256_237] : memref<1x512xf32, #tpu.memory_space<vmem>>, vector<1x256xf32>
    tpu.vector_store %arg7[%c0_236, %c256_237], %533 {strides = array<i32>} : memref<1x512xf32, #tpu.memory_space<vmem>>, vector<1x256xf32>,
    %c0_238 = arith.constant 0 : index
    %c0_239 = arith.constant 0 : index
    %583 = vector.load %arg7[%c0_238, %c0_239] : memref<1x512xf32, #tpu.memory_space<vmem>>, vector<1x512xf32>
    %cst_240 = arith.constant dense<0.000000e+00> : vector<1x256xf32>
    %584 = tpu.matmul %583, %9, %cst_240 {dimension_numbers = #tpu.dot_dimension_numbers<[1], [0], [0], [1], [0, 0, 1, 1], [], []>} : vector<1x512xf32>, vector<512x256xf32>, vector<1x256xf32> -> vector<1x256xf32>
    %585 = arith.addf %584, %10 : vector<1x256xf32>
    %c1_i32_241 = arith.constant 1 : i32
    %586 = arith.subi %c6_i32_215, %c1_i32_241 : i32
    %587 = arith.index_cast %586 : i32 to index
    %c0_242 = arith.constant 0 : index
    %588 = vector.load %arg3[%587, %c0_242] : memref<7x256xf32, #tpu.memory_space<vmem>>, vector<1x256xf32>
    tpu.vector_store %arg3[%587, %c0_242], %585 {strides = array<i32>} : memref<7x256xf32, #tpu.memory_space<vmem>>, vector<1x256xf32>,
    %589 = arith.subf %585, %533 : vector<1x256xf32>
    %c7_i32_243 = arith.constant 7 : i32
    %cst_244 = arith.constant dense<0.000000e+00> : vector<1x32xf32>
    %590 = tpu.matmul %579, %4, %cst_244 {dimension_numbers = #tpu.dot_dimension_numbers<[1], [0], [0], [1], [0, 0, 1, 1], [], []>} : vector<1x32xf32>, vector<32x32xf32>, vector<1x32xf32> -> vector<1x32xf32>
    %591 = vector.broadcast %590 : vector<1x32xf32> to vector<12x32xf32>
    %592 = arith.addf %271, %591 : vector<12x32xf32>
    %593 = math.tanh %592 : vector<12x32xf32>
    %cst_245 = arith.constant dense<0.000000e+00> : vector<12x1xf32>
    %594 = tpu.matmul %593, %5, %cst_245 {dimension_numbers = #tpu.dot_dimension_numbers<[1], [0], [0], [1], [0, 0, 1, 1], [], []>} : vector<12x32xf32>, vector<32x1xf32>, vector<12x1xf32> -> vector<12x1xf32>
    %cst_246 = arith.constant dense<0xFF800000> : vector<1xf32>
    %595 = vector.multi_reduction <maximumf>, %594, %cst_246 [0] : vector<12x1xf32> to vector<1xf32>
    %596 = vector.shape_cast %595 : vector<1xf32> to vector<1x1xf32>
    %597 = vector.broadcast %596 : vector<1x1xf32> to vector<12x1xf32>
    %598 = arith.subf %594, %597 : vector<12x1xf32>
    %599 = math.exp %598 : vector<12x1xf32>
    %cst_247 = arith.constant dense<0.000000e+00> : vector<1xf32>
    %600 = vector.multi_reduction <add>, %599, %cst_247 [0] : vector<12x1xf32> to vector<1xf32>
    %601 = vector.shape_cast %600 : vector<1xf32> to vector<1x1xf32>
    %602 = tpu.reciprocal %601 {approx = true} : vector<1x1xf32> -> vector<1x1xf32>
    %603 = vector.broadcast %602 : vector<1x1xf32> to vector<12x1xf32>
    %604 = arith.mulf %599, %603 : vector<12x1xf32>
    %605 = vector.broadcast %604 : vector<12x1xf32> to vector<12x32xf32>
    %606 = arith.mulf %605, %270 : vector<12x32xf32>
    %cst_248 = arith.constant dense<0.000000e+00> : vector<32xf32>
    %607 = vector.multi_reduction <add>, %606, %cst_248 [0] : vector<12x32xf32> to vector<32xf32>
    %608 = vector.shape_cast %607 : vector<32xf32> to vector<1x32xf32>
    %c0_249 = arith.constant 0 : index
    %c0_250 = arith.constant 0 : index
    %609 = vector.load %arg6[%c0_249, %c0_250] : memref<1x640xf32, #tpu.memory_space<vmem>>, vector<1x256xf32>
    tpu.vector_store %arg6[%c0_249, %c0_250], %585 {strides = array<i32>} : memref<1x640xf32, #tpu.memory_space<vmem>>, vector<1x256xf32>,
    %c0_251 = arith.constant 0 : index
    %c256_252 = arith.constant 256 : index
    %610 = vector.load %arg6[%c0_251, %c256_252] : memref<1x640xf32, #tpu.memory_space<vmem>>, vector<1x256xf32>
    tpu.vector_store %arg6[%c0_251, %c256_252], %589 {strides = array<i32>} : memref<1x640xf32, #tpu.memory_space<vmem>>, vector<1x256xf32>,
    %c0_253 = arith.constant 0 : index
    %c512_254 = arith.constant 512 : index
    %611 = vector.load %arg6[%c0_253, %c512_254] : memref<1x640xf32, #tpu.memory_space<vmem>>, vector<1x32xf32>
    tpu.vector_store %arg6[%c0_253, %c512_254], %608 {strides = array<i32>} : memref<1x640xf32, #tpu.memory_space<vmem>>, vector<1x32xf32>,
    %c0_255 = arith.constant 0 : index
    %c0_256 = arith.constant 0 : index
    %612 = vector.load %arg6[%c0_255, %c0_256] : memref<1x640xf32, #tpu.memory_space<vmem>>, vector<1x640xf32>
    %cst_257 = arith.constant dense<0.000000e+00> : vector<1x128xf32>
    %613 = tpu.matmul %612, %6, %cst_257 {dimension_numbers = #tpu.dot_dimension_numbers<[1], [0], [0], [1], [0, 0, 1, 1], [], []>} : vector<1x640xf32>, vector<640x128xf32>, vector<1x128xf32> -> vector<1x128xf32>
    %614 = arith.addf %613, %8 : vector<1x128xf32>
    %cst_258 = arith.constant dense<0.000000e+00> : vector<1x128xf32>
    %615 = tpu.matmul %579, %7, %cst_258 {dimension_numbers = #tpu.dot_dimension_numbers<[1], [0], [0], [1], [0, 0, 1, 1], [], []>} : vector<1x32xf32>, vector<32x128xf32>, vector<1x128xf32> -> vector<1x128xf32>
    %616 = arith.addf %614, %615 : vector<1x128xf32>
    %617 = arith.negf %616 : vector<1x128xf32>
    %618 = math.exp %617 : vector<1x128xf32>
    %cst_259 = arith.constant 1.000000e+00 : f32
    %619 = vector.broadcast %cst_259 : f32 to vector<1x128xf32>
    %620 = arith.addf %619, %618 : vector<1x128xf32>
    %621 = arith.divf %619, %620 : vector<1x128xf32>
    %622 = vector.extract_strided_slice %621 {offsets = [0, 0], sizes = [1, 32], strides = [1, 1]} : vector<1x128xf32> to vector<1x32xf32>
    %623 = vector.extract_strided_slice %621 {offsets = [0, 32], sizes = [1, 32], strides = [1, 1]} : vector<1x128xf32> to vector<1x32xf32>
    %624 = vector.extract_strided_slice %621 {offsets = [0, 96], sizes = [1, 32], strides = [1, 1]} : vector<1x128xf32> to vector<1x32xf32>
    %625 = vector.extract_strided_slice %616 {offsets = [0, 64], sizes = [1, 32], strides = [1, 1]} : vector<1x128xf32> to vector<1x32xf32>
    %626 = math.tanh %625 : vector<1x32xf32>
    %627 = arith.mulf %623, %577 : vector<1x32xf32>
    %628 = arith.mulf %622, %626 : vector<1x32xf32>
    %629 = arith.addf %627, %628 : vector<1x32xf32>
    %630 = math.tanh %629 : vector<1x32xf32>
    %631 = arith.mulf %624, %630 : vector<1x32xf32>
    %c0_260 = arith.constant 0 : index
    %c0_261 = arith.constant 0 : index
    %632 = vector.load %arg7[%c0_260, %c0_261] : memref<1x512xf32, #tpu.memory_space<vmem>>, vector<1x32xf32>
    tpu.vector_store %arg7[%c0_260, %c0_261], %631 {strides = array<i32>} : memref<1x512xf32, #tpu.memory_space<vmem>>, vector<1x32xf32>,
    %c0_262 = arith.constant 0 : index
    %c128_263 = arith.constant 128 : index
    %633 = vector.load %arg7[%c0_262, %c128_263] : memref<1x512xf32, #tpu.memory_space<vmem>>, vector<1x32xf32>
    tpu.vector_store %arg7[%c0_262, %c128_263], %608 {strides = array<i32>} : memref<1x512xf32, #tpu.memory_space<vmem>>, vector<1x32xf32>,
    %c0_264 = arith.constant 0 : index
    %c256_265 = arith.constant 256 : index
    %634 = vector.load %arg7[%c0_264, %c256_265] : memref<1x512xf32, #tpu.memory_space<vmem>>, vector<1x256xf32>
    tpu.vector_store %arg7[%c0_264, %c256_265], %585 {strides = array<i32>} : memref<1x512xf32, #tpu.memory_space<vmem>>, vector<1x256xf32>,
    %c0_266 = arith.constant 0 : index
    %c0_267 = arith.constant 0 : index
    %635 = vector.load %arg7[%c0_266, %c0_267] : memref<1x512xf32, #tpu.memory_space<vmem>>, vector<1x512xf32>
    %cst_268 = arith.constant dense<0.000000e+00> : vector<1x256xf32>
    %636 = tpu.matmul %635, %9, %cst_268 {dimension_numbers = #tpu.dot_dimension_numbers<[1], [0], [0], [1], [0, 0, 1, 1], [], []>} : vector<1x512xf32>, vector<512x256xf32>, vector<1x256xf32> -> vector<1x256xf32>
    %637 = arith.addf %636, %10 : vector<1x256xf32>
    %c1_i32_269 = arith.constant 1 : i32
    %638 = arith.subi %c7_i32_243, %c1_i32_269 : i32
    %639 = arith.index_cast %638 : i32 to index
    %c0_270 = arith.constant 0 : index
    %640 = vector.load %arg3[%639, %c0_270] : memref<7x256xf32, #tpu.memory_space<vmem>>, vector<1x256xf32>
    tpu.vector_store %arg3[%639, %c0_270], %637 {strides = array<i32>} : memref<7x256xf32, #tpu.memory_space<vmem>>, vector<1x256xf32>,
    %641 = arith.subf %637, %585 : vector<1x256xf32>
    %c7_i32_271 = arith.constant 7 : i32
    return
  }
}

</mosaic_0001>

<llo_original>
// kernel: tpu_custom_call.1
$region0: #{tpu_custom_call.1}
  #allocation0 [shape = 'u32[]', space=smem, size = 0x4, offset = 0x4, fixed_abs, tag = 'smem constant byte address 0x4 - core index']
  #allocation1 [shape = 'u32[144,128]{1,0:T(1,128)}', space=vmem, size = 0x12000, scoped, tag = 'internal scratch']
  #allocation2 [shape = 'f32[12,128]{1,0:T(8,128)}', space=vmem, size = 0x2000, scoped, tag = 'scratch operand']
  #allocation3 [shape = 'f32[12,32]{1,0:T(8,128)}', space=vmem, size = 0x2000, scoped, tag = 'scratch operand']
  #allocation4 [shape = 'f32[1,640]{1,0:T(1,128)}', space=vmem, size = 0xa00, scoped, tag = 'scratch operand']
  #allocation5 [shape = 'f32[1,512]{1,0:T(1,128)}', space=vmem, size = 0x800, scoped, tag = 'scratch operand']
  %s0 = inlined_call_operand.hbm [shape: f32[12,256], index: 0, kind: input, shape index: {}]
  %s1 = inlined_call_operand.hbm [shape: f32[8,256], index: 1, kind: input, shape index: {}]
  %s2 = inlined_call_operand.hbm [shape: f32[1592,256], index: 2, kind: input, shape index: {}]
  %s3 = inlined_call_operand.hbm [shape: f32[7,256], index: 3, kind: output, shape index: {}]
  %s4 = sld [smem:[#allocation0]]
  $region34: #{tpu_custom_call.1} parent=0
    _
  %s6 = ssub.s32 1, %s4
  %s7 = scalar_select 0, %s6, %s4
  $region1: #{tpu_custom_call.1} parent=0
    #allocation6 [shape = 'u8[16384]{0}', space=vmem, size = 0x4000, scoped, tag = 'input window, operand 0, single buffered']
    #allocation7 [shape = 's32[1]{0}', space=sflag, size = 0x4, scoped, tag = 'scoped memory for tpu_custom_call.1']
    #allocation8 [shape = 's32[1]{0}', space=sflag, size = 0x4, scoped, tag = 'scoped memory for tpu_custom_call.1']
    #allocation9 [shape = 'u8[8192]{0}', space=vmem, size = 0x2000, scoped, tag = 'input window, operand 1, single buffered']
    #allocation10 [shape = 's32[1]{0}', space=sflag, size = 0x4, scoped, tag = 'scoped memory for tpu_custom_call.1']
    #allocation11 [shape = 'u8[1630208]{0}', space=vmem, size = 0x18e000, scoped, tag = 'input window, operand 2, single buffered']
    #allocation12 [shape = 'u8[8192]{0}', space=vmem, size = 0x2000, scoped, tag = 'output window, operand 0, single buffered']
    %8 = vsyncpa [#allocation7], 0
    %9 = vsyncpa [#allocation10], 0
    %10 = vsyncpa [#allocation8], 0
    // Predicated region
    $region2: #{tpu_custom_call.1} parent=1 // pred_check
      _
    $region3: #{tpu_custom_call.1} parent=1 // pred_check_branch
      %12 = sbr.rel (0) target = $region5
    $region4: #{tpu_custom_call.1} parent=1 // pred_region
      %s14 = ssub.s32 512, 512
      %15 = vsyncadd [#allocation7], %s14
      %s16 = sshll.u32 [#allocation6], 4
      %s17 = int_to_ptr.vmem [resolvable:$true] %s16
      %22 = dma.hbm_to_vmem [thread:$0]  %s0, 512, %s17, [#allocation7], 256, 256, 16
    $region5: #{tpu_custom_call.1} parent=1 // pred_fallthru
      _
    // Predicated region
    $region6: #{tpu_custom_call.1} parent=1 // pred_check
      _
    $region7: #{tpu_custom_call.1} parent=1 // pred_check_branch
      %24 = sbr.rel (0) target = $region9
    $region8: #{tpu_custom_call.1} parent=1 // pred_region
      %s26 = ssub.s32 256, 256
      %27 = vsyncadd [#allocation10], %s26
      %s29 = sshll.u32 [#allocation9], 4
      %s30 = int_to_ptr.vmem [resolvable:$true] %s29
      %32 = dma.hbm_to_vmem [thread:$0]  %s1, 256, %s30, [#allocation10]
    $region9: #{tpu_custom_call.1} parent=1 // pred_fallthru
      _
    // Predicated region
    $region10: #{tpu_custom_call.1} parent=1 // pred_check
      _
    $region11: #{tpu_custom_call.1} parent=1 // pred_check_branch
      %34 = sbr.rel (0) target = $region13
    $region12: #{tpu_custom_call.1} parent=1 // pred_region
      %s36 = ssub.s32 50944, 50944
      %37 = vsyncadd [#allocation10], %s36
      %s38 = sshll.u32 [#allocation11], 4
      %s39 = int_to_ptr.vmem [resolvable:$true] %s38
      %44 = dma.hbm_to_vmem [thread:$0]  %s2, 50944, %s39, [#allocation10], 256, 256, 16
    $region13: #{tpu_custom_call.1} parent=1 // pred_fallthru
      _
    // Predicated region
    $region14: #{tpu_custom_call.1} parent=1 // pred_check
      _
    $region15: #{tpu_custom_call.1} parent=1 // pred_check_branch
      %46 = sbr.rel (0) target = $region17
    $region16: #{tpu_custom_call.1} parent=1 // pred_region
      %47 = dma.done [#allocation7], 512
    $region17: #{tpu_custom_call.1} parent=1 // pred_fallthru
      _
    // Predicated region
    $region18: #{tpu_custom_call.1} parent=1 // pred_check
      _
    $region19: #{tpu_custom_call.1} parent=1 // pred_check_branch
      %49 = sbr.rel (0) target = $region21
    $region20: #{tpu_custom_call.1} parent=1 // pred_region
      %50 = dma.done [#allocation10], 256
    $region21: #{tpu_custom_call.1} parent=1 // pred_fallthru
      _
    // Predicated region
    $region22: #{tpu_custom_call.1} parent=1 // pred_check
      _
    $region23: #{tpu_custom_call.1} parent=1 // pred_check_branch
      %52 = sbr.rel (0) target = $region25
    $region24: #{tpu_custom_call.1} parent=1 // pred_region
      %53 = dma.done [#allocation10], 50944
    $region25: #{tpu_custom_call.1} parent=1 // pred_fallthru
      _
    %v54 = vld [vmem:[#allocation11] sm:$0xff]
    %v55 = vld [vmem:[#allocation11 + $0x10] sm:$0xff]
    %v56 = vld [vmem:[#allocation11 + $0x20] sm:$0xff]
    %v57 = vld [vmem:[#allocation11 + $0x30] sm:$0xff]
    %v58 = vld [vmem:[#allocation11 + $0x40] sm:$0xff]
    %v59 = vld [vmem:[#allocation11 + $0x50] sm:$0xff]
    %v60 = vld [vmem:[#allocation11 + $0x60] sm:$0xff]
    %v61 = vld [vmem:[#allocation11 + $0x70] sm:$0xff]
    %v62 = vld [vmem:[#allocation11 + $0x80] sm:$0xff]
    %v63 = vld [vmem:[#allocation11 + $0x90] sm:$0xff]
    %v64 = vld [vmem:[#allocation11 + $0xa0] sm:$0xff]
    %v65 = vld [vmem:[#allocation11 + $0xb0] sm:$0xff]
    %v66 = vld [vmem:[#allocation11 + $0xc0] sm:$0xff]
    %v67 = vld [vmem:[#allocation11 + $0xd0] sm:$0xff]
    %v68 = vld [vmem:[#allocation11 + $0xe0] sm:$0xff]
    %v69 = vld [vmem:[#allocation11 + $0xf0] sm:$0xff]
    %v70 = vld [vmem:[#allocation11 + $0x100] sm:$0xff]
    %v71 = vld [vmem:[#allocation11 + $0x110] sm:$0xff]
    %v72 = vld [vmem:[#allocation11 + $0x120] sm:$0xff]
    %v73 = vld [vmem:[#allocation11 + $0x130] sm:$0xff]
    %v74 = vld [vmem:[#allocation11 + $0x140] sm:$0xff]
    %v75 = vld [vmem:[#allocation11 + $0x150] sm:$0xff]
    %v76 = vld [vmem:[#allocation11 + $0x160] sm:$0xff]
    %v77 = vld [vmem:[#allocation11 + $0x170] sm:$0xff]
    %v78 = vld [vmem:[#allocation11 + $0x180] sm:$0xff]
    %v79 = vld [vmem:[#allocation11 + $0x190] sm:$0xff]
    %v80 = vld [vmem:[#allocation11 + $0x1a0] sm:$0xff]
    %v81 = vld [vmem:[#allocation11 + $0x1b0] sm:$0xff]
    %v82 = vld [vmem:[#allocation11 + $0x1c0] sm:$0xff]
    %v83 = vld [vmem:[#allocation11 + $0x1d0] sm:$0xff]
    %v84 = vld [vmem:[#allocation11 + $0x1e0] sm:$0xff]
    %v85 = vld [vmem:[#allocation11 + $0x1f0] sm:$0xff]
    %v86 = vld [vmem:[#allocation11 + $0x200] sm:$0xff]
    %v87 = vld [vmem:[#allocation11 + $0x210] sm:$0xff]
    %v88 = vld [vmem:[#allocation11 + $0x220] sm:$0xff]
    %v89 = vld [vmem:[#allocation11 + $0x230] sm:$0xff]
    %v90 = vld [vmem:[#allocation11 + $0x240] ss:$0 sm:$0xff]
    %v91 = vld [vmem:[#allocation11 + $0x250] sm:$0xff]
    %v92 = vld [vmem:[#allocation11 + $0x260] sm:$0xff]
    %v93 = vld [vmem:[#allocation11 + $0x270] sm:$0xff]
    %v94 = vld [vmem:[#allocation11 + $0x280] sm:$0xff]
    %v95 = vld [vmem:[#allocation11 + $0x290] sm:$0xff]
    %v96 = vld [vmem:[#allocation11 + $0x2a0] sm:$0xff]
    %v97 = vld [vmem:[#allocation11 + $0x2b0] sm:$0xff]
    %v98 = vld [vmem:[#allocation11 + $0x2c0] sm:$0xff]
    %v99 = vld [vmem:[#allocation11 + $0x2d0] sm:$0xff]
    %v100 = vld [vmem:[#allocation11 + $0x2e0] sm:$0xff]
    %v101 = vld [vmem:[#allocation11 + $0x2f0] sm:$0xff]
    %v102 = vld [vmem:[#allocation11 + $0x300] sm:$0xff]
    %v103 = vld [vmem:[#allocation11 + $0x310] sm:$0xff]
    %v104 = vld [vmem:[#allocation11 + $0x320] sm:$0xff]
    %v105 = vld [vmem:[#allocation11 + $0x330] sm:$0xff]
    %v106 = vld [vmem:[#allocation11 + $0x340] sm:$0xff]
    %v107 = vld [vmem:[#allocation11 + $0x350] sm:$0xff]
    %v108 = vld [vmem:[#allocation11 + $0x360] sm:$0xff]
    %v109 = vld [vmem:[#allocation11 + $0x370] sm:$0xff]
    %v110 = vld [vmem:[#allocation11 + $0x380] sm:$0xff]
    %v111 = vld [vmem:[#allocation11 + $0x390] sm:$0xff]
    %v112 = vld [vmem:[#allocation11 + $0x3a0] sm:$0xff]
    %v113 = vld [vmem:[#allocation11 + $0x3b0] sm:$0xff]
    %v114 = vld [vmem:[#allocation11 + $0x3c0] sm:$0xff]
    %v115 = vld [vmem:[#allocation11 + $0x3d0] sm:$0xff]
    %v116 = vld [vmem:[#allocation11 + $0x3e0] sm:$0xff]
    %v117 = vld [vmem:[#allocation11 + $0x3f0] sm:$0xff]
    %v118 = vld [vmem:[#allocation11 + $0x400] sm:$0xff]
    %v119 = vld [vmem:[#allocation11 + $0x410] sm:$0xff]
    %v120 = vld [vmem:[#allocation11 + $0x420] sm:$0xff]
    %v121 = vld [vmem:[#allocation11 + $0x430] sm:$0xff]
    %v122 = vld [vmem:[#allocation11 + $0x440] sm:$0xff]
    %v123 = vld [vmem:[#allocation11 + $0x450] sm:$0xff]
    %v124 = vld [vmem:[#allocation11 + $0x460] sm:$0xff]
    %v125 = vld [vmem:[#allocation11 + $0x470] sm:$0xff]
    %v126 = vld [vmem:[#allocation11 + $0x480] sm:$0xff]
    %v127 = vld [vmem:[#allocation11 + $0x490] sm:$0xff]
    %v128 = vld [vmem:[#allocation11 + $0x4a0] sm:$0xff]
    %v129 = vld [vmem:[#allocation11 + $0x4b0] sm:$0xff]
    %v130 = vld [vmem:[#allocation11 + $0x4c0] sm:$0xff]
    %v131 = vld [vmem:[#allocation11 + $0x4d0] sm:$0xff]
    %v132 = vld [vmem:[#allocation11 + $0x4e0] sm:$0xff]
    %v133 = vld [vmem:[#allocation11 + $0x4f0] sm:$0xff]
    %v134 = vld [vmem:[#allocation11 + $0x500] sm:$0xff]
    %v135 = vld [vmem:[#allocation11 + $0x510] sm:$0xff]
    %v136 = vld [vmem:[#allocation11 + $0x520] sm:$0xff]
    %v137 = vld [vmem:[#allocation11 + $0x530] sm:$0xff]
    %v138 = vld [vmem:[#allocation11 + $0x540] sm:$0xff]
    %v139 = vld [vmem:[#allocation11 + $0x550] sm:$0xff]
    %v140 = vld [vmem:[#allocation11 + $0x560] sm:$0xff]
    %v141 = vld [vmem:[#allocation11 + $0x570] sm:$0xff]
    %v142 = vld [vmem:[#allocation11 + $0x580] sm:$0xff]
    %v143 = vld [vmem:[#allocation11 + $0x590] sm:$0xff]
    %v144 = vld [vmem:[#allocation11 + $0x5a0] sm:$0xff]
    %v145 = vld [vmem:[#allocation11 + $0x5b0] sm:$0xff]
    %v146 = vld [vmem:[#allocation11 + $0x5c0] sm:$0xff]
    %v147 = vld [vmem:[#allocation11 + $0x5d0] sm:$0xff]
    %v148 = vld [vmem:[#allocation11 + $0x5e0] sm:$0xff]
    %v149 = vld [vmem:[#allocation11 + $0x5f0] sm:$0xff]
    %v150 = vld [vmem:[#allocation11 + $0x600] sm:$0xff]
    %v151 = vld [vmem:[#allocation11 + $0x610] sm:$0xff]
    %v152 = vld [vmem:[#allocation11 + $0x620] sm:$0xff]
    %v153 = vld [vmem:[#allocation11 + $0x630] sm:$0xff]
    %v154 = vld [vmem:[#allocation11 + $0x640] sm:$0xff]
    %v155 = vld [vmem:[#allocation11 + $0x650] sm:$0xff]
    %v156 = vld [vmem:[#allocation11 + $0x660] sm:$0xff]
    %v157 = vld [vmem:[#allocation11 + $0x670] sm:$0xff]
    %v158 = vld [vmem:[#allocation11 + $0x680] sm:$0xff]
    %v159 = vld [vmem:[#allocation11 + $0x690] sm:$0xff]
    %v160 = vld [vmem:[#allocation11 + $0x6a0] sm:$0xff]
    %v161 = vld [vmem:[#allocation11 + $0x6b0] sm:$0xff]
    %v162 = vld [vmem:[#allocation11 + $0x6c0] sm:$0xff]
    %v163 = vld [vmem:[#allocation11 + $0x6d0] sm:$0xff]
    %v164 = vld [vmem:[#allocation11 + $0x6e0] sm:$0xff]
    %v165 = vld [vmem:[#allocation11 + $0x6f0] sm:$0xff]
    %v166 = vld [vmem:[#allocation11 + $0x700] sm:$0xff]
    %v167 = vld [vmem:[#allocation11 + $0x710] sm:$0xff]
    %v168 = vld [vmem:[#allocation11 + $0x720] sm:$0xff]
    %v169 = vld [vmem:[#allocation11 + $0x730] sm:$0xff]
    %v170 = vld [vmem:[#allocation11 + $0x740] sm:$0xff]
    %v171 = vld [vmem:[#allocation11 + $0x750] sm:$0xff]
    %v172 = vld [vmem:[#allocation11 + $0x760] sm:$0xff]
    %v173 = vld [vmem:[#allocation11 + $0x770] sm:$0xff]
    %v174 = vld [vmem:[#allocation11 + $0x780] sm:$0xff]
    %v175 = vld [vmem:[#allocation11 + $0x790] sm:$0xff]
    %v176 = vld [vmem:[#allocation11 + $0x7a0] sm:$0xff]
    %v177 = vld [vmem:[#allocation11 + $0x7b0] sm:$0xff]
    %v178 = vld [vmem:[#allocation11 + $0x7c0] sm:$0xff]
    %v179 = vld [vmem:[#allocation11 + $0x7d0] sm:$0xff]
    %v180 = vld [vmem:[#allocation11 + $0x7e0] sm:$0xff]
    %v181 = vld [vmem:[#allocation11 + $0x7f0] sm:$0xff]
    %v182 = vld [vmem:[#allocation11 + $0x800] sm:$0xff]
    %v183 = vld [vmem:[#allocation11 + $0x810] sm:$0xff]
    %v184 = vld [vmem:[#allocation11 + $0x820] sm:$0xff]
    %v185 = vld [vmem:[#allocation11 + $0x830] sm:$0xff]
    %v186 = vld [vmem:[#allocation11 + $0x840] sm:$0xff]
    %v187 = vld [vmem:[#allocation11 + $0x850] ss:$0 sm:$0xff]
    %v188 = vld [vmem:[#allocation11 + $0x860] sm:$0xff]
    %v189 = vld [vmem:[#allocation11 + $0x868] sm:$0xff]
    %v190 = vld [vmem:[#allocation11 + $0x870] sm:$0xff]
    %v191 = vld [vmem:[#allocation11 + $0x878] sm:$0xff]
    %v192 = vld [vmem:[#allocation11 + $0x880] sm:$0xff]
    %v193 = vld [vmem:[#allocation11 + $0x888] sm:$0xff]
    %v194 = vld [vmem:[#allocation11 + $0x890] sm:$0xff]
    %v195 = vld [vmem:[#allocation11 + $0x898] sm:$0xff]
    %v196 = vld [vmem:[#allocation11 + $0x8a0] sm:$0xff]
    %v197 = vld [vmem:[#allocation11 + $0x8a8] sm:$0xff]
    %v198 = vld [vmem:[#allocation11 + $0x8b0] sm:$0xff]
    %v199 = vld [vmem:[#allocation11 + $0x8b8] sm:$0xff]
    %v200 = vld [vmem:[#allocation11 + $0x8c0] sm:$0xff]
    %v201 = vld [vmem:[#allocation11 + $0x8c8] sm:$0xff]
    %v202 = vld [vmem:[#allocation11 + $0x8d0] sm:$0xff]
    %v203 = vld [vmem:[#allocation11 + $0x8d8] sm:$0xff]
    %v204 = vld [vmem:[#allocation11 + $0x8e0] sm:$0xff]
    %v205 = vld [vmem:[#allocation11 + $0x8e8] sm:$0xff]
    %v206 = vld [vmem:[#allocation11 + $0x8f0] sm:$0xff]
    %v207 = vld [vmem:[#allocation11 + $0x8f8] sm:$0xff]
    %v208 = vld [vmem:[#allocation11 + $0x900] sm:$0xff]
    %v209 = vld [vmem:[#allocation11 + $0x908] sm:$0xff]
    %v210 = vld [vmem:[#allocation11 + $0x910] sm:$0xff]
    %v211 = vld [vmem:[#allocation11 + $0x918] sm:$0xff]
    %v212 = vld [vmem:[#allocation11 + $0x920] sm:$0xff]
    %v213 = vld [vmem:[#allocation11 + $0x928] sm:$0xff]
    %v214 = vld [vmem:[#allocation11 + $0x930] sm:$0xff]
    %v215 = vld [vmem:[#allocation11 + $0x938] sm:$0xff]
    %v216 = vld [vmem:[#allocation11 + $0x940] sm:$0xff]
    %v217 = vld [vmem:[#allocation11 + $0x948] sm:$0xff]
    %v218 = vld [vmem:[#allocation11 + $0x950] sm:$0xff]
    %v219 = vld [vmem:[#allocation11 + $0x958] sm:$0xff]
    %v220 = vld [vmem:[#allocation11 + $0x960] sm:$0xff]
    %v221 = vld [vmem:[#allocation11 + $0x968] sm:$0xff]
    %v222 = vld [vmem:[#allocation11 + $0x970] sm:$0xff]
    %v223 = vld [vmem:[#allocation11 + $0x978] sm:$0xff]
    %v224 = vld [vmem:[#allocation11 + $0x980] sm:$0xff]
    %v225 = vld [vmem:[#allocation11 + $0x988] sm:$0xff]
    %v226 = vld [vmem:[#allocation11 + $0x990] sm:$0xff]
    %v227 = vld [vmem:[#allocation11 + $0x998] sm:$0xff]
    %v228 = vld [vmem:[#allocation11 + $0x9a0] sm:$0xff]
    %v229 = vld [vmem:[#allocation11 + $0x9a8] sm:$0xff]
    %v230 = vld [vmem:[#allocation11 + $0x9b0] sm:$0xff]
    %v231 = vld [vmem:[#allocation11 + $0x9b8] sm:$0xff]
    %v232 = vld [vmem:[#allocation11 + $0x9c0] sm:$0xff]
    %v233 = vld [vmem:[#allocation11 + $0x9c8] sm:$0xff]
    %v234 = vld [vmem:[#allocation11 + $0x9d0] sm:$0xff]
    %v235 = vld [vmem:[#allocation11 + $0x9d8] sm:$0xff]
    %v236 = vld [vmem:[#allocation11 + $0x9e0] sm:$0xff]
    %v237 = vld [vmem:[#allocation11 + $0x9e8] sm:$0xff]
    %v238 = vld [vmem:[#allocation11 + $0x9f0] sm:$0xff]
    %v239 = vld [vmem:[#allocation11 + $0x9f8] sm:$0xff]
    %v240 = vld [vmem:[#allocation11 + $0xa00] sm:$0xff]
    %v241 = vld [vmem:[#allocation11 + $0xa08] sm:$0xff]
    %v242 = vld [vmem:[#allocation11 + $0xa10] sm:$0xff]
    %v243 = vld [vmem:[#allocation11 + $0xa18] sm:$0xff]
    %v244 = vld [vmem:[#allocation11 + $0xa20] sm:$0xff]
    %v245 = vld [vmem:[#allocation11 + $0xa28] sm:$0xff]
    %v246 = vld [vmem:[#allocation11 + $0xa30] sm:$0xff]
    %v247 = vld [vmem:[#allocation11 + $0xa38] sm:$0xff]
    %v248 = vld [vmem:[#allocation11 + $0xa40] sm:$0xff]
    %v249 = vld [vmem:[#allocation11 + $0xa48] sm:$0xff]
    %v250 = vld [vmem:[#allocation11 + $0xa50] sm:$0xff]
    %v251 = vld [vmem:[#allocation11 + $0xa58] sm:$0xff]
    %v252 = vld [vmem:[#allocation11 + $0xa60] sm:$0xff]
    %v253 = vld [vmem:[#allocation11 + $0xa68] sm:$0xff]
    %v254 = vld [vmem:[#allocation11 + $0xa70] sm:$0xff]
    %v255 = vld [vmem:[#allocation11 + $0xa78] sm:$0xff]
    %v256 = vld [vmem:[#allocation11 + $0xa80] sm:$0xff]
    %v257 = vld [vmem:[#allocation11 + $0xa88] sm:$0xff]
    %v258 = vld [vmem:[#allocation11 + $0xa90] sm:$0xff]
    %v259 = vld [vmem:[#allocation11 + $0xa98] sm:$0xff]
    %v260 = vld [vmem:[#allocation11 + $0xaa0] sm:$0xff]
    %v261 = vld [vmem:[#allocation11 + $0xaa8] sm:$0xff]
    %v262 = vld [vmem:[#allocation11 + $0xab0] sm:$0xff]
    %v263 = vld [vmem:[#allocation11 + $0xab8] sm:$0xff]
    %v264 = vld [vmem:[#allocation11 + $0xac0] sm:$0xff]
    %v265 = vld [vmem:[#allocation11 + $0xac8] sm:$0xff]
    %v266 = vld [vmem:[#allocation11 + $0xad0] sm:$0xff]
    %v267 = vld [vmem:[#allocation11 + $0xad8] sm:$0xff]
    %v268 = vld [vmem:[#allocation11 + $0xae0] sm:$0xff]
    %v269 = vld [vmem:[#allocation11 + $0xae8] sm:$0xff]
    %v270 = vld [vmem:[#allocation11 + $0xaf0] sm:$0xff]
    %v271 = vld [vmem:[#allocation11 + $0xaf8] sm:$0xff]
    %v272 = vld [vmem:[#allocation11 + $0xb00] sm:$0xff]
    %v273 = vld [vmem:[#allocation11 + $0xb08] sm:$0xff]
    %v274 = vld [vmem:[#allocation11 + $0xb10] sm:$0xff]
    %v275 = vld [vmem:[#allocation11 + $0xb18] sm:$0xff]
    %v276 = vld [vmem:[#allocation11 + $0xb20] sm:$0xff]
    %v277 = vld [vmem:[#allocation11 + $0xb28] sm:$0xff]
    %v278 = vld [vmem:[#allocation11 + $0xb30] sm:$0xff]
    %v279 = vld [vmem:[#allocation11 + $0xb38] sm:$0xff]
    %v280 = vld [vmem:[#allocation11 + $0xb40] sm:$0xff]
    %v281 = vld [vmem:[#allocation11 + $0xb48] sm:$0xff]
    %v282 = vld [vmem:[#allocation11 + $0xb50] sm:$0xff]
    %v283 = vld [vmem:[#allocation11 + $0xb58] sm:$0xff]
    %v284 = vld [vmem:[#allocation11 + $0xb60] sm:$0xff]
    %v285 = vld [vmem:[#allocation11 + $0xb68] sm:$0xff]
    %v286 = vld [vmem:[#allocation11 + $0xb70] sm:$0xff]
    %v287 = vld [vmem:[#allocation11 + $0xb78] sm:$0xff]
    %v288 = vld [vmem:[#allocation11 + $0xb80] sm:$0xff]
    %v289 = vld [vmem:[#allocation11 + $0xb88] sm:$0xff]
    %v290 = vld [vmem:[#allocation11 + $0xb90] sm:$0xff]
    %v291 = vld [vmem:[#allocation11 + $0xb98] sm:$0xff]
    %v292 = vld [vmem:[#allocation11 + $0xba0] sm:$0xff]
    %v293 = vld [vmem:[#allocation11 + $0xba8] sm:$0xff]
    %v294 = vld [vmem:[#allocation11 + $0xbb0] sm:$0xff]
    %v295 = vld [vmem:[#allocation11 + $0xbb8] sm:$0xff]
    %v296 = vld [vmem:[#allocation11 + $0xbc0] sm:$0xff]
    %v297 = vld [vmem:[#allocation11 + $0xbc8] sm:$0xff]
    %v298 = vld [vmem:[#allocation11 + $0xbd0] sm:$0xff]
    %v299 = vld [vmem:[#allocation11 + $0xbd8] sm:$0xff]
    %v300 = vld [vmem:[#allocation11 + $0xbe0] sm:$0xff]
    %v301 = vld [vmem:[#allocation11 + $0xbe8] sm:$0xff]
    %v302 = vld [vmem:[#allocation11 + $0xbf0] sm:$0xff]
    %v303 = vld [vmem:[#allocation11 + $0xbf8] sm:$0xff]
    %v304 = vld [vmem:[#allocation11 + $0xc00] sm:$0xff]
    %v305 = vld [vmem:[#allocation11 + $0xc08] sm:$0xff]
    %v306 = vld [vmem:[#allocation11 + $0xc10] sm:$0xff]
    %v307 = vld [vmem:[#allocation11 + $0xc18] sm:$0xff]
    %v308 = vld [vmem:[#allocation11 + $0xc20] sm:$0xff]
    %v309 = vld [vmem:[#allocation11 + $0xc28] sm:$0xff]
    %v310 = vld [vmem:[#allocation11 + $0xc30] sm:$0xff]
    %v311 = vld [vmem:[#allocation11 + $0xc38] sm:$0xff]
    %v312 = vld [vmem:[#allocation11 + $0xc40] sm:$0xff]
    %v313 = vld [vmem:[#allocation11 + $0xc48] sm:$0xff]
    %v314 = vld [vmem:[#allocation11 + $0xc50] sm:$0xff]
    %v315 = vld [vmem:[#allocation11 + $0xc58] sm:$0xff]
    %s316 = scalar_lea.vmem [#allocation11], 3168
    %v317 = vld [vmem:[%s316] ss:$8 sm:$0x3]
    %v318 = vld [vmem:[#allocation6] sm:$0xff]
    %v319 = vld [vmem:[#allocation6 + $0x8] sm:$0xff]
    %v320 = vld [vmem:[#allocation6 + $0x10] sm:$0xf]
    %v321 = vld [vmem:[#allocation6 + $0x18] sm:$0xf]
    %322 = vmatprep.subr.mxu0 0.0
    %323 = vmatpush1.msra.mxu0 %v54
    %324 = vmatprep.subr.mxu0 0.0
    %325 = vmatpush1.msra.mxu0 %v55
    %326 = vmatprep.subr.mxu0 0.0
    %327 = vmatpush1.msra.mxu0 %v56
    %328 = vmatprep.subr.mxu0 0.0
    %329 = vmatpush1.msra.mxu0 %v57
    %330 = vmatprep.subr.mxu0 0.0
    %331 = vmatpush1.msra.mxu0 %v58
    %332 = vmatprep.subr.mxu0 0.0
    %333 = vmatpush1.msra.mxu0 %v59
    %334 = vmatprep.subr.mxu0 0.0
    %335 = vmatpush1.msra.mxu0 %v60
    %336 = vmatprep.subr.mxu0 0.0
    %337 = vmatpush1.msra.mxu0 %v61
    %338 = vmatprep.subr.mxu0 0.0
    %339 = vmatpush1.msra.mxu0 %v62
    %340 = vmatprep.subr.mxu0 0.0
    %341 = vmatpush1.msra.mxu0 %v63
    %342 = vmatprep.subr.mxu0 0.0
    %343 = vmatpush1.msra.mxu0 %v64
    %344 = vmatprep.subr.mxu0 0.0
    %345 = vmatpush1.msra.mxu0 %v65
    %346 = vmatprep.subr.mxu0 0.0
    %347 = vmatpush1.msra.mxu0 %v66
    %348 = vmatprep.subr.mxu0 0.0
    %349 = vmatpush1.msra.mxu0 %v67
    %350 = vmatprep.subr.mxu0 0.0
    %351 = vmatpush1.msra.mxu0 %v68
    %352 = vmatprep.subr.mxu0 0.0
    %353 = vmatpush1.msra.mxu0 %v69
    %354 = vmatprep.subr.mxu0 0.0
    %355 = vmatpush1.msra.mxu0 %v70
    %356 = vmatprep.subr.mxu0 0.0
    %357 = vmatpush1.msra.mxu0 %v71
    %358 = vmatprep.subr.mxu0 0.0
    %359 = vmatpush1.msra.mxu0 %v72
    %360 = vmatprep.subr.mxu0 0.0
    %361 = vmatpush1.msra.mxu0 %v73
    %362 = vmatprep.subr.mxu0 0.0
    %363 = vmatpush1.msra.mxu0 %v74
    %364 = vmatprep.subr.mxu0 0.0
    %365 = vmatpush1.msra.mxu0 %v75
    %366 = vmatprep.subr.mxu0 0.0
    %367 = vmatpush1.msra.mxu0 %v76
    %368 = vmatprep.subr.mxu0 0.0
    %369 = vmatpush1.msra.mxu0 %v77
    %370 = vmatprep.subr.mxu0 0.0
    %371 = vmatpush1.msra.mxu0 %v78
    %372 = vmatprep.subr.mxu0 0.0
    %373 = vmatpush1.msra.mxu0 %v79
    %374 = vmatprep.subr.mxu0 0.0
    %375 = vmatpush1.msra.mxu0 %v80
    %376 = vmatprep.subr.mxu0 0.0
    %377 = vmatpush1.msra.mxu0 %v81
    %378 = vmatprep.subr.mxu0 0.0
    %379 = vmatpush1.msra.mxu0 %v82
    %380 = vmatprep.subr.mxu0 0.0
    %381 = vmatpush1.msra.mxu0 %v83
    %382 = vmatprep.subr.mxu0 0.0
    %383 = vmatpush1.msra.mxu0 %v84
    %384 = vmatprep.subr.mxu0 0.0
    %385 = vmatpush1.msra.mxu0 %v85
    %386 = vmatprep.mubr.f32.mxu0 %v319
    %387 = vmatmul.mubr.f32.gmra.mrb[0].mxu0 %v318
    %v388 = vpop.f32.mrb[0].mxu0
    %v389 = vadd.f32 %v90, %v388
    %v390 = vpop.f32.mrb[0].mxu0
    %391 = vmatprep.mubr.f32.mxu0 %v321
    %392 = vmatmul.mubr.f32.gmra.mrb[0].mxu0 %v320
    %v393 = vpop.f32.mrb[0].mxu0
    %v394 = vadd.f32 %v90, %v393
    %v395 = vpop.f32.mrb[0].mxu0
    %396 = vdwg.mxu0
    %397 = vst [vmem:[#allocation2] sm:$0xff] %v389
    %398 = vst [vmem:[#allocation2 + $0x8] sm:$0xf] %v394
    %v399 = vld [vmem:[#allocation2] sm:$0x1]
    %vm400 = vcmask 261120
    %v402 = vsel %vm400, 0.0, 0
    %404 = vmatprep.subr.mxu0 0.0
    %405 = vmatpush1.msra.mxu0 %v86
    %406 = vmatprep.subr.mxu0 0.0
    %407 = vmatpush1.msra.mxu0 %v87
    %408 = vmatprep.subr.mxu0 0.0
    %409 = vmatpush1.msra.mxu0 %v88
    %410 = vmatprep.subr.mxu0 0.0
    %411 = vmatpush1.msra.mxu0 %v89
    %412 = vmatprep.subr.mxu0 0.0
    %413 = vmatpush1.msra.mxu0 0.0
    %414 = vmatprep.subr.mxu0 0.0
    %415 = vmatpush1.msra.mxu0 0.0
    %416 = vmatprep.subr.mxu0 0.0
    %417 = vmatpush1.msra.mxu0 0.0
    %418 = vmatprep.subr.mxu0 0.0
    %419 = vmatpush1.msra.mxu0 0.0
    %420 = vmatprep.subr.mxu0 0.0
    %421 = vmatpush1.msra.mxu0 0.0
    %422 = vmatprep.subr.mxu0 0.0
    %423 = vmatpush1.msra.mxu0 0.0
    %424 = vmatprep.subr.mxu0 0.0
    %425 = vmatpush1.msra.mxu0 0.0
    %426 = vmatprep.subr.mxu0 0.0
    %427 = vmatpush1.msra.mxu0 0.0
    %428 = vmatprep.subr.mxu0 0.0
    %429 = vmatpush1.msra.mxu0 0.0
    %430 = vmatprep.subr.mxu0 0.0
    %431 = vmatpush1.msra.mxu0 0.0
    %432 = vmatprep.subr.mxu0 0.0
    %433 = vmatpush1.msra.mxu0 0.0
    %434 = vmatprep.subr.mxu0 0.0
    %435 = vmatpush1.msra.mxu0 0.0
    %436 = vmatprep.subr.mxu0 0.0
    %437 = vmatpush1.msra.mxu0 0.0
    %438 = vmatprep.subr.mxu0 0.0
    %439 = vmatpush1.msra.mxu0 0.0
    %440 = vmatprep.subr.mxu0 0.0
    %441 = vmatpush1.msra.mxu0 0.0
    %442 = vmatprep.subr.mxu0 0.0
    %443 = vmatpush1.msra.mxu0 0.0
    %444 = vmatprep.subr.mxu0 0.0
    %445 = vmatpush1.msra.mxu0 0.0
    %446 = vmatprep.subr.mxu0 0.0
    %447 = vmatpush1.msra.mxu0 0.0
    %448 = vmatprep.subr.mxu0 0.0
    %449 = vmatpush1.msra.mxu0 0.0
    %450 = vmatprep.subr.mxu0 0.0
    %451 = vmatpush1.msra.mxu0 0.0
    %452 = vmatprep.subr.mxu0 0.0
    %453 = vmatpush1.msra.mxu0 0.0
    %454 = vmatprep.subr.mxu0 0.0
    %455 = vmatpush1.msra.mxu0 0.0
    %456 = vmatprep.subr.mxu0 0.0
    %457 = vmatpush1.msra.mxu0 0.0
    %458 = vmatprep.subr.mxu0 0.0
    %459 = vmatpush1.msra.mxu0 0.0
    %460 = vmatprep.subr.mxu0 0.0
    %461 = vmatpush1.msra.mxu0 0.0
    %462 = vmatprep.subr.mxu0 0.0
    %463 = vmatpush1.msra.mxu0 0.0
    %464 = vmatprep.subr.mxu0 0.0
    %465 = vmatpush1.msra.mxu0 0.0
    %466 = vmatprep.subr.mxu0 0.0
    %467 = vmatpush1.msra.mxu0 0.0
    %468 = vmatprep.mubr.f32.mxu0 0.0
    %469 = vmatmul.mubr.f32.gmra.mrb[0].mxu0 %v402
    %v470 = vpop.f32.mrb[0].mxu0
    %v471 = vadd.f32 0.0, %v470
    %v472 = vpop.f32.mrb[0].mxu0
    %473 = vdwg.mxu0
    %v474 = vadd.f32 %v399, %v471
    %v475 = vxor.u32 %v474, 2147483648
    %v476 = vmul.f32 %v475, 1.442695
    %v477 = vpow.pop %v476
    %v478 = vadd.f32 %v477, 1.0
    %v479 = vrcp.pop %v478
    %v480 = vmul.f32 1.0, %v479
    %v481 = vtanh.pop %v474
    %v482 = vmul.f32 %v480, 0.0
    %484 = vrot.lane.b32.xlu0 %v481, 64
    %v485 = vpop.permute.xlu0 %484
    %v487 = vmul.f32 %v480, %v485
    %489 = vrot.lane.b32.xlu0 %v487, 32
    %v490 = vpop.permute.xlu0 %489
    %v492 = vadd.f32 %v482, %v490
    %v493 = vtanh.pop %v492
    %495 = vrot.lane.b32.xlu0 %v493, 64
    %v496 = vpop.permute.xlu0 %495
    %v498 = vmul.f32 %v480, %v496
    %500 = vrot.lane.b32.xlu0 %v498, 32
    %v501 = vpop.permute.xlu0 %500
    %vm503 = vcmask 253952
    %504 = vst.msk [vmem:[#allocation3] sm:$0x1] %vm503, %v501
    %v505 = vld [vmem:[#allocation2 + $0x1] sm:$0x1]
    %v506 = vsel %vm400, %v501, 0
    %508 = vmatprep.subr.mxu0 0.0
    %509 = vmatpush1.msra.mxu0 %v86
    %510 = vmatprep.subr.mxu0 0.0
    %511 = vmatpush1.msra.mxu0 %v87
    %512 = vmatprep.subr.mxu0 0.0
    %513 = vmatpush1.msra.mxu0 %v88
    %514 = vmatprep.subr.mxu0 0.0
    %515 = vmatpush1.msra.mxu0 %v89
    %516 = vmatprep.subr.mxu0 0.0
    %517 = vmatpush1.msra.mxu0 0.0
    %518 = vmatprep.subr.mxu0 0.0
    %519 = vmatpush1.msra.mxu0 0.0
    %520 = vmatprep.subr.mxu0 0.0
    %521 = vmatpush1.msra.mxu0 0.0
    %522 = vmatprep.subr.mxu0 0.0
    %523 = vmatpush1.msra.mxu0 0.0
    %524 = vmatprep.subr.mxu0 0.0
    %525 = vmatpush1.msra.mxu0 0.0
    %526 = vmatprep.subr.mxu0 0.0
    %527 = vmatpush1.msra.mxu0 0.0
    %528 = vmatprep.subr.mxu0 0.0
    %529 = vmatpush1.msra.mxu0 0.0
    %530 = vmatprep.subr.mxu0 0.0
    %531 = vmatpush1.msra.mxu0 0.0
    %532 = vmatprep.subr.mxu0 0.0
    %533 = vmatpush1.msra.mxu0 0.0
    %534 = vmatprep.subr.mxu0 0.0
    %535 = vmatpush1.msra.mxu0 0.0
    %536 = vmatprep.subr.mxu0 0.0
    %537 = vmatpush1.msra.mxu0 0.0
    %538 = vmatprep.subr.mxu0 0.0
    %539 = vmatpush1.msra.mxu0 0.0
    %540 = vmatprep.subr.mxu0 0.0
    %541 = vmatpush1.msra.mxu0 0.0
    %542 = vmatprep.subr.mxu0 0.0
    %543 = vmatpush1.msra.mxu0 0.0
    %544 = vmatprep.subr.mxu0 0.0
    %545 = vmatpush1.msra.mxu0 0.0
    %546 = vmatprep.subr.mxu0 0.0
    %547 = vmatpush1.msra.mxu0 0.0
    %548 = vmatprep.subr.mxu0 0.0
    %549 = vmatpush1.msra.mxu0 0.0
    %550 = vmatprep.subr.mxu0 0.0
    %551 = vmatpush1.msra.mxu0 0.0
    %552 = vmatprep.subr.mxu0 0.0
    %553 = vmatpush1.msra.mxu0 0.0
    %554 = vmatprep.subr.mxu0 0.0
    %555 = vmatpush1.msra.mxu0 0.0
    %556 = vmatprep.subr.mxu0 0.0
    %557 = vmatpush1.msra.mxu0 0.0
    %558 = vmatprep.subr.mxu0 0.0
    %559 = vmatpush1.msra.mxu0 0.0
    %560 = vmatprep.subr.mxu0 0.0
    %561 = vmatpush1.msra.mxu0 0.0
    %562 = vmatprep.subr.mxu0 0.0
    %563 = vmatpush1.msra.mxu0 0.0
    %564 = vmatprep.subr.mxu0 0.0
    %565 = vmatpush1.msra.mxu0 0.0
    %566 = vmatprep.subr.mxu0 0.0
    %567 = vmatpush1.msra.mxu0 0.0
    %568 = vmatprep.subr.mxu0 0.0
    %569 = vmatpush1.msra.mxu0 0.0
    %570 = vmatprep.subr.mxu0 0.0
    %571 = vmatpush1.msra.mxu0 0.0
    %572 = vmatprep.mubr.f32.mxu0 0.0
    %573 = vmatmul.mubr.f32.gmra.mrb[0].mxu0 %v506
    %v574 = vpop.f32.mrb[0].mxu0
    %v575 = vadd.f32 0.0, %v574
    %v576 = vpop.f32.mrb[0].mxu0
    %577 = vdwg.mxu0
    %v578 = vadd.f32 %v505, %v575
    %v579 = vxor.u32 %v578, 2147483648
    %v580 = vmul.f32 %v579, 1.442695
    %v581 = vpow.pop %v580
    %v582 = vadd.f32 %v581, 1.0
    %v583 = vrcp.pop %v582
    %v584 = vmul.f32 1.0, %v583
    %v585 = vtanh.pop %v578
    %v586 = vmul.f32 %v584, %v492
    %588 = vrot.lane.b32.xlu0 %v585, 64
    %v589 = vpop.permute.xlu0 %588
    %v591 = vmul.f32 %v584, %v589
    %593 = vrot.lane.b32.xlu0 %v591, 32
    %v594 = vpop.permute.xlu0 %593
    %v596 = vadd.f32 %v586, %v594
    %v597 = vtanh.pop %v596
    %599 = vrot.lane.b32.xlu0 %v597, 64
    %v600 = vpop.permute.xlu0 %599
    %v602 = vmul.f32 %v584, %v600
    %604 = vrot.lane.b32.xlu0 %v602, 32
    %v605 = vpop.permute.xlu0 %604
    %607 = vst.msk [vmem:[#allocation3 + $0x1] sm:$0x1] %vm503, %v605
    %v608 = vld [vmem:[#allocation2 + $0x2] sm:$0x1]
    %v609 = vsel %vm400, %v605, 0
    %611 = vmatprep.subr.mxu0 0.0
    %612 = vmatpush1.msra.mxu0 %v86
    %613 = vmatprep.subr.mxu0 0.0
    %614 = vmatpush1.msra.mxu0 %v87
    %615 = vmatprep.subr.mxu0 0.0
    %616 = vmatpush1.msra.mxu0 %v88
    %617 = vmatprep.subr.mxu0 0.0
    %618 = vmatpush1.msra.mxu0 %v89
    %619 = vmatprep.subr.mxu0 0.0
    %620 = vmatpush1.msra.mxu0 0.0
    %621 = vmatprep.subr.mxu0 0.0
    %622 = vmatpush1.msra.mxu0 0.0
    %623 = vmatprep.subr.mxu0 0.0
    %624 = vmatpush1.msra.mxu0 0.0
    %625 = vmatprep.subr.mxu0 0.0
    %626 = vmatpush1.msra.mxu0 0.0
    %627 = vmatprep.subr.mxu0 0.0
    %628 = vmatpush1.msra.mxu0 0.0
    %629 = vmatprep.subr.mxu0 0.0
    %630 = vmatpush1.msra.mxu0 0.0
    %631 = vmatprep.subr.mxu0 0.0
    %632 = vmatpush1.msra.mxu0 0.0
    %633 = vmatprep.subr.mxu0 0.0
    %634 = vmatpush1.msra.mxu0 0.0
    %635 = vmatprep.subr.mxu0 0.0
    %636 = vmatpush1.msra.mxu0 0.0
    %637 = vmatprep.subr.mxu0 0.0
    %638 = vmatpush1.msra.mxu0 0.0
    %639 = vmatprep.subr.mxu0 0.0
    %640 = vmatpush1.msra.mxu0 0.0
    %641 = vmatprep.subr.mxu0 0.0
    %642 = vmatpush1.msra.mxu0 0.0
    %643 = vmatprep.subr.mxu0 0.0
    %644 = vmatpush1.msra.mxu0 0.0
    %645 = vmatprep.subr.mxu0 0.0
    %646 = vmatpush1.msra.mxu0 0.0
    %647 = vmatprep.subr.mxu0 0.0
    %648 = vmatpush1.msra.mxu0 0.0
    %649 = vmatprep.subr.mxu0 0.0
    %650 = vmatpush1.msra.mxu0 0.0
    %651 = vmatprep.subr.mxu0 0.0
    %652 = vmatpush1.msra.mxu0 0.0
    %653 = vmatprep.subr.mxu0 0.0
    %654 = vmatpush1.msra.mxu0 0.0
    %655 = vmatprep.subr.mxu0 0.0
    %656 = vmatpush1.msra.mxu0 0.0
    %657 = vmatprep.subr.mxu0 0.0
    %658 = vmatpush1.msra.mxu0 0.0
    %659 = vmatprep.subr.mxu0 0.0
    %660 = vmatpush1.msra.mxu0 0.0
    %661 = vmatprep.subr.mxu0 0.0
    %662 = vmatpush1.msra.mxu0 0.0
    %663 = vmatprep.subr.mxu0 0.0
    %664 = vmatpush1.msra.mxu0 0.0
    %665 = vmatprep.subr.mxu0 0.0
    %666 = vmatpush1.msra.mxu0 0.0
    %667 = vmatprep.subr.mxu0 0.0
    %668 = vmatpush1.msra.mxu0 0.0
    %669 = vmatprep.subr.mxu0 0.0
    %670 = vmatpush1.msra.mxu0 0.0
    %671 = vmatprep.subr.mxu0 0.0
    %672 = vmatpush1.msra.mxu0 0.0
    %673 = vmatprep.subr.mxu0 0.0
    %674 = vmatpush1.msra.mxu0 0.0
    %675 = vmatprep.mubr.f32.mxu0 0.0
    %676 = vmatmul.mubr.f32.gmra.mrb[0].mxu0 %v609
    %v677 = vpop.f32.mrb[0].mxu0
    %v678 = vadd.f32 0.0, %v677
    %v679 = vpop.f32.mrb[0].mxu0
    %680 = vdwg.mxu0
    %v681 = vadd.f32 %v608, %v678
    %v682 = vxor.u32 %v681, 2147483648
    %v683 = vmul.f32 %v682, 1.442695
    %v684 = vpow.pop %v683
    %v685 = vadd.f32 %v684, 1.0
    %v686 = vrcp.pop %v685
    %v687 = vmul.f32 1.0, %v686
    %v688 = vtanh.pop %v681
    %v689 = vmul.f32 %v687, %v596
    %691 = vrot.lane.b32.xlu0 %v688, 64
    %v692 = vpop.permute.xlu0 %691
    %v694 = vmul.f32 %v687, %v692
    %696 = vrot.lane.b32.xlu0 %v694, 32
    %v697 = vpop.permute.xlu0 %696
    %v699 = vadd.f32 %v689, %v697
    %v700 = vtanh.pop %v699
    %702 = vrot.lane.b32.xlu0 %v700, 64
    %v703 = vpop.permute.xlu0 %702
    %v705 = vmul.f32 %v687, %v703
    %707 = vrot.lane.b32.xlu0 %v705, 32
    %v708 = vpop.permute.xlu0 %707
    %710 = vst.msk [vmem:[#allocation3 + $0x2] sm:$0x1] %vm503, %v708
    %v711 = vld [vmem:[#allocation2 + $0x3] sm:$0x1]
    %v712 = vsel %vm400, %v708, 0
    %714 = vmatprep.subr.mxu0 0.0
    %715 = vmatpush1.msra.mxu0 %v86
    %716 = vmatprep.subr.mxu0 0.0
    %717 = vmatpush1.msra.mxu0 %v87
    %718 = vmatprep.subr.mxu0 0.0
    %719 = vmatpush1.msra.mxu0 %v88
    %720 = vmatprep.subr.mxu0 0.0
    %721 = vmatpush1.msra.mxu0 %v89
    %722 = vmatprep.subr.mxu0 0.0
    %723 = vmatpush1.msra.mxu0 0.0
    %724 = vmatprep.subr.mxu0 0.0
    %725 = vmatpush1.msra.mxu0 0.0
    %726 = vmatprep.subr.mxu0 0.0
    %727 = vmatpush1.msra.mxu0 0.0
    %728 = vmatprep.subr.mxu0 0.0
    %729 = vmatpush1.msra.mxu0 0.0
    %730 = vmatprep.subr.mxu0 0.0
    %731 = vmatpush1.msra.mxu0 0.0
    %732 = vmatprep.subr.mxu0 0.0
    %733 = vmatpush1.msra.mxu0 0.0
    %734 = vmatprep.subr.mxu0 0.0
    %735 = vmatpush1.msra.mxu0 0.0
    %736 = vmatprep.subr.mxu0 0.0
    %737 = vmatpush1.msra.mxu0 0.0
    %738 = vmatprep.subr.mxu0 0.0
    %739 = vmatpush1.msra.mxu0 0.0
    %740 = vmatprep.subr.mxu0 0.0
    %741 = vmatpush1.msra.mxu0 0.0
    %742 = vmatprep.subr.mxu0 0.0
    %743 = vmatpush1.msra.mxu0 0.0
    %744 = vmatprep.subr.mxu0 0.0
    %745 = vmatpush1.msra.mxu0 0.0
    %746 = vmatprep.subr.mxu0 0.0
    %747 = vmatpush1.msra.mxu0 0.0
    %748 = vmatprep.subr.mxu0 0.0
    %749 = vmatpush1.msra.mxu0 0.0
    %750 = vmatprep.subr.mxu0 0.0
    %751 = vmatpush1.msra.mxu0 0.0
    %752 = vmatprep.subr.mxu0 0.0
    %753 = vmatpush1.msra.mxu0 0.0
    %754 = vmatprep.subr.mxu0 0.0
    %755 = vmatpush1.msra.mxu0 0.0
    %756 = vmatprep.subr.mxu0 0.0
    %757 = vmatpush1.msra.mxu0 0.0
    %758 = vmatprep.subr.mxu0 0.0
    %759 = vmatpush1.msra.mxu0 0.0
    %760 = vmatprep.subr.mxu0 0.0
    %761 = vmatpush1.msra.mxu0 0.0
    %762 = vmatprep.subr.mxu0 0.0
    %763 = vmatpush1.msra.mxu0 0.0
    %764 = vmatprep.subr.mxu0 0.0
    %765 = vmatpush1.msra.mxu0 0.0
    %766 = vmatprep.subr.mxu0 0.0
    %767 = vmatpush1.msra.mxu0 0.0
    %768 = vmatprep.subr.mxu0 0.0
    %769 = vmatpush1.msra.mxu0 0.0
    %770 = vmatprep.subr.mxu0 0.0
    %771 = vmatpush1.msra.mxu0 0.0
    %772 = vmatprep.subr.mxu0 0.0
    %773 = vmatpush1.msra.mxu0 0.0
    %774 = vmatprep.subr.mxu0 0.0
    %775 = vmatpush1.msra.mxu0 0.0
    %776 = vmatprep.subr.mxu0 0.0
    %777 = vmatpush1.msra.mxu0 0.0
    %778 = vmatprep.mubr.f32.mxu0 0.0
    %779 = vmatmul.mubr.f32.gmra.mrb[0].mxu0 %v712
    %v780 = vpop.f32.mrb[0].mxu0
    %v781 = vadd.f32 0.0, %v780
    %v782 = vpop.f32.mrb[0].mxu0
    %783 = vdwg.mxu0
    %v784 = vadd.f32 %v711, %v781
    %v785 = vxor.u32 %v784, 2147483648
    %v786 = vmul.f32 %v785, 1.442695
    %v787 = vpow.pop %v786
    %v788 = vadd.f32 %v787, 1.0
    %v789 = vrcp.pop %v788
    %v790 = vmul.f32 1.0, %v789
    %v791 = vtanh.pop %v784
    %v792 = vmul.f32 %v790, %v699
    %794 = vrot.lane.b32.xlu0 %v791, 64
    %v795 = vpop.permute.xlu0 %794
    %v797 = vmul.f32 %v790, %v795
    %799 = vrot.lane.b32.xlu0 %v797, 32
    %v800 = vpop.permute.xlu0 %799
    %v802 = vadd.f32 %v792, %v800
    %v803 = vtanh.pop %v802
    %805 = vrot.lane.b32.xlu0 %v803, 64
    %v806 = vpop.permute.xlu0 %805
    %v808 = vmul.f32 %v790, %v806
    %810 = vrot.lane.b32.xlu0 %v808, 32
    %v811 = vpop.permute.xlu0 %810
    %813 = vst.msk [vmem:[#allocation3 + $0x3] sm:$0x1] %vm503, %v811
    %v814 = vld [vmem:[#allocation2 + $0x4] sm:$0x1]
    %v815 = vsel %vm400, %v811, 0
    %817 = vmatprep.subr.mxu0 0.0
    %818 = vmatpush1.msra.mxu0 %v86
    %819 = vmatprep.subr.mxu0 0.0
    %820 = vmatpush1.msra.mxu0 %v87
    %821 = vmatprep.subr.mxu0 0.0
    %822 = vmatpush1.msra.mxu0 %v88
    %823 = vmatprep.subr.mxu0 0.0
    %824 = vmatpush1.msra.mxu0 %v89
    %825 = vmatprep.subr.mxu0 0.0
    %826 = vmatpush1.msra.mxu0 0.0
    %827 = vmatprep.subr.mxu0 0.0
    %828 = vmatpush1.msra.mxu0 0.0
    %829 = vmatprep.subr.mxu0 0.0
    %830 = vmatpush1.msra.mxu0 0.0
    %831 = vmatprep.subr.mxu0 0.0
    %832 = vmatpush1.msra.mxu0 0.0
    %833 = vmatprep.subr.mxu0 0.0
    %834 = vmatpush1.msra.mxu0 0.0
    %835 = vmatprep.subr.mxu0 0.0
    %836 = vmatpush1.msra.mxu0 0.0
    %837 = vmatprep.subr.mxu0 0.0
    %838 = vmatpush1.msra.mxu0 0.0
    %839 = vmatprep.subr.mxu0 0.0
    %840 = vmatpush1.msra.mxu0 0.0
    %841 = vmatprep.subr.mxu0 0.0
    %842 = vmatpush1.msra.mxu0 0.0
    %843 = vmatprep.subr.mxu0 0.0
    %844 = vmatpush1.msra.mxu0 0.0
    %845 = vmatprep.subr.mxu0 0.0
    %846 = vmatpush1.msra.mxu0 0.0
    %847 = vmatprep.subr.mxu0 0.0
    %848 = vmatpush1.msra.mxu0 0.0
    %849 = vmatprep.subr.mxu0 0.0
    %850 = vmatpush1.msra.mxu0 0.0
    %851 = vmatprep.subr.mxu0 0.0
    %852 = vmatpush1.msra.mxu0 0.0
    %853 = vmatprep.subr.mxu0 0.0
    %854 = vmatpush1.msra.mxu0 0.0
    %855 = vmatprep.subr.mxu0 0.0
    %856 = vmatpush1.msra.mxu0 0.0
    %857 = vmatprep.subr.mxu0 0.0
    %858 = vmatpush1.msra.mxu0 0.0
    %859 = vmatprep.subr.mxu0 0.0
    %860 = vmatpush1.msra.mxu0 0.0
    %861 = vmatprep.subr.mxu0 0.0
    %862 = vmatpush1.msra.mxu0 0.0
    %863 = vmatprep.subr.mxu0 0.0
    %864 = vmatpush1.msra.mxu0 0.0
    %865 = vmatprep.subr.mxu0 0.0
    %866 = vmatpush1.msra.mxu0 0.0
    %867 = vmatprep.subr.mxu0 0.0
    %868 = vmatpush1.msra.mxu0 0.0
    %869 = vmatprep.subr.mxu0 0.0
    %870 = vmatpush1.msra.mxu0 0.0
    %871 = vmatprep.subr.mxu0 0.0
    %872 = vmatpush1.msra.mxu0 0.0
    %873 = vmatprep.subr.mxu0 0.0
    %874 = vmatpush1.msra.mxu0 0.0
    %875 = vmatprep.subr.mxu0 0.0
    %876 = vmatpush1.msra.mxu0 0.0
    %877 = vmatprep.subr.mxu0 0.0
    %878 = vmatpush1.msra.mxu0 0.0
    %879 = vmatprep.subr.mxu0 0.0
    %880 = vmatpush1.msra.mxu0 0.0
    %881 = vmatprep.mubr.f32.mxu0 0.0
    %882 = vmatmul.mubr.f32.gmra.mrb[0].mxu0 %v815
    %v883 = vpop.f32.mrb[0].mxu0
    %v884 = vadd.f32 0.0, %v883
    %v885 = vpop.f32.mrb[0].mxu0
    %886 = vdwg.mxu0
    %v887 = vadd.f32 %v814, %v884
    %v888 = vxor.u32 %v887, 2147483648
    %v889 = vmul.f32 %v888, 1.442695
    %v890 = vpow.pop %v889
    %v891 = vadd.f32 %v890, 1.0
    %v892 = vrcp.pop %v891
    %v893 = vmul.f32 1.0, %v892
    %v894 = vtanh.pop %v887
    %v895 = vmul.f32 %v893, %v802
    %897 = vrot.lane.b32.xlu0 %v894, 64
    %v898 = vpop.permute.xlu0 %897
    %v900 = vmul.f32 %v893, %v898
    %902 = vrot.lane.b32.xlu0 %v900, 32
    %v903 = vpop.permute.xlu0 %902
    %v905 = vadd.f32 %v895, %v903
    %v906 = vtanh.pop %v905
    %908 = vrot.lane.b32.xlu0 %v906, 64
    %v909 = vpop.permute.xlu0 %908
    %v911 = vmul.f32 %v893, %v909
    %913 = vrot.lane.b32.xlu0 %v911, 32
    %v914 = vpop.permute.xlu0 %913
    %916 = vst.msk [vmem:[#allocation3 + $0x4] sm:$0x1] %vm503, %v914
    %v917 = vld [vmem:[#allocation2 + $0x5] sm:$0x1]
    %v918 = vsel %vm400, %v914, 0
    %920 = vmatprep.subr.mxu0 0.0
    %921 = vmatpush1.msra.mxu0 %v86
    %922 = vmatprep.subr.mxu0 0.0
    %923 = vmatpush1.msra.mxu0 %v87
    %924 = vmatprep.subr.mxu0 0.0
    %925 = vmatpush1.msra.mxu0 %v88
    %926 = vmatprep.subr.mxu0 0.0
    %927 = vmatpush1.msra.mxu0 %v89
    %928 = vmatprep.subr.mxu0 0.0
    %929 = vmatpush1.msra.mxu0 0.0
    %930 = vmatprep.subr.mxu0 0.0
    %931 = vmatpush1.msra.mxu0 0.0
    %932 = vmatprep.subr.mxu0 0.0
    %933 = vmatpush1.msra.mxu0 0.0
    %934 = vmatprep.subr.mxu0 0.0
    %935 = vmatpush1.msra.mxu0 0.0
    %936 = vmatprep.subr.mxu0 0.0
    %937 = vmatpush1.msra.mxu0 0.0
    %938 = vmatprep.subr.mxu0 0.0
    %939 = vmatpush1.msra.mxu0 0.0
    %940 = vmatprep.subr.mxu0 0.0
    %941 = vmatpush1.msra.mxu0 0.0
    %942 = vmatprep.subr.mxu0 0.0
    %943 = vmatpush1.msra.mxu0 0.0
    %944 = vmatprep.subr.mxu0 0.0
    %945 = vmatpush1.msra.mxu0 0.0
    %946 = vmatprep.subr.mxu0 0.0
    %947 = vmatpush1.msra.mxu0 0.0
    %948 = vmatprep.subr.mxu0 0.0
    %949 = vmatpush1.msra.mxu0 0.0
    %950 = vmatprep.subr.mxu0 0.0
    %951 = vmatpush1.msra.mxu0 0.0
    %952 = vmatprep.subr.mxu0 0.0
    %953 = vmatpush1.msra.mxu0 0.0
    %954 = vmatprep.subr.mxu0 0.0
    %955 = vmatpush1.msra.mxu0 0.0
    %956 = vmatprep.subr.mxu0 0.0
    %957 = vmatpush1.msra.mxu0 0.0
    %958 = vmatprep.subr.mxu0 0.0
    %959 = vmatpush1.msra.mxu0 0.0
    %960 = vmatprep.subr.mxu0 0.0
    %961 = vmatpush1.msra.mxu0 0.0
    %962 = vmatprep.subr.mxu0 0.0
    %963 = vmatpush1.msra.mxu0 0.0
    %964 = vmatprep.subr.mxu0 0.0
    %965 = vmatpush1.msra.mxu0 0.0
    %966 = vmatprep.subr.mxu0 0.0
    %967 = vmatpush1.msra.mxu0 0.0
    %968 = vmatprep.subr.mxu0 0.0
    %969 = vmatpush1.msra.mxu0 0.0
    %970 = vmatprep.subr.mxu0 0.0
    %971 = vmatpush1.msra.mxu0 0.0
    %972 = vmatprep.subr.mxu0 0.0
    %973 = vmatpush1.msra.mxu0 0.0
    %974 = vmatprep.subr.mxu0 0.0
    %975 = vmatpush1.msra.mxu0 0.0
    %976 = vmatprep.subr.mxu0 0.0
    %977 = vmatpush1.msra.mxu0 0.0
    %978 = vmatprep.subr.mxu0 0.0
    %979 = vmatpush1.msra.mxu0 0.0
    %980 = vmatprep.subr.mxu0 0.0
    %981 = vmatpush1.msra.mxu0 0.0
    %982 = vmatprep.subr.mxu0 0.0
    %983 = vmatpush1.msra.mxu0 0.0
    %984 = vmatprep.mubr.f32.mxu0 0.0
    %985 = vmatmul.mubr.f32.gmra.mrb[0].mxu0 %v918
    %v986 = vpop.f32.mrb[0].mxu0
    %v987 = vadd.f32 0.0, %v986
    %v988 = vpop.f32.mrb[0].mxu0
    %989 = vdwg.mxu0
    %v990 = vadd.f32 %v917, %v987
    %v991 = vxor.u32 %v990, 2147483648
    %v992 = vmul.f32 %v991, 1.442695
    %v993 = vpow.pop %v992
    %v994 = vadd.f32 %v993, 1.0
    %v995 = vrcp.pop %v994
    %v996 = vmul.f32 1.0, %v995
    %v997 = vtanh.pop %v990
    %v998 = vmul.f32 %v996, %v905
    %1000 = vrot.lane.b32.xlu0 %v997, 64
    %v1001 = vpop.permute.xlu0 %1000
    %v1003 = vmul.f32 %v996, %v1001
    %1005 = vrot.lane.b32.xlu0 %v1003, 32
    %v1006 = vpop.permute.xlu0 %1005
    %v1008 = vadd.f32 %v998, %v1006
    %v1009 = vtanh.pop %v1008
    %1011 = vrot.lane.b32.xlu0 %v1009, 64
    %v1012 = vpop.permute.xlu0 %1011
    %v1014 = vmul.f32 %v996, %v1012
    %1016 = vrot.lane.b32.xlu0 %v1014, 32
    %v1017 = vpop.permute.xlu0 %1016
    %1019 = vst.msk [vmem:[#allocation3 + $0x5] sm:$0x1] %vm503, %v1017
    %v1020 = vld [vmem:[#allocation2 + $0x6] sm:$0x1]
    %v1021 = vsel %vm400, %v1017, 0
    %1023 = vmatprep.subr.mxu0 0.0
    %1024 = vmatpush1.msra.mxu0 %v86
    %1025 = vmatprep.subr.mxu0 0.0
    %1026 = vmatpush1.msra.mxu0 %v87
    %1027 = vmatprep.subr.mxu0 0.0
    %1028 = vmatpush1.msra.mxu0 %v88
    %1029 = vmatprep.subr.mxu0 0.0
    %1030 = vmatpush1.msra.mxu0 %v89
    %1031 = vmatprep.subr.mxu0 0.0
    %1032 = vmatpush1.msra.mxu0 0.0
    %1033 = vmatprep.subr.mxu0 0.0
    %1034 = vmatpush1.msra.mxu0 0.0
    %1035 = vmatprep.subr.mxu0 0.0
    %1036 = vmatpush1.msra.mxu0 0.0
    %1037 = vmatprep.subr.mxu0 0.0
    %1038 = vmatpush1.msra.mxu0 0.0
    %1039 = vmatprep.subr.mxu0 0.0
    %1040 = vmatpush1.msra.mxu0 0.0
    %1041 = vmatprep.subr.mxu0 0.0
    %1042 = vmatpush1.msra.mxu0 0.0
    %1043 = vmatprep.subr.mxu0 0.0
    %1044 = vmatpush1.msra.mxu0 0.0
    %1045 = vmatprep.subr.mxu0 0.0
    %1046 = vmatpush1.msra.mxu0 0.0
    %1047 = vmatprep.subr.mxu0 0.0
    %1048 = vmatpush1.msra.mxu0 0.0
    %1049 = vmatprep.subr.mxu0 0.0
    %1050 = vmatpush1.msra.mxu0 0.0
    %1051 = vmatprep.subr.mxu0 0.0
    %1052 = vmatpush1.msra.mxu0 0.0
    %1053 = vmatprep.subr.mxu0 0.0
    %1054 = vmatpush1.msra.mxu0 0.0
    %1055 = vmatprep.subr.mxu0 0.0
    %1056 = vmatpush1.msra.mxu0 0.0
    %1057 = vmatprep.subr.mxu0 0.0
    %1058 = vmatpush1.msra.mxu0 0.0
    %1059 = vmatprep.subr.mxu0 0.0
    %1060 = vmatpush1.msra.mxu0 0.0
    %1061 = vmatprep.subr.mxu0 0.0
    %1062 = vmatpush1.msra.mxu0 0.0
    %1063 = vmatprep.subr.mxu0 0.0
    %1064 = vmatpush1.msra.mxu0 0.0
    %1065 = vmatprep.subr.mxu0 0.0
    %1066 = vmatpush1.msra.mxu0 0.0
    %1067 = vmatprep.subr.mxu0 0.0
    %1068 = vmatpush1.msra.mxu0 0.0
    %1069 = vmatprep.subr.mxu0 0.0
    %1070 = vmatpush1.msra.mxu0 0.0
    %1071 = vmatprep.subr.mxu0 0.0
    %1072 = vmatpush1.msra.mxu0 0.0
    %1073 = vmatprep.subr.mxu0 0.0
    %1074 = vmatpush1.msra.mxu0 0.0
    %1075 = vmatprep.subr.mxu0 0.0
    %1076 = vmatpush1.msra.mxu0 0.0
    %1077 = vmatprep.subr.mxu0 0.0
    %1078 = vmatpush1.msra.mxu0 0.0
    %1079 = vmatprep.subr.mxu0 0.0
    %1080 = vmatpush1.msra.mxu0 0.0
    %1081 = vmatprep.subr.mxu0 0.0
    %1082 = vmatpush1.msra.mxu0 0.0
    %1083 = vmatprep.subr.mxu0 0.0
    %1084 = vmatpush1.msra.mxu0 0.0
    %1085 = vmatprep.subr.mxu0 0.0
    %1086 = vmatpush1.msra.mxu0 0.0
    %1087 = vmatprep.mubr.f32.mxu0 0.0
    %1088 = vmatmul.mubr.f32.gmra.mrb[0].mxu0 %v1021
    %v1089 = vpop.f32.mrb[0].mxu0
    %v1090 = vadd.f32 0.0, %v1089
    %v1091 = vpop.f32.mrb[0].mxu0
    %1092 = vdwg.mxu0
    %v1093 = vadd.f32 %v1020, %v1090
    %v1094 = vxor.u32 %v1093, 2147483648
    %v1095 = vmul.f32 %v1094, 1.442695
    %v1096 = vpow.pop %v1095
    %v1097 = vadd.f32 %v1096, 1.0
    %v1098 = vrcp.pop %v1097
    %v1099 = vmul.f32 1.0, %v1098
    %v1100 = vtanh.pop %v1093
    %v1101 = vmul.f32 %v1099, %v1008
    %1103 = vrot.lane.b32.xlu0 %v1100, 64
    %v1104 = vpop.permute.xlu0 %1103
    %v1106 = vmul.f32 %v1099, %v1104
    %1108 = vrot.lane.b32.xlu0 %v1106, 32
    %v1109 = vpop.permute.xlu0 %1108
    %v1111 = vadd.f32 %v1101, %v1109
    %v1112 = vtanh.pop %v1111
    %1114 = vrot.lane.b32.xlu0 %v1112, 64
    %v1115 = vpop.permute.xlu0 %1114
    %v1117 = vmul.f32 %v1099, %v1115
    %1119 = vrot.lane.b32.xlu0 %v1117, 32
    %v1120 = vpop.permute.xlu0 %1119
    %1122 = vst.msk [vmem:[#allocation3 + $0x6] sm:$0x1] %vm503, %v1120
    %v1123 = vld [vmem:[#allocation2 + $0x7] sm:$0x1]
    %v1124 = vsel %vm400, %v1120, 0
    %1126 = vmatprep.subr.mxu0 0.0
    %1127 = vmatpush1.msra.mxu0 %v86
    %1128 = vmatprep.subr.mxu0 0.0
    %1129 = vmatpush1.msra.mxu0 %v87
    %1130 = vmatprep.subr.mxu0 0.0
    %1131 = vmatpush1.msra.mxu0 %v88
    %1132 = vmatprep.subr.mxu0 0.0
    %1133 = vmatpush1.msra.mxu0 %v89
    %1134 = vmatprep.subr.mxu0 0.0
    %1135 = vmatpush1.msra.mxu0 0.0
    %1136 = vmatprep.subr.mxu0 0.0
    %1137 = vmatpush1.msra.mxu0 0.0
    %1138 = vmatprep.subr.mxu0 0.0
    %1139 = vmatpush1.msra.mxu0 0.0
    %1140 = vmatprep.subr.mxu0 0.0
    %1141 = vmatpush1.msra.mxu0 0.0
    %1142 = vmatprep.subr.mxu0 0.0
    %1143 = vmatpush1.msra.mxu0 0.0
    %1144 = vmatprep.subr.mxu0 0.0
    %1145 = vmatpush1.msra.mxu0 0.0
    %1146 = vmatprep.subr.mxu0 0.0
    %1147 = vmatpush1.msra.mxu0 0.0
    %1148 = vmatprep.subr.mxu0 0.0
    %1149 = vmatpush1.msra.mxu0 0.0
    %1150 = vmatprep.subr.mxu0 0.0
    %1151 = vmatpush1.msra.mxu0 0.0
    %1152 = vmatprep.subr.mxu0 0.0
    %1153 = vmatpush1.msra.mxu0 0.0
    %1154 = vmatprep.subr.mxu0 0.0
    %1155 = vmatpush1.msra.mxu0 0.0
    %1156 = vmatprep.subr.mxu0 0.0
    %1157 = vmatpush1.msra.mxu0 0.0
    %1158 = vmatprep.subr.mxu0 0.0
    %1159 = vmatpush1.msra.mxu0 0.0
    %1160 = vmatprep.subr.mxu0 0.0
    %1161 = vmatpush1.msra.mxu0 0.0
    %1162 = vmatprep.subr.mxu0 0.0
    %1163 = vmatpush1.msra.mxu0 0.0
    %1164 = vmatprep.subr.mxu0 0.0
    %1165 = vmatpush1.msra.mxu0 0.0
    %1166 = vmatprep.subr.mxu0 0.0
    %1167 = vmatpush1.msra.mxu0 0.0
    %1168 = vmatprep.subr.mxu0 0.0
    %1169 = vmatpush1.msra.mxu0 0.0
    %1170 = vmatprep.subr.mxu0 0.0
    %1171 = vmatpush1.msra.mxu0 0.0
    %1172 = vmatprep.subr.mxu0 0.0
    %1173 = vmatpush1.msra.mxu0 0.0
    %1174 = vmatprep.subr.mxu0 0.0
    %1175 = vmatpush1.msra.mxu0 0.0
    %1176 = vmatprep.subr.mxu0 0.0
    %1177 = vmatpush1.msra.mxu0 0.0
    %1178 = vmatprep.subr.mxu0 0.0
    %1179 = vmatpush1.msra.mxu0 0.0
    %1180 = vmatprep.subr.mxu0 0.0
    %1181 = vmatpush1.msra.mxu0 0.0
    %1182 = vmatprep.subr.mxu0 0.0
    %1183 = vmatpush1.msra.mxu0 0.0
    %1184 = vmatprep.subr.mxu0 0.0
    %1185 = vmatpush1.msra.mxu0 0.0
    %1186 = vmatprep.subr.mxu0 0.0
    %1187 = vmatpush1.msra.mxu0 0.0
    %1188 = vmatprep.subr.mxu0 0.0
    %1189 = vmatpush1.msra.mxu0 0.0
    %1190 = vmatprep.mubr.f32.mxu0 0.0
    %1191 = vmatmul.mubr.f32.gmra.mrb[0].mxu0 %v1124
    %v1192 = vpop.f32.mrb[0].mxu0
    %v1193 = vadd.f32 0.0, %v1192
    %v1194 = vpop.f32.mrb[0].mxu0
    %1195 = vdwg.mxu0
    %v1196 = vadd.f32 %v1123, %v1193
    %v1197 = vxor.u32 %v1196, 2147483648
    %v1198 = vmul.f32 %v1197, 1.442695
    %v1199 = vpow.pop %v1198
    %v1200 = vadd.f32 %v1199, 1.0
    %v1201 = vrcp.pop %v1200
    %v1202 = vmul.f32 1.0, %v1201
    %v1203 = vtanh.pop %v1196
    %v1204 = vmul.f32 %v1202, %v1111
    %1206 = vrot.lane.b32.xlu0 %v1203, 64
    %v1207 = vpop.permute.xlu0 %1206
    %v1209 = vmul.f32 %v1202, %v1207
    %1211 = vrot.lane.b32.xlu0 %v1209, 32
    %v1212 = vpop.permute.xlu0 %1211
    %v1214 = vadd.f32 %v1204, %v1212
    %v1215 = vtanh.pop %v1214
    %1217 = vrot.lane.b32.xlu0 %v1215, 64
    %v1218 = vpop.permute.xlu0 %1217
    %v1220 = vmul.f32 %v1202, %v1218
    %1222 = vrot.lane.b32.xlu0 %v1220, 32
    %v1223 = vpop.permute.xlu0 %1222
    %1225 = vst.msk [vmem:[#allocation3 + $0x7] sm:$0x1] %vm503, %v1223
    %v1226 = vld [vmem:[#allocation2 + $0x8] sm:$0x1]
    %v1227 = vsel %vm400, %v1223, 0
    %1229 = vmatprep.subr.mxu0 0.0
    %1230 = vmatpush1.msra.mxu0 %v86
    %1231 = vmatprep.subr.mxu0 0.0
    %1232 = vmatpush1.msra.mxu0 %v87
    %1233 = vmatprep.subr.mxu0 0.0
    %1234 = vmatpush1.msra.mxu0 %v88
    %1235 = vmatprep.subr.mxu0 0.0
    %1236 = vmatpush1.msra.mxu0 %v89
    %1237 = vmatprep.subr.mxu0 0.0
    %1238 = vmatpush1.msra.mxu0 0.0
    %1239 = vmatprep.subr.mxu0 0.0
    %1240 = vmatpush1.msra.mxu0 0.0
    %1241 = vmatprep.subr.mxu0 0.0
    %1242 = vmatpush1.msra.mxu0 0.0
    %1243 = vmatprep.subr.mxu0 0.0
    %1244 = vmatpush1.msra.mxu0 0.0
    %1245 = vmatprep.subr.mxu0 0.0
    %1246 = vmatpush1.msra.mxu0 0.0
    %1247 = vmatprep.subr.mxu0 0.0
    %1248 = vmatpush1.msra.mxu0 0.0
    %1249 = vmatprep.subr.mxu0 0.0
    %1250 = vmatpush1.msra.mxu0 0.0
    %1251 = vmatprep.subr.mxu0 0.0
    %1252 = vmatpush1.msra.mxu0 0.0
    %1253 = vmatprep.subr.mxu0 0.0
    %1254 = vmatpush1.msra.mxu0 0.0
    %1255 = vmatprep.subr.mxu0 0.0
    %1256 = vmatpush1.msra.mxu0 0.0
    %1257 = vmatprep.subr.mxu0 0.0
    %1258 = vmatpush1.msra.mxu0 0.0
    %1259 = vmatprep.subr.mxu0 0.0
    %1260 = vmatpush1.msra.mxu0 0.0
    %1261 = vmatprep.subr.mxu0 0.0
    %1262 = vmatpush1.msra.mxu0 0.0
    %1263 = vmatprep.subr.mxu0 0.0
    %1264 = vmatpush1.msra.mxu0 0.0
    %1265 = vmatprep.subr.mxu0 0.0
    %1266 = vmatpush1.msra.mxu0 0.0
    %1267 = vmatprep.subr.mxu0 0.0
    %1268 = vmatpush1.msra.mxu0 0.0
    %1269 = vmatprep.subr.mxu0 0.0
    %1270 = vmatpush1.msra.mxu0 0.0
    %1271 = vmatprep.subr.mxu0 0.0
    %1272 = vmatpush1.msra.mxu0 0.0
    %1273 = vmatprep.subr.mxu0 0.0
    %1274 = vmatpush1.msra.mxu0 0.0
    %1275 = vmatprep.subr.mxu0 0.0
    %1276 = vmatpush1.msra.mxu0 0.0
    %1277 = vmatprep.subr.mxu0 0.0
    %1278 = vmatpush1.msra.mxu0 0.0
    %1279 = vmatprep.subr.mxu0 0.0
    %1280 = vmatpush1.msra.mxu0 0.0
    %1281 = vmatprep.subr.mxu0 0.0
    %1282 = vmatpush1.msra.mxu0 0.0
    %1283 = vmatprep.subr.mxu0 0.0
    %1284 = vmatpush1.msra.mxu0 0.0
    %1285 = vmatprep.subr.mxu0 0.0
    %1286 = vmatpush1.msra.mxu0 0.0
    %1287 = vmatprep.subr.mxu0 0.0
    %1288 = vmatpush1.msra.mxu0 0.0
    %1289 = vmatprep.subr.mxu0 0.0
    %1290 = vmatpush1.msra.mxu0 0.0
    %1291 = vmatprep.subr.mxu0 0.0
    %1292 = vmatpush1.msra.mxu0 0.0
    %1293 = vmatprep.mubr.f32.mxu0 0.0
    %1294 = vmatmul.mubr.f32.gmra.mrb[0].mxu0 %v1227
    %v1295 = vpop.f32.mrb[0].mxu0
    %v1296 = vadd.f32 0.0, %v1295
    %v1297 = vpop.f32.mrb[0].mxu0
    %1298 = vdwg.mxu0
    %v1299 = vadd.f32 %v1226, %v1296
    %v1300 = vxor.u32 %v1299, 2147483648
    %v1301 = vmul.f32 %v1300, 1.442695
    %v1302 = vpow.pop %v1301
    %v1303 = vadd.f32 %v1302, 1.0
    %v1304 = vrcp.pop %v1303
    %v1305 = vmul.f32 1.0, %v1304
    %v1306 = vtanh.pop %v1299
    %v1307 = vmul.f32 %v1305, %v1214
    %1309 = vrot.lane.b32.xlu0 %v1306, 64
    %v1310 = vpop.permute.xlu0 %1309
    %v1312 = vmul.f32 %v1305, %v1310
    %1314 = vrot.lane.b32.xlu0 %v1312, 32
    %v1315 = vpop.permute.xlu0 %1314
    %v1317 = vadd.f32 %v1307, %v1315
    %v1318 = vtanh.pop %v1317
    %1320 = vrot.lane.b32.xlu0 %v1318, 64
    %v1321 = vpop.permute.xlu0 %1320
    %v1323 = vmul.f32 %v1305, %v1321
    %1325 = vrot.lane.b32.xlu0 %v1323, 32
    %v1326 = vpop.permute.xlu0 %1325
    %1328 = vst.msk [vmem:[#allocation3 + $0x8] sm:$0x1] %vm503, %v1326
    %v1329 = vld [vmem:[#allocation2 + $0x9] sm:$0x1]
    %v1330 = vsel %vm400, %v1326, 0
    %1332 = vmatprep.subr.mxu0 0.0
    %1333 = vmatpush1.msra.mxu0 %v86
    %1334 = vmatprep.subr.mxu0 0.0
    %1335 = vmatpush1.msra.mxu0 %v87
    %1336 = vmatprep.subr.mxu0 0.0
    %1337 = vmatpush1.msra.mxu0 %v88
    %1338 = vmatprep.subr.mxu0 0.0
    %1339 = vmatpush1.msra.mxu0 %v89
    %1340 = vmatprep.subr.mxu0 0.0
    %1341 = vmatpush1.msra.mxu0 0.0
    %1342 = vmatprep.subr.mxu0 0.0
    %1343 = vmatpush1.msra.mxu0 0.0
    %1344 = vmatprep.subr.mxu0 0.0
    %1345 = vmatpush1.msra.mxu0 0.0
    %1346 = vmatprep.subr.mxu0 0.0
    %1347 = vmatpush1.msra.mxu0 0.0
    %1348 = vmatprep.subr.mxu0 0.0
    %1349 = vmatpush1.msra.mxu0 0.0
    %1350 = vmatprep.subr.mxu0 0.0
    %1351 = vmatpush1.msra.mxu0 0.0
    %1352 = vmatprep.subr.mxu0 0.0
    %1353 = vmatpush1.msra.mxu0 0.0
    %1354 = vmatprep.subr.mxu0 0.0
    %1355 = vmatpush1.msra.mxu0 0.0
    %1356 = vmatprep.subr.mxu0 0.0
    %1357 = vmatpush1.msra.mxu0 0.0
    %1358 = vmatprep.subr.mxu0 0.0
    %1359 = vmatpush1.msra.mxu0 0.0
    %1360 = vmatprep.subr.mxu0 0.0
    %1361 = vmatpush1.msra.mxu0 0.0
    %1362 = vmatprep.subr.mxu0 0.0
    %1363 = vmatpush1.msra.mxu0 0.0
    %1364 = vmatprep.subr.mxu0 0.0
    %1365 = vmatpush1.msra.mxu0 0.0
    %1366 = vmatprep.subr.mxu0 0.0
    %1367 = vmatpush1.msra.mxu0 0.0
    %1368 = vmatprep.subr.mxu0 0.0
    %1369 = vmatpush1.msra.mxu0 0.0
    %1370 = vmatprep.subr.mxu0 0.0
    %1371 = vmatpush1.msra.mxu0 0.0
    %1372 = vmatprep.subr.mxu0 0.0
    %1373 = vmatpush1.msra.mxu0 0.0
    %1374 = vmatprep.subr.mxu0 0.0
    %1375 = vmatpush1.msra.mxu0 0.0
    %1376 = vmatprep.subr.mxu0 0.0
    %1377 = vmatpush1.msra.mxu0 0.0
    %1378 = vmatprep.subr.mxu0 0.0
    %1379 = vmatpush1.msra.mxu0 0.0
    %1380 = vmatprep.subr.mxu0 0.0
    %1381 = vmatpush1.msra.mxu0 0.0
    %1382 = vmatprep.subr.mxu0 0.0
    %1383 = vmatpush1.msra.mxu0 0.0
    %1384 = vmatprep.subr.mxu0 0.0
    %1385 = vmatpush1.msra.mxu0 0.0
    %1386 = vmatprep.subr.mxu0 0.0
    %1387 = vmatpush1.msra.mxu0 0.0
    %1388 = vmatprep.subr.mxu0 0.0
    %1389 = vmatpush1.msra.mxu0 0.0
    %1390 = vmatprep.subr.mxu0 0.0
    %1391 = vmatpush1.msra.mxu0 0.0
    %1392 = vmatprep.subr.mxu0 0.0
    %1393 = vmatpush1.msra.mxu0 0.0
    %1394 = vmatprep.subr.mxu0 0.0
    %1395 = vmatpush1.msra.mxu0 0.0
    %1396 = vmatprep.mubr.f32.mxu0 0.0
    %1397 = vmatmul.mubr.f32.gmra.mrb[0].mxu0 %v1330
    %v1398 = vpop.f32.mrb[0].mxu0
    %v1399 = vadd.f32 0.0, %v1398
    %v1400 = vpop.f32.mrb[0].mxu0
    %1401 = vdwg.mxu0
    %v1402 = vadd.f32 %v1329, %v1399
    %v1403 = vxor.u32 %v1402, 2147483648
    %v1404 = vmul.f32 %v1403, 1.442695
    %v1405 = vpow.pop %v1404
    %v1406 = vadd.f32 %v1405, 1.0
    %v1407 = vrcp.pop %v1406
    %v1408 = vmul.f32 1.0, %v1407
    %v1409 = vtanh.pop %v1402
    %v1410 = vmul.f32 %v1408, %v1317
    %1412 = vrot.lane.b32.xlu0 %v1409, 64
    %v1413 = vpop.permute.xlu0 %1412
    %v1415 = vmul.f32 %v1408, %v1413
    %1417 = vrot.lane.b32.xlu0 %v1415, 32
    %v1418 = vpop.permute.xlu0 %1417
    %v1420 = vadd.f32 %v1410, %v1418
    %v1421 = vtanh.pop %v1420
    %1423 = vrot.lane.b32.xlu0 %v1421, 64
    %v1424 = vpop.permute.xlu0 %1423
    %v1426 = vmul.f32 %v1408, %v1424
    %1428 = vrot.lane.b32.xlu0 %v1426, 32
    %v1429 = vpop.permute.xlu0 %1428
    %1431 = vst.msk [vmem:[#allocation3 + $0x9] sm:$0x1] %vm503, %v1429
    %v1432 = vld [vmem:[#allocation2 + $0xa] sm:$0x1]
    %v1433 = vsel %vm400, %v1429, 0
    %1435 = vmatprep.subr.mxu0 0.0
    %1436 = vmatpush1.msra.mxu0 %v86
    %1437 = vmatprep.subr.mxu0 0.0
    %1438 = vmatpush1.msra.mxu0 %v87
    %1439 = vmatprep.subr.mxu0 0.0
    %1440 = vmatpush1.msra.mxu0 %v88
    %1441 = vmatprep.subr.mxu0 0.0
    %1442 = vmatpush1.msra.mxu0 %v89
    %1443 = vmatprep.subr.mxu0 0.0
    %1444 = vmatpush1.msra.mxu0 0.0
    %1445 = vmatprep.subr.mxu0 0.0
    %1446 = vmatpush1.msra.mxu0 0.0
    %1447 = vmatprep.subr.mxu0 0.0
    %1448 = vmatpush1.msra.mxu0 0.0
    %1449 = vmatprep.subr.mxu0 0.0
    %1450 = vmatpush1.msra.mxu0 0.0
    %1451 = vmatprep.subr.mxu0 0.0
    %1452 = vmatpush1.msra.mxu0 0.0
    %1453 = vmatprep.subr.mxu0 0.0
    %1454 = vmatpush1.msra.mxu0 0.0
    %1455 = vmatprep.subr.mxu0 0.0
    %1456 = vmatpush1.msra.mxu0 0.0
    %1457 = vmatprep.subr.mxu0 0.0
    %1458 = vmatpush1.msra.mxu0 0.0
    %1459 = vmatprep.subr.mxu0 0.0
    %1460 = vmatpush1.msra.mxu0 0.0
    %1461 = vmatprep.subr.mxu0 0.0
    %1462 = vmatpush1.msra.mxu0 0.0
    %1463 = vmatprep.subr.mxu0 0.0
    %1464 = vmatpush1.msra.mxu0 0.0
    %1465 = vmatprep.subr.mxu0 0.0
    %1466 = vmatpush1.msra.mxu0 0.0
    %1467 = vmatprep.subr.mxu0 0.0
    %1468 = vmatpush1.msra.mxu0 0.0
    %1469 = vmatprep.subr.mxu0 0.0
    %1470 = vmatpush1.msra.mxu0 0.0
    %1471 = vmatprep.subr.mxu0 0.0
    %1472 = vmatpush1.msra.mxu0 0.0
    %1473 = vmatprep.subr.mxu0 0.0
    %1474 = vmatpush1.msra.mxu0 0.0
    %1475 = vmatprep.subr.mxu0 0.0
    %1476 = vmatpush1.msra.mxu0 0.0
    %1477 = vmatprep.subr.mxu0 0.0
    %1478 = vmatpush1.msra.mxu0 0.0
    %1479 = vmatprep.subr.mxu0 0.0
    %1480 = vmatpush1.msra.mxu0 0.0
    %1481 = vmatprep.subr.mxu0 0.0
    %1482 = vmatpush1.msra.mxu0 0.0
    %1483 = vmatprep.subr.mxu0 0.0
    %1484 = vmatpush1.msra.mxu0 0.0
    %1485 = vmatprep.subr.mxu0 0.0
    %1486 = vmatpush1.msra.mxu0 0.0
    %1487 = vmatprep.subr.mxu0 0.0
    %1488 = vmatpush1.msra.mxu0 0.0
    %1489 = vmatprep.subr.mxu0 0.0
    %1490 = vmatpush1.msra.mxu0 0.0
    %1491 = vmatprep.subr.mxu0 0.0
    %1492 = vmatpush1.msra.mxu0 0.0
    %1493 = vmatprep.subr.mxu0 0.0
    %1494 = vmatpush1.msra.mxu0 0.0
    %1495 = vmatprep.subr.mxu0 0.0
    %1496 = vmatpush1.msra.mxu0 0.0
    %1497 = vmatprep.subr.mxu0 0.0
    %1498 = vmatpush1.msra.mxu0 0.0
    %1499 = vmatprep.mubr.f32.mxu0 0.0
    %1500 = vmatmul.mubr.f32.gmra.mrb[0].mxu0 %v1433
    %v1501 = vpop.f32.mrb[0].mxu0
    %v1502 = vadd.f32 0.0, %v1501
    %v1503 = vpop.f32.mrb[0].mxu0
    %1504 = vdwg.mxu0
    %v1505 = vadd.f32 %v1432, %v1502
    %v1506 = vxor.u32 %v1505, 2147483648
    %v1507 = vmul.f32 %v1506, 1.442695
    %v1508 = vpow.pop %v1507
    %v1509 = vadd.f32 %v1508, 1.0
    %v1510 = vrcp.pop %v1509
    %v1511 = vmul.f32 1.0, %v1510
    %v1512 = vtanh.pop %v1505
    %v1513 = vmul.f32 %v1511, %v1420
    %1515 = vrot.lane.b32.xlu0 %v1512, 64
    %v1516 = vpop.permute.xlu0 %1515
    %v1518 = vmul.f32 %v1511, %v1516
    %1520 = vrot.lane.b32.xlu0 %v1518, 32
    %v1521 = vpop.permute.xlu0 %1520
    %v1523 = vadd.f32 %v1513, %v1521
    %v1524 = vtanh.pop %v1523
    %1526 = vrot.lane.b32.xlu0 %v1524, 64
    %v1527 = vpop.permute.xlu0 %1526
    %v1529 = vmul.f32 %v1511, %v1527
    %1531 = vrot.lane.b32.xlu0 %v1529, 32
    %v1532 = vpop.permute.xlu0 %1531
    %1534 = vst.msk [vmem:[#allocation3 + $0xa] sm:$0x1] %vm503, %v1532
    %v1535 = vld [vmem:[#allocation2 + $0xb] sm:$0x1]
    %v1536 = vsel %vm400, %v1532, 0
    %1538 = vmatprep.subr.mxu0 0.0
    %1539 = vmatpush1.msra.mxu0 %v86
    %1540 = vmatprep.subr.mxu0 0.0
    %1541 = vmatpush1.msra.mxu0 %v87
    %1542 = vmatprep.subr.mxu0 0.0
    %1543 = vmatpush1.msra.mxu0 %v88
    %1544 = vmatprep.subr.mxu0 0.0
    %1545 = vmatpush1.msra.mxu0 %v89
    %1546 = vmatprep.subr.mxu0 0.0
    %1547 = vmatpush1.msra.mxu0 0.0
    %1548 = vmatprep.subr.mxu0 0.0
    %1549 = vmatpush1.msra.mxu0 0.0
    %1550 = vmatprep.subr.mxu0 0.0
    %1551 = vmatpush1.msra.mxu0 0.0
    %1552 = vmatprep.subr.mxu0 0.0
    %1553 = vmatpush1.msra.mxu0 0.0
    %1554 = vmatprep.subr.mxu0 0.0
    %1555 = vmatpush1.msra.mxu0 0.0
    %1556 = vmatprep.subr.mxu0 0.0
    %1557 = vmatpush1.msra.mxu0 0.0
    %1558 = vmatprep.subr.mxu0 0.0
    %1559 = vmatpush1.msra.mxu0 0.0
    %1560 = vmatprep.subr.mxu0 0.0
    %1561 = vmatpush1.msra.mxu0 0.0
    %1562 = vmatprep.subr.mxu0 0.0
    %1563 = vmatpush1.msra.mxu0 0.0
    %1564 = vmatprep.subr.mxu0 0.0
    %1565 = vmatpush1.msra.mxu0 0.0
    %1566 = vmatprep.subr.mxu0 0.0
    %1567 = vmatpush1.msra.mxu0 0.0
    %1568 = vmatprep.subr.mxu0 0.0
    %1569 = vmatpush1.msra.mxu0 0.0
    %1570 = vmatprep.subr.mxu0 0.0
    %1571 = vmatpush1.msra.mxu0 0.0
    %1572 = vmatprep.subr.mxu0 0.0
    %1573 = vmatpush1.msra.mxu0 0.0
    %1574 = vmatprep.subr.mxu0 0.0
    %1575 = vmatpush1.msra.mxu0 0.0
    %1576 = vmatprep.subr.mxu0 0.0
    %1577 = vmatpush1.msra.mxu0 0.0
    %1578 = vmatprep.subr.mxu0 0.0
    %1579 = vmatpush1.msra.mxu0 0.0
    %1580 = vmatprep.subr.mxu0 0.0
    %1581 = vmatpush1.msra.mxu0 0.0
    %1582 = vmatprep.subr.mxu0 0.0
    %1583 = vmatpush1.msra.mxu0 0.0
    %1584 = vmatprep.subr.mxu0 0.0
    %1585 = vmatpush1.msra.mxu0 0.0
    %1586 = vmatprep.subr.mxu0 0.0
    %1587 = vmatpush1.msra.mxu0 0.0
    %1588 = vmatprep.subr.mxu0 0.0
    %1589 = vmatpush1.msra.mxu0 0.0
    %1590 = vmatprep.subr.mxu0 0.0
    %1591 = vmatpush1.msra.mxu0 0.0
    %1592 = vmatprep.subr.mxu0 0.0
    %1593 = vmatpush1.msra.mxu0 0.0
    %1594 = vmatprep.subr.mxu0 0.0
    %1595 = vmatpush1.msra.mxu0 0.0
    %1596 = vmatprep.subr.mxu0 0.0
    %1597 = vmatpush1.msra.mxu0 0.0
    %1598 = vmatprep.subr.mxu0 0.0
    %1599 = vmatpush1.msra.mxu0 0.0
    %1600 = vmatprep.subr.mxu0 0.0
    %1601 = vmatpush1.msra.mxu0 0.0
    %1602 = vmatprep.mubr.f32.mxu0 0.0
    %1603 = vmatmul.mubr.f32.gmra.mrb[0].mxu0 %v1536
    %v1604 = vpop.f32.mrb[0].mxu0
    %v1605 = vadd.f32 0.0, %v1604
    %v1606 = vpop.f32.mrb[0].mxu0
    %1607 = vdwg.mxu0
    %v1608 = vadd.f32 %v1535, %v1605
    %v1609 = vxor.u32 %v1608, 2147483648
    %v1610 = vmul.f32 %v1609, 1.442695
    %v1611 = vpow.pop %v1610
    %v1612 = vadd.f32 %v1611, 1.0
    %v1613 = vrcp.pop %v1612
    %v1614 = vmul.f32 1.0, %v1613
    %v1615 = vtanh.pop %v1608
    %v1616 = vmul.f32 %v1614, %v1523
    %1618 = vrot.lane.b32.xlu0 %v1615, 64
    %v1619 = vpop.permute.xlu0 %1618
    %v1621 = vmul.f32 %v1614, %v1619
    %1623 = vrot.lane.b32.xlu0 %v1621, 32
    %v1624 = vpop.permute.xlu0 %1623
    %v1626 = vadd.f32 %v1616, %v1624
    %v1627 = vtanh.pop %v1626
    %1629 = vrot.lane.b32.xlu0 %v1627, 64
    %v1630 = vpop.permute.xlu0 %1629
    %v1632 = vmul.f32 %v1614, %v1630
    %1634 = vrot.lane.b32.xlu0 %v1632, 32
    %v1635 = vpop.permute.xlu0 %1634
    %1637 = vst.msk [vmem:[#allocation3 + $0xb] sm:$0x1] %vm503, %v1635
    %v1638 = vld [vmem:[#allocation3] sm:$0xff]
    %v1639 = vld [vmem:[#allocation3 + $0x8] sm:$0xf]
    %v1641 = vsel %vm400, %v1638, 0
    %v1644 = vsel %vm400, %v1639, 0
    %1646 = vmatprep.subr.mxu0 0.0
    %1647 = vmatpush1.msra.mxu0 %v91
    %1648 = vmatprep.subr.mxu0 0.0
    %1649 = vmatpush1.msra.mxu0 %v92
    %1650 = vmatprep.subr.mxu0 0.0
    %1651 = vmatpush1.msra.mxu0 %v93
    %1652 = vmatprep.subr.mxu0 0.0
    %1653 = vmatpush1.msra.mxu0 %v94
    %1654 = vmatprep.subr.mxu0 0.0
    %1655 = vmatpush1.msra.mxu0 0.0
    %1656 = vmatprep.subr.mxu0 0.0
    %1657 = vmatpush1.msra.mxu0 0.0
    %1658 = vmatprep.subr.mxu0 0.0
    %1659 = vmatpush1.msra.mxu0 0.0
    %1660 = vmatprep.subr.mxu0 0.0
    %1661 = vmatpush1.msra.mxu0 0.0
    %1662 = vmatprep.subr.mxu0 0.0
    %1663 = vmatpush1.msra.mxu0 0.0
    %1664 = vmatprep.subr.mxu0 0.0
    %1665 = vmatpush1.msra.mxu0 0.0
    %1666 = vmatprep.subr.mxu0 0.0
    %1667 = vmatpush1.msra.mxu0 0.0
    %1668 = vmatprep.subr.mxu0 0.0
    %1669 = vmatpush1.msra.mxu0 0.0
    %1670 = vmatprep.subr.mxu0 0.0
    %1671 = vmatpush1.msra.mxu0 0.0
    %1672 = vmatprep.subr.mxu0 0.0
    %1673 = vmatpush1.msra.mxu0 0.0
    %1674 = vmatprep.subr.mxu0 0.0
    %1675 = vmatpush1.msra.mxu0 0.0
    %1676 = vmatprep.subr.mxu0 0.0
    %1677 = vmatpush1.msra.mxu0 0.0
    %1678 = vmatprep.subr.mxu0 0.0
    %1679 = vmatpush1.msra.mxu0 0.0
    %1680 = vmatprep.subr.mxu0 0.0
    %1681 = vmatpush1.msra.mxu0 0.0
    %1682 = vmatprep.subr.mxu0 0.0
    %1683 = vmatpush1.msra.mxu0 0.0
    %1684 = vmatprep.subr.mxu0 0.0
    %1685 = vmatpush1.msra.mxu0 0.0
    %1686 = vmatprep.subr.mxu0 0.0
    %1687 = vmatpush1.msra.mxu0 0.0
    %1688 = vmatprep.subr.mxu0 0.0
    %1689 = vmatpush1.msra.mxu0 0.0
    %1690 = vmatprep.subr.mxu0 0.0
    %1691 = vmatpush1.msra.mxu0 0.0
    %1692 = vmatprep.subr.mxu0 0.0
    %1693 = vmatpush1.msra.mxu0 0.0
    %1694 = vmatprep.subr.mxu0 0.0
    %1695 = vmatpush1.msra.mxu0 0.0
    %1696 = vmatprep.subr.mxu0 0.0
    %1697 = vmatpush1.msra.mxu0 0.0
    %1698 = vmatprep.subr.mxu0 0.0
    %1699 = vmatpush1.msra.mxu0 0.0
    %1700 = vmatprep.subr.mxu0 0.0
    %1701 = vmatpush1.msra.mxu0 0.0
    %1702 = vmatprep.subr.mxu0 0.0
    %1703 = vmatpush1.msra.mxu0 0.0
    %1704 = vmatprep.subr.mxu0 0.0
    %1705 = vmatpush1.msra.mxu0 0.0
    %1706 = vmatprep.subr.mxu0 0.0
    %1707 = vmatpush1.msra.mxu0 0.0
    %1708 = vmatprep.subr.mxu0 0.0
    %1709 = vmatpush1.msra.mxu0 0.0
    %1710 = vmatprep.mubr.f32.mxu0 0.0
    %1711 = vmatmul.mubr.f32.gmra.mrb[0].mxu0 %v1641
    %v1712 = vpop.f32.mrb[0].mxu0
    %v1713 = vadd.f32 0.0, %v1712
    %v1714 = vpop.f32.mrb[0].mxu0
    %1715 = vmatprep.mubr.f32.mxu0 0.0
    %1716 = vmatmul.mubr.f32.gmra.mrb[0].mxu0 %v1644
    %v1717 = vpop.f32.mrb[0].mxu0
    %v1718 = vadd.f32 0.0, %v1717
    %v1719 = vpop.f32.mrb[0].mxu0
    %1720 = vdwg.mxu0
    %v1721 = vlaneseq
    %vm1722 = vcmp.ge.s32.totalorder %v1721, 0
    %vm1723 = vcmp.lt.s32.totalorder %v1721, 640
    %vm1724 = vmand %vm1722, %vm1723
    %1725 = vst.msk [vmem:[#allocation4] sm:$0x1f] %vm1724, 0.0
    %vm1726 = vcmp.lt.s32.totalorder %v1721, 512
    %vm1727 = vmand %vm1722, %vm1726
    %1728 = vst.msk [vmem:[#allocation5] sm:$0xf] %vm1727, 0.0
    %v1729 = vld [vmem:[#allocation9] ss:$8 sm:$0x3]
    %v1730 = vsel %vm400, %v1635, 0
    %1732 = vmatprep.subr.mxu0 0.0
    %1733 = vmatpush1.msra.mxu0 %v95
    %1734 = vmatprep.subr.mxu0 0.0
    %1735 = vmatpush1.msra.mxu0 %v96
    %1736 = vmatprep.subr.mxu0 0.0
    %1737 = vmatpush1.msra.mxu0 %v97
    %1738 = vmatprep.subr.mxu0 0.0
    %1739 = vmatpush1.msra.mxu0 %v98
    %1740 = vmatprep.subr.mxu0 0.0
    %1741 = vmatpush1.msra.mxu0 0.0
    %1742 = vmatprep.subr.mxu0 0.0
    %1743 = vmatpush1.msra.mxu0 0.0
    %1744 = vmatprep.subr.mxu0 0.0
    %1745 = vmatpush1.msra.mxu0 0.0
    %1746 = vmatprep.subr.mxu0 0.0
    %1747 = vmatpush1.msra.mxu0 0.0
    %1748 = vmatprep.subr.mxu0 0.0
    %1749 = vmatpush1.msra.mxu0 0.0
    %1750 = vmatprep.subr.mxu0 0.0
    %1751 = vmatpush1.msra.mxu0 0.0
    %1752 = vmatprep.subr.mxu0 0.0
    %1753 = vmatpush1.msra.mxu0 0.0
    %1754 = vmatprep.subr.mxu0 0.0
    %1755 = vmatpush1.msra.mxu0 0.0
    %1756 = vmatprep.subr.mxu0 0.0
    %1757 = vmatpush1.msra.mxu0 0.0
    %1758 = vmatprep.subr.mxu0 0.0
    %1759 = vmatpush1.msra.mxu0 0.0
    %1760 = vmatprep.subr.mxu0 0.0
    %1761 = vmatpush1.msra.mxu0 0.0
    %1762 = vmatprep.subr.mxu0 0.0
    %1763 = vmatpush1.msra.mxu0 0.0
    %1764 = vmatprep.subr.mxu0 0.0
    %1765 = vmatpush1.msra.mxu0 0.0
    %1766 = vmatprep.subr.mxu0 0.0
    %1767 = vmatpush1.msra.mxu0 0.0
    %1768 = vmatprep.subr.mxu0 0.0
    %1769 = vmatpush1.msra.mxu0 0.0
    %1770 = vmatprep.subr.mxu0 0.0
    %1771 = vmatpush1.msra.mxu0 0.0
    %1772 = vmatprep.subr.mxu0 0.0
    %1773 = vmatpush1.msra.mxu0 0.0
    %1774 = vmatprep.subr.mxu0 0.0
    %1775 = vmatpush1.msra.mxu0 0.0
    %1776 = vmatprep.subr.mxu0 0.0
    %1777 = vmatpush1.msra.mxu0 0.0
    %1778 = vmatprep.subr.mxu0 0.0
    %1779 = vmatpush1.msra.mxu0 0.0
    %1780 = vmatprep.subr.mxu0 0.0
    %1781 = vmatpush1.msra.mxu0 0.0
    %1782 = vmatprep.subr.mxu0 0.0
    %1783 = vmatpush1.msra.mxu0 0.0
    %1784 = vmatprep.subr.mxu0 0.0
    %1785 = vmatpush1.msra.mxu0 0.0
    %1786 = vmatprep.subr.mxu0 0.0
    %1787 = vmatpush1.msra.mxu0 0.0
    %1788 = vmatprep.subr.mxu0 0.0
    %1789 = vmatpush1.msra.mxu0 0.0
    %1790 = vmatprep.subr.mxu0 0.0
    %1791 = vmatpush1.msra.mxu0 0.0
    %1792 = vmatprep.subr.mxu0 0.0
    %1793 = vmatpush1.msra.mxu0 0.0
    %1794 = vmatprep.subr.mxu0 0.0
    %1795 = vmatpush1.msra.mxu0 0.0
    %1796 = vmatprep.mubr.f32.mxu0 0.0
    %1797 = vmatmul.mubr.f32.gmra.mrb[0].mxu0 %v1730
    %v1798 = vpop.f32.mrb[0].mxu0
    %v1799 = vadd.f32 0.0, %v1798
    %v1800 = vpop.f32.mrb[0].mxu0
    %1801 = vdwg.mxu0
    %v1802 = vlaneseq
    %v1803 = vshrl.u32 %v1802, 7
    %v1804 = vsub.s32 0, %v1803
    %v1805 = vrot.slane %v1799, %v1804
    %v1806 = vadd.f32 %v1713, %v1805
    %v1807 = vadd.f32 %v1718, %v1805
    %v1808 = vtanh.pop %v1806
    %v1809 = vtanh.pop %v1807
    %v1811 = vsel %vm400, %v1808, 0
    %v1814 = vsel %vm400, %v1809, 0
    %1816 = vmatprep.subr.mxu0 0.0
    %1817 = vmatpush1.msra.mxu0 %v99
    %1818 = vmatprep.subr.mxu0 0.0
    %1819 = vmatpush1.msra.mxu0 %v100
    %1820 = vmatprep.subr.mxu0 0.0
    %1821 = vmatpush1.msra.mxu0 %v101
    %1822 = vmatprep.subr.mxu0 0.0
    %1823 = vmatpush1.msra.mxu0 %v102
    %1824 = vmatprep.subr.mxu0 0.0
    %1825 = vmatpush1.msra.mxu0 0.0
    %1826 = vmatprep.subr.mxu0 0.0
    %1827 = vmatpush1.msra.mxu0 0.0
    %1828 = vmatprep.subr.mxu0 0.0
    %1829 = vmatpush1.msra.mxu0 0.0
    %1830 = vmatprep.subr.mxu0 0.0
    %1831 = vmatpush1.msra.mxu0 0.0
    %1832 = vmatprep.subr.mxu0 0.0
    %1833 = vmatpush1.msra.mxu0 0.0
    %1834 = vmatprep.subr.mxu0 0.0
    %1835 = vmatpush1.msra.mxu0 0.0
    %1836 = vmatprep.subr.mxu0 0.0
    %1837 = vmatpush1.msra.mxu0 0.0
    %1838 = vmatprep.subr.mxu0 0.0
    %1839 = vmatpush1.msra.mxu0 0.0
    %1840 = vmatprep.subr.mxu0 0.0
    %1841 = vmatpush1.msra.mxu0 0.0
    %1842 = vmatprep.subr.mxu0 0.0
    %1843 = vmatpush1.msra.mxu0 0.0
    %1844 = vmatprep.subr.mxu0 0.0
    %1845 = vmatpush1.msra.mxu0 0.0
    %1846 = vmatprep.subr.mxu0 0.0
    %1847 = vmatpush1.msra.mxu0 0.0
    %1848 = vmatprep.subr.mxu0 0.0
    %1849 = vmatpush1.msra.mxu0 0.0
    %1850 = vmatprep.subr.mxu0 0.0
    %1851 = vmatpush1.msra.mxu0 0.0
    %1852 = vmatprep.subr.mxu0 0.0
    %1853 = vmatpush1.msra.mxu0 0.0
    %1854 = vmatprep.subr.mxu0 0.0
    %1855 = vmatpush1.msra.mxu0 0.0
    %1856 = vmatprep.subr.mxu0 0.0
    %1857 = vmatpush1.msra.mxu0 0.0
    %1858 = vmatprep.subr.mxu0 0.0
    %1859 = vmatpush1.msra.mxu0 0.0
    %1860 = vmatprep.subr.mxu0 0.0
    %1861 = vmatpush1.msra.mxu0 0.0
    %1862 = vmatprep.subr.mxu0 0.0
    %1863 = vmatpush1.msra.mxu0 0.0
    %1864 = vmatprep.subr.mxu0 0.0
    %1865 = vmatpush1.msra.mxu0 0.0
    %1866 = vmatprep.subr.mxu0 0.0
    %1867 = vmatpush1.msra.mxu0 0.0
    %1868 = vmatprep.subr.mxu0 0.0
    %1869 = vmatpush1.msra.mxu0 0.0
    %1870 = vmatprep.subr.mxu0 0.0
    %1871 = vmatpush1.msra.mxu0 0.0
    %1872 = vmatprep.subr.mxu0 0.0
    %1873 = vmatpush1.msra.mxu0 0.0
    %1874 = vmatprep.subr.mxu0 0.0
    %1875 = vmatpush1.msra.mxu0 0.0
    %1876 = vmatprep.subr.mxu0 0.0
    %1877 = vmatpush1.msra.mxu0 0.0
    %1878 = vmatprep.subr.mxu0 0.0
    %1879 = vmatpush1.msra.mxu0 0.0
    %1880 = vmatprep.mubr.f32.mxu0 0.0
    %1881 = vmatmul.mubr.f32.gmra.mrb[0].mxu0 %v1811
    %v1882 = vpop.f32.mrb[0].mxu0
    %v1883 = vadd.f32 0.0, %v1882
    %v1884 = vpop.f32.mrb[0].mxu0
    %1885 = vmatprep.mubr.f32.mxu0 0.0
    %1886 = vmatmul.mubr.f32.gmra.mrb[0].mxu0 %v1814
    %v1887 = vpop.f32.mrb[0].mxu0
    %v1888 = vadd.f32 0.0, %v1887
    %v1889 = vpop.f32.mrb[0].mxu0
    %1890 = vdwg.mxu0
    %vm1891 = vcmask 7168
    %v1892 = vsel %vm1891, %v1883, -inf
    %vm1893 = vcmask 3072
    %v1894 = vsel %vm1893, %v1888, -inf
    %v1895 = vmax.f32 %v1892, %v1894
    %v1896 = vrot.slane %v1895, 4
    %v1897 = vmax.f32 %v1895, %v1896
    %v1898 = vrot.slane %v1897, 2
    %v1899 = vmax.f32 %v1897, %v1898
    %v1900 = vrot.slane %v1899, 1
    %v1901 = vmax.f32 %v1899, %v1900
    %v1902 = vsub.f32 %v1883, %v1901
    %v1903 = vsub.f32 %v1888, %v1901
    %v1904 = vmul.f32 %v1902, 1.442695
    %v1905 = vpow.pop %v1904
    %v1906 = vmul.f32 %v1903, 1.442695
    %v1907 = vpow.pop %v1906
    %v1908 = vsel %vm1891, %v1905, 0.0
    %v1909 = vsel %vm1893, %v1907, 0.0
    %v1910 = vadd.f32 %v1908, %v1909
    %v1911 = vrot.slane %v1910, 4
    %v1912 = vadd.f32 %v1910, %v1911
    %v1913 = vrot.slane %v1912, 2
    %v1914 = vadd.f32 %v1912, %v1913
    %v1915 = vrot.slane %v1914, 1
    %v1916 = vadd.f32 %v1914, %v1915
    %v1917 = vrcp.pop %v1916
    %v1918 = vmul.f32 %v1905, %v1917
    %v1919 = vmul.f32 %v1907, %v1917
    %1921 = vset.pattern.permute.xlu0 0
    %1922 = vperm.xlu0 %1921, %v1918
    %v1923 = vpop.permute.xlu0 %1922
    %1926 = vset.pattern.permute.xlu0 0
    %1927 = vperm.xlu0 %1926, %v1919
    %v1928 = vpop.permute.xlu0 %1927
    %v1930 = vmul.f32 %v1923, %v1638
    %v1931 = vmul.f32 %v1928, %v1639
    %v1932 = vsel %vm400, %v1930, 0.0
    %vm1933 = vcmask 257024
    %v1934 = vsel %vm1933, %v1931, 0.0
    %v1935 = vadd.f32 %v1932, %v1934
    %v1936 = vrot.slane %v1935, 4
    %v1937 = vadd.f32 %v1935, %v1936
    %v1938 = vrot.slane %v1937, 2
    %v1939 = vadd.f32 %v1937, %v1938
    %v1940 = vrot.slane %v1939, 1
    %v1941 = vadd.f32 %v1939, %v1940
    %vm1942 = vcmp.lt.s32.totalorder %v1721, 256
    %vm1943 = vmand %vm1722, %vm1942
    %1944 = vst.msk [vmem:[#allocation4] sm:$0x3] %vm1943, %v1729
    %1945 = vst.msk [vmem:[#allocation4 + $0x2] sm:$0x3] %vm1943, 0.0
    %vm1946 = vcmp.lt.s32.totalorder %v1721, 32
    %vm1947 = vmand %vm1722, %vm1946
    %1948 = vst.msk [vmem:[#allocation4 + $0x4] sm:$0x1] %vm1947, %v1941
    %v1949 = vld [vmem:[#allocation4] sm:$0x1f]
    %v1951 = vlaneseq
    %v1952 = vshrl.u32 %v1951, 7
    %v1953 = vsub.s32 0, %v1952
    %v1954 = vrot.slane %v1949, %v1953
    %v1955 = vlaneseq
    %v1956 = vshrl.u32 %v1955, 7
    %v1957 = vsub.s32 1, %v1956
    %v1958 = vrot.slane %v1949, %v1957
    %v1959 = vlaneseq
    %v1960 = vshrl.u32 %v1959, 7
    %v1961 = vsub.s32 2, %v1960
    %v1962 = vrot.slane %v1949, %v1961
    %v1963 = vlaneseq
    %v1964 = vshrl.u32 %v1963, 7
    %v1965 = vsub.s32 3, %v1964
    %v1966 = vrot.slane %v1949, %v1965
    %v1967 = vlaneseq
    %v1968 = vshrl.u32 %v1967, 7
    %v1969 = vsub.s32 4, %v1968
    %v1970 = vrot.slane %v1949, %v1969
    %1976 = vmatprep.subr.mxu0 0.0
    %1977 = vmatpush1.msra.mxu0 %v103
    %1978 = vmatprep.subr.mxu0 0.0
    %1979 = vmatpush1.msra.mxu0 %v104
    %1980 = vmatprep.subr.mxu0 0.0
    %1981 = vmatpush1.msra.mxu0 %v105
    %1982 = vmatprep.subr.mxu0 0.0
    %1983 = vmatpush1.msra.mxu0 %v106
    %1984 = vmatprep.subr.mxu0 0.0
    %1985 = vmatpush1.msra.mxu0 %v107
    %1986 = vmatprep.subr.mxu0 0.0
    %1987 = vmatpush1.msra.mxu0 %v108
    %1988 = vmatprep.subr.mxu0 0.0
    %1989 = vmatpush1.msra.mxu0 %v109
    %1990 = vmatprep.subr.mxu0 0.0
    %1991 = vmatpush1.msra.mxu0 %v110
    %1992 = vmatprep.subr.mxu0 0.0
    %1993 = vmatpush1.msra.mxu0 %v111
    %1994 = vmatprep.subr.mxu0 0.0
    %1995 = vmatpush1.msra.mxu0 %v112
    %1996 = vmatprep.subr.mxu0 0.0
    %1997 = vmatpush1.msra.mxu0 %v113
    %1998 = vmatprep.subr.mxu0 0.0
    %1999 = vmatpush1.msra.mxu0 %v114
    %2000 = vmatprep.subr.mxu0 0.0
    %2001 = vmatpush1.msra.mxu0 %v115
    %2002 = vmatprep.subr.mxu0 0.0
    %2003 = vmatpush1.msra.mxu0 %v116
    %2004 = vmatprep.subr.mxu0 0.0
    %2005 = vmatpush1.msra.mxu0 %v117
    %2006 = vmatprep.subr.mxu0 0.0
    %2007 = vmatpush1.msra.mxu0 %v118
    %2008 = vmatprep.subr.mxu0 0.0
    %2009 = vmatpush1.msra.mxu0 %v119
    %2010 = vmatprep.subr.mxu0 0.0
    %2011 = vmatpush1.msra.mxu0 %v120
    %2012 = vmatprep.subr.mxu0 0.0
    %2013 = vmatpush1.msra.mxu0 %v121
    %2014 = vmatprep.subr.mxu0 0.0
    %2015 = vmatpush1.msra.mxu0 %v122
    %2016 = vmatprep.subr.mxu0 0.0
    %2017 = vmatpush1.msra.mxu0 %v123
    %2018 = vmatprep.subr.mxu0 0.0
    %2019 = vmatpush1.msra.mxu0 %v124
    %2020 = vmatprep.subr.mxu0 0.0
    %2021 = vmatpush1.msra.mxu0 %v125
    %2022 = vmatprep.subr.mxu0 0.0
    %2023 = vmatpush1.msra.mxu0 %v126
    %2024 = vmatprep.subr.mxu0 0.0
    %2025 = vmatpush1.msra.mxu0 %v127
    %2026 = vmatprep.subr.mxu0 0.0
    %2027 = vmatpush1.msra.mxu0 %v128
    %2028 = vmatprep.subr.mxu0 0.0
    %2029 = vmatpush1.msra.mxu0 %v129
    %2030 = vmatprep.subr.mxu0 0.0
    %2031 = vmatpush1.msra.mxu0 %v130
    %2032 = vmatprep.subr.mxu0 0.0
    %2033 = vmatpush1.msra.mxu0 %v131
    %2034 = vmatprep.subr.mxu0 0.0
    %2035 = vmatpush1.msra.mxu0 %v132
    %2036 = vmatprep.subr.mxu0 0.0
    %2037 = vmatpush1.msra.mxu0 %v133
    %2038 = vmatprep.subr.mxu0 0.0
    %2039 = vmatpush1.msra.mxu0 %v134
    %2040 = vmatprep.mubr.f32.mxu0 %v1958
    %2041 = vmatmul.mubr.f32.gmra.mrb[0].mxu0 %v1954
    %v2042 = vpop.f32.mrb[0].mxu0
    %v2043 = vadd.f32 %v187, %v2042
    %v2044 = vpop.f32.mrb[0].mxu0
    %2045 = vdwg.mxu0
    %2046 = vmatprep.subr.mxu0 0.0
    %2047 = vmatpush1.msra.mxu0 %v135
    %2048 = vmatprep.subr.mxu0 0.0
    %2049 = vmatpush1.msra.mxu0 %v136
    %2050 = vmatprep.subr.mxu0 0.0
    %2051 = vmatpush1.msra.mxu0 %v137
    %2052 = vmatprep.subr.mxu0 0.0
    %2053 = vmatpush1.msra.mxu0 %v138
    %2054 = vmatprep.subr.mxu0 0.0
    %2055 = vmatpush1.msra.mxu0 %v139
    %2056 = vmatprep.subr.mxu0 0.0
    %2057 = vmatpush1.msra.mxu0 %v140
    %2058 = vmatprep.subr.mxu0 0.0
    %2059 = vmatpush1.msra.mxu0 %v141
    %2060 = vmatprep.subr.mxu0 0.0
    %2061 = vmatpush1.msra.mxu0 %v142
    %2062 = vmatprep.subr.mxu0 0.0
    %2063 = vmatpush1.msra.mxu0 %v143
    %2064 = vmatprep.subr.mxu0 0.0
    %2065 = vmatpush1.msra.mxu0 %v144
    %2066 = vmatprep.subr.mxu0 0.0
    %2067 = vmatpush1.msra.mxu0 %v145
    %2068 = vmatprep.subr.mxu0 0.0
    %2069 = vmatpush1.msra.mxu0 %v146
    %2070 = vmatprep.subr.mxu0 0.0
    %2071 = vmatpush1.msra.mxu0 %v147
    %2072 = vmatprep.subr.mxu0 0.0
    %2073 = vmatpush1.msra.mxu0 %v148
    %2074 = vmatprep.subr.mxu0 0.0
    %2075 = vmatpush1.msra.mxu0 %v149
    %2076 = vmatprep.subr.mxu0 0.0
    %2077 = vmatpush1.msra.mxu0 %v150
    %2078 = vmatprep.subr.mxu0 0.0
    %2079 = vmatpush1.msra.mxu0 %v151
    %2080 = vmatprep.subr.mxu0 0.0
    %2081 = vmatpush1.msra.mxu0 %v152
    %2082 = vmatprep.subr.mxu0 0.0
    %2083 = vmatpush1.msra.mxu0 %v153
    %2084 = vmatprep.subr.mxu0 0.0
    %2085 = vmatpush1.msra.mxu0 %v154
    %2086 = vmatprep.subr.mxu0 0.0
    %2087 = vmatpush1.msra.mxu0 %v155
    %2088 = vmatprep.subr.mxu0 0.0
    %2089 = vmatpush1.msra.mxu0 %v156
    %2090 = vmatprep.subr.mxu0 0.0
    %2091 = vmatpush1.msra.mxu0 %v157
    %2092 = vmatprep.subr.mxu0 0.0
    %2093 = vmatpush1.msra.mxu0 %v158
    %2094 = vmatprep.subr.mxu0 0.0
    %2095 = vmatpush1.msra.mxu0 %v159
    %2096 = vmatprep.subr.mxu0 0.0
    %2097 = vmatpush1.msra.mxu0 %v160
    %2098 = vmatprep.subr.mxu0 0.0
    %2099 = vmatpush1.msra.mxu0 %v161
    %2100 = vmatprep.subr.mxu0 0.0
    %2101 = vmatpush1.msra.mxu0 %v162
    %2102 = vmatprep.subr.mxu0 0.0
    %2103 = vmatpush1.msra.mxu0 %v163
    %2104 = vmatprep.subr.mxu0 0.0
    %2105 = vmatpush1.msra.mxu0 %v164
    %2106 = vmatprep.subr.mxu0 0.0
    %2107 = vmatpush1.msra.mxu0 %v165
    %2108 = vmatprep.subr.mxu0 0.0
    %2109 = vmatpush1.msra.mxu0 %v166
    %2110 = vmatprep.mubr.f32.mxu0 %v1966
    %2111 = vmatmul.mubr.f32.gmra.mrb[0].mxu0 %v1962
    %v2112 = vpop.f32.mrb[0].mxu0
    %v2113 = vadd.f32 %v2043, %v2112
    %v2114 = vpop.f32.mrb[0].mxu0
    %2115 = vdwg.mxu0
    %2116 = vmatprep.subr.mxu0 0.0
    %2117 = vmatpush1.msra.mxu0 %v167
    %2118 = vmatprep.subr.mxu0 0.0
    %2119 = vmatpush1.msra.mxu0 %v168
    %2120 = vmatprep.subr.mxu0 0.0
    %2121 = vmatpush1.msra.mxu0 %v169
    %2122 = vmatprep.subr.mxu0 0.0
    %2123 = vmatpush1.msra.mxu0 %v170
    %2124 = vmatprep.subr.mxu0 0.0
    %2125 = vmatpush1.msra.mxu0 %v171
    %2126 = vmatprep.subr.mxu0 0.0
    %2127 = vmatpush1.msra.mxu0 %v172
    %2128 = vmatprep.subr.mxu0 0.0
    %2129 = vmatpush1.msra.mxu0 %v173
    %2130 = vmatprep.subr.mxu0 0.0
    %2131 = vmatpush1.msra.mxu0 %v174
    %2132 = vmatprep.subr.mxu0 0.0
    %2133 = vmatpush1.msra.mxu0 %v175
    %2134 = vmatprep.subr.mxu0 0.0
    %2135 = vmatpush1.msra.mxu0 %v176
    %2136 = vmatprep.subr.mxu0 0.0
    %2137 = vmatpush1.msra.mxu0 %v177
    %2138 = vmatprep.subr.mxu0 0.0
    %2139 = vmatpush1.msra.mxu0 %v178
    %2140 = vmatprep.subr.mxu0 0.0
    %2141 = vmatpush1.msra.mxu0 %v179
    %2142 = vmatprep.subr.mxu0 0.0
    %2143 = vmatpush1.msra.mxu0 %v180
    %2144 = vmatprep.subr.mxu0 0.0
    %2145 = vmatpush1.msra.mxu0 %v181
    %2146 = vmatprep.subr.mxu0 0.0
    %2147 = vmatpush1.msra.mxu0 %v182
    %2148 = vmatprep.subr.mxu0 0.0
    %2149 = vmatpush1.msra.mxu0 0.0
    %2150 = vmatprep.subr.mxu0 0.0
    %2151 = vmatpush1.msra.mxu0 0.0
    %2152 = vmatprep.subr.mxu0 0.0
    %2153 = vmatpush1.msra.mxu0 0.0
    %2154 = vmatprep.subr.mxu0 0.0
    %2155 = vmatpush1.msra.mxu0 0.0
    %2156 = vmatprep.subr.mxu0 0.0
    %2157 = vmatpush1.msra.mxu0 0.0
    %2158 = vmatprep.subr.mxu0 0.0
    %2159 = vmatpush1.msra.mxu0 0.0
    %2160 = vmatprep.subr.mxu0 0.0
    %2161 = vmatpush1.msra.mxu0 0.0
    %2162 = vmatprep.subr.mxu0 0.0
    %2163 = vmatpush1.msra.mxu0 0.0
    %2164 = vmatprep.subr.mxu0 0.0
    %2165 = vmatpush1.msra.mxu0 0.0
    %2166 = vmatprep.subr.mxu0 0.0
    %2167 = vmatpush1.msra.mxu0 0.0
    %2168 = vmatprep.subr.mxu0 0.0
    %2169 = vmatpush1.msra.mxu0 0.0
    %2170 = vmatprep.subr.mxu0 0.0
    %2171 = vmatpush1.msra.mxu0 0.0
    %2172 = vmatprep.subr.mxu0 0.0
    %2173 = vmatpush1.msra.mxu0 0.0
    %2174 = vmatprep.subr.mxu0 0.0
    %2175 = vmatpush1.msra.mxu0 0.0
    %2176 = vmatprep.subr.mxu0 0.0
    %2177 = vmatpush1.msra.mxu0 0.0
    %2178 = vmatprep.subr.mxu0 0.0
    %2179 = vmatpush1.msra.mxu0 0.0
    %2180 = vmatprep.mubr.f32.mxu0 0.0
    %2181 = vmatmul.mubr.f32.gmra.mrb[0].mxu0 %v1970
    %v2182 = vpop.f32.mrb[0].mxu0
    %v2183 = vadd.f32 %v2113, %v2182
    %v2184 = vpop.f32.mrb[0].mxu0
    %2185 = vdwg.mxu0
    %2186 = vmatprep.subr.mxu0 0.0
    %2187 = vmatpush1.msra.mxu0 %v183
    %2188 = vmatprep.subr.mxu0 0.0
    %2189 = vmatpush1.msra.mxu0 %v184
    %2190 = vmatprep.subr.mxu0 0.0
    %2191 = vmatpush1.msra.mxu0 %v185
    %2192 = vmatprep.subr.mxu0 0.0
    %2193 = vmatpush1.msra.mxu0 %v186
    %2194 = vmatprep.subr.mxu0 0.0
    %2195 = vmatpush1.msra.mxu0 0.0
    %2196 = vmatprep.subr.mxu0 0.0
    %2197 = vmatpush1.msra.mxu0 0.0
    %2198 = vmatprep.subr.mxu0 0.0
    %2199 = vmatpush1.msra.mxu0 0.0
    %2200 = vmatprep.subr.mxu0 0.0
    %2201 = vmatpush1.msra.mxu0 0.0
    %2202 = vmatprep.subr.mxu0 0.0
    %2203 = vmatpush1.msra.mxu0 0.0
    %2204 = vmatprep.subr.mxu0 0.0
    %2205 = vmatpush1.msra.mxu0 0.0
    %2206 = vmatprep.subr.mxu0 0.0
    %2207 = vmatpush1.msra.mxu0 0.0
    %2208 = vmatprep.subr.mxu0 0.0
    %2209 = vmatpush1.msra.mxu0 0.0
    %2210 = vmatprep.subr.mxu0 0.0
    %2211 = vmatpush1.msra.mxu0 0.0
    %2212 = vmatprep.subr.mxu0 0.0
    %2213 = vmatpush1.msra.mxu0 0.0
    %2214 = vmatprep.subr.mxu0 0.0
    %2215 = vmatpush1.msra.mxu0 0.0
    %2216 = vmatprep.subr.mxu0 0.0
    %2217 = vmatpush1.msra.mxu0 0.0
    %2218 = vmatprep.subr.mxu0 0.0
    %2219 = vmatpush1.msra.mxu0 0.0
    %2220 = vmatprep.subr.mxu0 0.0
    %2221 = vmatpush1.msra.mxu0 0.0
    %2222 = vmatprep.subr.mxu0 0.0
    %2223 = vmatpush1.msra.mxu0 0.0
    %2224 = vmatprep.subr.mxu0 0.0
    %2225 = vmatpush1.msra.mxu0 0.0
    %2226 = vmatprep.subr.mxu0 0.0
    %2227 = vmatpush1.msra.mxu0 0.0
    %2228 = vmatprep.subr.mxu0 0.0
    %2229 = vmatpush1.msra.mxu0 0.0
    %2230 = vmatprep.subr.mxu0 0.0
    %2231 = vmatpush1.msra.mxu0 0.0
    %2232 = vmatprep.subr.mxu0 0.0
    %2233 = vmatpush1.msra.mxu0 0.0
    %2234 = vmatprep.subr.mxu0 0.0
    %2235 = vmatpush1.msra.mxu0 0.0
    %2236 = vmatprep.subr.mxu0 0.0
    %2237 = vmatpush1.msra.mxu0 0.0
    %2238 = vmatprep.subr.mxu0 0.0
    %2239 = vmatpush1.msra.mxu0 0.0
    %2240 = vmatprep.subr.mxu0 0.0
    %2241 = vmatpush1.msra.mxu0 0.0
    %2242 = vmatprep.subr.mxu0 0.0
    %2243 = vmatpush1.msra.mxu0 0.0
    %2244 = vmatprep.subr.mxu0 0.0
    %2245 = vmatpush1.msra.mxu0 0.0
    %2246 = vmatprep.subr.mxu0 0.0
    %2247 = vmatpush1.msra.mxu0 0.0
    %2248 = vmatprep.subr.mxu0 0.0
    %2249 = vmatpush1.msra.mxu0 0.0
    %2250 = vmatprep.mubr.f32.mxu0 0.0
    %2251 = vmatmul.mubr.f32.gmra.mrb[0].mxu0 %v1730
    %v2252 = vpop.f32.mrb[0].mxu0
    %v2253 = vadd.f32 0.0, %v2252
    %v2254 = vpop.f32.mrb[0].mxu0
    %2255 = vdwg.mxu0
    %v2256 = vadd.f32 %v2183, %v2253
    %v2257 = vxor.u32 %v2256, 2147483648
    %v2258 = vmul.f32 %v2257, 1.442695
    %v2259 = vpow.pop %v2258
    %v2260 = vadd.f32 %v2259, 1.0
    %v2261 = vrcp.pop %v2260
    %v2262 = vmul.f32 1.0, %v2261
    %v2263 = vtanh.pop %v2256
    %v2264 = vmul.f32 %v2262, %v1626
    %2266 = vrot.lane.b32.xlu0 %v2263, 64
    %v2267 = vpop.permute.xlu0 %2266
    %v2269 = vmul.f32 %v2262, %v2267
    %2271 = vrot.lane.b32.xlu0 %v2269, 32
    %v2272 = vpop.permute.xlu0 %2271
    %v2274 = vadd.f32 %v2264, %v2272
    %v2275 = vtanh.pop %v2274
    %2277 = vrot.lane.b32.xlu0 %v2275, 64
    %v2278 = vpop.permute.xlu0 %2277
    %v2280 = vmul.f32 %v2262, %v2278
    %v2283 = vunpack.c.l.s4 1966171168
    %v2284 = vunpack.c.0.s8 %v2283
    %v2285 = vlaneseq
    %v2286 = vshrl.u32 %v2285, 7
    %v2287 = vsub.s32 %v2284, %v2286
    %v2288 = vrot.slane %v2280, %v2287
    %v2290 = vunpack.c.l.s4 1966171168
    %v2291 = vunpack.c.0.s8 %v2290
    %v2292 = vlaneseq
    %v2293 = vshrl.u32 %v2292, 7
    %v2294 = vsub.s32 %v2291, %v2293
    %v2295 = vrot.slane %v2288, %v2294
    %2296 = vrot.lane.b32.xlu0 %v2295, 32
    %v2297 = vpop.permute.xlu0 %2296
    %2299 = vst.msk [vmem:[#allocation5] sm:$0x1] %vm1947, %v2297
    %2300 = vst.msk [vmem:[#allocation5 + $0x1] sm:$0x1] %vm1947, %v1941
    %2301 = vst.msk [vmem:[#allocation5 + $0x2] sm:$0x3] %vm1943, %v1729
    %v2302 = vld [vmem:[#allocation5] sm:$0xf]
    %v2304 = vlaneseq
    %v2305 = vshrl.u32 %v2304, 7
    %v2306 = vsub.s32 0, %v2305
    %v2307 = vrot.slane %v2302, %v2306
    %v2308 = vlaneseq
    %v2309 = vshrl.u32 %v2308, 7
    %v2310 = vsub.s32 1, %v2309
    %v2311 = vrot.slane %v2302, %v2310
    %v2312 = vlaneseq
    %v2313 = vshrl.u32 %v2312, 7
    %v2314 = vsub.s32 2, %v2313
    %v2315 = vrot.slane %v2302, %v2314
    %v2316 = vlaneseq
    %v2317 = vshrl.u32 %v2316, 7
    %v2318 = vsub.s32 3, %v2317
    %v2319 = vrot.slane %v2302, %v2318
    %v2325 = vlaneseq
    %v2326 = vshrl.u32 %v2325, 7
    %v2327 = vsub.s32 0, %v2326
    %v2328 = vrot.slane %v317, %v2327
    %v2329 = vlaneseq
    %v2330 = vshrl.u32 %v2329, 7
    %v2331 = vsub.s32 1, %v2330
    %v2332 = vrot.slane %v317, %v2331
    %2335 = vmatprep.subr.mxu0 %v189
    %2336 = vmatpush1.msra.mxu0 %v188
    %2337 = vmatprep.subr.mxu0 %v191
    %2338 = vmatpush1.msra.mxu0 %v190
    %2339 = vmatprep.subr.mxu0 %v193
    %2340 = vmatpush1.msra.mxu0 %v192
    %2341 = vmatprep.subr.mxu0 %v195
    %2342 = vmatpush1.msra.mxu0 %v194
    %2343 = vmatprep.subr.mxu0 %v197
    %2344 = vmatpush1.msra.mxu0 %v196
    %2345 = vmatprep.subr.mxu0 %v199
    %2346 = vmatpush1.msra.mxu0 %v198
    %2347 = vmatprep.subr.mxu0 %v201
    %2348 = vmatpush1.msra.mxu0 %v200
    %2349 = vmatprep.subr.mxu0 %v203
    %2350 = vmatpush1.msra.mxu0 %v202
    %2351 = vmatprep.subr.mxu0 %v205
    %2352 = vmatpush1.msra.mxu0 %v204
    %2353 = vmatprep.subr.mxu0 %v207
    %2354 = vmatpush1.msra.mxu0 %v206
    %2355 = vmatprep.subr.mxu0 %v209
    %2356 = vmatpush1.msra.mxu0 %v208
    %2357 = vmatprep.subr.mxu0 %v211
    %2358 = vmatpush1.msra.mxu0 %v210
    %2359 = vmatprep.subr.mxu0 %v213
    %2360 = vmatpush1.msra.mxu0 %v212
    %2361 = vmatprep.subr.mxu0 %v215
    %2362 = vmatpush1.msra.mxu0 %v214
    %2363 = vmatprep.subr.mxu0 %v217
    %2364 = vmatpush1.msra.mxu0 %v216
    %2365 = vmatprep.subr.mxu0 %v219
    %2366 = vmatpush1.msra.mxu0 %v218
    %2367 = vmatprep.subr.mxu0 %v221
    %2368 = vmatpush1.msra.mxu0 %v220
    %2369 = vmatprep.subr.mxu0 %v223
    %2370 = vmatpush1.msra.mxu0 %v222
    %2371 = vmatprep.subr.mxu0 %v225
    %2372 = vmatpush1.msra.mxu0 %v224
    %2373 = vmatprep.subr.mxu0 %v227
    %2374 = vmatpush1.msra.mxu0 %v226
    %2375 = vmatprep.subr.mxu0 %v229
    %2376 = vmatpush1.msra.mxu0 %v228
    %2377 = vmatprep.subr.mxu0 %v231
    %2378 = vmatpush1.msra.mxu0 %v230
    %2379 = vmatprep.subr.mxu0 %v233
    %2380 = vmatpush1.msra.mxu0 %v232
    %2381 = vmatprep.subr.mxu0 %v235
    %2382 = vmatpush1.msra.mxu0 %v234
    %2383 = vmatprep.subr.mxu0 %v237
    %2384 = vmatpush1.msra.mxu0 %v236
    %2385 = vmatprep.subr.mxu0 %v239
    %2386 = vmatpush1.msra.mxu0 %v238
    %2387 = vmatprep.subr.mxu0 %v241
    %2388 = vmatpush1.msra.mxu0 %v240
    %2389 = vmatprep.subr.mxu0 %v243
    %2390 = vmatpush1.msra.mxu0 %v242
    %2391 = vmatprep.subr.mxu0 %v245
    %2392 = vmatpush1.msra.mxu0 %v244
    %2393 = vmatprep.subr.mxu0 %v247
    %2394 = vmatpush1.msra.mxu0 %v246
    %2395 = vmatprep.subr.mxu0 %v249
    %2396 = vmatpush1.msra.mxu0 %v248
    %2397 = vmatprep.subr.mxu0 %v251
    %2398 = vmatpush1.msra.mxu0 %v250
    %2399 = vmatprep.mubr.f32.mxu0 %v2311
    %2400 = vmatmul.mubr.f32.gmra.mrb[0].mxu0 %v2307
    %v2401 = vpop.f32.mrb[0].mxu0
    %v2402 = vadd.f32 %v2328, %v2401
    %v2403 = vpop.f32.mrb[0].mxu0
    %v2404 = vadd.f32 %v2332, %v2403
    %2405 = vdwg.mxu0
    %2406 = vmatprep.subr.mxu0 %v253
    %2407 = vmatpush1.msra.mxu0 %v252
    %2408 = vmatprep.subr.mxu0 %v255
    %2409 = vmatpush1.msra.mxu0 %v254
    %2410 = vmatprep.subr.mxu0 %v257
    %2411 = vmatpush1.msra.mxu0 %v256
    %2412 = vmatprep.subr.mxu0 %v259
    %2413 = vmatpush1.msra.mxu0 %v258
    %2414 = vmatprep.subr.mxu0 %v261
    %2415 = vmatpush1.msra.mxu0 %v260
    %2416 = vmatprep.subr.mxu0 %v263
    %2417 = vmatpush1.msra.mxu0 %v262
    %2418 = vmatprep.subr.mxu0 %v265
    %2419 = vmatpush1.msra.mxu0 %v264
    %2420 = vmatprep.subr.mxu0 %v267
    %2421 = vmatpush1.msra.mxu0 %v266
    %2422 = vmatprep.subr.mxu0 %v269
    %2423 = vmatpush1.msra.mxu0 %v268
    %2424 = vmatprep.subr.mxu0 %v271
    %2425 = vmatpush1.msra.mxu0 %v270
    %2426 = vmatprep.subr.mxu0 %v273
    %2427 = vmatpush1.msra.mxu0 %v272
    %2428 = vmatprep.subr.mxu0 %v275
    %2429 = vmatpush1.msra.mxu0 %v274
    %2430 = vmatprep.subr.mxu0 %v277
    %2431 = vmatpush1.msra.mxu0 %v276
    %2432 = vmatprep.subr.mxu0 %v279
    %2433 = vmatpush1.msra.mxu0 %v278
    %2434 = vmatprep.subr.mxu0 %v281
    %2435 = vmatpush1.msra.mxu0 %v280
    %2436 = vmatprep.subr.mxu0 %v283
    %2437 = vmatpush1.msra.mxu0 %v282
    %2438 = vmatprep.subr.mxu0 %v285
    %2439 = vmatpush1.msra.mxu0 %v284
    %2440 = vmatprep.subr.mxu0 %v287
    %2441 = vmatpush1.msra.mxu0 %v286
    %2442 = vmatprep.subr.mxu0 %v289
    %2443 = vmatpush1.msra.mxu0 %v288
    %2444 = vmatprep.subr.mxu0 %v291
    %2445 = vmatpush1.msra.mxu0 %v290
    %2446 = vmatprep.subr.mxu0 %v293
    %2447 = vmatpush1.msra.mxu0 %v292
    %2448 = vmatprep.subr.mxu0 %v295
    %2449 = vmatpush1.msra.mxu0 %v294
    %2450 = vmatprep.subr.mxu0 %v297
    %2451 = vmatpush1.msra.mxu0 %v296
    %2452 = vmatprep.subr.mxu0 %v299
    %2453 = vmatpush1.msra.mxu0 %v298
    %2454 = vmatprep.subr.mxu0 %v301
    %2455 = vmatpush1.msra.mxu0 %v300
    %2456 = vmatprep.subr.mxu0 %v303
    %2457 = vmatpush1.msra.mxu0 %v302
    %2458 = vmatprep.subr.mxu0 %v305
    %2459 = vmatpush1.msra.mxu0 %v304
    %2460 = vmatprep.subr.mxu0 %v307
    %2461 = vmatpush1.msra.mxu0 %v306
    %2462 = vmatprep.subr.mxu0 %v309
    %2463 = vmatpush1.msra.mxu0 %v308
    %2464 = vmatprep.subr.mxu0 %v311
    %2465 = vmatpush1.msra.mxu0 %v310
    %2466 = vmatprep.subr.mxu0 %v313
    %2467 = vmatpush1.msra.mxu0 %v312
    %2468 = vmatprep.subr.mxu0 %v315
    %2469 = vmatpush1.msra.mxu0 %v314
    %2470 = vmatprep.mubr.f32.mxu0 %v2319
    %2471 = vmatmul.mubr.f32.gmra.mrb[0].mxu0 %v2315
    %v2472 = vpop.f32.mrb[0].mxu0
    %v2473 = vadd.f32 %v2402, %v2472
    %v2474 = vpop.f32.mrb[0].mxu0
    %v2475 = vadd.f32 %v2404, %v2474
    %2476 = vdwg.mxu0
    %v2479 = vcombine.low %v2473, %v2475
    %v2481 = vunpack.c.l.s4 1966171168
    %v2482 = vunpack.c.0.s8 %v2481
    %v2483 = vlaneseq
    %v2484 = vshrl.u32 %v2483, 7
    %v2485 = vsub.s32 %v2482, %v2484
    %v2486 = vrot.slane %v2479, %v2485
    %v2488 = vunpack.c.l.s4 1966171168
    %v2489 = vunpack.c.0.s8 %v2488
    %v2490 = vlaneseq
    %v2491 = vshrl.u32 %v2490, 7
    %v2492 = vsub.s32 %v2489, %v2491
    %v2493 = vrot.slane %v2486, %v2492
    %2495 = vst.msk [vmem:[#allocation12] ss:$8 sm:$0x3] %vm1943, %v2493
    %2496 = vst.msk [vmem:[#allocation12] ss:$8 sm:$0x0] %vm1943, %v2493
    %v2498 = vlaneseq
    %v2499 = vshrl.u32 %v2498, 7
    %v2500 = vsub.s32 0, %v2499
    %v2501 = vrot.slane %v1729, %v2500
    %v2502 = vlaneseq
    %v2503 = vshrl.u32 %v2502, 7
    %v2504 = vsub.s32 1, %v2503
    %v2505 = vrot.slane %v1729, %v2504
    %v2508 = vsub.f32 %v2473, %v2501
    %v2509 = vsub.f32 %v2475, %v2505
    %2510 = vrot.lane.b32.xlu0 %v2280, 32
    %v2511 = vpop.permute.xlu0 %2510
    %v2512 = vsel %vm400, %v2511, 0
    %2514 = vmatprep.subr.mxu0 0.0
    %2515 = vmatpush1.msra.mxu0 %v95
    %2516 = vmatprep.subr.mxu0 0.0
    %2517 = vmatpush1.msra.mxu0 %v96
    %2518 = vmatprep.subr.mxu0 0.0
    %2519 = vmatpush1.msra.mxu0 %v97
    %2520 = vmatprep.subr.mxu0 0.0
    %2521 = vmatpush1.msra.mxu0 %v98
    %2522 = vmatprep.subr.mxu0 0.0
    %2523 = vmatpush1.msra.mxu0 0.0
    %2524 = vmatprep.subr.mxu0 0.0
    %2525 = vmatpush1.msra.mxu0 0.0
    %2526 = vmatprep.subr.mxu0 0.0
    %2527 = vmatpush1.msra.mxu0 0.0
    %2528 = vmatprep.subr.mxu0 0.0
    %2529 = vmatpush1.msra.mxu0 0.0
    %2530 = vmatprep.subr.mxu0 0.0
    %2531 = vmatpush1.msra.mxu0 0.0
    %2532 = vmatprep.subr.mxu0 0.0
    %2533 = vmatpush1.msra.mxu0 0.0
    %2534 = vmatprep.subr.mxu0 0.0
    %2535 = vmatpush1.msra.mxu0 0.0
    %2536 = vmatprep.subr.mxu0 0.0
    %2537 = vmatpush1.msra.mxu0 0.0
    %2538 = vmatprep.subr.mxu0 0.0
    %2539 = vmatpush1.msra.mxu0 0.0
    %2540 = vmatprep.subr.mxu0 0.0
    %2541 = vmatpush1.msra.mxu0 0.0
    %2542 = vmatprep.subr.mxu0 0.0
    %2543 = vmatpush1.msra.mxu0 0.0
    %2544 = vmatprep.subr.mxu0 0.0
    %2545 = vmatpush1.msra.mxu0 0.0
    %2546 = vmatprep.subr.mxu0 0.0
    %2547 = vmatpush1.msra.mxu0 0.0
    %2548 = vmatprep.subr.mxu0 0.0
    %2549 = vmatpush1.msra.mxu0 0.0
    %2550 = vmatprep.subr.mxu0 0.0
    %2551 = vmatpush1.msra.mxu0 0.0
    %2552 = vmatprep.subr.mxu0 0.0
    %2553 = vmatpush1.msra.mxu0 0.0
    %2554 = vmatprep.subr.mxu0 0.0
    %2555 = vmatpush1.msra.mxu0 0.0
    %2556 = vmatprep.subr.mxu0 0.0
    %2557 = vmatpush1.msra.mxu0 0.0
    %2558 = vmatprep.subr.mxu0 0.0
    %2559 = vmatpush1.msra.mxu0 0.0
    %2560 = vmatprep.subr.mxu0 0.0
    %2561 = vmatpush1.msra.mxu0 0.0
    %2562 = vmatprep.subr.mxu0 0.0
    %2563 = vmatpush1.msra.mxu0 0.0
    %2564 = vmatprep.subr.mxu0 0.0
    %2565 = vmatpush1.msra.mxu0 0.0
    %2566 = vmatprep.subr.mxu0 0.0
    %2567 = vmatpush1.msra.mxu0 0.0
    %2568 = vmatprep.subr.mxu0 0.0
    %2569 = vmatpush1.msra.mxu0 0.0
    %2570 = vmatprep.subr.mxu0 0.0
    %2571 = vmatpush1.msra.mxu0 0.0
    %2572 = vmatprep.subr.mxu0 0.0
    %2573 = vmatpush1.msra.mxu0 0.0
    %2574 = vmatprep.subr.mxu0 0.0
    %2575 = vmatpush1.msra.mxu0 0.0
    %2576 = vmatprep.subr.mxu0 0.0
    %2577 = vmatpush1.msra.mxu0 0.0
    %2578 = vmatprep.mubr.f32.mxu0 0.0
    %2579 = vmatmul.mubr.f32.gmra.mrb[0].mxu0 %v2512
    %v2580 = vpop.f32.mrb[0].mxu0
    %v2581 = vadd.f32 0.0, %v2580
    %v2582 = vpop.f32.mrb[0].mxu0
    %2583 = vdwg.mxu0
    %v2584 = vlaneseq
    %v2585 = vshrl.u32 %v2584, 7
    %v2586 = vsub.s32 0, %v2585
    %v2587 = vrot.slane %v2581, %v2586
    %v2588 = vadd.f32 %v1713, %v2587
    %v2589 = vadd.f32 %v1718, %v2587
    %v2590 = vtanh.pop %v2588
    %v2591 = vtanh.pop %v2589
    %v2593 = vsel %vm400, %v2590, 0
    %v2596 = vsel %vm400, %v2591, 0
    %2598 = vmatprep.subr.mxu0 0.0
    %2599 = vmatpush1.msra.mxu0 %v99
    %2600 = vmatprep.subr.mxu0 0.0
    %2601 = vmatpush1.msra.mxu0 %v100
    %2602 = vmatprep.subr.mxu0 0.0
    %2603 = vmatpush1.msra.mxu0 %v101
    %2604 = vmatprep.subr.mxu0 0.0
    %2605 = vmatpush1.msra.mxu0 %v102
    %2606 = vmatprep.subr.mxu0 0.0
    %2607 = vmatpush1.msra.mxu0 0.0
    %2608 = vmatprep.subr.mxu0 0.0
    %2609 = vmatpush1.msra.mxu0 0.0
    %2610 = vmatprep.subr.mxu0 0.0
    %2611 = vmatpush1.msra.mxu0 0.0
    %2612 = vmatprep.subr.mxu0 0.0
    %2613 = vmatpush1.msra.mxu0 0.0
    %2614 = vmatprep.subr.mxu0 0.0
    %2615 = vmatpush1.msra.mxu0 0.0
    %2616 = vmatprep.subr.mxu0 0.0
    %2617 = vmatpush1.msra.mxu0 0.0
    %2618 = vmatprep.subr.mxu0 0.0
    %2619 = vmatpush1.msra.mxu0 0.0
    %2620 = vmatprep.subr.mxu0 0.0
    %2621 = vmatpush1.msra.mxu0 0.0
    %2622 = vmatprep.subr.mxu0 0.0
    %2623 = vmatpush1.msra.mxu0 0.0
    %2624 = vmatprep.subr.mxu0 0.0
    %2625 = vmatpush1.msra.mxu0 0.0
    %2626 = vmatprep.subr.mxu0 0.0
    %2627 = vmatpush1.msra.mxu0 0.0
    %2628 = vmatprep.subr.mxu0 0.0
    %2629 = vmatpush1.msra.mxu0 0.0
    %2630 = vmatprep.subr.mxu0 0.0
    %2631 = vmatpush1.msra.mxu0 0.0
    %2632 = vmatprep.subr.mxu0 0.0
    %2633 = vmatpush1.msra.mxu0 0.0
    %2634 = vmatprep.subr.mxu0 0.0
    %2635 = vmatpush1.msra.mxu0 0.0
    %2636 = vmatprep.subr.mxu0 0.0
    %2637 = vmatpush1.msra.mxu0 0.0
    %2638 = vmatprep.subr.mxu0 0.0
    %2639 = vmatpush1.msra.mxu0 0.0
    %2640 = vmatprep.subr.mxu0 0.0
    %2641 = vmatpush1.msra.mxu0 0.0
    %2642 = vmatprep.subr.mxu0 0.0
    %2643 = vmatpush1.msra.mxu0 0.0
    %2644 = vmatprep.subr.mxu0 0.0
    %2645 = vmatpush1.msra.mxu0 0.0
    %2646 = vmatprep.subr.mxu0 0.0
    %2647 = vmatpush1.msra.mxu0 0.0
    %2648 = vmatprep.subr.mxu0 0.0
    %2649 = vmatpush1.msra.mxu0 0.0
    %2650 = vmatprep.subr.mxu0 0.0
    %2651 = vmatpush1.msra.mxu0 0.0
    %2652 = vmatprep.subr.mxu0 0.0
    %2653 = vmatpush1.msra.mxu0 0.0
    %2654 = vmatprep.subr.mxu0 0.0
    %2655 = vmatpush1.msra.mxu0 0.0
    %2656 = vmatprep.subr.mxu0 0.0
    %2657 = vmatpush1.msra.mxu0 0.0
    %2658 = vmatprep.subr.mxu0 0.0
    %2659 = vmatpush1.msra.mxu0 0.0
    %2660 = vmatprep.subr.mxu0 0.0
    %2661 = vmatpush1.msra.mxu0 0.0
    %2662 = vmatprep.mubr.f32.mxu0 0.0
    %2663 = vmatmul.mubr.f32.gmra.mrb[0].mxu0 %v2593
    %v2664 = vpop.f32.mrb[0].mxu0
    %v2665 = vadd.f32 0.0, %v2664
    %v2666 = vpop.f32.mrb[0].mxu0
    %2667 = vmatprep.mubr.f32.mxu0 0.0
    %2668 = vmatmul.mubr.f32.gmra.mrb[0].mxu0 %v2596
    %v2669 = vpop.f32.mrb[0].mxu0
    %v2670 = vadd.f32 0.0, %v2669
    %v2671 = vpop.f32.mrb[0].mxu0
    %2672 = vdwg.mxu0
    %v2673 = vsel %vm1891, %v2665, -inf
    %v2674 = vsel %vm1893, %v2670, -inf
    %v2675 = vmax.f32 %v2673, %v2674
    %v2676 = vrot.slane %v2675, 4
    %v2677 = vmax.f32 %v2675, %v2676
    %v2678 = vrot.slane %v2677, 2
    %v2679 = vmax.f32 %v2677, %v2678
    %v2680 = vrot.slane %v2679, 1
    %v2681 = vmax.f32 %v2679, %v2680
    %v2682 = vsub.f32 %v2665, %v2681
    %v2683 = vsub.f32 %v2670, %v2681
    %v2684 = vmul.f32 %v2682, 1.442695
    %v2685 = vpow.pop %v2684
    %v2686 = vmul.f32 %v2683, 1.442695
    %v2687 = vpow.pop %v2686
    %v2688 = vsel %vm1891, %v2685, 0.0
    %v2689 = vsel %vm1893, %v2687, 0.0
    %v2690 = vadd.f32 %v2688, %v2689
    %v2691 = vrot.slane %v2690, 4
    %v2692 = vadd.f32 %v2690, %v2691
    %v2693 = vrot.slane %v2692, 2
    %v2694 = vadd.f32 %v2692, %v2693
    %v2695 = vrot.slane %v2694, 1
    %v2696 = vadd.f32 %v2694, %v2695
    %v2697 = vrcp.pop %v2696
    %v2698 = vmul.f32 %v2685, %v2697
    %v2699 = vmul.f32 %v2687, %v2697
    %2701 = vset.pattern.permute.xlu0 0
    %2702 = vperm.xlu0 %2701, %v2698
    %v2703 = vpop.permute.xlu0 %2702
    %2706 = vset.pattern.permute.xlu0 0
    %2707 = vperm.xlu0 %2706, %v2699
    %v2708 = vpop.permute.xlu0 %2707
    %v2710 = vmul.f32 %v2703, %v1638
    %v2711 = vmul.f32 %v2708, %v1639
    %v2712 = vsel %vm400, %v2710, 0.0
    %v2713 = vsel %vm1933, %v2711, 0.0
    %v2714 = vadd.f32 %v2712, %v2713
    %v2715 = vrot.slane %v2714, 4
    %v2716 = vadd.f32 %v2714, %v2715
    %v2717 = vrot.slane %v2716, 2
    %v2718 = vadd.f32 %v2716, %v2717
    %v2719 = vrot.slane %v2718, 1
    %v2720 = vadd.f32 %v2718, %v2719
    %2721 = vst.msk [vmem:[#allocation4] sm:$0x3] %vm1943, %v2493
    %v2724 = vcombine.low %v2508, %v2509
    %v2726 = vunpack.c.l.s4 1966171168
    %v2727 = vunpack.c.0.s8 %v2726
    %v2728 = vlaneseq
    %v2729 = vshrl.u32 %v2728, 7
    %v2730 = vsub.s32 %v2727, %v2729
    %v2731 = vrot.slane %v2724, %v2730
    %v2733 = vunpack.c.l.s4 1966171168
    %v2734 = vunpack.c.0.s8 %v2733
    %v2735 = vlaneseq
    %v2736 = vshrl.u32 %v2735, 7
    %v2737 = vsub.s32 %v2734, %v2736
    %v2738 = vrot.slane %v2731, %v2737
    %2740 = vst.msk [vmem:[#allocation4 + $0x2] sm:$0x3] %vm1943, %v2738
    %2741 = vst.msk [vmem:[#allocation4 + $0x4] sm:$0x1] %vm1947, %v2720
    %v2742 = vld [vmem:[#allocation4] sm:$0x1f]
    %v2744 = vlaneseq
    %v2745 = vshrl.u32 %v2744, 7
    %v2746 = vsub.s32 0, %v2745
    %v2747 = vrot.slane %v2742, %v2746
    %v2748 = vlaneseq
    %v2749 = vshrl.u32 %v2748, 7
    %v2750 = vsub.s32 1, %v2749
    %v2751 = vrot.slane %v2742, %v2750
    %v2752 = vlaneseq
    %v2753 = vshrl.u32 %v2752, 7
    %v2754 = vsub.s32 2, %v2753
    %v2755 = vrot.slane %v2742, %v2754
    %v2756 = vlaneseq
    %v2757 = vshrl.u32 %v2756, 7
    %v2758 = vsub.s32 3, %v2757
    %v2759 = vrot.slane %v2742, %v2758
    %v2760 = vlaneseq
    %v2761 = vshrl.u32 %v2760, 7
    %v2762 = vsub.s32 4, %v2761
    %v2763 = vrot.slane %v2742, %v2762
    %2769 = vmatprep.subr.mxu0 0.0
    %2770 = vmatpush1.msra.mxu0 %v103
    %2771 = vmatprep.subr.mxu0 0.0
    %2772 = vmatpush1.msra.mxu0 %v104
    %2773 = vmatprep.subr.mxu0 0.0
    %2774 = vmatpush1.msra.mxu0 %v105
    %2775 = vmatprep.subr.mxu0 0.0
    %2776 = vmatpush1.msra.mxu0 %v106
    %2777 = vmatprep.subr.mxu0 0.0
    %2778 = vmatpush1.msra.mxu0 %v107
    %2779 = vmatprep.subr.mxu0 0.0
    %2780 = vmatpush1.msra.mxu0 %v108
    %2781 = vmatprep.subr.mxu0 0.0
    %2782 = vmatpush1.msra.mxu0 %v109
    %2783 = vmatprep.subr.mxu0 0.0
    %2784 = vmatpush1.msra.mxu0 %v110
    %2785 = vmatprep.subr.mxu0 0.0
    %2786 = vmatpush1.msra.mxu0 %v111
    %2787 = vmatprep.subr.mxu0 0.0
    %2788 = vmatpush1.msra.mxu0 %v112
    %2789 = vmatprep.subr.mxu0 0.0
    %2790 = vmatpush1.msra.mxu0 %v113
    %2791 = vmatprep.subr.mxu0 0.0
    %2792 = vmatpush1.msra.mxu0 %v114
    %2793 = vmatprep.subr.mxu0 0.0
    %2794 = vmatpush1.msra.mxu0 %v115
    %2795 = vmatprep.subr.mxu0 0.0
    %2796 = vmatpush1.msra.mxu0 %v116
    %2797 = vmatprep.subr.mxu0 0.0
    %2798 = vmatpush1.msra.mxu0 %v117
    %2799 = vmatprep.subr.mxu0 0.0
    %2800 = vmatpush1.msra.mxu0 %v118
    %2801 = vmatprep.subr.mxu0 0.0
    %2802 = vmatpush1.msra.mxu0 %v119
    %2803 = vmatprep.subr.mxu0 0.0
    %2804 = vmatpush1.msra.mxu0 %v120
    %2805 = vmatprep.subr.mxu0 0.0
    %2806 = vmatpush1.msra.mxu0 %v121
    %2807 = vmatprep.subr.mxu0 0.0
    %2808 = vmatpush1.msra.mxu0 %v122
    %2809 = vmatprep.subr.mxu0 0.0
    %2810 = vmatpush1.msra.mxu0 %v123
    %2811 = vmatprep.subr.mxu0 0.0
    %2812 = vmatpush1.msra.mxu0 %v124
    %2813 = vmatprep.subr.mxu0 0.0
    %2814 = vmatpush1.msra.mxu0 %v125
    %2815 = vmatprep.subr.mxu0 0.0
    %2816 = vmatpush1.msra.mxu0 %v126
    %2817 = vmatprep.subr.mxu0 0.0
    %2818 = vmatpush1.msra.mxu0 %v127
    %2819 = vmatprep.subr.mxu0 0.0
    %2820 = vmatpush1.msra.mxu0 %v128
    %2821 = vmatprep.subr.mxu0 0.0
    %2822 = vmatpush1.msra.mxu0 %v129
    %2823 = vmatprep.subr.mxu0 0.0
    %2824 = vmatpush1.msra.mxu0 %v130
    %2825 = vmatprep.subr.mxu0 0.0
    %2826 = vmatpush1.msra.mxu0 %v131
    %2827 = vmatprep.subr.mxu0 0.0
    %2828 = vmatpush1.msra.mxu0 %v132
    %2829 = vmatprep.subr.mxu0 0.0
    %2830 = vmatpush1.msra.mxu0 %v133
    %2831 = vmatprep.subr.mxu0 0.0
    %2832 = vmatpush1.msra.mxu0 %v134
    %2833 = vmatprep.mubr.f32.mxu0 %v2751
    %2834 = vmatmul.mubr.f32.gmra.mrb[0].mxu0 %v2747
    %v2835 = vpop.f32.mrb[0].mxu0
    %v2836 = vadd.f32 %v187, %v2835
    %v2837 = vpop.f32.mrb[0].mxu0
    %2838 = vdwg.mxu0
    %2839 = vmatprep.subr.mxu0 0.0
    %2840 = vmatpush1.msra.mxu0 %v135
    %2841 = vmatprep.subr.mxu0 0.0
    %2842 = vmatpush1.msra.mxu0 %v136
    %2843 = vmatprep.subr.mxu0 0.0
    %2844 = vmatpush1.msra.mxu0 %v137
    %2845 = vmatprep.subr.mxu0 0.0
    %2846 = vmatpush1.msra.mxu0 %v138
    %2847 = vmatprep.subr.mxu0 0.0
    %2848 = vmatpush1.msra.mxu0 %v139
    %2849 = vmatprep.subr.mxu0 0.0
    %2850 = vmatpush1.msra.mxu0 %v140
    %2851 = vmatprep.subr.mxu0 0.0
    %2852 = vmatpush1.msra.mxu0 %v141
    %2853 = vmatprep.subr.mxu0 0.0
    %2854 = vmatpush1.msra.mxu0 %v142
    %2855 = vmatprep.subr.mxu0 0.0
    %2856 = vmatpush1.msra.mxu0 %v143
    %2857 = vmatprep.subr.mxu0 0.0
    %2858 = vmatpush1.msra.mxu0 %v144
    %2859 = vmatprep.subr.mxu0 0.0
    %2860 = vmatpush1.msra.mxu0 %v145
    %2861 = vmatprep.subr.mxu0 0.0
    %2862 = vmatpush1.msra.mxu0 %v146
    %2863 = vmatprep.subr.mxu0 0.0
    %2864 = vmatpush1.msra.mxu0 %v147
    %2865 = vmatprep.subr.mxu0 0.0
    %2866 = vmatpush1.msra.mxu0 %v148
    %2867 = vmatprep.subr.mxu0 0.0
    %2868 = vmatpush1.msra.mxu0 %v149
    %2869 = vmatprep.subr.mxu0 0.0
    %2870 = vmatpush1.msra.mxu0 %v150
    %2871 = vmatprep.subr.mxu0 0.0
    %2872 = vmatpush1.msra.mxu0 %v151
    %2873 = vmatprep.subr.mxu0 0.0
    %2874 = vmatpush1.msra.mxu0 %v152
    %2875 = vmatprep.subr.mxu0 0.0
    %2876 = vmatpush1.msra.mxu0 %v153
    %2877 = vmatprep.subr.mxu0 0.0
    %2878 = vmatpush1.msra.mxu0 %v154
    %2879 = vmatprep.subr.mxu0 0.0
    %2880 = vmatpush1.msra.mxu0 %v155
    %2881 = vmatprep.subr.mxu0 0.0
    %2882 = vmatpush1.msra.mxu0 %v156
    %2883 = vmatprep.subr.mxu0 0.0
    %2884 = vmatpush1.msra.mxu0 %v157
    %2885 = vmatprep.subr.mxu0 0.0
    %2886 = vmatpush1.msra.mxu0 %v158
    %2887 = vmatprep.subr.mxu0 0.0
    %2888 = vmatpush1.msra.mxu0 %v159
    %2889 = vmatprep.subr.mxu0 0.0
    %2890 = vmatpush1.msra.mxu0 %v160
    %2891 = vmatprep.subr.mxu0 0.0
    %2892 = vmatpush1.msra.mxu0 %v161
    %2893 = vmatprep.subr.mxu0 0.0
    %2894 = vmatpush1.msra.mxu0 %v162
    %2895 = vmatprep.subr.mxu0 0.0
    %2896 = vmatpush1.msra.mxu0 %v163
    %2897 = vmatprep.subr.mxu0 0.0
    %2898 = vmatpush1.msra.mxu0 %v164
    %2899 = vmatprep.subr.mxu0 0.0
    %2900 = vmatpush1.msra.mxu0 %v165
    %2901 = vmatprep.subr.mxu0 0.0
    %2902 = vmatpush1.msra.mxu0 %v166
    %2903 = vmatprep.mubr.f32.mxu0 %v2759
    %2904 = vmatmul.mubr.f32.gmra.mrb[0].mxu0 %v2755
    %v2905 = vpop.f32.mrb[0].mxu0
    %v2906 = vadd.f32 %v2836, %v2905
    %v2907 = vpop.f32.mrb[0].mxu0
    %2908 = vdwg.mxu0
    %2909 = vmatprep.subr.mxu0 0.0
    %2910 = vmatpush1.msra.mxu0 %v167
    %2911 = vmatprep.subr.mxu0 0.0
    %2912 = vmatpush1.msra.mxu0 %v168
    %2913 = vmatprep.subr.mxu0 0.0
    %2914 = vmatpush1.msra.mxu0 %v169
    %2915 = vmatprep.subr.mxu0 0.0
    %2916 = vmatpush1.msra.mxu0 %v170
    %2917 = vmatprep.subr.mxu0 0.0
    %2918 = vmatpush1.msra.mxu0 %v171
    %2919 = vmatprep.subr.mxu0 0.0
    %2920 = vmatpush1.msra.mxu0 %v172
    %2921 = vmatprep.subr.mxu0 0.0
    %2922 = vmatpush1.msra.mxu0 %v173
    %2923 = vmatprep.subr.mxu0 0.0
    %2924 = vmatpush1.msra.mxu0 %v174
    %2925 = vmatprep.subr.mxu0 0.0
    %2926 = vmatpush1.msra.mxu0 %v175
    %2927 = vmatprep.subr.mxu0 0.0
    %2928 = vmatpush1.msra.mxu0 %v176
    %2929 = vmatprep.subr.mxu0 0.0
    %2930 = vmatpush1.msra.mxu0 %v177
    %2931 = vmatprep.subr.mxu0 0.0
    %2932 = vmatpush1.msra.mxu0 %v178
    %2933 = vmatprep.subr.mxu0 0.0
    %2934 = vmatpush1.msra.mxu0 %v179
    %2935 = vmatprep.subr.mxu0 0.0
    %2936 = vmatpush1.msra.mxu0 %v180
    %2937 = vmatprep.subr.mxu0 0.0
    %2938 = vmatpush1.msra.mxu0 %v181
    %2939 = vmatprep.subr.mxu0 0.0
    %2940 = vmatpush1.msra.mxu0 %v182
    %2941 = vmatprep.subr.mxu0 0.0
    %2942 = vmatpush1.msra.mxu0 0.0
    %2943 = vmatprep.subr.mxu0 0.0
    %2944 = vmatpush1.msra.mxu0 0.0
    %2945 = vmatprep.subr.mxu0 0.0
    %2946 = vmatpush1.msra.mxu0 0.0
    %2947 = vmatprep.subr.mxu0 0.0
    %2948 = vmatpush1.msra.mxu0 0.0
    %2949 = vmatprep.subr.mxu0 0.0
    %2950 = vmatpush1.msra.mxu0 0.0
    %2951 = vmatprep.subr.mxu0 0.0
    %2952 = vmatpush1.msra.mxu0 0.0
    %2953 = vmatprep.subr.mxu0 0.0
    %2954 = vmatpush1.msra.mxu0 0.0
    %2955 = vmatprep.subr.mxu0 0.0
    %2956 = vmatpush1.msra.mxu0 0.0
    %2957 = vmatprep.subr.mxu0 0.0
    %2958 = vmatpush1.msra.mxu0 0.0
    %2959 = vmatprep.subr.mxu0 0.0
    %2960 = vmatpush1.msra.mxu0 0.0
    %2961 = vmatprep.subr.mxu0 0.0
    %2962 = vmatpush1.msra.mxu0 0.0
    %2963 = vmatprep.subr.mxu0 0.0
    %2964 = vmatpush1.msra.mxu0 0.0
    %2965 = vmatprep.subr.mxu0 0.0
    %2966 = vmatpush1.msra.mxu0 0.0
    %2967 = vmatprep.subr.mxu0 0.0
    %2968 = vmatpush1.msra.mxu0 0.0
    %2969 = vmatprep.subr.mxu0 0.0
    %2970 = vmatpush1.msra.mxu0 0.0
    %2971 = vmatprep.subr.mxu0 0.0
    %2972 = vmatpush1.msra.mxu0 0.0
    %2973 = vmatprep.mubr.f32.mxu0 0.0
    %2974 = vmatmul.mubr.f32.gmra.mrb[0].mxu0 %v2763
    %v2975 = vpop.f32.mrb[0].mxu0
    %v2976 = vadd.f32 %v2906, %v2975
    %v2977 = vpop.f32.mrb[0].mxu0
    %2978 = vdwg.mxu0
    %2979 = vmatprep.subr.mxu0 0.0
    %2980 = vmatpush1.msra.mxu0 %v183
    %2981 = vmatprep.subr.mxu0 0.0
    %2982 = vmatpush1.msra.mxu0 %v184
    %2983 = vmatprep.subr.mxu0 0.0
    %2984 = vmatpush1.msra.mxu0 %v185
    %2985 = vmatprep.subr.mxu0 0.0
    %2986 = vmatpush1.msra.mxu0 %v186
    %2987 = vmatprep.subr.mxu0 0.0
    %2988 = vmatpush1.msra.mxu0 0.0
    %2989 = vmatprep.subr.mxu0 0.0
    %2990 = vmatpush1.msra.mxu0 0.0
    %2991 = vmatprep.subr.mxu0 0.0
    %2992 = vmatpush1.msra.mxu0 0.0
    %2993 = vmatprep.subr.mxu0 0.0
    %2994 = vmatpush1.msra.mxu0 0.0
    %2995 = vmatprep.subr.mxu0 0.0
    %2996 = vmatpush1.msra.mxu0 0.0
    %2997 = vmatprep.subr.mxu0 0.0
    %2998 = vmatpush1.msra.mxu0 0.0
    %2999 = vmatprep.subr.mxu0 0.0
    %3000 = vmatpush1.msra.mxu0 0.0
    %3001 = vmatprep.subr.mxu0 0.0
    %3002 = vmatpush1.msra.mxu0 0.0
    %3003 = vmatprep.subr.mxu0 0.0
    %3004 = vmatpush1.msra.mxu0 0.0
    %3005 = vmatprep.subr.mxu0 0.0
    %3006 = vmatpush1.msra.mxu0 0.0
    %3007 = vmatprep.subr.mxu0 0.0
    %3008 = vmatpush1.msra.mxu0 0.0
    %3009 = vmatprep.subr.mxu0 0.0
    %3010 = vmatpush1.msra.mxu0 0.0
    %3011 = vmatprep.subr.mxu0 0.0
    %3012 = vmatpush1.msra.mxu0 0.0
    %3013 = vmatprep.subr.mxu0 0.0
    %3014 = vmatpush1.msra.mxu0 0.0
    %3015 = vmatprep.subr.mxu0 0.0
    %3016 = vmatpush1.msra.mxu0 0.0
    %3017 = vmatprep.subr.mxu0 0.0
    %3018 = vmatpush1.msra.mxu0 0.0
    %3019 = vmatprep.subr.mxu0 0.0
    %3020 = vmatpush1.msra.mxu0 0.0
    %3021 = vmatprep.subr.mxu0 0.0
    %3022 = vmatpush1.msra.mxu0 0.0
    %3023 = vmatprep.subr.mxu0 0.0
    %3024 = vmatpush1.msra.mxu0 0.0
    %3025 = vmatprep.subr.mxu0 0.0
    %3026 = vmatpush1.msra.mxu0 0.0
    %3027 = vmatprep.subr.mxu0 0.0
    %3028 = vmatpush1.msra.mxu0 0.0
    %3029 = vmatprep.subr.mxu0 0.0
    %3030 = vmatpush1.msra.mxu0 0.0
    %3031 = vmatprep.subr.mxu0 0.0
    %3032 = vmatpush1.msra.mxu0 0.0
    %3033 = vmatprep.subr.mxu0 0.0
    %3034 = vmatpush1.msra.mxu0 0.0
    %3035 = vmatprep.subr.mxu0 0.0
    %3036 = vmatpush1.msra.mxu0 0.0
    %3037 = vmatprep.subr.mxu0 0.0
    %3038 = vmatpush1.msra.mxu0 0.0
    %3039 = vmatprep.subr.mxu0 0.0
    %3040 = vmatpush1.msra.mxu0 0.0
    %3041 = vmatprep.subr.mxu0 0.0
    %3042 = vmatpush1.msra.mxu0 0.0
    %3043 = vmatprep.mubr.f32.mxu0 0.0
    %3044 = vmatmul.mubr.f32.gmra.mrb[0].mxu0 %v2512
    %v3045 = vpop.f32.mrb[0].mxu0
    %v3046 = vadd.f32 0.0, %v3045
    %v3047 = vpop.f32.mrb[0].mxu0
    %3048 = vdwg.mxu0
    %v3049 = vadd.f32 %v2976, %v3046
    %v3050 = vxor.u32 %v3049, 2147483648
    %v3051 = vmul.f32 %v3050, 1.442695
    %v3052 = vpow.pop %v3051
    %v3053 = vadd.f32 %v3052, 1.0
    %v3054 = vrcp.pop %v3053
    %v3055 = vmul.f32 1.0, %v3054
    %v3056 = vtanh.pop %v3049
    %v3057 = vmul.f32 %v3055, %v2274
    %3059 = vrot.lane.b32.xlu0 %v3056, 64
    %v3060 = vpop.permute.xlu0 %3059
    %v3062 = vmul.f32 %v3055, %v3060
    %3064 = vrot.lane.b32.xlu0 %v3062, 32
    %v3065 = vpop.permute.xlu0 %3064
    %v3067 = vadd.f32 %v3057, %v3065
    %v3068 = vtanh.pop %v3067
    %3070 = vrot.lane.b32.xlu0 %v3068, 64
    %v3071 = vpop.permute.xlu0 %3070
    %v3073 = vmul.f32 %v3055, %v3071
    %v3076 = vunpack.c.l.s4 1966171168
    %v3077 = vunpack.c.0.s8 %v3076
    %v3078 = vlaneseq
    %v3079 = vshrl.u32 %v3078, 7
    %v3080 = vsub.s32 %v3077, %v3079
    %v3081 = vrot.slane %v3073, %v3080
    %v3083 = vunpack.c.l.s4 1966171168
    %v3084 = vunpack.c.0.s8 %v3083
    %v3085 = vlaneseq
    %v3086 = vshrl.u32 %v3085, 7
    %v3087 = vsub.s32 %v3084, %v3086
    %v3088 = vrot.slane %v3081, %v3087
    %3089 = vrot.lane.b32.xlu0 %v3088, 32
    %v3090 = vpop.permute.xlu0 %3089
    %3092 = vst.msk [vmem:[#allocation5] sm:$0x1] %vm1947, %v3090
    %3093 = vst.msk [vmem:[#allocation5 + $0x1] sm:$0x1] %vm1947, %v2720
    %3094 = vst.msk [vmem:[#allocation5 + $0x2] sm:$0x3] %vm1943, %v2493
    %v3095 = vld [vmem:[#allocation5] sm:$0xf]
    %v3097 = vlaneseq
    %v3098 = vshrl.u32 %v3097, 7
    %v3099 = vsub.s32 0, %v3098
    %v3100 = vrot.slane %v3095, %v3099
    %v3101 = vlaneseq
    %v3102 = vshrl.u32 %v3101, 7
    %v3103 = vsub.s32 1, %v3102
    %v3104 = vrot.slane %v3095, %v3103
    %v3105 = vlaneseq
    %v3106 = vshrl.u32 %v3105, 7
    %v3107 = vsub.s32 2, %v3106
    %v3108 = vrot.slane %v3095, %v3107
    %v3109 = vlaneseq
    %v3110 = vshrl.u32 %v3109, 7
    %v3111 = vsub.s32 3, %v3110
    %v3112 = vrot.slane %v3095, %v3111
    %3117 = vmatprep.subr.mxu0 %v189
    %3118 = vmatpush1.msra.mxu0 %v188
    %3119 = vmatprep.subr.mxu0 %v191
    %3120 = vmatpush1.msra.mxu0 %v190
    %3121 = vmatprep.subr.mxu0 %v193
    %3122 = vmatpush1.msra.mxu0 %v192
    %3123 = vmatprep.subr.mxu0 %v195
    %3124 = vmatpush1.msra.mxu0 %v194
    %3125 = vmatprep.subr.mxu0 %v197
    %3126 = vmatpush1.msra.mxu0 %v196
    %3127 = vmatprep.subr.mxu0 %v199
    %3128 = vmatpush1.msra.mxu0 %v198
    %3129 = vmatprep.subr.mxu0 %v201
    %3130 = vmatpush1.msra.mxu0 %v200
    %3131 = vmatprep.subr.mxu0 %v203
    %3132 = vmatpush1.msra.mxu0 %v202
    %3133 = vmatprep.subr.mxu0 %v205
    %3134 = vmatpush1.msra.mxu0 %v204
    %3135 = vmatprep.subr.mxu0 %v207
    %3136 = vmatpush1.msra.mxu0 %v206
    %3137 = vmatprep.subr.mxu0 %v209
    %3138 = vmatpush1.msra.mxu0 %v208
    %3139 = vmatprep.subr.mxu0 %v211
    %3140 = vmatpush1.msra.mxu0 %v210
    %3141 = vmatprep.subr.mxu0 %v213
    %3142 = vmatpush1.msra.mxu0 %v212
    %3143 = vmatprep.subr.mxu0 %v215
    %3144 = vmatpush1.msra.mxu0 %v214
    %3145 = vmatprep.subr.mxu0 %v217
    %3146 = vmatpush1.msra.mxu0 %v216
    %3147 = vmatprep.subr.mxu0 %v219
    %3148 = vmatpush1.msra.mxu0 %v218
    %3149 = vmatprep.subr.mxu0 %v221
    %3150 = vmatpush1.msra.mxu0 %v220
    %3151 = vmatprep.subr.mxu0 %v223
    %3152 = vmatpush1.msra.mxu0 %v222
    %3153 = vmatprep.subr.mxu0 %v225
    %3154 = vmatpush1.msra.mxu0 %v224
    %3155 = vmatprep.subr.mxu0 %v227
    %3156 = vmatpush1.msra.mxu0 %v226
    %3157 = vmatprep.subr.mxu0 %v229
    %3158 = vmatpush1.msra.mxu0 %v228
    %3159 = vmatprep.subr.mxu0 %v231
    %3160 = vmatpush1.msra.mxu0 %v230
    %3161 = vmatprep.subr.mxu0 %v233
    %3162 = vmatpush1.msra.mxu0 %v232
    %3163 = vmatprep.subr.mxu0 %v235
    %3164 = vmatpush1.msra.mxu0 %v234
    %3165 = vmatprep.subr.mxu0 %v237
    %3166 = vmatpush1.msra.mxu0 %v236
    %3167 = vmatprep.subr.mxu0 %v239
    %3168 = vmatpush1.msra.mxu0 %v238
    %3169 = vmatprep.subr.mxu0 %v241
    %3170 = vmatpush1.msra.mxu0 %v240
    %3171 = vmatprep.subr.mxu0 %v243
    %3172 = vmatpush1.msra.mxu0 %v242
    %3173 = vmatprep.subr.mxu0 %v245
    %3174 = vmatpush1.msra.mxu0 %v244
    %3175 = vmatprep.subr.mxu0 %v247
    %3176 = vmatpush1.msra.mxu0 %v246
    %3177 = vmatprep.subr.mxu0 %v249
    %3178 = vmatpush1.msra.mxu0 %v248
    %3179 = vmatprep.subr.mxu0 %v251
    %3180 = vmatpush1.msra.mxu0 %v250
    %3181 = vmatprep.mubr.f32.mxu0 %v3104
    %3182 = vmatmul.mubr.f32.gmra.mrb[0].mxu0 %v3100
    %v3183 = vpop.f32.mrb[0].mxu0
    %v3184 = vadd.f32 %v2328, %v3183
    %v3185 = vpop.f32.mrb[0].mxu0
    %v3186 = vadd.f32 %v2332, %v3185
    %3187 = vdwg.mxu0
    %3188 = vmatprep.subr.mxu0 %v253
    %3189 = vmatpush1.msra.mxu0 %v252
    %3190 = vmatprep.subr.mxu0 %v255
    %3191 = vmatpush1.msra.mxu0 %v254
    %3192 = vmatprep.subr.mxu0 %v257
    %3193 = vmatpush1.msra.mxu0 %v256
    %3194 = vmatprep.subr.mxu0 %v259
    %3195 = vmatpush1.msra.mxu0 %v258
    %3196 = vmatprep.subr.mxu0 %v261
    %3197 = vmatpush1.msra.mxu0 %v260
    %3198 = vmatprep.subr.mxu0 %v263
    %3199 = vmatpush1.msra.mxu0 %v262
    %3200 = vmatprep.subr.mxu0 %v265
    %3201 = vmatpush1.msra.mxu0 %v264
    %3202 = vmatprep.subr.mxu0 %v267
    %3203 = vmatpush1.msra.mxu0 %v266
    %3204 = vmatprep.subr.mxu0 %v269
    %3205 = vmatpush1.msra.mxu0 %v268
    %3206 = vmatprep.subr.mxu0 %v271
    %3207 = vmatpush1.msra.mxu0 %v270
    %3208 = vmatprep.subr.mxu0 %v273
    %3209 = vmatpush1.msra.mxu0 %v272
    %3210 = vmatprep.subr.mxu0 %v275
    %3211 = vmatpush1.msra.mxu0 %v274
    %3212 = vmatprep.subr.mxu0 %v277
    %3213 = vmatpush1.msra.mxu0 %v276
    %3214 = vmatprep.subr.mxu0 %v279
    %3215 = vmatpush1.msra.mxu0 %v278
    %3216 = vmatprep.subr.mxu0 %v281
    %3217 = vmatpush1.msra.mxu0 %v280
    %3218 = vmatprep.subr.mxu0 %v283
    %3219 = vmatpush1.msra.mxu0 %v282
    %3220 = vmatprep.subr.mxu0 %v285
    %3221 = vmatpush1.msra.mxu0 %v284
    %3222 = vmatprep.subr.mxu0 %v287
    %3223 = vmatpush1.msra.mxu0 %v286
    %3224 = vmatprep.subr.mxu0 %v289
    %3225 = vmatpush1.msra.mxu0 %v288
    %3226 = vmatprep.subr.mxu0 %v291
    %3227 = vmatpush1.msra.mxu0 %v290
    %3228 = vmatprep.subr.mxu0 %v293
    %3229 = vmatpush1.msra.mxu0 %v292
    %3230 = vmatprep.subr.mxu0 %v295
    %3231 = vmatpush1.msra.mxu0 %v294
    %3232 = vmatprep.subr.mxu0 %v297
    %3233 = vmatpush1.msra.mxu0 %v296
    %3234 = vmatprep.subr.mxu0 %v299
    %3235 = vmatpush1.msra.mxu0 %v298
    %3236 = vmatprep.subr.mxu0 %v301
    %3237 = vmatpush1.msra.mxu0 %v300
    %3238 = vmatprep.subr.mxu0 %v303
    %3239 = vmatpush1.msra.mxu0 %v302
    %3240 = vmatprep.subr.mxu0 %v305
    %3241 = vmatpush1.msra.mxu0 %v304
    %3242 = vmatprep.subr.mxu0 %v307
    %3243 = vmatpush1.msra.mxu0 %v306
    %3244 = vmatprep.subr.mxu0 %v309
    %3245 = vmatpush1.msra.mxu0 %v308
    %3246 = vmatprep.subr.mxu0 %v311
    %3247 = vmatpush1.msra.mxu0 %v310
    %3248 = vmatprep.subr.mxu0 %v313
    %3249 = vmatpush1.msra.mxu0 %v312
    %3250 = vmatprep.subr.mxu0 %v315
    %3251 = vmatpush1.msra.mxu0 %v314
    %3252 = vmatprep.mubr.f32.mxu0 %v3112
    %3253 = vmatmul.mubr.f32.gmra.mrb[0].mxu0 %v3108
    %v3254 = vpop.f32.mrb[0].mxu0
    %v3255 = vadd.f32 %v3184, %v3254
    %v3256 = vpop.f32.mrb[0].mxu0
    %v3257 = vadd.f32 %v3186, %v3256
    %3258 = vdwg.mxu0
    %v3261 = vcombine.low %v3255, %v3257
    %v3263 = vunpack.c.l.s4 1966171168
    %v3264 = vunpack.c.0.s8 %v3263
    %v3265 = vlaneseq
    %v3266 = vshrl.u32 %v3265, 7
    %v3267 = vsub.s32 %v3264, %v3266
    %v3268 = vrot.slane %v3261, %v3267
    %v3270 = vunpack.c.l.s4 1966171168
    %v3271 = vunpack.c.0.s8 %v3270
    %v3272 = vlaneseq
    %v3273 = vshrl.u32 %v3272, 7
    %v3274 = vsub.s32 %v3271, %v3273
    %v3275 = vrot.slane %v3268, %v3274
    %s3277 = scalar_lea.vmem [#allocation12], 1
    %3278 = vst.msk [vmem:[%s3277] ss:$8 sm:$0x3] %vm1943, %v3275
    %3279 = vst.msk [vmem:[%s3277] ss:$8 sm:$0x0] %vm1943, %v3275
    %v3280 = vsub.f32 %v3255, %v2473
    %v3281 = vsub.f32 %v3257, %v2475
    %3282 = vrot.lane.b32.xlu0 %v3073, 32
    %v3283 = vpop.permute.xlu0 %3282
    %v3284 = vsel %vm400, %v3283, 0
    %3286 = vmatprep.subr.mxu0 0.0
    %3287 = vmatpush1.msra.mxu0 %v95
    %3288 = vmatprep.subr.mxu0 0.0
    %3289 = vmatpush1.msra.mxu0 %v96
    %3290 = vmatprep.subr.mxu0 0.0
    %3291 = vmatpush1.msra.mxu0 %v97
    %3292 = vmatprep.subr.mxu0 0.0
    %3293 = vmatpush1.msra.mxu0 %v98
    %3294 = vmatprep.subr.mxu0 0.0
    %3295 = vmatpush1.msra.mxu0 0.0
    %3296 = vmatprep.subr.mxu0 0.0
    %3297 = vmatpush1.msra.mxu0 0.0
    %3298 = vmatprep.subr.mxu0 0.0
    %3299 = vmatpush1.msra.mxu0 0.0
    %3300 = vmatprep.subr.mxu0 0.0
    %3301 = vmatpush1.msra.mxu0 0.0
    %3302 = vmatprep.subr.mxu0 0.0
    %3303 = vmatpush1.msra.mxu0 0.0
    %3304 = vmatprep.subr.mxu0 0.0
    %3305 = vmatpush1.msra.mxu0 0.0
    %3306 = vmatprep.subr.mxu0 0.0
    %3307 = vmatpush1.msra.mxu0 0.0
    %3308 = vmatprep.subr.mxu0 0.0
    %3309 = vmatpush1.msra.mxu0 0.0
    %3310 = vmatprep.subr.mxu0 0.0
    %3311 = vmatpush1.msra.mxu0 0.0
    %3312 = vmatprep.subr.mxu0 0.0
    %3313 = vmatpush1.msra.mxu0 0.0
    %3314 = vmatprep.subr.mxu0 0.0
    %3315 = vmatpush1.msra.mxu0 0.0
    %3316 = vmatprep.subr.mxu0 0.0
    %3317 = vmatpush1.msra.mxu0 0.0
    %3318 = vmatprep.subr.mxu0 0.0
    %3319 = vmatpush1.msra.mxu0 0.0
    %3320 = vmatprep.subr.mxu0 0.0
    %3321 = vmatpush1.msra.mxu0 0.0
    %3322 = vmatprep.subr.mxu0 0.0
    %3323 = vmatpush1.msra.mxu0 0.0
    %3324 = vmatprep.subr.mxu0 0.0
    %3325 = vmatpush1.msra.mxu0 0.0
    %3326 = vmatprep.subr.mxu0 0.0
    %3327 = vmatpush1.msra.mxu0 0.0
    %3328 = vmatprep.subr.mxu0 0.0
    %3329 = vmatpush1.msra.mxu0 0.0
    %3330 = vmatprep.subr.mxu0 0.0
    %3331 = vmatpush1.msra.mxu0 0.0
    %3332 = vmatprep.subr.mxu0 0.0
    %3333 = vmatpush1.msra.mxu0 0.0
    %3334 = vmatprep.subr.mxu0 0.0
    %3335 = vmatpush1.msra.mxu0 0.0
    %3336 = vmatprep.subr.mxu0 0.0
    %3337 = vmatpush1.msra.mxu0 0.0
    %3338 = vmatprep.subr.mxu0 0.0
    %3339 = vmatpush1.msra.mxu0 0.0
    %3340 = vmatprep.subr.mxu0 0.0
    %3341 = vmatpush1.msra.mxu0 0.0
    %3342 = vmatprep.subr.mxu0 0.0
    %3343 = vmatpush1.msra.mxu0 0.0
    %3344 = vmatprep.subr.mxu0 0.0
    %3345 = vmatpush1.msra.mxu0 0.0
    %3346 = vmatprep.subr.mxu0 0.0
    %3347 = vmatpush1.msra.mxu0 0.0
    %3348 = vmatprep.subr.mxu0 0.0
    %3349 = vmatpush1.msra.mxu0 0.0
    %3350 = vmatprep.mubr.f32.mxu0 0.0
    %3351 = vmatmul.mubr.f32.gmra.mrb[0].mxu0 %v3284
    %v3352 = vpop.f32.mrb[0].mxu0
    %v3353 = vadd.f32 0.0, %v3352
    %v3354 = vpop.f32.mrb[0].mxu0
    %3355 = vdwg.mxu0
    %v3356 = vlaneseq
    %v3357 = vshrl.u32 %v3356, 7
    %v3358 = vsub.s32 0, %v3357
    %v3359 = vrot.slane %v3353, %v3358
    %v3360 = vadd.f32 %v1713, %v3359
    %v3361 = vadd.f32 %v1718, %v3359
    %v3362 = vtanh.pop %v3360
    %v3363 = vtanh.pop %v3361
    %v3365 = vsel %vm400, %v3362, 0
    %v3368 = vsel %vm400, %v3363, 0
    %3370 = vmatprep.subr.mxu0 0.0
    %3371 = vmatpush1.msra.mxu0 %v99
    %3372 = vmatprep.subr.mxu0 0.0
    %3373 = vmatpush1.msra.mxu0 %v100
    %3374 = vmatprep.subr.mxu0 0.0
    %3375 = vmatpush1.msra.mxu0 %v101
    %3376 = vmatprep.subr.mxu0 0.0
    %3377 = vmatpush1.msra.mxu0 %v102
    %3378 = vmatprep.subr.mxu0 0.0
    %3379 = vmatpush1.msra.mxu0 0.0
    %3380 = vmatprep.subr.mxu0 0.0
    %3381 = vmatpush1.msra.mxu0 0.0
    %3382 = vmatprep.subr.mxu0 0.0
    %3383 = vmatpush1.msra.mxu0 0.0
    %3384 = vmatprep.subr.mxu0 0.0
    %3385 = vmatpush1.msra.mxu0 0.0
    %3386 = vmatprep.subr.mxu0 0.0
    %3387 = vmatpush1.msra.mxu0 0.0
    %3388 = vmatprep.subr.mxu0 0.0
    %3389 = vmatpush1.msra.mxu0 0.0
    %3390 = vmatprep.subr.mxu0 0.0
    %3391 = vmatpush1.msra.mxu0 0.0
    %3392 = vmatprep.subr.mxu0 0.0
    %3393 = vmatpush1.msra.mxu0 0.0
    %3394 = vmatprep.subr.mxu0 0.0
    %3395 = vmatpush1.msra.mxu0 0.0
    %3396 = vmatprep.subr.mxu0 0.0
    %3397 = vmatpush1.msra.mxu0 0.0
    %3398 = vmatprep.subr.mxu0 0.0
    %3399 = vmatpush1.msra.mxu0 0.0
    %3400 = vmatprep.subr.mxu0 0.0
    %3401 = vmatpush1.msra.mxu0 0.0
    %3402 = vmatprep.subr.mxu0 0.0
    %3403 = vmatpush1.msra.mxu0 0.0
    %3404 = vmatprep.subr.mxu0 0.0
    %3405 = vmatpush1.msra.mxu0 0.0
    %3406 = vmatprep.subr.mxu0 0.0
    %3407 = vmatpush1.msra.mxu0 0.0
    %3408 = vmatprep.subr.mxu0 0.0
    %3409 = vmatpush1.msra.mxu0 0.0
    %3410 = vmatprep.subr.mxu0 0.0
    %3411 = vmatpush1.msra.mxu0 0.0
    %3412 = vmatprep.subr.mxu0 0.0
    %3413 = vmatpush1.msra.mxu0 0.0
    %3414 = vmatprep.subr.mxu0 0.0
    %3415 = vmatpush1.msra.mxu0 0.0
    %3416 = vmatprep.subr.mxu0 0.0
    %3417 = vmatpush1.msra.mxu0 0.0
    %3418 = vmatprep.subr.mxu0 0.0
    %3419 = vmatpush1.msra.mxu0 0.0
    %3420 = vmatprep.subr.mxu0 0.0
    %3421 = vmatpush1.msra.mxu0 0.0
    %3422 = vmatprep.subr.mxu0 0.0
    %3423 = vmatpush1.msra.mxu0 0.0
    %3424 = vmatprep.subr.mxu0 0.0
    %3425 = vmatpush1.msra.mxu0 0.0
    %3426 = vmatprep.subr.mxu0 0.0
    %3427 = vmatpush1.msra.mxu0 0.0
    %3428 = vmatprep.subr.mxu0 0.0
    %3429 = vmatpush1.msra.mxu0 0.0
    %3430 = vmatprep.subr.mxu0 0.0
    %3431 = vmatpush1.msra.mxu0 0.0
    %3432 = vmatprep.subr.mxu0 0.0
    %3433 = vmatpush1.msra.mxu0 0.0
    %3434 = vmatprep.mubr.f32.mxu0 0.0
    %3435 = vmatmul.mubr.f32.gmra.mrb[0].mxu0 %v3365
    %v3436 = vpop.f32.mrb[0].mxu0
    %v3437 = vadd.f32 0.0, %v3436
    %v3438 = vpop.f32.mrb[0].mxu0
    %3439 = vmatprep.mubr.f32.mxu0 0.0
    %3440 = vmatmul.mubr.f32.gmra.mrb[0].mxu0 %v3368
    %v3441 = vpop.f32.mrb[0].mxu0
    %v3442 = vadd.f32 0.0, %v3441
    %v3443 = vpop.f32.mrb[0].mxu0
    %3444 = vdwg.mxu0
    %v3445 = vsel %vm1891, %v3437, -inf
    %v3446 = vsel %vm1893, %v3442, -inf
    %v3447 = vmax.f32 %v3445, %v3446
    %v3448 = vrot.slane %v3447, 4
    %v3449 = vmax.f32 %v3447, %v3448
    %v3450 = vrot.slane %v3449, 2
    %v3451 = vmax.f32 %v3449, %v3450
    %v3452 = vrot.slane %v3451, 1
    %v3453 = vmax.f32 %v3451, %v3452
    %v3454 = vsub.f32 %v3437, %v3453
    %v3455 = vsub.f32 %v3442, %v3453
    %v3456 = vmul.f32 %v3454, 1.442695
    %v3457 = vpow.pop %v3456
    %v3458 = vmul.f32 %v3455, 1.442695
    %v3459 = vpow.pop %v3458
    %v3460 = vsel %vm1891, %v3457, 0.0
    %v3461 = vsel %vm1893, %v3459, 0.0
    %v3462 = vadd.f32 %v3460, %v3461
    %v3463 = vrot.slane %v3462, 4
    %v3464 = vadd.f32 %v3462, %v3463
    %v3465 = vrot.slane %v3464, 2
    %v3466 = vadd.f32 %v3464, %v3465
    %v3467 = vrot.slane %v3466, 1
    %v3468 = vadd.f32 %v3466, %v3467
    %v3469 = vrcp.pop %v3468
    %v3470 = vmul.f32 %v3457, %v3469
    %v3471 = vmul.f32 %v3459, %v3469
    %3473 = vset.pattern.permute.xlu0 0
    %3474 = vperm.xlu0 %3473, %v3470
    %v3475 = vpop.permute.xlu0 %3474
    %3478 = vset.pattern.permute.xlu0 0
    %3479 = vperm.xlu0 %3478, %v3471
    %v3480 = vpop.permute.xlu0 %3479
    %v3482 = vmul.f32 %v3475, %v1638
    %v3483 = vmul.f32 %v3480, %v1639
    %v3484 = vsel %vm400, %v3482, 0.0
    %v3485 = vsel %vm1933, %v3483, 0.0
    %v3486 = vadd.f32 %v3484, %v3485
    %v3487 = vrot.slane %v3486, 4
    %v3488 = vadd.f32 %v3486, %v3487
    %v3489 = vrot.slane %v3488, 2
    %v3490 = vadd.f32 %v3488, %v3489
    %v3491 = vrot.slane %v3490, 1
    %v3492 = vadd.f32 %v3490, %v3491
    %3493 = vst.msk [vmem:[#allocation4] sm:$0x3] %vm1943, %v3275
    %v3496 = vcombine.low %v3280, %v3281
    %v3498 = vunpack.c.l.s4 1966171168
    %v3499 = vunpack.c.0.s8 %v3498
    %v3500 = vlaneseq
    %v3501 = vshrl.u32 %v3500, 7
    %v3502 = vsub.s32 %v3499, %v3501
    %v3503 = vrot.slane %v3496, %v3502
    %v3505 = vunpack.c.l.s4 1966171168
    %v3506 = vunpack.c.0.s8 %v3505
    %v3507 = vlaneseq
    %v3508 = vshrl.u32 %v3507, 7
    %v3509 = vsub.s32 %v3506, %v3508
    %v3510 = vrot.slane %v3503, %v3509
    %3512 = vst.msk [vmem:[#allocation4 + $0x2] sm:$0x3] %vm1943, %v3510
    %3513 = vst.msk [vmem:[#allocation4 + $0x4] sm:$0x1] %vm1947, %v3492
    %v3514 = vld [vmem:[#allocation4] sm:$0x1f]
    %v3516 = vlaneseq
    %v3517 = vshrl.u32 %v3516, 7
    %v3518 = vsub.s32 0, %v3517
    %v3519 = vrot.slane %v3514, %v3518
    %v3520 = vlaneseq
    %v3521 = vshrl.u32 %v3520, 7
    %v3522 = vsub.s32 1, %v3521
    %v3523 = vrot.slane %v3514, %v3522
    %v3524 = vlaneseq
    %v3525 = vshrl.u32 %v3524, 7
    %v3526 = vsub.s32 2, %v3525
    %v3527 = vrot.slane %v3514, %v3526
    %v3528 = vlaneseq
    %v3529 = vshrl.u32 %v3528, 7
    %v3530 = vsub.s32 3, %v3529
    %v3531 = vrot.slane %v3514, %v3530
    %v3532 = vlaneseq
    %v3533 = vshrl.u32 %v3532, 7
    %v3534 = vsub.s32 4, %v3533
    %v3535 = vrot.slane %v3514, %v3534
    %3541 = vmatprep.subr.mxu0 0.0
    %3542 = vmatpush1.msra.mxu0 %v103
    %3543 = vmatprep.subr.mxu0 0.0
    %3544 = vmatpush1.msra.mxu0 %v104
    %3545 = vmatprep.subr.mxu0 0.0
    %3546 = vmatpush1.msra.mxu0 %v105
    %3547 = vmatprep.subr.mxu0 0.0
    %3548 = vmatpush1.msra.mxu0 %v106
    %3549 = vmatprep.subr.mxu0 0.0
    %3550 = vmatpush1.msra.mxu0 %v107
    %3551 = vmatprep.subr.mxu0 0.0
    %3552 = vmatpush1.msra.mxu0 %v108
    %3553 = vmatprep.subr.mxu0 0.0
    %3554 = vmatpush1.msra.mxu0 %v109
    %3555 = vmatprep.subr.mxu0 0.0
    %3556 = vmatpush1.msra.mxu0 %v110
    %3557 = vmatprep.subr.mxu0 0.0
    %3558 = vmatpush1.msra.mxu0 %v111
    %3559 = vmatprep.subr.mxu0 0.0
    %3560 = vmatpush1.msra.mxu0 %v112
    %3561 = vmatprep.subr.mxu0 0.0
    %3562 = vmatpush1.msra.mxu0 %v113
    %3563 = vmatprep.subr.mxu0 0.0
    %3564 = vmatpush1.msra.mxu0 %v114
    %3565 = vmatprep.subr.mxu0 0.0
    %3566 = vmatpush1.msra.mxu0 %v115
    %3567 = vmatprep.subr.mxu0 0.0
    %3568 = vmatpush1.msra.mxu0 %v116
    %3569 = vmatprep.subr.mxu0 0.0
    %3570 = vmatpush1.msra.mxu0 %v117
    %3571 = vmatprep.subr.mxu0 0.0
    %3572 = vmatpush1.msra.mxu0 %v118
    %3573 = vmatprep.subr.mxu0 0.0
    %3574 = vmatpush1.msra.mxu0 %v119
    %3575 = vmatprep.subr.mxu0 0.0
    %3576 = vmatpush1.msra.mxu0 %v120
    %3577 = vmatprep.subr.mxu0 0.0
    %3578 = vmatpush1.msra.mxu0 %v121
    %3579 = vmatprep.subr.mxu0 0.0
    %3580 = vmatpush1.msra.mxu0 %v122
    %3581 = vmatprep.subr.mxu0 0.0
    %3582 = vmatpush1.msra.mxu0 %v123
    %3583 = vmatprep.subr.mxu0 0.0
    %3584 = vmatpush1.msra.mxu0 %v124
    %3585 = vmatprep.subr.mxu0 0.0
    %3586 = vmatpush1.msra.mxu0 %v125
    %3587 = vmatprep.subr.mxu0 0.0
    %3588 = vmatpush1.msra.mxu0 %v126
    %3589 = vmatprep.subr.mxu0 0.0
    %3590 = vmatpush1.msra.mxu0 %v127
    %3591 = vmatprep.subr.mxu0 0.0
    %3592 = vmatpush1.msra.mxu0 %v128
    %3593 = vmatprep.subr.mxu0 0.0
    %3594 = vmatpush1.msra.mxu0 %v129
    %3595 = vmatprep.subr.mxu0 0.0
    %3596 = vmatpush1.msra.mxu0 %v130
    %3597 = vmatprep.subr.mxu0 0.0
    %3598 = vmatpush1.msra.mxu0 %v131
    %3599 = vmatprep.subr.mxu0 0.0
    %3600 = vmatpush1.msra.mxu0 %v132
    %3601 = vmatprep.subr.mxu0 0.0
    %3602 = vmatpush1.msra.mxu0 %v133
    %3603 = vmatprep.subr.mxu0 0.0
    %3604 = vmatpush1.msra.mxu0 %v134
    %3605 = vmatprep.mubr.f32.mxu0 %v3523
    %3606 = vmatmul.mubr.f32.gmra.mrb[0].mxu0 %v3519
    %v3607 = vpop.f32.mrb[0].mxu0
    %v3608 = vadd.f32 %v187, %v3607
    %v3609 = vpop.f32.mrb[0].mxu0
    %3610 = vdwg.mxu0
    %3611 = vmatprep.subr.mxu0 0.0
    %3612 = vmatpush1.msra.mxu0 %v135
    %3613 = vmatprep.subr.mxu0 0.0
    %3614 = vmatpush1.msra.mxu0 %v136
    %3615 = vmatprep.subr.mxu0 0.0
    %3616 = vmatpush1.msra.mxu0 %v137
    %3617 = vmatprep.subr.mxu0 0.0
    %3618 = vmatpush1.msra.mxu0 %v138
    %3619 = vmatprep.subr.mxu0 0.0
    %3620 = vmatpush1.msra.mxu0 %v139
    %3621 = vmatprep.subr.mxu0 0.0
    %3622 = vmatpush1.msra.mxu0 %v140
    %3623 = vmatprep.subr.mxu0 0.0
    %3624 = vmatpush1.msra.mxu0 %v141
    %3625 = vmatprep.subr.mxu0 0.0
    %3626 = vmatpush1.msra.mxu0 %v142
    %3627 = vmatprep.subr.mxu0 0.0
    %3628 = vmatpush1.msra.mxu0 %v143
    %3629 = vmatprep.subr.mxu0 0.0
    %3630 = vmatpush1.msra.mxu0 %v144
    %3631 = vmatprep.subr.mxu0 0.0
    %3632 = vmatpush1.msra.mxu0 %v145
    %3633 = vmatprep.subr.mxu0 0.0
    %3634 = vmatpush1.msra.mxu0 %v146
    %3635 = vmatprep.subr.mxu0 0.0
    %3636 = vmatpush1.msra.mxu0 %v147
    %3637 = vmatprep.subr.mxu0 0.0
    %3638 = vmatpush1.msra.mxu0 %v148
    %3639 = vmatprep.subr.mxu0 0.0
    %3640 = vmatpush1.msra.mxu0 %v149
    %3641 = vmatprep.subr.mxu0 0.0
    %3642 = vmatpush1.msra.mxu0 %v150
    %3643 = vmatprep.subr.mxu0 0.0
    %3644 = vmatpush1.msra.mxu0 %v151
    %3645 = vmatprep.subr.mxu0 0.0
    %3646 = vmatpush1.msra.mxu0 %v152
    %3647 = vmatprep.subr.mxu0 0.0
    %3648 = vmatpush1.msra.mxu0 %v153
    %3649 = vmatprep.subr.mxu0 0.0
    %3650 = vmatpush1.msra.mxu0 %v154
    %3651 = vmatprep.subr.mxu0 0.0
    %3652 = vmatpush1.msra.mxu0 %v155
    %3653 = vmatprep.subr.mxu0 0.0
    %3654 = vmatpush1.msra.mxu0 %v156
    %3655 = vmatprep.subr.mxu0 0.0
    %3656 = vmatpush1.msra.mxu0 %v157
    %3657 = vmatprep.subr.mxu0 0.0
    %3658 = vmatpush1.msra.mxu0 %v158
    %3659 = vmatprep.subr.mxu0 0.0
    %3660 = vmatpush1.msra.mxu0 %v159
    %3661 = vmatprep.subr.mxu0 0.0
    %3662 = vmatpush1.msra.mxu0 %v160
    %3663 = vmatprep.subr.mxu0 0.0
    %3664 = vmatpush1.msra.mxu0 %v161
    %3665 = vmatprep.subr.mxu0 0.0
    %3666 = vmatpush1.msra.mxu0 %v162
    %3667 = vmatprep.subr.mxu0 0.0
    %3668 = vmatpush1.msra.mxu0 %v163
    %3669 = vmatprep.subr.mxu0 0.0
    %3670 = vmatpush1.msra.mxu0 %v164
    %3671 = vmatprep.subr.mxu0 0.0
    %3672 = vmatpush1.msra.mxu0 %v165
    %3673 = vmatprep.subr.mxu0 0.0
    %3674 = vmatpush1.msra.mxu0 %v166
    %3675 = vmatprep.mubr.f32.mxu0 %v3531
    %3676 = vmatmul.mubr.f32.gmra.mrb[0].mxu0 %v3527
    %v3677 = vpop.f32.mrb[0].mxu0
    %v3678 = vadd.f32 %v3608, %v3677
    %v3679 = vpop.f32.mrb[0].mxu0
    %3680 = vdwg.mxu0
    %3681 = vmatprep.subr.mxu0 0.0
    %3682 = vmatpush1.msra.mxu0 %v167
    %3683 = vmatprep.subr.mxu0 0.0
    %3684 = vmatpush1.msra.mxu0 %v168
    %3685 = vmatprep.subr.mxu0 0.0
    %3686 = vmatpush1.msra.mxu0 %v169
    %3687 = vmatprep.subr.mxu0 0.0
    %3688 = vmatpush1.msra.mxu0 %v170
    %3689 = vmatprep.subr.mxu0 0.0
    %3690 = vmatpush1.msra.mxu0 %v171
    %3691 = vmatprep.subr.mxu0 0.0
    %3692 = vmatpush1.msra.mxu0 %v172
    %3693 = vmatprep.subr.mxu0 0.0
    %3694 = vmatpush1.msra.mxu0 %v173
    %3695 = vmatprep.subr.mxu0 0.0
    %3696 = vmatpush1.msra.mxu0 %v174
    %3697 = vmatprep.subr.mxu0 0.0
    %3698 = vmatpush1.msra.mxu0 %v175
    %3699 = vmatprep.subr.mxu0 0.0
    %3700 = vmatpush1.msra.mxu0 %v176
    %3701 = vmatprep.subr.mxu0 0.0
    %3702 = vmatpush1.msra.mxu0 %v177
    %3703 = vmatprep.subr.mxu0 0.0
    %3704 = vmatpush1.msra.mxu0 %v178
    %3705 = vmatprep.subr.mxu0 0.0
    %3706 = vmatpush1.msra.mxu0 %v179
    %3707 = vmatprep.subr.mxu0 0.0
    %3708 = vmatpush1.msra.mxu0 %v180
    %3709 = vmatprep.subr.mxu0 0.0
    %3710 = vmatpush1.msra.mxu0 %v181
    %3711 = vmatprep.subr.mxu0 0.0
    %3712 = vmatpush1.msra.mxu0 %v182
    %3713 = vmatprep.subr.mxu0 0.0
    %3714 = vmatpush1.msra.mxu0 0.0
    %3715 = vmatprep.subr.mxu0 0.0
    %3716 = vmatpush1.msra.mxu0 0.0
    %3717 = vmatprep.subr.mxu0 0.0
    %3718 = vmatpush1.msra.mxu0 0.0
    %3719 = vmatprep.subr.mxu0 0.0
    %3720 = vmatpush1.msra.mxu0 0.0
    %3721 = vmatprep.subr.mxu0 0.0
    %3722 = vmatpush1.msra.mxu0 0.0
    %3723 = vmatprep.subr.mxu0 0.0
    %3724 = vmatpush1.msra.mxu0 0.0
    %3725 = vmatprep.subr.mxu0 0.0
    %3726 = vmatpush1.msra.mxu0 0.0
    %3727 = vmatprep.subr.mxu0 0.0
    %3728 = vmatpush1.msra.mxu0 0.0
    %3729 = vmatprep.subr.mxu0 0.0
    %3730 = vmatpush1.msra.mxu0 0.0
    %3731 = vmatprep.subr.mxu0 0.0
    %3732 = vmatpush1.msra.mxu0 0.0
    %3733 = vmatprep.subr.mxu0 0.0
    %3734 = vmatpush1.msra.mxu0 0.0
    %3735 = vmatprep.subr.mxu0 0.0
    %3736 = vmatpush1.msra.mxu0 0.0
    %3737 = vmatprep.subr.mxu0 0.0
    %3738 = vmatpush1.msra.mxu0 0.0
    %3739 = vmatprep.subr.mxu0 0.0
    %3740 = vmatpush1.msra.mxu0 0.0
    %3741 = vmatprep.subr.mxu0 0.0
    %3742 = vmatpush1.msra.mxu0 0.0
    %3743 = vmatprep.subr.mxu0 0.0
    %3744 = vmatpush1.msra.mxu0 0.0
    %3745 = vmatprep.mubr.f32.mxu0 0.0
    %3746 = vmatmul.mubr.f32.gmra.mrb[0].mxu0 %v3535
    %v3747 = vpop.f32.mrb[0].mxu0
    %v3748 = vadd.f32 %v3678, %v3747
    %v3749 = vpop.f32.mrb[0].mxu0
    %3750 = vdwg.mxu0
    %3751 = vmatprep.subr.mxu0 0.0
    %3752 = vmatpush1.msra.mxu0 %v183
    %3753 = vmatprep.subr.mxu0 0.0
    %3754 = vmatpush1.msra.mxu0 %v184
    %3755 = vmatprep.subr.mxu0 0.0
    %3756 = vmatpush1.msra.mxu0 %v185
    %3757 = vmatprep.subr.mxu0 0.0
    %3758 = vmatpush1.msra.mxu0 %v186
    %3759 = vmatprep.subr.mxu0 0.0
    %3760 = vmatpush1.msra.mxu0 0.0
    %3761 = vmatprep.subr.mxu0 0.0
    %3762 = vmatpush1.msra.mxu0 0.0
    %3763 = vmatprep.subr.mxu0 0.0
    %3764 = vmatpush1.msra.mxu0 0.0
    %3765 = vmatprep.subr.mxu0 0.0
    %3766 = vmatpush1.msra.mxu0 0.0
    %3767 = vmatprep.subr.mxu0 0.0
    %3768 = vmatpush1.msra.mxu0 0.0
    %3769 = vmatprep.subr.mxu0 0.0
    %3770 = vmatpush1.msra.mxu0 0.0
    %3771 = vmatprep.subr.mxu0 0.0
    %3772 = vmatpush1.msra.mxu0 0.0
    %3773 = vmatprep.subr.mxu0 0.0
    %3774 = vmatpush1.msra.mxu0 0.0
    %3775 = vmatprep.subr.mxu0 0.0
    %3776 = vmatpush1.msra.mxu0 0.0
    %3777 = vmatprep.subr.mxu0 0.0
    %3778 = vmatpush1.msra.mxu0 0.0
    %3779 = vmatprep.subr.mxu0 0.0
    %3780 = vmatpush1.msra.mxu0 0.0
    %3781 = vmatprep.subr.mxu0 0.0
    %3782 = vmatpush1.msra.mxu0 0.0
    %3783 = vmatprep.subr.mxu0 0.0
    %3784 = vmatpush1.msra.mxu0 0.0
    %3785 = vmatprep.subr.mxu0 0.0
    %3786 = vmatpush1.msra.mxu0 0.0
    %3787 = vmatprep.subr.mxu0 0.0
    %3788 = vmatpush1.msra.mxu0 0.0
    %3789 = vmatprep.subr.mxu0 0.0
    %3790 = vmatpush1.msra.mxu0 0.0
    %3791 = vmatprep.subr.mxu0 0.0
    %3792 = vmatpush1.msra.mxu0 0.0
    %3793 = vmatprep.subr.mxu0 0.0
    %3794 = vmatpush1.msra.mxu0 0.0
    %3795 = vmatprep.subr.mxu0 0.0
    %3796 = vmatpush1.msra.mxu0 0.0
    %3797 = vmatprep.subr.mxu0 0.0
    %3798 = vmatpush1.msra.mxu0 0.0
    %3799 = vmatprep.subr.mxu0 0.0
    %3800 = vmatpush1.msra.mxu0 0.0
    %3801 = vmatprep.subr.mxu0 0.0
    %3802 = vmatpush1.msra.mxu0 0.0
    %3803 = vmatprep.subr.mxu0 0.0
    %3804 = vmatpush1.msra.mxu0 0.0
    %3805 = vmatprep.subr.mxu0 0.0
    %3806 = vmatpush1.msra.mxu0 0.0
    %3807 = vmatprep.subr.mxu0 0.0
    %3808 = vmatpush1.msra.mxu0 0.0
    %3809 = vmatprep.subr.mxu0 0.0
    %3810 = vmatpush1.msra.mxu0 0.0
    %3811 = vmatprep.subr.mxu0 0.0
    %3812 = vmatpush1.msra.mxu0 0.0
    %3813 = vmatprep.subr.mxu0 0.0
    %3814 = vmatpush1.msra.mxu0 0.0
    %3815 = vmatprep.mubr.f32.mxu0 0.0
    %3816 = vmatmul.mubr.f32.gmra.mrb[0].mxu0 %v3284
    %v3817 = vpop.f32.mrb[0].mxu0
    %v3818 = vadd.f32 0.0, %v3817
    %v3819 = vpop.f32.mrb[0].mxu0
    %3820 = vdwg.mxu0
    %v3821 = vadd.f32 %v3748, %v3818
    %v3822 = vxor.u32 %v3821, 2147483648
    %v3823 = vmul.f32 %v3822, 1.442695
    %v3824 = vpow.pop %v3823
    %v3825 = vadd.f32 %v3824, 1.0
    %v3826 = vrcp.pop %v3825
    %v3827 = vmul.f32 1.0, %v3826
    %v3828 = vtanh.pop %v3821
    %v3829 = vmul.f32 %v3827, %v3067
    %3831 = vrot.lane.b32.xlu0 %v3828, 64
    %v3832 = vpop.permute.xlu0 %3831
    %v3834 = vmul.f32 %v3827, %v3832
    %3836 = vrot.lane.b32.xlu0 %v3834, 32
    %v3837 = vpop.permute.xlu0 %3836
    %v3839 = vadd.f32 %v3829, %v3837
    %v3840 = vtanh.pop %v3839
    %3842 = vrot.lane.b32.xlu0 %v3840, 64
    %v3843 = vpop.permute.xlu0 %3842
    %v3845 = vmul.f32 %v3827, %v3843
    %v3848 = vunpack.c.l.s4 1966171168
    %v3849 = vunpack.c.0.s8 %v3848
    %v3850 = vlaneseq
    %v3851 = vshrl.u32 %v3850, 7
    %v3852 = vsub.s32 %v3849, %v3851
    %v3853 = vrot.slane %v3845, %v3852
    %v3855 = vunpack.c.l.s4 1966171168
    %v3856 = vunpack.c.0.s8 %v3855
    %v3857 = vlaneseq
    %v3858 = vshrl.u32 %v3857, 7
    %v3859 = vsub.s32 %v3856, %v3858
    %v3860 = vrot.slane %v3853, %v3859
    %3861 = vrot.lane.b32.xlu0 %v3860, 32
    %v3862 = vpop.permute.xlu0 %3861
    %3864 = vst.msk [vmem:[#allocation5] sm:$0x1] %vm1947, %v3862
    %3865 = vst.msk [vmem:[#allocation5 + $0x1] sm:$0x1] %vm1947, %v3492
    %3866 = vst.msk [vmem:[#allocation5 + $0x2] sm:$0x3] %vm1943, %v3275
    %v3867 = vld [vmem:[#allocation5] sm:$0xf]
    %v3869 = vlaneseq
    %v3870 = vshrl.u32 %v3869, 7
    %v3871 = vsub.s32 0, %v3870
    %v3872 = vrot.slane %v3867, %v3871
    %v3873 = vlaneseq
    %v3874 = vshrl.u32 %v3873, 7
    %v3875 = vsub.s32 1, %v3874
    %v3876 = vrot.slane %v3867, %v3875
    %v3877 = vlaneseq
    %v3878 = vshrl.u32 %v3877, 7
    %v3879 = vsub.s32 2, %v3878
    %v3880 = vrot.slane %v3867, %v3879
    %v3881 = vlaneseq
    %v3882 = vshrl.u32 %v3881, 7
    %v3883 = vsub.s32 3, %v3882
    %v3884 = vrot.slane %v3867, %v3883
    %3889 = vmatprep.subr.mxu0 %v189
    %3890 = vmatpush1.msra.mxu0 %v188
    %3891 = vmatprep.subr.mxu0 %v191
    %3892 = vmatpush1.msra.mxu0 %v190
    %3893 = vmatprep.subr.mxu0 %v193
    %3894 = vmatpush1.msra.mxu0 %v192
    %3895 = vmatprep.subr.mxu0 %v195
    %3896 = vmatpush1.msra.mxu0 %v194
    %3897 = vmatprep.subr.mxu0 %v197
    %3898 = vmatpush1.msra.mxu0 %v196
    %3899 = vmatprep.subr.mxu0 %v199
    %3900 = vmatpush1.msra.mxu0 %v198
    %3901 = vmatprep.subr.mxu0 %v201
    %3902 = vmatpush1.msra.mxu0 %v200
    %3903 = vmatprep.subr.mxu0 %v203
    %3904 = vmatpush1.msra.mxu0 %v202
    %3905 = vmatprep.subr.mxu0 %v205
    %3906 = vmatpush1.msra.mxu0 %v204
    %3907 = vmatprep.subr.mxu0 %v207
    %3908 = vmatpush1.msra.mxu0 %v206
    %3909 = vmatprep.subr.mxu0 %v209
    %3910 = vmatpush1.msra.mxu0 %v208
    %3911 = vmatprep.subr.mxu0 %v211
    %3912 = vmatpush1.msra.mxu0 %v210
    %3913 = vmatprep.subr.mxu0 %v213
    %3914 = vmatpush1.msra.mxu0 %v212
    %3915 = vmatprep.subr.mxu0 %v215
    %3916 = vmatpush1.msra.mxu0 %v214
    %3917 = vmatprep.subr.mxu0 %v217
    %3918 = vmatpush1.msra.mxu0 %v216
    %3919 = vmatprep.subr.mxu0 %v219
    %3920 = vmatpush1.msra.mxu0 %v218
    %3921 = vmatprep.subr.mxu0 %v221
    %3922 = vmatpush1.msra.mxu0 %v220
    %3923 = vmatprep.subr.mxu0 %v223
    %3924 = vmatpush1.msra.mxu0 %v222
    %3925 = vmatprep.subr.mxu0 %v225
    %3926 = vmatpush1.msra.mxu0 %v224
    %3927 = vmatprep.subr.mxu0 %v227
    %3928 = vmatpush1.msra.mxu0 %v226
    %3929 = vmatprep.subr.mxu0 %v229
    %3930 = vmatpush1.msra.mxu0 %v228
    %3931 = vmatprep.subr.mxu0 %v231
    %3932 = vmatpush1.msra.mxu0 %v230
    %3933 = vmatprep.subr.mxu0 %v233
    %3934 = vmatpush1.msra.mxu0 %v232
    %3935 = vmatprep.subr.mxu0 %v235
    %3936 = vmatpush1.msra.mxu0 %v234
    %3937 = vmatprep.subr.mxu0 %v237
    %3938 = vmatpush1.msra.mxu0 %v236
    %3939 = vmatprep.subr.mxu0 %v239
    %3940 = vmatpush1.msra.mxu0 %v238
    %3941 = vmatprep.subr.mxu0 %v241
    %3942 = vmatpush1.msra.mxu0 %v240
    %3943 = vmatprep.subr.mxu0 %v243
    %3944 = vmatpush1.msra.mxu0 %v242
    %3945 = vmatprep.subr.mxu0 %v245
    %3946 = vmatpush1.msra.mxu0 %v244
    %3947 = vmatprep.subr.mxu0 %v247
    %3948 = vmatpush1.msra.mxu0 %v246
    %3949 = vmatprep.subr.mxu0 %v249
    %3950 = vmatpush1.msra.mxu0 %v248
    %3951 = vmatprep.subr.mxu0 %v251
    %3952 = vmatpush1.msra.mxu0 %v250
    %3953 = vmatprep.mubr.f32.mxu0 %v3876
    %3954 = vmatmul.mubr.f32.gmra.mrb[0].mxu0 %v3872
    %v3955 = vpop.f32.mrb[0].mxu0
    %v3956 = vadd.f32 %v2328, %v3955
    %v3957 = vpop.f32.mrb[0].mxu0
    %v3958 = vadd.f32 %v2332, %v3957
    %3959 = vdwg.mxu0
    %3960 = vmatprep.subr.mxu0 %v253
    %3961 = vmatpush1.msra.mxu0 %v252
    %3962 = vmatprep.subr.mxu0 %v255
    %3963 = vmatpush1.msra.mxu0 %v254
    %3964 = vmatprep.subr.mxu0 %v257
    %3965 = vmatpush1.msra.mxu0 %v256
    %3966 = vmatprep.subr.mxu0 %v259
    %3967 = vmatpush1.msra.mxu0 %v258
    %3968 = vmatprep.subr.mxu0 %v261
    %3969 = vmatpush1.msra.mxu0 %v260
    %3970 = vmatprep.subr.mxu0 %v263
    %3971 = vmatpush1.msra.mxu0 %v262
    %3972 = vmatprep.subr.mxu0 %v265
    %3973 = vmatpush1.msra.mxu0 %v264
    %3974 = vmatprep.subr.mxu0 %v267
    %3975 = vmatpush1.msra.mxu0 %v266
    %3976 = vmatprep.subr.mxu0 %v269
    %3977 = vmatpush1.msra.mxu0 %v268
    %3978 = vmatprep.subr.mxu0 %v271
    %3979 = vmatpush1.msra.mxu0 %v270
    %3980 = vmatprep.subr.mxu0 %v273
    %3981 = vmatpush1.msra.mxu0 %v272
    %3982 = vmatprep.subr.mxu0 %v275
    %3983 = vmatpush1.msra.mxu0 %v274
    %3984 = vmatprep.subr.mxu0 %v277
    %3985 = vmatpush1.msra.mxu0 %v276
    %3986 = vmatprep.subr.mxu0 %v279
    %3987 = vmatpush1.msra.mxu0 %v278
    %3988 = vmatprep.subr.mxu0 %v281
    %3989 = vmatpush1.msra.mxu0 %v280
    %3990 = vmatprep.subr.mxu0 %v283
    %3991 = vmatpush1.msra.mxu0 %v282
    %3992 = vmatprep.subr.mxu0 %v285
    %3993 = vmatpush1.msra.mxu0 %v284
    %3994 = vmatprep.subr.mxu0 %v287
    %3995 = vmatpush1.msra.mxu0 %v286
    %3996 = vmatprep.subr.mxu0 %v289
    %3997 = vmatpush1.msra.mxu0 %v288
    %3998 = vmatprep.subr.mxu0 %v291
    %3999 = vmatpush1.msra.mxu0 %v290
    %4000 = vmatprep.subr.mxu0 %v293
    %4001 = vmatpush1.msra.mxu0 %v292
    %4002 = vmatprep.subr.mxu0 %v295
    %4003 = vmatpush1.msra.mxu0 %v294
    %4004 = vmatprep.subr.mxu0 %v297
    %4005 = vmatpush1.msra.mxu0 %v296
    %4006 = vmatprep.subr.mxu0 %v299
    %4007 = vmatpush1.msra.mxu0 %v298
    %4008 = vmatprep.subr.mxu0 %v301
    %4009 = vmatpush1.msra.mxu0 %v300
    %4010 = vmatprep.subr.mxu0 %v303
    %4011 = vmatpush1.msra.mxu0 %v302
    %4012 = vmatprep.subr.mxu0 %v305
    %4013 = vmatpush1.msra.mxu0 %v304
    %4014 = vmatprep.subr.mxu0 %v307
    %4015 = vmatpush1.msra.mxu0 %v306
    %4016 = vmatprep.subr.mxu0 %v309
    %4017 = vmatpush1.msra.mxu0 %v308
    %4018 = vmatprep.subr.mxu0 %v311
    %4019 = vmatpush1.msra.mxu0 %v310
    %4020 = vmatprep.subr.mxu0 %v313
    %4021 = vmatpush1.msra.mxu0 %v312
    %4022 = vmatprep.subr.mxu0 %v315
    %4023 = vmatpush1.msra.mxu0 %v314
    %4024 = vmatprep.mubr.f32.mxu0 %v3884
    %4025 = vmatmul.mubr.f32.gmra.mrb[0].mxu0 %v3880
    %v4026 = vpop.f32.mrb[0].mxu0
    %v4027 = vadd.f32 %v3956, %v4026
    %v4028 = vpop.f32.mrb[0].mxu0
    %v4029 = vadd.f32 %v3958, %v4028
    %4030 = vdwg.mxu0
    %v4033 = vcombine.low %v4027, %v4029
    %v4035 = vunpack.c.l.s4 1966171168
    %v4036 = vunpack.c.0.s8 %v4035
    %v4037 = vlaneseq
    %v4038 = vshrl.u32 %v4037, 7
    %v4039 = vsub.s32 %v4036, %v4038
    %v4040 = vrot.slane %v4033, %v4039
    %v4042 = vunpack.c.l.s4 1966171168
    %v4043 = vunpack.c.0.s8 %v4042
    %v4044 = vlaneseq
    %v4045 = vshrl.u32 %v4044, 7
    %v4046 = vsub.s32 %v4043, %v4045
    %v4047 = vrot.slane %v4040, %v4046
    %s4049 = scalar_lea.vmem [#allocation12], 2
    %4050 = vst.msk [vmem:[%s4049] ss:$8 sm:$0x3] %vm1943, %v4047
    %4051 = vst.msk [vmem:[%s4049] ss:$8 sm:$0x0] %vm1943, %v4047
    %v4052 = vsub.f32 %v4027, %v3255
    %v4053 = vsub.f32 %v4029, %v3257
    %4054 = vrot.lane.b32.xlu0 %v3845, 32
    %v4055 = vpop.permute.xlu0 %4054
    %v4056 = vsel %vm400, %v4055, 0
    %4058 = vmatprep.subr.mxu0 0.0
    %4059 = vmatpush1.msra.mxu0 %v95
    %4060 = vmatprep.subr.mxu0 0.0
    %4061 = vmatpush1.msra.mxu0 %v96
    %4062 = vmatprep.subr.mxu0 0.0
    %4063 = vmatpush1.msra.mxu0 %v97
    %4064 = vmatprep.subr.mxu0 0.0
    %4065 = vmatpush1.msra.mxu0 %v98
    %4066 = vmatprep.subr.mxu0 0.0
    %4067 = vmatpush1.msra.mxu0 0.0
    %4068 = vmatprep.subr.mxu0 0.0
    %4069 = vmatpush1.msra.mxu0 0.0
    %4070 = vmatprep.subr.mxu0 0.0
    %4071 = vmatpush1.msra.mxu0 0.0
    %4072 = vmatprep.subr.mxu0 0.0
    %4073 = vmatpush1.msra.mxu0 0.0
    %4074 = vmatprep.subr.mxu0 0.0
    %4075 = vmatpush1.msra.mxu0 0.0
    %4076 = vmatprep.subr.mxu0 0.0
    %4077 = vmatpush1.msra.mxu0 0.0
    %4078 = vmatprep.subr.mxu0 0.0
    %4079 = vmatpush1.msra.mxu0 0.0
    %4080 = vmatprep.subr.mxu0 0.0
    %4081 = vmatpush1.msra.mxu0 0.0
    %4082 = vmatprep.subr.mxu0 0.0
    %4083 = vmatpush1.msra.mxu0 0.0
    %4084 = vmatprep.subr.mxu0 0.0
    %4085 = vmatpush1.msra.mxu0 0.0
    %4086 = vmatprep.subr.mxu0 0.0
    %4087 = vmatpush1.msra.mxu0 0.0
    %4088 = vmatprep.subr.mxu0 0.0
    %4089 = vmatpush1.msra.mxu0 0.0
    %4090 = vmatprep.subr.mxu0 0.0
    %4091 = vmatpush1.msra.mxu0 0.0
    %4092 = vmatprep.subr.mxu0 0.0
    %4093 = vmatpush1.msra.mxu0 0.0
    %4094 = vmatprep.subr.mxu0 0.0
    %4095 = vmatpush1.msra.mxu0 0.0
    %4096 = vmatprep.subr.mxu0 0.0
    %4097 = vmatpush1.msra.mxu0 0.0
    %4098 = vmatprep.subr.mxu0 0.0
    %4099 = vmatpush1.msra.mxu0 0.0
    %4100 = vmatprep.subr.mxu0 0.0
    %4101 = vmatpush1.msra.mxu0 0.0
    %4102 = vmatprep.subr.mxu0 0.0
    %4103 = vmatpush1.msra.mxu0 0.0
    %4104 = vmatprep.subr.mxu0 0.0
    %4105 = vmatpush1.msra.mxu0 0.0
    %4106 = vmatprep.subr.mxu0 0.0
    %4107 = vmatpush1.msra.mxu0 0.0
    %4108 = vmatprep.subr.mxu0 0.0
    %4109 = vmatpush1.msra.mxu0 0.0
    %4110 = vmatprep.subr.mxu0 0.0
    %4111 = vmatpush1.msra.mxu0 0.0
    %4112 = vmatprep.subr.mxu0 0.0
    %4113 = vmatpush1.msra.mxu0 0.0
    %4114 = vmatprep.subr.mxu0 0.0
    %4115 = vmatpush1.msra.mxu0 0.0
    %4116 = vmatprep.subr.mxu0 0.0
    %4117 = vmatpush1.msra.mxu0 0.0
    %4118 = vmatprep.subr.mxu0 0.0
    %4119 = vmatpush1.msra.mxu0 0.0
    %4120 = vmatprep.subr.mxu0 0.0
    %4121 = vmatpush1.msra.mxu0 0.0
    %4122 = vmatprep.mubr.f32.mxu0 0.0
    %4123 = vmatmul.mubr.f32.gmra.mrb[0].mxu0 %v4056
    %v4124 = vpop.f32.mrb[0].mxu0
    %v4125 = vadd.f32 0.0, %v4124
    %v4126 = vpop.f32.mrb[0].mxu0
    %4127 = vdwg.mxu0
    %v4128 = vlaneseq
    %v4129 = vshrl.u32 %v4128, 7
    %v4130 = vsub.s32 0, %v4129
    %v4131 = vrot.slane %v4125, %v4130
    %v4132 = vadd.f32 %v1713, %v4131
    %v4133 = vadd.f32 %v1718, %v4131
    %v4134 = vtanh.pop %v4132
    %v4135 = vtanh.pop %v4133
    %v4137 = vsel %vm400, %v4134, 0
    %v4140 = vsel %vm400, %v4135, 0
    %4142 = vmatprep.subr.mxu0 0.0
    %4143 = vmatpush1.msra.mxu0 %v99
    %4144 = vmatprep.subr.mxu0 0.0
    %4145 = vmatpush1.msra.mxu0 %v100
    %4146 = vmatprep.subr.mxu0 0.0
    %4147 = vmatpush1.msra.mxu0 %v101
    %4148 = vmatprep.subr.mxu0 0.0
    %4149 = vmatpush1.msra.mxu0 %v102
    %4150 = vmatprep.subr.mxu0 0.0
    %4151 = vmatpush1.msra.mxu0 0.0
    %4152 = vmatprep.subr.mxu0 0.0
    %4153 = vmatpush1.msra.mxu0 0.0
    %4154 = vmatprep.subr.mxu0 0.0
    %4155 = vmatpush1.msra.mxu0 0.0
    %4156 = vmatprep.subr.mxu0 0.0
    %4157 = vmatpush1.msra.mxu0 0.0
    %4158 = vmatprep.subr.mxu0 0.0
    %4159 = vmatpush1.msra.mxu0 0.0
    %4160 = vmatprep.subr.mxu0 0.0
    %4161 = vmatpush1.msra.mxu0 0.0
    %4162 = vmatprep.subr.mxu0 0.0
    %4163 = vmatpush1.msra.mxu0 0.0
    %4164 = vmatprep.subr.mxu0 0.0
    %4165 = vmatpush1.msra.mxu0 0.0
    %4166 = vmatprep.subr.mxu0 0.0
    %4167 = vmatpush1.msra.mxu0 0.0
    %4168 = vmatprep.subr.mxu0 0.0
    %4169 = vmatpush1.msra.mxu0 0.0
    %4170 = vmatprep.subr.mxu0 0.0
    %4171 = vmatpush1.msra.mxu0 0.0
    %4172 = vmatprep.subr.mxu0 0.0
    %4173 = vmatpush1.msra.mxu0 0.0
    %4174 = vmatprep.subr.mxu0 0.0
    %4175 = vmatpush1.msra.mxu0 0.0
    %4176 = vmatprep.subr.mxu0 0.0
    %4177 = vmatpush1.msra.mxu0 0.0
    %4178 = vmatprep.subr.mxu0 0.0
    %4179 = vmatpush1.msra.mxu0 0.0
    %4180 = vmatprep.subr.mxu0 0.0
    %4181 = vmatpush1.msra.mxu0 0.0
    %4182 = vmatprep.subr.mxu0 0.0
    %4183 = vmatpush1.msra.mxu0 0.0
    %4184 = vmatprep.subr.mxu0 0.0
    %4185 = vmatpush1.msra.mxu0 0.0
    %4186 = vmatprep.subr.mxu0 0.0
    %4187 = vmatpush1.msra.mxu0 0.0
    %4188 = vmatprep.subr.mxu0 0.0
    %4189 = vmatpush1.msra.mxu0 0.0
    %4190 = vmatprep.subr.mxu0 0.0
    %4191 = vmatpush1.msra.mxu0 0.0
    %4192 = vmatprep.subr.mxu0 0.0
    %4193 = vmatpush1.msra.mxu0 0.0
    %4194 = vmatprep.subr.mxu0 0.0
    %4195 = vmatpush1.msra.mxu0 0.0
    %4196 = vmatprep.subr.mxu0 0.0
    %4197 = vmatpush1.msra.mxu0 0.0
    %4198 = vmatprep.subr.mxu0 0.0
    %4199 = vmatpush1.msra.mxu0 0.0
    %4200 = vmatprep.subr.mxu0 0.0
    %4201 = vmatpush1.msra.mxu0 0.0
    %4202 = vmatprep.subr.mxu0 0.0
    %4203 = vmatpush1.msra.mxu0 0.0
    %4204 = vmatprep.subr.mxu0 0.0
    %4205 = vmatpush1.msra.mxu0 0.0
    %4206 = vmatprep.mubr.f32.mxu0 0.0
    %4207 = vmatmul.mubr.f32.gmra.mrb[0].mxu0 %v4137
    %v4208 = vpop.f32.mrb[0].mxu0
    %v4209 = vadd.f32 0.0, %v4208
    %v4210 = vpop.f32.mrb[0].mxu0
    %4211 = vmatprep.mubr.f32.mxu0 0.0
    %4212 = vmatmul.mubr.f32.gmra.mrb[0].mxu0 %v4140
    %v4213 = vpop.f32.mrb[0].mxu0
    %v4214 = vadd.f32 0.0, %v4213
    %v4215 = vpop.f32.mrb[0].mxu0
    %4216 = vdwg.mxu0
    %v4217 = vsel %vm1891, %v4209, -inf
    %v4218 = vsel %vm1893, %v4214, -inf
    %v4219 = vmax.f32 %v4217, %v4218
    %v4220 = vrot.slane %v4219, 4
    %v4221 = vmax.f32 %v4219, %v4220
    %v4222 = vrot.slane %v4221, 2
    %v4223 = vmax.f32 %v4221, %v4222
    %v4224 = vrot.slane %v4223, 1
    %v4225 = vmax.f32 %v4223, %v4224
    %v4226 = vsub.f32 %v4209, %v4225
    %v4227 = vsub.f32 %v4214, %v4225
    %v4228 = vmul.f32 %v4226, 1.442695
    %v4229 = vpow.pop %v4228
    %v4230 = vmul.f32 %v4227, 1.442695
    %v4231 = vpow.pop %v4230
    %v4232 = vsel %vm1891, %v4229, 0.0
    %v4233 = vsel %vm1893, %v4231, 0.0
    %v4234 = vadd.f32 %v4232, %v4233
    %v4235 = vrot.slane %v4234, 4
    %v4236 = vadd.f32 %v4234, %v4235
    %v4237 = vrot.slane %v4236, 2
    %v4238 = vadd.f32 %v4236, %v4237
    %v4239 = vrot.slane %v4238, 1
    %v4240 = vadd.f32 %v4238, %v4239
    %v4241 = vrcp.pop %v4240
    %v4242 = vmul.f32 %v4229, %v4241
    %v4243 = vmul.f32 %v4231, %v4241
    %4245 = vset.pattern.permute.xlu0 0
    %4246 = vperm.xlu0 %4245, %v4242
    %v4247 = vpop.permute.xlu0 %4246
    %4250 = vset.pattern.permute.xlu0 0
    %4251 = vperm.xlu0 %4250, %v4243
    %v4252 = vpop.permute.xlu0 %4251
    %v4254 = vmul.f32 %v4247, %v1638
    %v4255 = vmul.f32 %v4252, %v1639
    %v4256 = vsel %vm400, %v4254, 0.0
    %v4257 = vsel %vm1933, %v4255, 0.0
    %v4258 = vadd.f32 %v4256, %v4257
    %v4259 = vrot.slane %v4258, 4
    %v4260 = vadd.f32 %v4258, %v4259
    %v4261 = vrot.slane %v4260, 2
    %v4262 = vadd.f32 %v4260, %v4261
    %v4263 = vrot.slane %v4262, 1
    %v4264 = vadd.f32 %v4262, %v4263
    %4265 = vst.msk [vmem:[#allocation4] sm:$0x3] %vm1943, %v4047
    %v4268 = vcombine.low %v4052, %v4053
    %v4270 = vunpack.c.l.s4 1966171168
    %v4271 = vunpack.c.0.s8 %v4270
    %v4272 = vlaneseq
    %v4273 = vshrl.u32 %v4272, 7
    %v4274 = vsub.s32 %v4271, %v4273
    %v4275 = vrot.slane %v4268, %v4274
    %v4277 = vunpack.c.l.s4 1966171168
    %v4278 = vunpack.c.0.s8 %v4277
    %v4279 = vlaneseq
    %v4280 = vshrl.u32 %v4279, 7
    %v4281 = vsub.s32 %v4278, %v4280
    %v4282 = vrot.slane %v4275, %v4281
    %4284 = vst.msk [vmem:[#allocation4 + $0x2] sm:$0x3] %vm1943, %v4282
    %4285 = vst.msk [vmem:[#allocation4 + $0x4] sm:$0x1] %vm1947, %v4264
    %v4286 = vld [vmem:[#allocation4] sm:$0x1f]
    %v4288 = vlaneseq
    %v4289 = vshrl.u32 %v4288, 7
    %v4290 = vsub.s32 0, %v4289
    %v4291 = vrot.slane %v4286, %v4290
    %v4292 = vlaneseq
    %v4293 = vshrl.u32 %v4292, 7
    %v4294 = vsub.s32 1, %v4293
    %v4295 = vrot.slane %v4286, %v4294
    %v4296 = vlaneseq
    %v4297 = vshrl.u32 %v4296, 7
    %v4298 = vsub.s32 2, %v4297
    %v4299 = vrot.slane %v4286, %v4298
    %v4300 = vlaneseq
    %v4301 = vshrl.u32 %v4300, 7
    %v4302 = vsub.s32 3, %v4301
    %v4303 = vrot.slane %v4286, %v4302
    %v4304 = vlaneseq
    %v4305 = vshrl.u32 %v4304, 7
    %v4306 = vsub.s32 4, %v4305
    %v4307 = vrot.slane %v4286, %v4306
    %4313 = vmatprep.subr.mxu0 0.0
    %4314 = vmatpush1.msra.mxu0 %v103
    %4315 = vmatprep.subr.mxu0 0.0
    %4316 = vmatpush1.msra.mxu0 %v104
    %4317 = vmatprep.subr.mxu0 0.0
    %4318 = vmatpush1.msra.mxu0 %v105
    %4319 = vmatprep.subr.mxu0 0.0
    %4320 = vmatpush1.msra.mxu0 %v106
    %4321 = vmatprep.subr.mxu0 0.0
    %4322 = vmatpush1.msra.mxu0 %v107
    %4323 = vmatprep.subr.mxu0 0.0
    %4324 = vmatpush1.msra.mxu0 %v108
    %4325 = vmatprep.subr.mxu0 0.0
    %4326 = vmatpush1.msra.mxu0 %v109
    %4327 = vmatprep.subr.mxu0 0.0
    %4328 = vmatpush1.msra.mxu0 %v110
    %4329 = vmatprep.subr.mxu0 0.0
    %4330 = vmatpush1.msra.mxu0 %v111
    %4331 = vmatprep.subr.mxu0 0.0
    %4332 = vmatpush1.msra.mxu0 %v112
    %4333 = vmatprep.subr.mxu0 0.0
    %4334 = vmatpush1.msra.mxu0 %v113
    %4335 = vmatprep.subr.mxu0 0.0
    %4336 = vmatpush1.msra.mxu0 %v114
    %4337 = vmatprep.subr.mxu0 0.0
    %4338 = vmatpush1.msra.mxu0 %v115
    %4339 = vmatprep.subr.mxu0 0.0
    %4340 = vmatpush1.msra.mxu0 %v116
    %4341 = vmatprep.subr.mxu0 0.0
    %4342 = vmatpush1.msra.mxu0 %v117
    %4343 = vmatprep.subr.mxu0 0.0
    %4344 = vmatpush1.msra.mxu0 %v118
    %4345 = vmatprep.subr.mxu0 0.0
    %4346 = vmatpush1.msra.mxu0 %v119
    %4347 = vmatprep.subr.mxu0 0.0
    %4348 = vmatpush1.msra.mxu0 %v120
    %4349 = vmatprep.subr.mxu0 0.0
    %4350 = vmatpush1.msra.mxu0 %v121
    %4351 = vmatprep.subr.mxu0 0.0
    %4352 = vmatpush1.msra.mxu0 %v122
    %4353 = vmatprep.subr.mxu0 0.0
    %4354 = vmatpush1.msra.mxu0 %v123
    %4355 = vmatprep.subr.mxu0 0.0
    %4356 = vmatpush1.msra.mxu0 %v124
    %4357 = vmatprep.subr.mxu0 0.0
    %4358 = vmatpush1.msra.mxu0 %v125
    %4359 = vmatprep.subr.mxu0 0.0
    %4360 = vmatpush1.msra.mxu0 %v126
    %4361 = vmatprep.subr.mxu0 0.0
    %4362 = vmatpush1.msra.mxu0 %v127
    %4363 = vmatprep.subr.mxu0 0.0
    %4364 = vmatpush1.msra.mxu0 %v128
    %4365 = vmatprep.subr.mxu0 0.0
    %4366 = vmatpush1.msra.mxu0 %v129
    %4367 = vmatprep.subr.mxu0 0.0
    %4368 = vmatpush1.msra.mxu0 %v130
    %4369 = vmatprep.subr.mxu0 0.0
    %4370 = vmatpush1.msra.mxu0 %v131
    %4371 = vmatprep.subr.mxu0 0.0
    %4372 = vmatpush1.msra.mxu0 %v132
    %4373 = vmatprep.subr.mxu0 0.0
    %4374 = vmatpush1.msra.mxu0 %v133
    %4375 = vmatprep.subr.mxu0 0.0
    %4376 = vmatpush1.msra.mxu0 %v134
    %4377 = vmatprep.mubr.f32.mxu0 %v4295
    %4378 = vmatmul.mubr.f32.gmra.mrb[0].mxu0 %v4291
    %v4379 = vpop.f32.mrb[0].mxu0
    %v4380 = vadd.f32 %v187, %v4379
    %v4381 = vpop.f32.mrb[0].mxu0
    %4382 = vdwg.mxu0
    %4383 = vmatprep.subr.mxu0 0.0
    %4384 = vmatpush1.msra.mxu0 %v135
    %4385 = vmatprep.subr.mxu0 0.0
    %4386 = vmatpush1.msra.mxu0 %v136
    %4387 = vmatprep.subr.mxu0 0.0
    %4388 = vmatpush1.msra.mxu0 %v137
    %4389 = vmatprep.subr.mxu0 0.0
    %4390 = vmatpush1.msra.mxu0 %v138
    %4391 = vmatprep.subr.mxu0 0.0
    %4392 = vmatpush1.msra.mxu0 %v139
    %4393 = vmatprep.subr.mxu0 0.0
    %4394 = vmatpush1.msra.mxu0 %v140
    %4395 = vmatprep.subr.mxu0 0.0
    %4396 = vmatpush1.msra.mxu0 %v141
    %4397 = vmatprep.subr.mxu0 0.0
    %4398 = vmatpush1.msra.mxu0 %v142
    %4399 = vmatprep.subr.mxu0 0.0
    %4400 = vmatpush1.msra.mxu0 %v143
    %4401 = vmatprep.subr.mxu0 0.0
    %4402 = vmatpush1.msra.mxu0 %v144
    %4403 = vmatprep.subr.mxu0 0.0
    %4404 = vmatpush1.msra.mxu0 %v145
    %4405 = vmatprep.subr.mxu0 0.0
    %4406 = vmatpush1.msra.mxu0 %v146
    %4407 = vmatprep.subr.mxu0 0.0
    %4408 = vmatpush1.msra.mxu0 %v147
    %4409 = vmatprep.subr.mxu0 0.0
    %4410 = vmatpush1.msra.mxu0 %v148
    %4411 = vmatprep.subr.mxu0 0.0
    %4412 = vmatpush1.msra.mxu0 %v149
    %4413 = vmatprep.subr.mxu0 0.0
    %4414 = vmatpush1.msra.mxu0 %v150
    %4415 = vmatprep.subr.mxu0 0.0
    %4416 = vmatpush1.msra.mxu0 %v151
    %4417 = vmatprep.subr.mxu0 0.0
    %4418 = vmatpush1.msra.mxu0 %v152
    %4419 = vmatprep.subr.mxu0 0.0
    %4420 = vmatpush1.msra.mxu0 %v153
    %4421 = vmatprep.subr.mxu0 0.0
    %4422 = vmatpush1.msra.mxu0 %v154
    %4423 = vmatprep.subr.mxu0 0.0
    %4424 = vmatpush1.msra.mxu0 %v155
    %4425 = vmatprep.subr.mxu0 0.0
    %4426 = vmatpush1.msra.mxu0 %v156
    %4427 = vmatprep.subr.mxu0 0.0
    %4428 = vmatpush1.msra.mxu0 %v157
    %4429 = vmatprep.subr.mxu0 0.0
    %4430 = vmatpush1.msra.mxu0 %v158
    %4431 = vmatprep.subr.mxu0 0.0
    %4432 = vmatpush1.msra.mxu0 %v159
    %4433 = vmatprep.subr.mxu0 0.0
    %4434 = vmatpush1.msra.mxu0 %v160
    %4435 = vmatprep.subr.mxu0 0.0
    %4436 = vmatpush1.msra.mxu0 %v161
    %4437 = vmatprep.subr.mxu0 0.0
    %4438 = vmatpush1.msra.mxu0 %v162
    %4439 = vmatprep.subr.mxu0 0.0
    %4440 = vmatpush1.msra.mxu0 %v163
    %4441 = vmatprep.subr.mxu0 0.0
    %4442 = vmatpush1.msra.mxu0 %v164
    %4443 = vmatprep.subr.mxu0 0.0
    %4444 = vmatpush1.msra.mxu0 %v165
    %4445 = vmatprep.subr.mxu0 0.0
    %4446 = vmatpush1.msra.mxu0 %v166
    %4447 = vmatprep.mubr.f32.mxu0 %v4303
    %4448 = vmatmul.mubr.f32.gmra.mrb[0].mxu0 %v4299
    %v4449 = vpop.f32.mrb[0].mxu0
    %v4450 = vadd.f32 %v4380, %v4449
    %v4451 = vpop.f32.mrb[0].mxu0
    %4452 = vdwg.mxu0
    %4453 = vmatprep.subr.mxu0 0.0
    %4454 = vmatpush1.msra.mxu0 %v167
    %4455 = vmatprep.subr.mxu0 0.0
    %4456 = vmatpush1.msra.mxu0 %v168
    %4457 = vmatprep.subr.mxu0 0.0
    %4458 = vmatpush1.msra.mxu0 %v169
    %4459 = vmatprep.subr.mxu0 0.0
    %4460 = vmatpush1.msra.mxu0 %v170
    %4461 = vmatprep.subr.mxu0 0.0
    %4462 = vmatpush1.msra.mxu0 %v171
    %4463 = vmatprep.subr.mxu0 0.0
    %4464 = vmatpush1.msra.mxu0 %v172
    %4465 = vmatprep.subr.mxu0 0.0
    %4466 = vmatpush1.msra.mxu0 %v173
    %4467 = vmatprep.subr.mxu0 0.0
    %4468 = vmatpush1.msra.mxu0 %v174
    %4469 = vmatprep.subr.mxu0 0.0
    %4470 = vmatpush1.msra.mxu0 %v175
    %4471 = vmatprep.subr.mxu0 0.0
    %4472 = vmatpush1.msra.mxu0 %v176
    %4473 = vmatprep.subr.mxu0 0.0
    %4474 = vmatpush1.msra.mxu0 %v177
    %4475 = vmatprep.subr.mxu0 0.0
    %4476 = vmatpush1.msra.mxu0 %v178
    %4477 = vmatprep.subr.mxu0 0.0
    %4478 = vmatpush1.msra.mxu0 %v179
    %4479 = vmatprep.subr.mxu0 0.0
    %4480 = vmatpush1.msra.mxu0 %v180
    %4481 = vmatprep.subr.mxu0 0.0
    %4482 = vmatpush1.msra.mxu0 %v181
    %4483 = vmatprep.subr.mxu0 0.0
    %4484 = vmatpush1.msra.mxu0 %v182
    %4485 = vmatprep.subr.mxu0 0.0
    %4486 = vmatpush1.msra.mxu0 0.0
    %4487 = vmatprep.subr.mxu0 0.0
    %4488 = vmatpush1.msra.mxu0 0.0
    %4489 = vmatprep.subr.mxu0 0.0
    %4490 = vmatpush1.msra.mxu0 0.0
    %4491 = vmatprep.subr.mxu0 0.0
    %4492 = vmatpush1.msra.mxu0 0.0
    %4493 = vmatprep.subr.mxu0 0.0
    %4494 = vmatpush1.msra.mxu0 0.0
    %4495 = vmatprep.subr.mxu0 0.0
    %4496 = vmatpush1.msra.mxu0 0.0
    %4497 = vmatprep.subr.mxu0 0.0
    %4498 = vmatpush1.msra.mxu0 0.0
    %4499 = vmatprep.subr.mxu0 0.0
    %4500 = vmatpush1.msra.mxu0 0.0
    %4501 = vmatprep.subr.mxu0 0.0
    %4502 = vmatpush1.msra.mxu0 0.0
    %4503 = vmatprep.subr.mxu0 0.0
    %4504 = vmatpush1.msra.mxu0 0.0
    %4505 = vmatprep.subr.mxu0 0.0
    %4506 = vmatpush1.msra.mxu0 0.0
    %4507 = vmatprep.subr.mxu0 0.0
    %4508 = vmatpush1.msra.mxu0 0.0
    %4509 = vmatprep.subr.mxu0 0.0
    %4510 = vmatpush1.msra.mxu0 0.0
    %4511 = vmatprep.subr.mxu0 0.0
    %4512 = vmatpush1.msra.mxu0 0.0
    %4513 = vmatprep.subr.mxu0 0.0
    %4514 = vmatpush1.msra.mxu0 0.0
    %4515 = vmatprep.subr.mxu0 0.0
    %4516 = vmatpush1.msra.mxu0 0.0
    %4517 = vmatprep.mubr.f32.mxu0 0.0
    %4518 = vmatmul.mubr.f32.gmra.mrb[0].mxu0 %v4307
    %v4519 = vpop.f32.mrb[0].mxu0
    %v4520 = vadd.f32 %v4450, %v4519
    %v4521 = vpop.f32.mrb[0].mxu0
    %4522 = vdwg.mxu0
    %4523 = vmatprep.subr.mxu0 0.0
    %4524 = vmatpush1.msra.mxu0 %v183
    %4525 = vmatprep.subr.mxu0 0.0
    %4526 = vmatpush1.msra.mxu0 %v184
    %4527 = vmatprep.subr.mxu0 0.0
    %4528 = vmatpush1.msra.mxu0 %v185
    %4529 = vmatprep.subr.mxu0 0.0
    %4530 = vmatpush1.msra.mxu0 %v186
    %4531 = vmatprep.subr.mxu0 0.0
    %4532 = vmatpush1.msra.mxu0 0.0
    %4533 = vmatprep.subr.mxu0 0.0
    %4534 = vmatpush1.msra.mxu0 0.0
    %4535 = vmatprep.subr.mxu0 0.0
    %4536 = vmatpush1.msra.mxu0 0.0
    %4537 = vmatprep.subr.mxu0 0.0
    %4538 = vmatpush1.msra.mxu0 0.0
    %4539 = vmatprep.subr.mxu0 0.0
    %4540 = vmatpush1.msra.mxu0 0.0
    %4541 = vmatprep.subr.mxu0 0.0
    %4542 = vmatpush1.msra.mxu0 0.0
    %4543 = vmatprep.subr.mxu0 0.0
    %4544 = vmatpush1.msra.mxu0 0.0
    %4545 = vmatprep.subr.mxu0 0.0
    %4546 = vmatpush1.msra.mxu0 0.0
    %4547 = vmatprep.subr.mxu0 0.0
    %4548 = vmatpush1.msra.mxu0 0.0
    %4549 = vmatprep.subr.mxu0 0.0
    %4550 = vmatpush1.msra.mxu0 0.0
    %4551 = vmatprep.subr.mxu0 0.0
    %4552 = vmatpush1.msra.mxu0 0.0
    %4553 = vmatprep.subr.mxu0 0.0
    %4554 = vmatpush1.msra.mxu0 0.0
    %4555 = vmatprep.subr.mxu0 0.0
    %4556 = vmatpush1.msra.mxu0 0.0
    %4557 = vmatprep.subr.mxu0 0.0
    %4558 = vmatpush1.msra.mxu0 0.0
    %4559 = vmatprep.subr.mxu0 0.0
    %4560 = vmatpush1.msra.mxu0 0.0
    %4561 = vmatprep.subr.mxu0 0.0
    %4562 = vmatpush1.msra.mxu0 0.0
    %4563 = vmatprep.subr.mxu0 0.0
    %4564 = vmatpush1.msra.mxu0 0.0
    %4565 = vmatprep.subr.mxu0 0.0
    %4566 = vmatpush1.msra.mxu0 0.0
    %4567 = vmatprep.subr.mxu0 0.0
    %4568 = vmatpush1.msra.mxu0 0.0
    %4569 = vmatprep.subr.mxu0 0.0
    %4570 = vmatpush1.msra.mxu0 0.0
    %4571 = vmatprep.subr.mxu0 0.0
    %4572 = vmatpush1.msra.mxu0 0.0
    %4573 = vmatprep.subr.mxu0 0.0
    %4574 = vmatpush1.msra.mxu0 0.0
    %4575 = vmatprep.subr.mxu0 0.0
    %4576 = vmatpush1.msra.mxu0 0.0
    %4577 = vmatprep.subr.mxu0 0.0
    %4578 = vmatpush1.msra.mxu0 0.0
    %4579 = vmatprep.subr.mxu0 0.0
    %4580 = vmatpush1.msra.mxu0 0.0
    %4581 = vmatprep.subr.mxu0 0.0
    %4582 = vmatpush1.msra.mxu0 0.0
    %4583 = vmatprep.subr.mxu0 0.0
    %4584 = vmatpush1.msra.mxu0 0.0
    %4585 = vmatprep.subr.mxu0 0.0
    %4586 = vmatpush1.msra.mxu0 0.0
    %4587 = vmatprep.mubr.f32.mxu0 0.0
    %4588 = vmatmul.mubr.f32.gmra.mrb[0].mxu0 %v4056
    %v4589 = vpop.f32.mrb[0].mxu0
    %v4590 = vadd.f32 0.0, %v4589
    %v4591 = vpop.f32.mrb[0].mxu0
    %4592 = vdwg.mxu0
    %v4593 = vadd.f32 %v4520, %v4590
    %v4594 = vxor.u32 %v4593, 2147483648
    %v4595 = vmul.f32 %v4594, 1.442695
    %v4596 = vpow.pop %v4595
    %v4597 = vadd.f32 %v4596, 1.0
    %v4598 = vrcp.pop %v4597
    %v4599 = vmul.f32 1.0, %v4598
    %v4600 = vtanh.pop %v4593
    %v4601 = vmul.f32 %v4599, %v3839
    %4603 = vrot.lane.b32.xlu0 %v4600, 64
    %v4604 = vpop.permute.xlu0 %4603
    %v4606 = vmul.f32 %v4599, %v4604
    %4608 = vrot.lane.b32.xlu0 %v4606, 32
    %v4609 = vpop.permute.xlu0 %4608
    %v4611 = vadd.f32 %v4601, %v4609
    %v4612 = vtanh.pop %v4611
    %4614 = vrot.lane.b32.xlu0 %v4612, 64
    %v4615 = vpop.permute.xlu0 %4614
    %v4617 = vmul.f32 %v4599, %v4615
    %v4620 = vunpack.c.l.s4 1966171168
    %v4621 = vunpack.c.0.s8 %v4620
    %v4622 = vlaneseq
    %v4623 = vshrl.u32 %v4622, 7
    %v4624 = vsub.s32 %v4621, %v4623
    %v4625 = vrot.slane %v4617, %v4624
    %v4627 = vunpack.c.l.s4 1966171168
    %v4628 = vunpack.c.0.s8 %v4627
    %v4629 = vlaneseq
    %v4630 = vshrl.u32 %v4629, 7
    %v4631 = vsub.s32 %v4628, %v4630
    %v4632 = vrot.slane %v4625, %v4631
    %4633 = vrot.lane.b32.xlu0 %v4632, 32
    %v4634 = vpop.permute.xlu0 %4633
    %4636 = vst.msk [vmem:[#allocation5] sm:$0x1] %vm1947, %v4634
    %4637 = vst.msk [vmem:[#allocation5 + $0x1] sm:$0x1] %vm1947, %v4264
    %4638 = vst.msk [vmem:[#allocation5 + $0x2] sm:$0x3] %vm1943, %v4047
    %v4639 = vld [vmem:[#allocation5] sm:$0xf]
    %v4641 = vlaneseq
    %v4642 = vshrl.u32 %v4641, 7
    %v4643 = vsub.s32 0, %v4642
    %v4644 = vrot.slane %v4639, %v4643
    %v4645 = vlaneseq
    %v4646 = vshrl.u32 %v4645, 7
    %v4647 = vsub.s32 1, %v4646
    %v4648 = vrot.slane %v4639, %v4647
    %v4649 = vlaneseq
    %v4650 = vshrl.u32 %v4649, 7
    %v4651 = vsub.s32 2, %v4650
    %v4652 = vrot.slane %v4639, %v4651
    %v4653 = vlaneseq
    %v4654 = vshrl.u32 %v4653, 7
    %v4655 = vsub.s32 3, %v4654
    %v4656 = vrot.slane %v4639, %v4655
    %4661 = vmatprep.subr.mxu0 %v189
    %4662 = vmatpush1.msra.mxu0 %v188
    %4663 = vmatprep.subr.mxu0 %v191
    %4664 = vmatpush1.msra.mxu0 %v190
    %4665 = vmatprep.subr.mxu0 %v193
    %4666 = vmatpush1.msra.mxu0 %v192
    %4667 = vmatprep.subr.mxu0 %v195
    %4668 = vmatpush1.msra.mxu0 %v194
    %4669 = vmatprep.subr.mxu0 %v197
    %4670 = vmatpush1.msra.mxu0 %v196
    %4671 = vmatprep.subr.mxu0 %v199
    %4672 = vmatpush1.msra.mxu0 %v198
    %4673 = vmatprep.subr.mxu0 %v201
    %4674 = vmatpush1.msra.mxu0 %v200
    %4675 = vmatprep.subr.mxu0 %v203
    %4676 = vmatpush1.msra.mxu0 %v202
    %4677 = vmatprep.subr.mxu0 %v205
    %4678 = vmatpush1.msra.mxu0 %v204
    %4679 = vmatprep.subr.mxu0 %v207
    %4680 = vmatpush1.msra.mxu0 %v206
    %4681 = vmatprep.subr.mxu0 %v209
    %4682 = vmatpush1.msra.mxu0 %v208
    %4683 = vmatprep.subr.mxu0 %v211
    %4684 = vmatpush1.msra.mxu0 %v210
    %4685 = vmatprep.subr.mxu0 %v213
    %4686 = vmatpush1.msra.mxu0 %v212
    %4687 = vmatprep.subr.mxu0 %v215
    %4688 = vmatpush1.msra.mxu0 %v214
    %4689 = vmatprep.subr.mxu0 %v217
    %4690 = vmatpush1.msra.mxu0 %v216
    %4691 = vmatprep.subr.mxu0 %v219
    %4692 = vmatpush1.msra.mxu0 %v218
    %4693 = vmatprep.subr.mxu0 %v221
    %4694 = vmatpush1.msra.mxu0 %v220
    %4695 = vmatprep.subr.mxu0 %v223
    %4696 = vmatpush1.msra.mxu0 %v222
    %4697 = vmatprep.subr.mxu0 %v225
    %4698 = vmatpush1.msra.mxu0 %v224
    %4699 = vmatprep.subr.mxu0 %v227
    %4700 = vmatpush1.msra.mxu0 %v226
    %4701 = vmatprep.subr.mxu0 %v229
    %4702 = vmatpush1.msra.mxu0 %v228
    %4703 = vmatprep.subr.mxu0 %v231
    %4704 = vmatpush1.msra.mxu0 %v230
    %4705 = vmatprep.subr.mxu0 %v233
    %4706 = vmatpush1.msra.mxu0 %v232
    %4707 = vmatprep.subr.mxu0 %v235
    %4708 = vmatpush1.msra.mxu0 %v234
    %4709 = vmatprep.subr.mxu0 %v237
    %4710 = vmatpush1.msra.mxu0 %v236
    %4711 = vmatprep.subr.mxu0 %v239
    %4712 = vmatpush1.msra.mxu0 %v238
    %4713 = vmatprep.subr.mxu0 %v241
    %4714 = vmatpush1.msra.mxu0 %v240
    %4715 = vmatprep.subr.mxu0 %v243
    %4716 = vmatpush1.msra.mxu0 %v242
    %4717 = vmatprep.subr.mxu0 %v245
    %4718 = vmatpush1.msra.mxu0 %v244
    %4719 = vmatprep.subr.mxu0 %v247
    %4720 = vmatpush1.msra.mxu0 %v246
    %4721 = vmatprep.subr.mxu0 %v249
    %4722 = vmatpush1.msra.mxu0 %v248
    %4723 = vmatprep.subr.mxu0 %v251
    %4724 = vmatpush1.msra.mxu0 %v250
    %4725 = vmatprep.mubr.f32.mxu0 %v4648
    %4726 = vmatmul.mubr.f32.gmra.mrb[0].mxu0 %v4644
    %v4727 = vpop.f32.mrb[0].mxu0
    %v4728 = vadd.f32 %v2328, %v4727
    %v4729 = vpop.f32.mrb[0].mxu0
    %v4730 = vadd.f32 %v2332, %v4729
    %4731 = vdwg.mxu0
    %4732 = vmatprep.subr.mxu0 %v253
    %4733 = vmatpush1.msra.mxu0 %v252
    %4734 = vmatprep.subr.mxu0 %v255
    %4735 = vmatpush1.msra.mxu0 %v254
    %4736 = vmatprep.subr.mxu0 %v257
    %4737 = vmatpush1.msra.mxu0 %v256
    %4738 = vmatprep.subr.mxu0 %v259
    %4739 = vmatpush1.msra.mxu0 %v258
    %4740 = vmatprep.subr.mxu0 %v261
    %4741 = vmatpush1.msra.mxu0 %v260
    %4742 = vmatprep.subr.mxu0 %v263
    %4743 = vmatpush1.msra.mxu0 %v262
    %4744 = vmatprep.subr.mxu0 %v265
    %4745 = vmatpush1.msra.mxu0 %v264
    %4746 = vmatprep.subr.mxu0 %v267
    %4747 = vmatpush1.msra.mxu0 %v266
    %4748 = vmatprep.subr.mxu0 %v269
    %4749 = vmatpush1.msra.mxu0 %v268
    %4750 = vmatprep.subr.mxu0 %v271
    %4751 = vmatpush1.msra.mxu0 %v270
    %4752 = vmatprep.subr.mxu0 %v273
    %4753 = vmatpush1.msra.mxu0 %v272
    %4754 = vmatprep.subr.mxu0 %v275
    %4755 = vmatpush1.msra.mxu0 %v274
    %4756 = vmatprep.subr.mxu0 %v277
    %4757 = vmatpush1.msra.mxu0 %v276
    %4758 = vmatprep.subr.mxu0 %v279
    %4759 = vmatpush1.msra.mxu0 %v278
    %4760 = vmatprep.subr.mxu0 %v281
    %4761 = vmatpush1.msra.mxu0 %v280
    %4762 = vmatprep.subr.mxu0 %v283
    %4763 = vmatpush1.msra.mxu0 %v282
    %4764 = vmatprep.subr.mxu0 %v285
    %4765 = vmatpush1.msra.mxu0 %v284
    %4766 = vmatprep.subr.mxu0 %v287
    %4767 = vmatpush1.msra.mxu0 %v286
    %4768 = vmatprep.subr.mxu0 %v289
    %4769 = vmatpush1.msra.mxu0 %v288
    %4770 = vmatprep.subr.mxu0 %v291
    %4771 = vmatpush1.msra.mxu0 %v290
    %4772 = vmatprep.subr.mxu0 %v293
    %4773 = vmatpush1.msra.mxu0 %v292
    %4774 = vmatprep.subr.mxu0 %v295
    %4775 = vmatpush1.msra.mxu0 %v294
    %4776 = vmatprep.subr.mxu0 %v297
    %4777 = vmatpush1.msra.mxu0 %v296
    %4778 = vmatprep.subr.mxu0 %v299
    %4779 = vmatpush1.msra.mxu0 %v298
    %4780 = vmatprep.subr.mxu0 %v301
    %4781 = vmatpush1.msra.mxu0 %v300
    %4782 = vmatprep.subr.mxu0 %v303
    %4783 = vmatpush1.msra.mxu0 %v302
    %4784 = vmatprep.subr.mxu0 %v305
    %4785 = vmatpush1.msra.mxu0 %v304
    %4786 = vmatprep.subr.mxu0 %v307
    %4787 = vmatpush1.msra.mxu0 %v306
    %4788 = vmatprep.subr.mxu0 %v309
    %4789 = vmatpush1.msra.mxu0 %v308
    %4790 = vmatprep.subr.mxu0 %v311
    %4791 = vmatpush1.msra.mxu0 %v310
    %4792 = vmatprep.subr.mxu0 %v313
    %4793 = vmatpush1.msra.mxu0 %v312
    %4794 = vmatprep.subr.mxu0 %v315
    %4795 = vmatpush1.msra.mxu0 %v314
    %4796 = vmatprep.mubr.f32.mxu0 %v4656
    %4797 = vmatmul.mubr.f32.gmra.mrb[0].mxu0 %v4652
    %v4798 = vpop.f32.mrb[0].mxu0
    %v4799 = vadd.f32 %v4728, %v4798
    %v4800 = vpop.f32.mrb[0].mxu0
    %v4801 = vadd.f32 %v4730, %v4800
    %4802 = vdwg.mxu0
    %v4805 = vcombine.low %v4799, %v4801
    %v4807 = vunpack.c.l.s4 1966171168
    %v4808 = vunpack.c.0.s8 %v4807
    %v4809 = vlaneseq
    %v4810 = vshrl.u32 %v4809, 7
    %v4811 = vsub.s32 %v4808, %v4810
    %v4812 = vrot.slane %v4805, %v4811
    %v4814 = vunpack.c.l.s4 1966171168
    %v4815 = vunpack.c.0.s8 %v4814
    %v4816 = vlaneseq
    %v4817 = vshrl.u32 %v4816, 7
    %v4818 = vsub.s32 %v4815, %v4817
    %v4819 = vrot.slane %v4812, %v4818
    %s4821 = scalar_lea.vmem [#allocation12], 3
    %4822 = vst.msk [vmem:[%s4821] ss:$8 sm:$0x3] %vm1943, %v4819
    %4823 = vst.msk [vmem:[%s4821] ss:$8 sm:$0x0] %vm1943, %v4819
    %v4824 = vsub.f32 %v4799, %v4027
    %v4825 = vsub.f32 %v4801, %v4029
    %4826 = vrot.lane.b32.xlu0 %v4617, 32
    %v4827 = vpop.permute.xlu0 %4826
    %v4828 = vsel %vm400, %v4827, 0
    %4830 = vmatprep.subr.mxu0 0.0
    %4831 = vmatpush1.msra.mxu0 %v95
    %4832 = vmatprep.subr.mxu0 0.0
    %4833 = vmatpush1.msra.mxu0 %v96
    %4834 = vmatprep.subr.mxu0 0.0
    %4835 = vmatpush1.msra.mxu0 %v97
    %4836 = vmatprep.subr.mxu0 0.0
    %4837 = vmatpush1.msra.mxu0 %v98
    %4838 = vmatprep.subr.mxu0 0.0
    %4839 = vmatpush1.msra.mxu0 0.0
    %4840 = vmatprep.subr.mxu0 0.0
    %4841 = vmatpush1.msra.mxu0 0.0
    %4842 = vmatprep.subr.mxu0 0.0
    %4843 = vmatpush1.msra.mxu0 0.0
    %4844 = vmatprep.subr.mxu0 0.0
    %4845 = vmatpush1.msra.mxu0 0.0
    %4846 = vmatprep.subr.mxu0 0.0
    %4847 = vmatpush1.msra.mxu0 0.0
    %4848 = vmatprep.subr.mxu0 0.0
    %4849 = vmatpush1.msra.mxu0 0.0
    %4850 = vmatprep.subr.mxu0 0.0
    %4851 = vmatpush1.msra.mxu0 0.0
    %4852 = vmatprep.subr.mxu0 0.0
    %4853 = vmatpush1.msra.mxu0 0.0
    %4854 = vmatprep.subr.mxu0 0.0
    %4855 = vmatpush1.msra.mxu0 0.0
    %4856 = vmatprep.subr.mxu0 0.0
    %4857 = vmatpush1.msra.mxu0 0.0
    %4858 = vmatprep.subr.mxu0 0.0
    %4859 = vmatpush1.msra.mxu0 0.0
    %4860 = vmatprep.subr.mxu0 0.0
    %4861 = vmatpush1.msra.mxu0 0.0
    %4862 = vmatprep.subr.mxu0 0.0
    %4863 = vmatpush1.msra.mxu0 0.0
    %4864 = vmatprep.subr.mxu0 0.0
    %4865 = vmatpush1.msra.mxu0 0.0
    %4866 = vmatprep.subr.mxu0 0.0
    %4867 = vmatpush1.msra.mxu0 0.0
    %4868 = vmatprep.subr.mxu0 0.0
    %4869 = vmatpush1.msra.mxu0 0.0
    %4870 = vmatprep.subr.mxu0 0.0
    %4871 = vmatpush1.msra.mxu0 0.0
    %4872 = vmatprep.subr.mxu0 0.0
    %4873 = vmatpush1.msra.mxu0 0.0
    %4874 = vmatprep.subr.mxu0 0.0
    %4875 = vmatpush1.msra.mxu0 0.0
    %4876 = vmatprep.subr.mxu0 0.0
    %4877 = vmatpush1.msra.mxu0 0.0
    %4878 = vmatprep.subr.mxu0 0.0
    %4879 = vmatpush1.msra.mxu0 0.0
    %4880 = vmatprep.subr.mxu0 0.0
    %4881 = vmatpush1.msra.mxu0 0.0
    %4882 = vmatprep.subr.mxu0 0.0
    %4883 = vmatpush1.msra.mxu0 0.0
    %4884 = vmatprep.subr.mxu0 0.0
    %4885 = vmatpush1.msra.mxu0 0.0
    %4886 = vmatprep.subr.mxu0 0.0
    %4887 = vmatpush1.msra.mxu0 0.0
    %4888 = vmatprep.subr.mxu0 0.0
    %4889 = vmatpush1.msra.mxu0 0.0
    %4890 = vmatprep.subr.mxu0 0.0
    %4891 = vmatpush1.msra.mxu0 0.0
    %4892 = vmatprep.subr.mxu0 0.0
    %4893 = vmatpush1.msra.mxu0 0.0
    %4894 = vmatprep.mubr.f32.mxu0 0.0
    %4895 = vmatmul.mubr.f32.gmra.mrb[0].mxu0 %v4828
    %v4896 = vpop.f32.mrb[0].mxu0
    %v4897 = vadd.f32 0.0, %v4896
    %v4898 = vpop.f32.mrb[0].mxu0
    %4899 = vdwg.mxu0
    %v4900 = vlaneseq
    %v4901 = vshrl.u32 %v4900, 7
    %v4902 = vsub.s32 0, %v4901
    %v4903 = vrot.slane %v4897, %v4902
    %v4904 = vadd.f32 %v1713, %v4903
    %v4905 = vadd.f32 %v1718, %v4903
    %v4906 = vtanh.pop %v4904
    %v4907 = vtanh.pop %v4905
    %v4909 = vsel %vm400, %v4906, 0
    %v4912 = vsel %vm400, %v4907, 0
    %4914 = vmatprep.subr.mxu0 0.0
    %4915 = vmatpush1.msra.mxu0 %v99
    %4916 = vmatprep.subr.mxu0 0.0
    %4917 = vmatpush1.msra.mxu0 %v100
    %4918 = vmatprep.subr.mxu0 0.0
    %4919 = vmatpush1.msra.mxu0 %v101
    %4920 = vmatprep.subr.mxu0 0.0
    %4921 = vmatpush1.msra.mxu0 %v102
    %4922 = vmatprep.subr.mxu0 0.0
    %4923 = vmatpush1.msra.mxu0 0.0
    %4924 = vmatprep.subr.mxu0 0.0
    %4925 = vmatpush1.msra.mxu0 0.0
    %4926 = vmatprep.subr.mxu0 0.0
    %4927 = vmatpush1.msra.mxu0 0.0
    %4928 = vmatprep.subr.mxu0 0.0
    %4929 = vmatpush1.msra.mxu0 0.0
    %4930 = vmatprep.subr.mxu0 0.0
    %4931 = vmatpush1.msra.mxu0 0.0
    %4932 = vmatprep.subr.mxu0 0.0
    %4933 = vmatpush1.msra.mxu0 0.0
    %4934 = vmatprep.subr.mxu0 0.0
    %4935 = vmatpush1.msra.mxu0 0.0
    %4936 = vmatprep.subr.mxu0 0.0
    %4937 = vmatpush1.msra.mxu0 0.0
    %4938 = vmatprep.subr.mxu0 0.0
    %4939 = vmatpush1.msra.mxu0 0.0
    %4940 = vmatprep.subr.mxu0 0.0
    %4941 = vmatpush1.msra.mxu0 0.0
    %4942 = vmatprep.subr.mxu0 0.0
    %4943 = vmatpush1.msra.mxu0 0.0
    %4944 = vmatprep.subr.mxu0 0.0
    %4945 = vmatpush1.msra.mxu0 0.0
    %4946 = vmatprep.subr.mxu0 0.0
    %4947 = vmatpush1.msra.mxu0 0.0
    %4948 = vmatprep.subr.mxu0 0.0
    %4949 = vmatpush1.msra.mxu0 0.0
    %4950 = vmatprep.subr.mxu0 0.0
    %4951 = vmatpush1.msra.mxu0 0.0
    %4952 = vmatprep.subr.mxu0 0.0
    %4953 = vmatpush1.msra.mxu0 0.0
    %4954 = vmatprep.subr.mxu0 0.0
    %4955 = vmatpush1.msra.mxu0 0.0
    %4956 = vmatprep.subr.mxu0 0.0
    %4957 = vmatpush1.msra.mxu0 0.0
    %4958 = vmatprep.subr.mxu0 0.0
    %4959 = vmatpush1.msra.mxu0 0.0
    %4960 = vmatprep.subr.mxu0 0.0
    %4961 = vmatpush1.msra.mxu0 0.0
    %4962 = vmatprep.subr.mxu0 0.0
    %4963 = vmatpush1.msra.mxu0 0.0
    %4964 = vmatprep.subr.mxu0 0.0
    %4965 = vmatpush1.msra.mxu0 0.0
    %4966 = vmatprep.subr.mxu0 0.0
    %4967 = vmatpush1.msra.mxu0 0.0
    %4968 = vmatprep.subr.mxu0 0.0
    %4969 = vmatpush1.msra.mxu0 0.0
    %4970 = vmatprep.subr.mxu0 0.0
    %4971 = vmatpush1.msra.mxu0 0.0
    %4972 = vmatprep.subr.mxu0 0.0
    %4973 = vmatpush1.msra.mxu0 0.0
    %4974 = vmatprep.subr.mxu0 0.0
    %4975 = vmatpush1.msra.mxu0 0.0
    %4976 = vmatprep.subr.mxu0 0.0
    %4977 = vmatpush1.msra.mxu0 0.0
    %4978 = vmatprep.mubr.f32.mxu0 0.0
    %4979 = vmatmul.mubr.f32.gmra.mrb[0].mxu0 %v4909
    %v4980 = vpop.f32.mrb[0].mxu0
    %v4981 = vadd.f32 0.0, %v4980
    %v4982 = vpop.f32.mrb[0].mxu0
    %4983 = vmatprep.mubr.f32.mxu0 0.0
    %4984 = vmatmul.mubr.f32.gmra.mrb[0].mxu0 %v4912
    %v4985 = vpop.f32.mrb[0].mxu0
    %v4986 = vadd.f32 0.0, %v4985
    %v4987 = vpop.f32.mrb[0].mxu0
    %4988 = vdwg.mxu0
    %v4989 = vsel %vm1891, %v4981, -inf
    %v4990 = vsel %vm1893, %v4986, -inf
    %v4991 = vmax.f32 %v4989, %v4990
    %v4992 = vrot.slane %v4991, 4
    %v4993 = vmax.f32 %v4991, %v4992
    %v4994 = vrot.slane %v4993, 2
    %v4995 = vmax.f32 %v4993, %v4994
    %v4996 = vrot.slane %v4995, 1
    %v4997 = vmax.f32 %v4995, %v4996
    %v4998 = vsub.f32 %v4981, %v4997
    %v4999 = vsub.f32 %v4986, %v4997
    %v5000 = vmul.f32 %v4998, 1.442695
    %v5001 = vpow.pop %v5000
    %v5002 = vmul.f32 %v4999, 1.442695
    %v5003 = vpow.pop %v5002
    %v5004 = vsel %vm1891, %v5001, 0.0
    %v5005 = vsel %vm1893, %v5003, 0.0
    %v5006 = vadd.f32 %v5004, %v5005
    %v5007 = vrot.slane %v5006, 4
    %v5008 = vadd.f32 %v5006, %v5007
    %v5009 = vrot.slane %v5008, 2
    %v5010 = vadd.f32 %v5008, %v5009
    %v5011 = vrot.slane %v5010, 1
    %v5012 = vadd.f32 %v5010, %v5011
    %v5013 = vrcp.pop %v5012
    %v5014 = vmul.f32 %v5001, %v5013
    %v5015 = vmul.f32 %v5003, %v5013
    %5017 = vset.pattern.permute.xlu0 0
    %5018 = vperm.xlu0 %5017, %v5014
    %v5019 = vpop.permute.xlu0 %5018
    %5022 = vset.pattern.permute.xlu0 0
    %5023 = vperm.xlu0 %5022, %v5015
    %v5024 = vpop.permute.xlu0 %5023
    %v5026 = vmul.f32 %v5019, %v1638
    %v5027 = vmul.f32 %v5024, %v1639
    %v5028 = vsel %vm400, %v5026, 0.0
    %v5029 = vsel %vm1933, %v5027, 0.0
    %v5030 = vadd.f32 %v5028, %v5029
    %v5031 = vrot.slane %v5030, 4
    %v5032 = vadd.f32 %v5030, %v5031
    %v5033 = vrot.slane %v5032, 2
    %v5034 = vadd.f32 %v5032, %v5033
    %v5035 = vrot.slane %v5034, 1
    %v5036 = vadd.f32 %v5034, %v5035
    %5037 = vst.msk [vmem:[#allocation4] sm:$0x3] %vm1943, %v4819
    %v5040 = vcombine.low %v4824, %v4825
    %v5042 = vunpack.c.l.s4 1966171168
    %v5043 = vunpack.c.0.s8 %v5042
    %v5044 = vlaneseq
    %v5045 = vshrl.u32 %v5044, 7
    %v5046 = vsub.s32 %v5043, %v5045
    %v5047 = vrot.slane %v5040, %v5046
    %v5049 = vunpack.c.l.s4 1966171168
    %v5050 = vunpack.c.0.s8 %v5049
    %v5051 = vlaneseq
    %v5052 = vshrl.u32 %v5051, 7
    %v5053 = vsub.s32 %v5050, %v5052
    %v5054 = vrot.slane %v5047, %v5053
    %5056 = vst.msk [vmem:[#allocation4 + $0x2] sm:$0x3] %vm1943, %v5054
    %5057 = vst.msk [vmem:[#allocation4 + $0x4] sm:$0x1] %vm1947, %v5036
    %v5058 = vld [vmem:[#allocation4] sm:$0x1f]
    %v5060 = vlaneseq
    %v5061 = vshrl.u32 %v5060, 7
    %v5062 = vsub.s32 0, %v5061
    %v5063 = vrot.slane %v5058, %v5062
    %v5064 = vlaneseq
    %v5065 = vshrl.u32 %v5064, 7
    %v5066 = vsub.s32 1, %v5065
    %v5067 = vrot.slane %v5058, %v5066
    %v5068 = vlaneseq
    %v5069 = vshrl.u32 %v5068, 7
    %v5070 = vsub.s32 2, %v5069
    %v5071 = vrot.slane %v5058, %v5070
    %v5072 = vlaneseq
    %v5073 = vshrl.u32 %v5072, 7
    %v5074 = vsub.s32 3, %v5073
    %v5075 = vrot.slane %v5058, %v5074
    %v5076 = vlaneseq
    %v5077 = vshrl.u32 %v5076, 7
    %v5078 = vsub.s32 4, %v5077
    %v5079 = vrot.slane %v5058, %v5078
    %5085 = vmatprep.subr.mxu0 0.0
    %5086 = vmatpush1.msra.mxu0 %v103
    %5087 = vmatprep.subr.mxu0 0.0
    %5088 = vmatpush1.msra.mxu0 %v104
    %5089 = vmatprep.subr.mxu0 0.0
    %5090 = vmatpush1.msra.mxu0 %v105
    %5091 = vmatprep.subr.mxu0 0.0
    %5092 = vmatpush1.msra.mxu0 %v106
    %5093 = vmatprep.subr.mxu0 0.0
    %5094 = vmatpush1.msra.mxu0 %v107
    %5095 = vmatprep.subr.mxu0 0.0
    %5096 = vmatpush1.msra.mxu0 %v108
    %5097 = vmatprep.subr.mxu0 0.0
    %5098 = vmatpush1.msra.mxu0 %v109
    %5099 = vmatprep.subr.mxu0 0.0
    %5100 = vmatpush1.msra.mxu0 %v110
    %5101 = vmatprep.subr.mxu0 0.0
    %5102 = vmatpush1.msra.mxu0 %v111
    %5103 = vmatprep.subr.mxu0 0.0
    %5104 = vmatpush1.msra.mxu0 %v112
    %5105 = vmatprep.subr.mxu0 0.0
    %5106 = vmatpush1.msra.mxu0 %v113
    %5107 = vmatprep.subr.mxu0 0.0
    %5108 = vmatpush1.msra.mxu0 %v114
    %5109 = vmatprep.subr.mxu0 0.0
    %5110 = vmatpush1.msra.mxu0 %v115
    %5111 = vmatprep.subr.mxu0 0.0
    %5112 = vmatpush1.msra.mxu0 %v116
    %5113 = vmatprep.subr.mxu0 0.0
    %5114 = vmatpush1.msra.mxu0 %v117
    %5115 = vmatprep.subr.mxu0 0.0
    %5116 = vmatpush1.msra.mxu0 %v118
    %5117 = vmatprep.subr.mxu0 0.0
    %5118 = vmatpush1.msra.mxu0 %v119
    %5119 = vmatprep.subr.mxu0 0.0
    %5120 = vmatpush1.msra.mxu0 %v120
    %5121 = vmatprep.subr.mxu0 0.0
    %5122 = vmatpush1.msra.mxu0 %v121
    %5123 = vmatprep.subr.mxu0 0.0
    %5124 = vmatpush1.msra.mxu0 %v122
    %5125 = vmatprep.subr.mxu0 0.0
    %5126 = vmatpush1.msra.mxu0 %v123
    %5127 = vmatprep.subr.mxu0 0.0
    %5128 = vmatpush1.msra.mxu0 %v124
    %5129 = vmatprep.subr.mxu0 0.0
    %5130 = vmatpush1.msra.mxu0 %v125
    %5131 = vmatprep.subr.mxu0 0.0
    %5132 = vmatpush1.msra.mxu0 %v126
    %5133 = vmatprep.subr.mxu0 0.0
    %5134 = vmatpush1.msra.mxu0 %v127
    %5135 = vmatprep.subr.mxu0 0.0
    %5136 = vmatpush1.msra.mxu0 %v128
    %5137 = vmatprep.subr.mxu0 0.0
    %5138 = vmatpush1.msra.mxu0 %v129
    %5139 = vmatprep.subr.mxu0 0.0
    %5140 = vmatpush1.msra.mxu0 %v130
    %5141 = vmatprep.subr.mxu0 0.0
    %5142 = vmatpush1.msra.mxu0 %v131
    %5143 = vmatprep.subr.mxu0 0.0
    %5144 = vmatpush1.msra.mxu0 %v132
    %5145 = vmatprep.subr.mxu0 0.0
    %5146 = vmatpush1.msra.mxu0 %v133
    %5147 = vmatprep.subr.mxu0 0.0
    %5148 = vmatpush1.msra.mxu0 %v134
    %5149 = vmatprep.mubr.f32.mxu0 %v5067
    %5150 = vmatmul.mubr.f32.gmra.mrb[0].mxu0 %v5063
    %v5151 = vpop.f32.mrb[0].mxu0
    %v5152 = vadd.f32 %v187, %v5151
    %v5153 = vpop.f32.mrb[0].mxu0
    %5154 = vdwg.mxu0
    %5155 = vmatprep.subr.mxu0 0.0
    %5156 = vmatpush1.msra.mxu0 %v135
    %5157 = vmatprep.subr.mxu0 0.0
    %5158 = vmatpush1.msra.mxu0 %v136
    %5159 = vmatprep.subr.mxu0 0.0
    %5160 = vmatpush1.msra.mxu0 %v137
    %5161 = vmatprep.subr.mxu0 0.0
    %5162 = vmatpush1.msra.mxu0 %v138
    %5163 = vmatprep.subr.mxu0 0.0
    %5164 = vmatpush1.msra.mxu0 %v139
    %5165 = vmatprep.subr.mxu0 0.0
    %5166 = vmatpush1.msra.mxu0 %v140
    %5167 = vmatprep.subr.mxu0 0.0
    %5168 = vmatpush1.msra.mxu0 %v141
    %5169 = vmatprep.subr.mxu0 0.0
    %5170 = vmatpush1.msra.mxu0 %v142
    %5171 = vmatprep.subr.mxu0 0.0
    %5172 = vmatpush1.msra.mxu0 %v143
    %5173 = vmatprep.subr.mxu0 0.0
    %5174 = vmatpush1.msra.mxu0 %v144
    %5175 = vmatprep.subr.mxu0 0.0
    %5176 = vmatpush1.msra.mxu0 %v145
    %5177 = vmatprep.subr.mxu0 0.0
    %5178 = vmatpush1.msra.mxu0 %v146
    %5179 = vmatprep.subr.mxu0 0.0
    %5180 = vmatpush1.msra.mxu0 %v147
    %5181 = vmatprep.subr.mxu0 0.0
    %5182 = vmatpush1.msra.mxu0 %v148
    %5183 = vmatprep.subr.mxu0 0.0
    %5184 = vmatpush1.msra.mxu0 %v149
    %5185 = vmatprep.subr.mxu0 0.0
    %5186 = vmatpush1.msra.mxu0 %v150
    %5187 = vmatprep.subr.mxu0 0.0
    %5188 = vmatpush1.msra.mxu0 %v151
    %5189 = vmatprep.subr.mxu0 0.0
    %5190 = vmatpush1.msra.mxu0 %v152
    %5191 = vmatprep.subr.mxu0 0.0
    %5192 = vmatpush1.msra.mxu0 %v153
    %5193 = vmatprep.subr.mxu0 0.0
    %5194 = vmatpush1.msra.mxu0 %v154
    %5195 = vmatprep.subr.mxu0 0.0
    %5196 = vmatpush1.msra.mxu0 %v155
    %5197 = vmatprep.subr.mxu0 0.0
    %5198 = vmatpush1.msra.mxu0 %v156
    %5199 = vmatprep.subr.mxu0 0.0
    %5200 = vmatpush1.msra.mxu0 %v157
    %5201 = vmatprep.subr.mxu0 0.0
    %5202 = vmatpush1.msra.mxu0 %v158
    %5203 = vmatprep.subr.mxu0 0.0
    %5204 = vmatpush1.msra.mxu0 %v159
    %5205 = vmatprep.subr.mxu0 0.0
    %5206 = vmatpush1.msra.mxu0 %v160
    %5207 = vmatprep.subr.mxu0 0.0
    %5208 = vmatpush1.msra.mxu0 %v161
    %5209 = vmatprep.subr.mxu0 0.0
    %5210 = vmatpush1.msra.mxu0 %v162
    %5211 = vmatprep.subr.mxu0 0.0
    %5212 = vmatpush1.msra.mxu0 %v163
    %5213 = vmatprep.subr.mxu0 0.0
    %5214 = vmatpush1.msra.mxu0 %v164
    %5215 = vmatprep.subr.mxu0 0.0
    %5216 = vmatpush1.msra.mxu0 %v165
    %5217 = vmatprep.subr.mxu0 0.0
    %5218 = vmatpush1.msra.mxu0 %v166
    %5219 = vmatprep.mubr.f32.mxu0 %v5075
    %5220 = vmatmul.mubr.f32.gmra.mrb[0].mxu0 %v5071
    %v5221 = vpop.f32.mrb[0].mxu0
    %v5222 = vadd.f32 %v5152, %v5221
    %v5223 = vpop.f32.mrb[0].mxu0
    %5224 = vdwg.mxu0
    %5225 = vmatprep.subr.mxu0 0.0
    %5226 = vmatpush1.msra.mxu0 %v167
    %5227 = vmatprep.subr.mxu0 0.0
    %5228 = vmatpush1.msra.mxu0 %v168
    %5229 = vmatprep.subr.mxu0 0.0
    %5230 = vmatpush1.msra.mxu0 %v169
    %5231 = vmatprep.subr.mxu0 0.0
    %5232 = vmatpush1.msra.mxu0 %v170
    %5233 = vmatprep.subr.mxu0 0.0
    %5234 = vmatpush1.msra.mxu0 %v171
    %5235 = vmatprep.subr.mxu0 0.0
    %5236 = vmatpush1.msra.mxu0 %v172
    %5237 = vmatprep.subr.mxu0 0.0
    %5238 = vmatpush1.msra.mxu0 %v173
    %5239 = vmatprep.subr.mxu0 0.0
    %5240 = vmatpush1.msra.mxu0 %v174
    %5241 = vmatprep.subr.mxu0 0.0
    %5242 = vmatpush1.msra.mxu0 %v175
    %5243 = vmatprep.subr.mxu0 0.0
    %5244 = vmatpush1.msra.mxu0 %v176
    %5245 = vmatprep.subr.mxu0 0.0
    %5246 = vmatpush1.msra.mxu0 %v177
    %5247 = vmatprep.subr.mxu0 0.0
    %5248 = vmatpush1.msra.mxu0 %v178
    %5249 = vmatprep.subr.mxu0 0.0
    %5250 = vmatpush1.msra.mxu0 %v179
    %5251 = vmatprep.subr.mxu0 0.0
    %5252 = vmatpush1.msra.mxu0 %v180
    %5253 = vmatprep.subr.mxu0 0.0
    %5254 = vmatpush1.msra.mxu0 %v181
    %5255 = vmatprep.subr.mxu0 0.0
    %5256 = vmatpush1.msra.mxu0 %v182
    %5257 = vmatprep.subr.mxu0 0.0
    %5258 = vmatpush1.msra.mxu0 0.0
    %5259 = vmatprep.subr.mxu0 0.0
    %5260 = vmatpush1.msra.mxu0 0.0
    %5261 = vmatprep.subr.mxu0 0.0
    %5262 = vmatpush1.msra.mxu0 0.0
    %5263 = vmatprep.subr.mxu0 0.0
    %5264 = vmatpush1.msra.mxu0 0.0
    %5265 = vmatprep.subr.mxu0 0.0
    %5266 = vmatpush1.msra.mxu0 0.0
    %5267 = vmatprep.subr.mxu0 0.0
    %5268 = vmatpush1.msra.mxu0 0.0
    %5269 = vmatprep.subr.mxu0 0.0
    %5270 = vmatpush1.msra.mxu0 0.0
    %5271 = vmatprep.subr.mxu0 0.0
    %5272 = vmatpush1.msra.mxu0 0.0
    %5273 = vmatprep.subr.mxu0 0.0
    %5274 = vmatpush1.msra.mxu0 0.0
    %5275 = vmatprep.subr.mxu0 0.0
    %5276 = vmatpush1.msra.mxu0 0.0
    %5277 = vmatprep.subr.mxu0 0.0
    %5278 = vmatpush1.msra.mxu0 0.0
    %5279 = vmatprep.subr.mxu0 0.0
    %5280 = vmatpush1.msra.mxu0 0.0
    %5281 = vmatprep.subr.mxu0 0.0
    %5282 = vmatpush1.msra.mxu0 0.0
    %5283 = vmatprep.subr.mxu0 0.0
    %5284 = vmatpush1.msra.mxu0 0.0
    %5285 = vmatprep.subr.mxu0 0.0
    %5286 = vmatpush1.msra.mxu0 0.0
    %5287 = vmatprep.subr.mxu0 0.0
    %5288 = vmatpush1.msra.mxu0 0.0
    %5289 = vmatprep.mubr.f32.mxu0 0.0
    %5290 = vmatmul.mubr.f32.gmra.mrb[0].mxu0 %v5079
    %v5291 = vpop.f32.mrb[0].mxu0
    %v5292 = vadd.f32 %v5222, %v5291
    %v5293 = vpop.f32.mrb[0].mxu0
    %5294 = vdwg.mxu0
    %5295 = vmatprep.subr.mxu0 0.0
    %5296 = vmatpush1.msra.mxu0 %v183
    %5297 = vmatprep.subr.mxu0 0.0
    %5298 = vmatpush1.msra.mxu0 %v184
    %5299 = vmatprep.subr.mxu0 0.0
    %5300 = vmatpush1.msra.mxu0 %v185
    %5301 = vmatprep.subr.mxu0 0.0
    %5302 = vmatpush1.msra.mxu0 %v186
    %5303 = vmatprep.subr.mxu0 0.0
    %5304 = vmatpush1.msra.mxu0 0.0
    %5305 = vmatprep.subr.mxu0 0.0
    %5306 = vmatpush1.msra.mxu0 0.0
    %5307 = vmatprep.subr.mxu0 0.0
    %5308 = vmatpush1.msra.mxu0 0.0
    %5309 = vmatprep.subr.mxu0 0.0
    %5310 = vmatpush1.msra.mxu0 0.0
    %5311 = vmatprep.subr.mxu0 0.0
    %5312 = vmatpush1.msra.mxu0 0.0
    %5313 = vmatprep.subr.mxu0 0.0
    %5314 = vmatpush1.msra.mxu0 0.0
    %5315 = vmatprep.subr.mxu0 0.0
    %5316 = vmatpush1.msra.mxu0 0.0
    %5317 = vmatprep.subr.mxu0 0.0
    %5318 = vmatpush1.msra.mxu0 0.0
    %5319 = vmatprep.subr.mxu0 0.0
    %5320 = vmatpush1.msra.mxu0 0.0
    %5321 = vmatprep.subr.mxu0 0.0
    %5322 = vmatpush1.msra.mxu0 0.0
    %5323 = vmatprep.subr.mxu0 0.0
    %5324 = vmatpush1.msra.mxu0 0.0
    %5325 = vmatprep.subr.mxu0 0.0
    %5326 = vmatpush1.msra.mxu0 0.0
    %5327 = vmatprep.subr.mxu0 0.0
    %5328 = vmatpush1.msra.mxu0 0.0
    %5329 = vmatprep.subr.mxu0 0.0
    %5330 = vmatpush1.msra.mxu0 0.0
    %5331 = vmatprep.subr.mxu0 0.0
    %5332 = vmatpush1.msra.mxu0 0.0
    %5333 = vmatprep.subr.mxu0 0.0
    %5334 = vmatpush1.msra.mxu0 0.0
    %5335 = vmatprep.subr.mxu0 0.0
    %5336 = vmatpush1.msra.mxu0 0.0
    %5337 = vmatprep.subr.mxu0 0.0
    %5338 = vmatpush1.msra.mxu0 0.0
    %5339 = vmatprep.subr.mxu0 0.0
    %5340 = vmatpush1.msra.mxu0 0.0
    %5341 = vmatprep.subr.mxu0 0.0
    %5342 = vmatpush1.msra.mxu0 0.0
    %5343 = vmatprep.subr.mxu0 0.0
    %5344 = vmatpush1.msra.mxu0 0.0
    %5345 = vmatprep.subr.mxu0 0.0
    %5346 = vmatpush1.msra.mxu0 0.0
    %5347 = vmatprep.subr.mxu0 0.0
    %5348 = vmatpush1.msra.mxu0 0.0
    %5349 = vmatprep.subr.mxu0 0.0
    %5350 = vmatpush1.msra.mxu0 0.0
    %5351 = vmatprep.subr.mxu0 0.0
    %5352 = vmatpush1.msra.mxu0 0.0
    %5353 = vmatprep.subr.mxu0 0.0
    %5354 = vmatpush1.msra.mxu0 0.0
    %5355 = vmatprep.subr.mxu0 0.0
    %5356 = vmatpush1.msra.mxu0 0.0
    %5357 = vmatprep.subr.mxu0 0.0
    %5358 = vmatpush1.msra.mxu0 0.0
    %5359 = vmatprep.mubr.f32.mxu0 0.0
    %5360 = vmatmul.mubr.f32.gmra.mrb[0].mxu0 %v4828
    %v5361 = vpop.f32.mrb[0].mxu0
    %v5362 = vadd.f32 0.0, %v5361
    %v5363 = vpop.f32.mrb[0].mxu0
    %5364 = vdwg.mxu0
    %v5365 = vadd.f32 %v5292, %v5362
    %v5366 = vxor.u32 %v5365, 2147483648
    %v5367 = vmul.f32 %v5366, 1.442695
    %v5368 = vpow.pop %v5367
    %v5369 = vadd.f32 %v5368, 1.0
    %v5370 = vrcp.pop %v5369
    %v5371 = vmul.f32 1.0, %v5370
    %v5372 = vtanh.pop %v5365
    %v5373 = vmul.f32 %v5371, %v4611
    %5375 = vrot.lane.b32.xlu0 %v5372, 64
    %v5376 = vpop.permute.xlu0 %5375
    %v5378 = vmul.f32 %v5371, %v5376
    %5380 = vrot.lane.b32.xlu0 %v5378, 32
    %v5381 = vpop.permute.xlu0 %5380
    %v5383 = vadd.f32 %v5373, %v5381
    %v5384 = vtanh.pop %v5383
    %5386 = vrot.lane.b32.xlu0 %v5384, 64
    %v5387 = vpop.permute.xlu0 %5386
    %v5389 = vmul.f32 %v5371, %v5387
    %v5392 = vunpack.c.l.s4 1966171168
    %v5393 = vunpack.c.0.s8 %v5392
    %v5394 = vlaneseq
    %v5395 = vshrl.u32 %v5394, 7
    %v5396 = vsub.s32 %v5393, %v5395
    %v5397 = vrot.slane %v5389, %v5396
    %v5399 = vunpack.c.l.s4 1966171168
    %v5400 = vunpack.c.0.s8 %v5399
    %v5401 = vlaneseq
    %v5402 = vshrl.u32 %v5401, 7
    %v5403 = vsub.s32 %v5400, %v5402
    %v5404 = vrot.slane %v5397, %v5403
    %5405 = vrot.lane.b32.xlu0 %v5404, 32
    %v5406 = vpop.permute.xlu0 %5405
    %5408 = vst.msk [vmem:[#allocation5] sm:$0x1] %vm1947, %v5406
    %5409 = vst.msk [vmem:[#allocation5 + $0x1] sm:$0x1] %vm1947, %v5036
    %5410 = vst.msk [vmem:[#allocation5 + $0x2] sm:$0x3] %vm1943, %v4819
    %v5411 = vld [vmem:[#allocation5] sm:$0xf]
    %v5413 = vlaneseq
    %v5414 = vshrl.u32 %v5413, 7
    %v5415 = vsub.s32 0, %v5414
    %v5416 = vrot.slane %v5411, %v5415
    %v5417 = vlaneseq
    %v5418 = vshrl.u32 %v5417, 7
    %v5419 = vsub.s32 1, %v5418
    %v5420 = vrot.slane %v5411, %v5419
    %v5421 = vlaneseq
    %v5422 = vshrl.u32 %v5421, 7
    %v5423 = vsub.s32 2, %v5422
    %v5424 = vrot.slane %v5411, %v5423
    %v5425 = vlaneseq
    %v5426 = vshrl.u32 %v5425, 7
    %v5427 = vsub.s32 3, %v5426
    %v5428 = vrot.slane %v5411, %v5427
    %5433 = vmatprep.subr.mxu0 %v189
    %5434 = vmatpush1.msra.mxu0 %v188
    %5435 = vmatprep.subr.mxu0 %v191
    %5436 = vmatpush1.msra.mxu0 %v190
    %5437 = vmatprep.subr.mxu0 %v193
    %5438 = vmatpush1.msra.mxu0 %v192
    %5439 = vmatprep.subr.mxu0 %v195
    %5440 = vmatpush1.msra.mxu0 %v194
    %5441 = vmatprep.subr.mxu0 %v197
    %5442 = vmatpush1.msra.mxu0 %v196
    %5443 = vmatprep.subr.mxu0 %v199
    %5444 = vmatpush1.msra.mxu0 %v198
    %5445 = vmatprep.subr.mxu0 %v201
    %5446 = vmatpush1.msra.mxu0 %v200
    %5447 = vmatprep.subr.mxu0 %v203
    %5448 = vmatpush1.msra.mxu0 %v202
    %5449 = vmatprep.subr.mxu0 %v205
    %5450 = vmatpush1.msra.mxu0 %v204
    %5451 = vmatprep.subr.mxu0 %v207
    %5452 = vmatpush1.msra.mxu0 %v206
    %5453 = vmatprep.subr.mxu0 %v209
    %5454 = vmatpush1.msra.mxu0 %v208
    %5455 = vmatprep.subr.mxu0 %v211
    %5456 = vmatpush1.msra.mxu0 %v210
    %5457 = vmatprep.subr.mxu0 %v213
    %5458 = vmatpush1.msra.mxu0 %v212
    %5459 = vmatprep.subr.mxu0 %v215
    %5460 = vmatpush1.msra.mxu0 %v214
    %5461 = vmatprep.subr.mxu0 %v217
    %5462 = vmatpush1.msra.mxu0 %v216
    %5463 = vmatprep.subr.mxu0 %v219
    %5464 = vmatpush1.msra.mxu0 %v218
    %5465 = vmatprep.subr.mxu0 %v221
    %5466 = vmatpush1.msra.mxu0 %v220
    %5467 = vmatprep.subr.mxu0 %v223
    %5468 = vmatpush1.msra.mxu0 %v222
    %5469 = vmatprep.subr.mxu0 %v225
    %5470 = vmatpush1.msra.mxu0 %v224
    %5471 = vmatprep.subr.mxu0 %v227
    %5472 = vmatpush1.msra.mxu0 %v226
    %5473 = vmatprep.subr.mxu0 %v229
    %5474 = vmatpush1.msra.mxu0 %v228
    %5475 = vmatprep.subr.mxu0 %v231
    %5476 = vmatpush1.msra.mxu0 %v230
    %5477 = vmatprep.subr.mxu0 %v233
    %5478 = vmatpush1.msra.mxu0 %v232
    %5479 = vmatprep.subr.mxu0 %v235
    %5480 = vmatpush1.msra.mxu0 %v234
    %5481 = vmatprep.subr.mxu0 %v237
    %5482 = vmatpush1.msra.mxu0 %v236
    %5483 = vmatprep.subr.mxu0 %v239
    %5484 = vmatpush1.msra.mxu0 %v238
    %5485 = vmatprep.subr.mxu0 %v241
    %5486 = vmatpush1.msra.mxu0 %v240
    %5487 = vmatprep.subr.mxu0 %v243
    %5488 = vmatpush1.msra.mxu0 %v242
    %5489 = vmatprep.subr.mxu0 %v245
    %5490 = vmatpush1.msra.mxu0 %v244
    %5491 = vmatprep.subr.mxu0 %v247
    %5492 = vmatpush1.msra.mxu0 %v246
    %5493 = vmatprep.subr.mxu0 %v249
    %5494 = vmatpush1.msra.mxu0 %v248
    %5495 = vmatprep.subr.mxu0 %v251
    %5496 = vmatpush1.msra.mxu0 %v250
    %5497 = vmatprep.mubr.f32.mxu0 %v5420
    %5498 = vmatmul.mubr.f32.gmra.mrb[0].mxu0 %v5416
    %v5499 = vpop.f32.mrb[0].mxu0
    %v5500 = vadd.f32 %v2328, %v5499
    %v5501 = vpop.f32.mrb[0].mxu0
    %v5502 = vadd.f32 %v2332, %v5501
    %5503 = vdwg.mxu0
    %5504 = vmatprep.subr.mxu0 %v253
    %5505 = vmatpush1.msra.mxu0 %v252
    %5506 = vmatprep.subr.mxu0 %v255
    %5507 = vmatpush1.msra.mxu0 %v254
    %5508 = vmatprep.subr.mxu0 %v257
    %5509 = vmatpush1.msra.mxu0 %v256
    %5510 = vmatprep.subr.mxu0 %v259
    %5511 = vmatpush1.msra.mxu0 %v258
    %5512 = vmatprep.subr.mxu0 %v261
    %5513 = vmatpush1.msra.mxu0 %v260
    %5514 = vmatprep.subr.mxu0 %v263
    %5515 = vmatpush1.msra.mxu0 %v262
    %5516 = vmatprep.subr.mxu0 %v265
    %5517 = vmatpush1.msra.mxu0 %v264
    %5518 = vmatprep.subr.mxu0 %v267
    %5519 = vmatpush1.msra.mxu0 %v266
    %5520 = vmatprep.subr.mxu0 %v269
    %5521 = vmatpush1.msra.mxu0 %v268
    %5522 = vmatprep.subr.mxu0 %v271
    %5523 = vmatpush1.msra.mxu0 %v270
    %5524 = vmatprep.subr.mxu0 %v273
    %5525 = vmatpush1.msra.mxu0 %v272
    %5526 = vmatprep.subr.mxu0 %v275
    %5527 = vmatpush1.msra.mxu0 %v274
    %5528 = vmatprep.subr.mxu0 %v277
    %5529 = vmatpush1.msra.mxu0 %v276
    %5530 = vmatprep.subr.mxu0 %v279
    %5531 = vmatpush1.msra.mxu0 %v278
    %5532 = vmatprep.subr.mxu0 %v281
    %5533 = vmatpush1.msra.mxu0 %v280
    %5534 = vmatprep.subr.mxu0 %v283
    %5535 = vmatpush1.msra.mxu0 %v282
    %5536 = vmatprep.subr.mxu0 %v285
    %5537 = vmatpush1.msra.mxu0 %v284
    %5538 = vmatprep.subr.mxu0 %v287
    %5539 = vmatpush1.msra.mxu0 %v286
    %5540 = vmatprep.subr.mxu0 %v289
    %5541 = vmatpush1.msra.mxu0 %v288
    %5542 = vmatprep.subr.mxu0 %v291
    %5543 = vmatpush1.msra.mxu0 %v290
    %5544 = vmatprep.subr.mxu0 %v293
    %5545 = vmatpush1.msra.mxu0 %v292
    %5546 = vmatprep.subr.mxu0 %v295
    %5547 = vmatpush1.msra.mxu0 %v294
    %5548 = vmatprep.subr.mxu0 %v297
    %5549 = vmatpush1.msra.mxu0 %v296
    %5550 = vmatprep.subr.mxu0 %v299
    %5551 = vmatpush1.msra.mxu0 %v298
    %5552 = vmatprep.subr.mxu0 %v301
    %5553 = vmatpush1.msra.mxu0 %v300
    %5554 = vmatprep.subr.mxu0 %v303
    %5555 = vmatpush1.msra.mxu0 %v302
    %5556 = vmatprep.subr.mxu0 %v305
    %5557 = vmatpush1.msra.mxu0 %v304
    %5558 = vmatprep.subr.mxu0 %v307
    %5559 = vmatpush1.msra.mxu0 %v306
    %5560 = vmatprep.subr.mxu0 %v309
    %5561 = vmatpush1.msra.mxu0 %v308
    %5562 = vmatprep.subr.mxu0 %v311
    %5563 = vmatpush1.msra.mxu0 %v310
    %5564 = vmatprep.subr.mxu0 %v313
    %5565 = vmatpush1.msra.mxu0 %v312
    %5566 = vmatprep.subr.mxu0 %v315
    %5567 = vmatpush1.msra.mxu0 %v314
    %5568 = vmatprep.mubr.f32.mxu0 %v5428
    %5569 = vmatmul.mubr.f32.gmra.mrb[0].mxu0 %v5424
    %v5570 = vpop.f32.mrb[0].mxu0
    %v5571 = vadd.f32 %v5500, %v5570
    %v5572 = vpop.f32.mrb[0].mxu0
    %v5573 = vadd.f32 %v5502, %v5572
    %5574 = vdwg.mxu0
    %v5577 = vcombine.low %v5571, %v5573
    %v5579 = vunpack.c.l.s4 1966171168
    %v5580 = vunpack.c.0.s8 %v5579
    %v5581 = vlaneseq
    %v5582 = vshrl.u32 %v5581, 7
    %v5583 = vsub.s32 %v5580, %v5582
    %v5584 = vrot.slane %v5577, %v5583
    %v5586 = vunpack.c.l.s4 1966171168
    %v5587 = vunpack.c.0.s8 %v5586
    %v5588 = vlaneseq
    %v5589 = vshrl.u32 %v5588, 7
    %v5590 = vsub.s32 %v5587, %v5589
    %v5591 = vrot.slane %v5584, %v5590
    %s5593 = scalar_lea.vmem [#allocation12], 4
    %5594 = vst.msk [vmem:[%s5593] ss:$8 sm:$0x3] %vm1943, %v5591
    %5595 = vst.msk [vmem:[%s5593] ss:$8 sm:$0x0] %vm1943, %v5591
    %v5596 = vsub.f32 %v5571, %v4799
    %v5597 = vsub.f32 %v5573, %v4801
    %5598 = vrot.lane.b32.xlu0 %v5389, 32
    %v5599 = vpop.permute.xlu0 %5598
    %v5600 = vsel %vm400, %v5599, 0
    %5602 = vmatprep.subr.mxu0 0.0
    %5603 = vmatpush1.msra.mxu0 %v95
    %5604 = vmatprep.subr.mxu0 0.0
    %5605 = vmatpush1.msra.mxu0 %v96
    %5606 = vmatprep.subr.mxu0 0.0
    %5607 = vmatpush1.msra.mxu0 %v97
    %5608 = vmatprep.subr.mxu0 0.0
    %5609 = vmatpush1.msra.mxu0 %v98
    %5610 = vmatprep.subr.mxu0 0.0
    %5611 = vmatpush1.msra.mxu0 0.0
    %5612 = vmatprep.subr.mxu0 0.0
    %5613 = vmatpush1.msra.mxu0 0.0
    %5614 = vmatprep.subr.mxu0 0.0
    %5615 = vmatpush1.msra.mxu0 0.0
    %5616 = vmatprep.subr.mxu0 0.0
    %5617 = vmatpush1.msra.mxu0 0.0
    %5618 = vmatprep.subr.mxu0 0.0
    %5619 = vmatpush1.msra.mxu0 0.0
    %5620 = vmatprep.subr.mxu0 0.0
    %5621 = vmatpush1.msra.mxu0 0.0
    %5622 = vmatprep.subr.mxu0 0.0
    %5623 = vmatpush1.msra.mxu0 0.0
    %5624 = vmatprep.subr.mxu0 0.0
    %5625 = vmatpush1.msra.mxu0 0.0
    %5626 = vmatprep.subr.mxu0 0.0
    %5627 = vmatpush1.msra.mxu0 0.0
    %5628 = vmatprep.subr.mxu0 0.0
    %5629 = vmatpush1.msra.mxu0 0.0
    %5630 = vmatprep.subr.mxu0 0.0
    %5631 = vmatpush1.msra.mxu0 0.0
    %5632 = vmatprep.subr.mxu0 0.0
    %5633 = vmatpush1.msra.mxu0 0.0
    %5634 = vmatprep.subr.mxu0 0.0
    %5635 = vmatpush1.msra.mxu0 0.0
    %5636 = vmatprep.subr.mxu0 0.0
    %5637 = vmatpush1.msra.mxu0 0.0
    %5638 = vmatprep.subr.mxu0 0.0
    %5639 = vmatpush1.msra.mxu0 0.0
    %5640 = vmatprep.subr.mxu0 0.0
    %5641 = vmatpush1.msra.mxu0 0.0
    %5642 = vmatprep.subr.mxu0 0.0
    %5643 = vmatpush1.msra.mxu0 0.0
    %5644 = vmatprep.subr.mxu0 0.0
    %5645 = vmatpush1.msra.mxu0 0.0
    %5646 = vmatprep.subr.mxu0 0.0
    %5647 = vmatpush1.msra.mxu0 0.0
    %5648 = vmatprep.subr.mxu0 0.0
    %5649 = vmatpush1.msra.mxu0 0.0
    %5650 = vmatprep.subr.mxu0 0.0
    %5651 = vmatpush1.msra.mxu0 0.0
    %5652 = vmatprep.subr.mxu0 0.0
    %5653 = vmatpush1.msra.mxu0 0.0
    %5654 = vmatprep.subr.mxu0 0.0
    %5655 = vmatpush1.msra.mxu0 0.0
    %5656 = vmatprep.subr.mxu0 0.0
    %5657 = vmatpush1.msra.mxu0 0.0
    %5658 = vmatprep.subr.mxu0 0.0
    %5659 = vmatpush1.msra.mxu0 0.0
    %5660 = vmatprep.subr.mxu0 0.0
    %5661 = vmatpush1.msra.mxu0 0.0
    %5662 = vmatprep.subr.mxu0 0.0
    %5663 = vmatpush1.msra.mxu0 0.0
    %5664 = vmatprep.subr.mxu0 0.0
    %5665 = vmatpush1.msra.mxu0 0.0
    %5666 = vmatprep.mubr.f32.mxu0 0.0
    %5667 = vmatmul.mubr.f32.gmra.mrb[0].mxu0 %v5600
    %v5668 = vpop.f32.mrb[0].mxu0
    %v5669 = vadd.f32 0.0, %v5668
    %v5670 = vpop.f32.mrb[0].mxu0
    %5671 = vdwg.mxu0
    %v5672 = vlaneseq
    %v5673 = vshrl.u32 %v5672, 7
    %v5674 = vsub.s32 0, %v5673
    %v5675 = vrot.slane %v5669, %v5674
    %v5676 = vadd.f32 %v1713, %v5675
    %v5677 = vadd.f32 %v1718, %v5675
    %v5678 = vtanh.pop %v5676
    %v5679 = vtanh.pop %v5677
    %v5681 = vsel %vm400, %v5678, 0
    %v5684 = vsel %vm400, %v5679, 0
    %5686 = vmatprep.subr.mxu0 0.0
    %5687 = vmatpush1.msra.mxu0 %v99
    %5688 = vmatprep.subr.mxu0 0.0
    %5689 = vmatpush1.msra.mxu0 %v100
    %5690 = vmatprep.subr.mxu0 0.0
    %5691 = vmatpush1.msra.mxu0 %v101
    %5692 = vmatprep.subr.mxu0 0.0
    %5693 = vmatpush1.msra.mxu0 %v102
    %5694 = vmatprep.subr.mxu0 0.0
    %5695 = vmatpush1.msra.mxu0 0.0
    %5696 = vmatprep.subr.mxu0 0.0
    %5697 = vmatpush1.msra.mxu0 0.0
    %5698 = vmatprep.subr.mxu0 0.0
    %5699 = vmatpush1.msra.mxu0 0.0
    %5700 = vmatprep.subr.mxu0 0.0
    %5701 = vmatpush1.msra.mxu0 0.0
    %5702 = vmatprep.subr.mxu0 0.0
    %5703 = vmatpush1.msra.mxu0 0.0
    %5704 = vmatprep.subr.mxu0 0.0
    %5705 = vmatpush1.msra.mxu0 0.0
    %5706 = vmatprep.subr.mxu0 0.0
    %5707 = vmatpush1.msra.mxu0 0.0
    %5708 = vmatprep.subr.mxu0 0.0
    %5709 = vmatpush1.msra.mxu0 0.0
    %5710 = vmatprep.subr.mxu0 0.0
    %5711 = vmatpush1.msra.mxu0 0.0
    %5712 = vmatprep.subr.mxu0 0.0
    %5713 = vmatpush1.msra.mxu0 0.0
    %5714 = vmatprep.subr.mxu0 0.0
    %5715 = vmatpush1.msra.mxu0 0.0
    %5716 = vmatprep.subr.mxu0 0.0
    %5717 = vmatpush1.msra.mxu0 0.0
    %5718 = vmatprep.subr.mxu0 0.0
    %5719 = vmatpush1.msra.mxu0 0.0
    %5720 = vmatprep.subr.mxu0 0.0
    %5721 = vmatpush1.msra.mxu0 0.0
    %5722 = vmatprep.subr.mxu0 0.0
    %5723 = vmatpush1.msra.mxu0 0.0
    %5724 = vmatprep.subr.mxu0 0.0
    %5725 = vmatpush1.msra.mxu0 0.0
    %5726 = vmatprep.subr.mxu0 0.0
    %5727 = vmatpush1.msra.mxu0 0.0
    %5728 = vmatprep.subr.mxu0 0.0
    %5729 = vmatpush1.msra.mxu0 0.0
    %5730 = vmatprep.subr.mxu0 0.0
    %5731 = vmatpush1.msra.mxu0 0.0
    %5732 = vmatprep.subr.mxu0 0.0
    %5733 = vmatpush1.msra.mxu0 0.0
    %5734 = vmatprep.subr.mxu0 0.0
    %5735 = vmatpush1.msra.mxu0 0.0
    %5736 = vmatprep.subr.mxu0 0.0
    %5737 = vmatpush1.msra.mxu0 0.0
    %5738 = vmatprep.subr.mxu0 0.0
    %5739 = vmatpush1.msra.mxu0 0.0
    %5740 = vmatprep.subr.mxu0 0.0
    %5741 = vmatpush1.msra.mxu0 0.0
    %5742 = vmatprep.subr.mxu0 0.0
    %5743 = vmatpush1.msra.mxu0 0.0
    %5744 = vmatprep.subr.mxu0 0.0
    %5745 = vmatpush1.msra.mxu0 0.0
    %5746 = vmatprep.subr.mxu0 0.0
    %5747 = vmatpush1.msra.mxu0 0.0
    %5748 = vmatprep.subr.mxu0 0.0
    %5749 = vmatpush1.msra.mxu0 0.0
    %5750 = vmatprep.mubr.f32.mxu0 0.0
    %5751 = vmatmul.mubr.f32.gmra.mrb[0].mxu0 %v5681
    %v5752 = vpop.f32.mrb[0].mxu0
    %v5753 = vadd.f32 0.0, %v5752
    %v5754 = vpop.f32.mrb[0].mxu0
    %5755 = vmatprep.mubr.f32.mxu0 0.0
    %5756 = vmatmul.mubr.f32.gmra.mrb[0].mxu0 %v5684
    %v5757 = vpop.f32.mrb[0].mxu0
    %v5758 = vadd.f32 0.0, %v5757
    %v5759 = vpop.f32.mrb[0].mxu0
    %5760 = vdwg.mxu0
    %v5761 = vsel %vm1891, %v5753, -inf
    %v5762 = vsel %vm1893, %v5758, -inf
    %v5763 = vmax.f32 %v5761, %v5762
    %v5764 = vrot.slane %v5763, 4
    %v5765 = vmax.f32 %v5763, %v5764
    %v5766 = vrot.slane %v5765, 2
    %v5767 = vmax.f32 %v5765, %v5766
    %v5768 = vrot.slane %v5767, 1
    %v5769 = vmax.f32 %v5767, %v5768
    %v5770 = vsub.f32 %v5753, %v5769
    %v5771 = vsub.f32 %v5758, %v5769
    %v5772 = vmul.f32 %v5770, 1.442695
    %v5773 = vpow.pop %v5772
    %v5774 = vmul.f32 %v5771, 1.442695
    %v5775 = vpow.pop %v5774
    %v5776 = vsel %vm1891, %v5773, 0.0
    %v5777 = vsel %vm1893, %v5775, 0.0
    %v5778 = vadd.f32 %v5776, %v5777
    %v5779 = vrot.slane %v5778, 4
    %v5780 = vadd.f32 %v5778, %v5779
    %v5781 = vrot.slane %v5780, 2
    %v5782 = vadd.f32 %v5780, %v5781
    %v5783 = vrot.slane %v5782, 1
    %v5784 = vadd.f32 %v5782, %v5783
    %v5785 = vrcp.pop %v5784
    %v5786 = vmul.f32 %v5773, %v5785
    %v5787 = vmul.f32 %v5775, %v5785
    %5789 = vset.pattern.permute.xlu0 0
    %5790 = vperm.xlu0 %5789, %v5786
    %v5791 = vpop.permute.xlu0 %5790
    %5794 = vset.pattern.permute.xlu0 0
    %5795 = vperm.xlu0 %5794, %v5787
    %v5796 = vpop.permute.xlu0 %5795
    %v5798 = vmul.f32 %v5791, %v1638
    %v5799 = vmul.f32 %v5796, %v1639
    %v5800 = vsel %vm400, %v5798, 0.0
    %v5801 = vsel %vm1933, %v5799, 0.0
    %v5802 = vadd.f32 %v5800, %v5801
    %v5803 = vrot.slane %v5802, 4
    %v5804 = vadd.f32 %v5802, %v5803
    %v5805 = vrot.slane %v5804, 2
    %v5806 = vadd.f32 %v5804, %v5805
    %v5807 = vrot.slane %v5806, 1
    %v5808 = vadd.f32 %v5806, %v5807
    %5809 = vst.msk [vmem:[#allocation4] sm:$0x3] %vm1943, %v5591
    %v5812 = vcombine.low %v5596, %v5597
    %v5814 = vunpack.c.l.s4 1966171168
    %v5815 = vunpack.c.0.s8 %v5814
    %v5816 = vlaneseq
    %v5817 = vshrl.u32 %v5816, 7
    %v5818 = vsub.s32 %v5815, %v5817
    %v5819 = vrot.slane %v5812, %v5818
    %v5821 = vunpack.c.l.s4 1966171168
    %v5822 = vunpack.c.0.s8 %v5821
    %v5823 = vlaneseq
    %v5824 = vshrl.u32 %v5823, 7
    %v5825 = vsub.s32 %v5822, %v5824
    %v5826 = vrot.slane %v5819, %v5825
    %5828 = vst.msk [vmem:[#allocation4 + $0x2] sm:$0x3] %vm1943, %v5826
    %5829 = vst.msk [vmem:[#allocation4 + $0x4] sm:$0x1] %vm1947, %v5808
    %v5830 = vld [vmem:[#allocation4] sm:$0x1f]
    %v5832 = vlaneseq
    %v5833 = vshrl.u32 %v5832, 7
    %v5834 = vsub.s32 0, %v5833
    %v5835 = vrot.slane %v5830, %v5834
    %v5836 = vlaneseq
    %v5837 = vshrl.u32 %v5836, 7
    %v5838 = vsub.s32 1, %v5837
    %v5839 = vrot.slane %v5830, %v5838
    %v5840 = vlaneseq
    %v5841 = vshrl.u32 %v5840, 7
    %v5842 = vsub.s32 2, %v5841
    %v5843 = vrot.slane %v5830, %v5842
    %v5844 = vlaneseq
    %v5845 = vshrl.u32 %v5844, 7
    %v5846 = vsub.s32 3, %v5845
    %v5847 = vrot.slane %v5830, %v5846
    %v5848 = vlaneseq
    %v5849 = vshrl.u32 %v5848, 7
    %v5850 = vsub.s32 4, %v5849
    %v5851 = vrot.slane %v5830, %v5850
    %5857 = vmatprep.subr.mxu0 0.0
    %5858 = vmatpush1.msra.mxu0 %v103
    %5859 = vmatprep.subr.mxu0 0.0
    %5860 = vmatpush1.msra.mxu0 %v104
    %5861 = vmatprep.subr.mxu0 0.0
    %5862 = vmatpush1.msra.mxu0 %v105
    %5863 = vmatprep.subr.mxu0 0.0
    %5864 = vmatpush1.msra.mxu0 %v106
    %5865 = vmatprep.subr.mxu0 0.0
    %5866 = vmatpush1.msra.mxu0 %v107
    %5867 = vmatprep.subr.mxu0 0.0
    %5868 = vmatpush1.msra.mxu0 %v108
    %5869 = vmatprep.subr.mxu0 0.0
    %5870 = vmatpush1.msra.mxu0 %v109
    %5871 = vmatprep.subr.mxu0 0.0
    %5872 = vmatpush1.msra.mxu0 %v110
    %5873 = vmatprep.subr.mxu0 0.0
    %5874 = vmatpush1.msra.mxu0 %v111
    %5875 = vmatprep.subr.mxu0 0.0
    %5876 = vmatpush1.msra.mxu0 %v112
    %5877 = vmatprep.subr.mxu0 0.0
    %5878 = vmatpush1.msra.mxu0 %v113
    %5879 = vmatprep.subr.mxu0 0.0
    %5880 = vmatpush1.msra.mxu0 %v114
    %5881 = vmatprep.subr.mxu0 0.0
    %5882 = vmatpush1.msra.mxu0 %v115
    %5883 = vmatprep.subr.mxu0 0.0
    %5884 = vmatpush1.msra.mxu0 %v116
    %5885 = vmatprep.subr.mxu0 0.0
    %5886 = vmatpush1.msra.mxu0 %v117
    %5887 = vmatprep.subr.mxu0 0.0
    %5888 = vmatpush1.msra.mxu0 %v118
    %5889 = vmatprep.subr.mxu0 0.0
    %5890 = vmatpush1.msra.mxu0 %v119
    %5891 = vmatprep.subr.mxu0 0.0
    %5892 = vmatpush1.msra.mxu0 %v120
    %5893 = vmatprep.subr.mxu0 0.0
    %5894 = vmatpush1.msra.mxu0 %v121
    %5895 = vmatprep.subr.mxu0 0.0
    %5896 = vmatpush1.msra.mxu0 %v122
    %5897 = vmatprep.subr.mxu0 0.0
    %5898 = vmatpush1.msra.mxu0 %v123
    %5899 = vmatprep.subr.mxu0 0.0
    %5900 = vmatpush1.msra.mxu0 %v124
    %5901 = vmatprep.subr.mxu0 0.0
    %5902 = vmatpush1.msra.mxu0 %v125
    %5903 = vmatprep.subr.mxu0 0.0
    %5904 = vmatpush1.msra.mxu0 %v126
    %5905 = vmatprep.subr.mxu0 0.0
    %5906 = vmatpush1.msra.mxu0 %v127
    %5907 = vmatprep.subr.mxu0 0.0
    %5908 = vmatpush1.msra.mxu0 %v128
    %5909 = vmatprep.subr.mxu0 0.0
    %5910 = vmatpush1.msra.mxu0 %v129
    %5911 = vmatprep.subr.mxu0 0.0
    %5912 = vmatpush1.msra.mxu0 %v130
    %5913 = vmatprep.subr.mxu0 0.0
    %5914 = vmatpush1.msra.mxu0 %v131
    %5915 = vmatprep.subr.mxu0 0.0
    %5916 = vmatpush1.msra.mxu0 %v132
    %5917 = vmatprep.subr.mxu0 0.0
    %5918 = vmatpush1.msra.mxu0 %v133
    %5919 = vmatprep.subr.mxu0 0.0
    %5920 = vmatpush1.msra.mxu0 %v134
    %5921 = vmatprep.mubr.f32.mxu0 %v5839
    %5922 = vmatmul.mubr.f32.gmra.mrb[0].mxu0 %v5835
    %v5923 = vpop.f32.mrb[0].mxu0
    %v5924 = vadd.f32 %v187, %v5923
    %v5925 = vpop.f32.mrb[0].mxu0
    %5926 = vdwg.mxu0
    %5927 = vmatprep.subr.mxu0 0.0
    %5928 = vmatpush1.msra.mxu0 %v135
    %5929 = vmatprep.subr.mxu0 0.0
    %5930 = vmatpush1.msra.mxu0 %v136
    %5931 = vmatprep.subr.mxu0 0.0
    %5932 = vmatpush1.msra.mxu0 %v137
    %5933 = vmatprep.subr.mxu0 0.0
    %5934 = vmatpush1.msra.mxu0 %v138
    %5935 = vmatprep.subr.mxu0 0.0
    %5936 = vmatpush1.msra.mxu0 %v139
    %5937 = vmatprep.subr.mxu0 0.0
    %5938 = vmatpush1.msra.mxu0 %v140
    %5939 = vmatprep.subr.mxu0 0.0
    %5940 = vmatpush1.msra.mxu0 %v141
    %5941 = vmatprep.subr.mxu0 0.0
    %5942 = vmatpush1.msra.mxu0 %v142
    %5943 = vmatprep.subr.mxu0 0.0
    %5944 = vmatpush1.msra.mxu0 %v143
    %5945 = vmatprep.subr.mxu0 0.0
    %5946 = vmatpush1.msra.mxu0 %v144
    %5947 = vmatprep.subr.mxu0 0.0
    %5948 = vmatpush1.msra.mxu0 %v145
    %5949 = vmatprep.subr.mxu0 0.0
    %5950 = vmatpush1.msra.mxu0 %v146
    %5951 = vmatprep.subr.mxu0 0.0
    %5952 = vmatpush1.msra.mxu0 %v147
    %5953 = vmatprep.subr.mxu0 0.0
    %5954 = vmatpush1.msra.mxu0 %v148
    %5955 = vmatprep.subr.mxu0 0.0
    %5956 = vmatpush1.msra.mxu0 %v149
    %5957 = vmatprep.subr.mxu0 0.0
    %5958 = vmatpush1.msra.mxu0 %v150
    %5959 = vmatprep.subr.mxu0 0.0
    %5960 = vmatpush1.msra.mxu0 %v151
    %5961 = vmatprep.subr.mxu0 0.0
    %5962 = vmatpush1.msra.mxu0 %v152
    %5963 = vmatprep.subr.mxu0 0.0
    %5964 = vmatpush1.msra.mxu0 %v153
    %5965 = vmatprep.subr.mxu0 0.0
    %5966 = vmatpush1.msra.mxu0 %v154
    %5967 = vmatprep.subr.mxu0 0.0
    %5968 = vmatpush1.msra.mxu0 %v155
    %5969 = vmatprep.subr.mxu0 0.0
    %5970 = vmatpush1.msra.mxu0 %v156
    %5971 = vmatprep.subr.mxu0 0.0
    %5972 = vmatpush1.msra.mxu0 %v157
    %5973 = vmatprep.subr.mxu0 0.0
    %5974 = vmatpush1.msra.mxu0 %v158
    %5975 = vmatprep.subr.mxu0 0.0
    %5976 = vmatpush1.msra.mxu0 %v159
    %5977 = vmatprep.subr.mxu0 0.0
    %5978 = vmatpush1.msra.mxu0 %v160
    %5979 = vmatprep.subr.mxu0 0.0
    %5980 = vmatpush1.msra.mxu0 %v161
    %5981 = vmatprep.subr.mxu0 0.0
    %5982 = vmatpush1.msra.mxu0 %v162
    %5983 = vmatprep.subr.mxu0 0.0
    %5984 = vmatpush1.msra.mxu0 %v163
    %5985 = vmatprep.subr.mxu0 0.0
    %5986 = vmatpush1.msra.mxu0 %v164
    %5987 = vmatprep.subr.mxu0 0.0
    %5988 = vmatpush1.msra.mxu0 %v165
    %5989 = vmatprep.subr.mxu0 0.0
    %5990 = vmatpush1.msra.mxu0 %v166
    %5991 = vmatprep.mubr.f32.mxu0 %v5847
    %5992 = vmatmul.mubr.f32.gmra.mrb[0].mxu0 %v5843
    %v5993 = vpop.f32.mrb[0].mxu0
    %v5994 = vadd.f32 %v5924, %v5993
    %v5995 = vpop.f32.mrb[0].mxu0
    %5996 = vdwg.mxu0
    %5997 = vmatprep.subr.mxu0 0.0
    %5998 = vmatpush1.msra.mxu0 %v167
    %5999 = vmatprep.subr.mxu0 0.0
    %6000 = vmatpush1.msra.mxu0 %v168
    %6001 = vmatprep.subr.mxu0 0.0
    %6002 = vmatpush1.msra.mxu0 %v169
    %6003 = vmatprep.subr.mxu0 0.0
    %6004 = vmatpush1.msra.mxu0 %v170
    %6005 = vmatprep.subr.mxu0 0.0
    %6006 = vmatpush1.msra.mxu0 %v171
    %6007 = vmatprep.subr.mxu0 0.0
    %6008 = vmatpush1.msra.mxu0 %v172
    %6009 = vmatprep.subr.mxu0 0.0
    %6010 = vmatpush1.msra.mxu0 %v173
    %6011 = vmatprep.subr.mxu0 0.0
    %6012 = vmatpush1.msra.mxu0 %v174
    %6013 = vmatprep.subr.mxu0 0.0
    %6014 = vmatpush1.msra.mxu0 %v175
    %6015 = vmatprep.subr.mxu0 0.0
    %6016 = vmatpush1.msra.mxu0 %v176
    %6017 = vmatprep.subr.mxu0 0.0
    %6018 = vmatpush1.msra.mxu0 %v177
    %6019 = vmatprep.subr.mxu0 0.0
    %6020 = vmatpush1.msra.mxu0 %v178
    %6021 = vmatprep.subr.mxu0 0.0
    %6022 = vmatpush1.msra.mxu0 %v179
    %6023 = vmatprep.subr.mxu0 0.0
    %6024 = vmatpush1.msra.mxu0 %v180
    %6025 = vmatprep.subr.mxu0 0.0
    %6026 = vmatpush1.msra.mxu0 %v181
    %6027 = vmatprep.subr.mxu0 0.0
    %6028 = vmatpush1.msra.mxu0 %v182
    %6029 = vmatprep.subr.mxu0 0.0
    %6030 = vmatpush1.msra.mxu0 0.0
    %6031 = vmatprep.subr.mxu0 0.0
    %6032 = vmatpush1.msra.mxu0 0.0
    %6033 = vmatprep.subr.mxu0 0.0
    %6034 = vmatpush1.msra.mxu0 0.0
    %6035 = vmatprep.subr.mxu0 0.0
    %6036 = vmatpush1.msra.mxu0 0.0
    %6037 = vmatprep.subr.mxu0 0.0
    %6038 = vmatpush1.msra.mxu0 0.0
    %6039 = vmatprep.subr.mxu0 0.0
    %6040 = vmatpush1.msra.mxu0 0.0
    %6041 = vmatprep.subr.mxu0 0.0
    %6042 = vmatpush1.msra.mxu0 0.0
    %6043 = vmatprep.subr.mxu0 0.0
    %6044 = vmatpush1.msra.mxu0 0.0
    %6045 = vmatprep.subr.mxu0 0.0
    %6046 = vmatpush1.msra.mxu0 0.0
    %6047 = vmatprep.subr.mxu0 0.0
    %6048 = vmatpush1.msra.mxu0 0.0
    %6049 = vmatprep.subr.mxu0 0.0
    %6050 = vmatpush1.msra.mxu0 0.0
    %6051 = vmatprep.subr.mxu0 0.0
    %6052 = vmatpush1.msra.mxu0 0.0
    %6053 = vmatprep.subr.mxu0 0.0
    %6054 = vmatpush1.msra.mxu0 0.0
    %6055 = vmatprep.subr.mxu0 0.0
    %6056 = vmatpush1.msra.mxu0 0.0
    %6057 = vmatprep.subr.mxu0 0.0
    %6058 = vmatpush1.msra.mxu0 0.0
    %6059 = vmatprep.subr.mxu0 0.0
    %6060 = vmatpush1.msra.mxu0 0.0
    %6061 = vmatprep.mubr.f32.mxu0 0.0
    %6062 = vmatmul.mubr.f32.gmra.mrb[0].mxu0 %v5851
    %v6063 = vpop.f32.mrb[0].mxu0
    %v6064 = vadd.f32 %v5994, %v6063
    %v6065 = vpop.f32.mrb[0].mxu0
    %6066 = vdwg.mxu0
    %6067 = vmatprep.subr.mxu0 0.0
    %6068 = vmatpush1.msra.mxu0 %v183
    %6069 = vmatprep.subr.mxu0 0.0
    %6070 = vmatpush1.msra.mxu0 %v184
    %6071 = vmatprep.subr.mxu0 0.0
    %6072 = vmatpush1.msra.mxu0 %v185
    %6073 = vmatprep.subr.mxu0 0.0
    %6074 = vmatpush1.msra.mxu0 %v186
    %6075 = vmatprep.subr.mxu0 0.0
    %6076 = vmatpush1.msra.mxu0 0.0
    %6077 = vmatprep.subr.mxu0 0.0
    %6078 = vmatpush1.msra.mxu0 0.0
    %6079 = vmatprep.subr.mxu0 0.0
    %6080 = vmatpush1.msra.mxu0 0.0
    %6081 = vmatprep.subr.mxu0 0.0
    %6082 = vmatpush1.msra.mxu0 0.0
    %6083 = vmatprep.subr.mxu0 0.0
    %6084 = vmatpush1.msra.mxu0 0.0
    %6085 = vmatprep.subr.mxu0 0.0
    %6086 = vmatpush1.msra.mxu0 0.0
    %6087 = vmatprep.subr.mxu0 0.0
    %6088 = vmatpush1.msra.mxu0 0.0
    %6089 = vmatprep.subr.mxu0 0.0
    %6090 = vmatpush1.msra.mxu0 0.0
    %6091 = vmatprep.subr.mxu0 0.0
    %6092 = vmatpush1.msra.mxu0 0.0
    %6093 = vmatprep.subr.mxu0 0.0
    %6094 = vmatpush1.msra.mxu0 0.0
    %6095 = vmatprep.subr.mxu0 0.0
    %6096 = vmatpush1.msra.mxu0 0.0
    %6097 = vmatprep.subr.mxu0 0.0
    %6098 = vmatpush1.msra.mxu0 0.0
    %6099 = vmatprep.subr.mxu0 0.0
    %6100 = vmatpush1.msra.mxu0 0.0
    %6101 = vmatprep.subr.mxu0 0.0
    %6102 = vmatpush1.msra.mxu0 0.0
    %6103 = vmatprep.subr.mxu0 0.0
    %6104 = vmatpush1.msra.mxu0 0.0
    %6105 = vmatprep.subr.mxu0 0.0
    %6106 = vmatpush1.msra.mxu0 0.0
    %6107 = vmatprep.subr.mxu0 0.0
    %6108 = vmatpush1.msra.mxu0 0.0
    %6109 = vmatprep.subr.mxu0 0.0
    %6110 = vmatpush1.msra.mxu0 0.0
    %6111 = vmatprep.subr.mxu0 0.0
    %6112 = vmatpush1.msra.mxu0 0.0
    %6113 = vmatprep.subr.mxu0 0.0
    %6114 = vmatpush1.msra.mxu0 0.0
    %6115 = vmatprep.subr.mxu0 0.0
    %6116 = vmatpush1.msra.mxu0 0.0
    %6117 = vmatprep.subr.mxu0 0.0
    %6118 = vmatpush1.msra.mxu0 0.0
    %6119 = vmatprep.subr.mxu0 0.0
    %6120 = vmatpush1.msra.mxu0 0.0
    %6121 = vmatprep.subr.mxu0 0.0
    %6122 = vmatpush1.msra.mxu0 0.0
    %6123 = vmatprep.subr.mxu0 0.0
    %6124 = vmatpush1.msra.mxu0 0.0
    %6125 = vmatprep.subr.mxu0 0.0
    %6126 = vmatpush1.msra.mxu0 0.0
    %6127 = vmatprep.subr.mxu0 0.0
    %6128 = vmatpush1.msra.mxu0 0.0
    %6129 = vmatprep.subr.mxu0 0.0
    %6130 = vmatpush1.msra.mxu0 0.0
    %6131 = vmatprep.mubr.f32.mxu0 0.0
    %6132 = vmatmul.mubr.f32.gmra.mrb[0].mxu0 %v5600
    %v6133 = vpop.f32.mrb[0].mxu0
    %v6134 = vadd.f32 0.0, %v6133
    %v6135 = vpop.f32.mrb[0].mxu0
    %6136 = vdwg.mxu0
    %v6137 = vadd.f32 %v6064, %v6134
    %v6138 = vxor.u32 %v6137, 2147483648
    %v6139 = vmul.f32 %v6138, 1.442695
    %v6140 = vpow.pop %v6139
    %v6141 = vadd.f32 %v6140, 1.0
    %v6142 = vrcp.pop %v6141
    %v6143 = vmul.f32 1.0, %v6142
    %v6144 = vtanh.pop %v6137
    %v6145 = vmul.f32 %v6143, %v5383
    %6147 = vrot.lane.b32.xlu0 %v6144, 64
    %v6148 = vpop.permute.xlu0 %6147
    %v6150 = vmul.f32 %v6143, %v6148
    %6152 = vrot.lane.b32.xlu0 %v6150, 32
    %v6153 = vpop.permute.xlu0 %6152
    %v6155 = vadd.f32 %v6145, %v6153
    %v6156 = vtanh.pop %v6155
    %6158 = vrot.lane.b32.xlu0 %v6156, 64
    %v6159 = vpop.permute.xlu0 %6158
    %v6161 = vmul.f32 %v6143, %v6159
    %v6164 = vunpack.c.l.s4 1966171168
    %v6165 = vunpack.c.0.s8 %v6164
    %v6166 = vlaneseq
    %v6167 = vshrl.u32 %v6166, 7
    %v6168 = vsub.s32 %v6165, %v6167
    %v6169 = vrot.slane %v6161, %v6168
    %v6171 = vunpack.c.l.s4 1966171168
    %v6172 = vunpack.c.0.s8 %v6171
    %v6173 = vlaneseq
    %v6174 = vshrl.u32 %v6173, 7
    %v6175 = vsub.s32 %v6172, %v6174
    %v6176 = vrot.slane %v6169, %v6175
    %6177 = vrot.lane.b32.xlu0 %v6176, 32
    %v6178 = vpop.permute.xlu0 %6177
    %6180 = vst.msk [vmem:[#allocation5] sm:$0x1] %vm1947, %v6178
    %6181 = vst.msk [vmem:[#allocation5 + $0x1] sm:$0x1] %vm1947, %v5808
    %6182 = vst.msk [vmem:[#allocation5 + $0x2] sm:$0x3] %vm1943, %v5591
    %v6183 = vld [vmem:[#allocation5] sm:$0xf]
    %v6185 = vlaneseq
    %v6186 = vshrl.u32 %v6185, 7
    %v6187 = vsub.s32 0, %v6186
    %v6188 = vrot.slane %v6183, %v6187
    %v6189 = vlaneseq
    %v6190 = vshrl.u32 %v6189, 7
    %v6191 = vsub.s32 1, %v6190
    %v6192 = vrot.slane %v6183, %v6191
    %v6193 = vlaneseq
    %v6194 = vshrl.u32 %v6193, 7
    %v6195 = vsub.s32 2, %v6194
    %v6196 = vrot.slane %v6183, %v6195
    %v6197 = vlaneseq
    %v6198 = vshrl.u32 %v6197, 7
    %v6199 = vsub.s32 3, %v6198
    %v6200 = vrot.slane %v6183, %v6199
    %6205 = vmatprep.subr.mxu0 %v189
    %6206 = vmatpush1.msra.mxu0 %v188
    %6207 = vmatprep.subr.mxu0 %v191
    %6208 = vmatpush1.msra.mxu0 %v190
    %6209 = vmatprep.subr.mxu0 %v193
    %6210 = vmatpush1.msra.mxu0 %v192
    %6211 = vmatprep.subr.mxu0 %v195
    %6212 = vmatpush1.msra.mxu0 %v194
    %6213 = vmatprep.subr.mxu0 %v197
    %6214 = vmatpush1.msra.mxu0 %v196
    %6215 = vmatprep.subr.mxu0 %v199
    %6216 = vmatpush1.msra.mxu0 %v198
    %6217 = vmatprep.subr.mxu0 %v201
    %6218 = vmatpush1.msra.mxu0 %v200
    %6219 = vmatprep.subr.mxu0 %v203
    %6220 = vmatpush1.msra.mxu0 %v202
    %6221 = vmatprep.subr.mxu0 %v205
    %6222 = vmatpush1.msra.mxu0 %v204
    %6223 = vmatprep.subr.mxu0 %v207
    %6224 = vmatpush1.msra.mxu0 %v206
    %6225 = vmatprep.subr.mxu0 %v209
    %6226 = vmatpush1.msra.mxu0 %v208
    %6227 = vmatprep.subr.mxu0 %v211
    %6228 = vmatpush1.msra.mxu0 %v210
    %6229 = vmatprep.subr.mxu0 %v213
    %6230 = vmatpush1.msra.mxu0 %v212
    %6231 = vmatprep.subr.mxu0 %v215
    %6232 = vmatpush1.msra.mxu0 %v214
    %6233 = vmatprep.subr.mxu0 %v217
    %6234 = vmatpush1.msra.mxu0 %v216
    %6235 = vmatprep.subr.mxu0 %v219
    %6236 = vmatpush1.msra.mxu0 %v218
    %6237 = vmatprep.subr.mxu0 %v221
    %6238 = vmatpush1.msra.mxu0 %v220
    %6239 = vmatprep.subr.mxu0 %v223
    %6240 = vmatpush1.msra.mxu0 %v222
    %6241 = vmatprep.subr.mxu0 %v225
    %6242 = vmatpush1.msra.mxu0 %v224
    %6243 = vmatprep.subr.mxu0 %v227
    %6244 = vmatpush1.msra.mxu0 %v226
    %6245 = vmatprep.subr.mxu0 %v229
    %6246 = vmatpush1.msra.mxu0 %v228
    %6247 = vmatprep.subr.mxu0 %v231
    %6248 = vmatpush1.msra.mxu0 %v230
    %6249 = vmatprep.subr.mxu0 %v233
    %6250 = vmatpush1.msra.mxu0 %v232
    %6251 = vmatprep.subr.mxu0 %v235
    %6252 = vmatpush1.msra.mxu0 %v234
    %6253 = vmatprep.subr.mxu0 %v237
    %6254 = vmatpush1.msra.mxu0 %v236
    %6255 = vmatprep.subr.mxu0 %v239
    %6256 = vmatpush1.msra.mxu0 %v238
    %6257 = vmatprep.subr.mxu0 %v241
    %6258 = vmatpush1.msra.mxu0 %v240
    %6259 = vmatprep.subr.mxu0 %v243
    %6260 = vmatpush1.msra.mxu0 %v242
    %6261 = vmatprep.subr.mxu0 %v245
    %6262 = vmatpush1.msra.mxu0 %v244
    %6263 = vmatprep.subr.mxu0 %v247
    %6264 = vmatpush1.msra.mxu0 %v246
    %6265 = vmatprep.subr.mxu0 %v249
    %6266 = vmatpush1.msra.mxu0 %v248
    %6267 = vmatprep.subr.mxu0 %v251
    %6268 = vmatpush1.msra.mxu0 %v250
    %6269 = vmatprep.mubr.f32.mxu0 %v6192
    %6270 = vmatmul.mubr.f32.gmra.mrb[0].mxu0 %v6188
    %v6271 = vpop.f32.mrb[0].mxu0
    %v6272 = vadd.f32 %v2328, %v6271
    %v6273 = vpop.f32.mrb[0].mxu0
    %v6274 = vadd.f32 %v2332, %v6273
    %6275 = vdwg.mxu0
    %6276 = vmatprep.subr.mxu0 %v253
    %6277 = vmatpush1.msra.mxu0 %v252
    %6278 = vmatprep.subr.mxu0 %v255
    %6279 = vmatpush1.msra.mxu0 %v254
    %6280 = vmatprep.subr.mxu0 %v257
    %6281 = vmatpush1.msra.mxu0 %v256
    %6282 = vmatprep.subr.mxu0 %v259
    %6283 = vmatpush1.msra.mxu0 %v258
    %6284 = vmatprep.subr.mxu0 %v261
    %6285 = vmatpush1.msra.mxu0 %v260
    %6286 = vmatprep.subr.mxu0 %v263
    %6287 = vmatpush1.msra.mxu0 %v262
    %6288 = vmatprep.subr.mxu0 %v265
    %6289 = vmatpush1.msra.mxu0 %v264
    %6290 = vmatprep.subr.mxu0 %v267
    %6291 = vmatpush1.msra.mxu0 %v266
    %6292 = vmatprep.subr.mxu0 %v269
    %6293 = vmatpush1.msra.mxu0 %v268
    %6294 = vmatprep.subr.mxu0 %v271
    %6295 = vmatpush1.msra.mxu0 %v270
    %6296 = vmatprep.subr.mxu0 %v273
    %6297 = vmatpush1.msra.mxu0 %v272
    %6298 = vmatprep.subr.mxu0 %v275
    %6299 = vmatpush1.msra.mxu0 %v274
    %6300 = vmatprep.subr.mxu0 %v277
    %6301 = vmatpush1.msra.mxu0 %v276
    %6302 = vmatprep.subr.mxu0 %v279
    %6303 = vmatpush1.msra.mxu0 %v278
    %6304 = vmatprep.subr.mxu0 %v281
    %6305 = vmatpush1.msra.mxu0 %v280
    %6306 = vmatprep.subr.mxu0 %v283
    %6307 = vmatpush1.msra.mxu0 %v282
    %6308 = vmatprep.subr.mxu0 %v285
    %6309 = vmatpush1.msra.mxu0 %v284
    %6310 = vmatprep.subr.mxu0 %v287
    %6311 = vmatpush1.msra.mxu0 %v286
    %6312 = vmatprep.subr.mxu0 %v289
    %6313 = vmatpush1.msra.mxu0 %v288
    %6314 = vmatprep.subr.mxu0 %v291
    %6315 = vmatpush1.msra.mxu0 %v290
    %6316 = vmatprep.subr.mxu0 %v293
    %6317 = vmatpush1.msra.mxu0 %v292
    %6318 = vmatprep.subr.mxu0 %v295
    %6319 = vmatpush1.msra.mxu0 %v294
    %6320 = vmatprep.subr.mxu0 %v297
    %6321 = vmatpush1.msra.mxu0 %v296
    %6322 = vmatprep.subr.mxu0 %v299
    %6323 = vmatpush1.msra.mxu0 %v298
    %6324 = vmatprep.subr.mxu0 %v301
    %6325 = vmatpush1.msra.mxu0 %v300
    %6326 = vmatprep.subr.mxu0 %v303
    %6327 = vmatpush1.msra.mxu0 %v302
    %6328 = vmatprep.subr.mxu0 %v305
    %6329 = vmatpush1.msra.mxu0 %v304
    %6330 = vmatprep.subr.mxu0 %v307
    %6331 = vmatpush1.msra.mxu0 %v306
    %6332 = vmatprep.subr.mxu0 %v309
    %6333 = vmatpush1.msra.mxu0 %v308
    %6334 = vmatprep.subr.mxu0 %v311
    %6335 = vmatpush1.msra.mxu0 %v310
    %6336 = vmatprep.subr.mxu0 %v313
    %6337 = vmatpush1.msra.mxu0 %v312
    %6338 = vmatprep.subr.mxu0 %v315
    %6339 = vmatpush1.msra.mxu0 %v314
    %6340 = vmatprep.mubr.f32.mxu0 %v6200
    %6341 = vmatmul.mubr.f32.gmra.mrb[0].mxu0 %v6196
    %v6342 = vpop.f32.mrb[0].mxu0
    %v6343 = vadd.f32 %v6272, %v6342
    %v6344 = vpop.f32.mrb[0].mxu0
    %v6345 = vadd.f32 %v6274, %v6344
    %6346 = vdwg.mxu0
    %v6349 = vcombine.low %v6343, %v6345
    %v6351 = vunpack.c.l.s4 1966171168
    %v6352 = vunpack.c.0.s8 %v6351
    %v6353 = vlaneseq
    %v6354 = vshrl.u32 %v6353, 7
    %v6355 = vsub.s32 %v6352, %v6354
    %v6356 = vrot.slane %v6349, %v6355
    %v6358 = vunpack.c.l.s4 1966171168
    %v6359 = vunpack.c.0.s8 %v6358
    %v6360 = vlaneseq
    %v6361 = vshrl.u32 %v6360, 7
    %v6362 = vsub.s32 %v6359, %v6361
    %v6363 = vrot.slane %v6356, %v6362
    %s6365 = scalar_lea.vmem [#allocation12], 5
    %6366 = vst.msk [vmem:[%s6365] ss:$8 sm:$0x3] %vm1943, %v6363
    %6367 = vst.msk [vmem:[%s6365] ss:$8 sm:$0x0] %vm1943, %v6363
    %v6368 = vsub.f32 %v6343, %v5571
    %v6369 = vsub.f32 %v6345, %v5573
    %6370 = vrot.lane.b32.xlu0 %v6161, 32
    %v6371 = vpop.permute.xlu0 %6370
    %v6372 = vsel %vm400, %v6371, 0
    %6374 = vmatprep.subr.mxu0 0.0
    %6375 = vmatpush1.msra.mxu0 %v95
    %6376 = vmatprep.subr.mxu0 0.0
    %6377 = vmatpush1.msra.mxu0 %v96
    %6378 = vmatprep.subr.mxu0 0.0
    %6379 = vmatpush1.msra.mxu0 %v97
    %6380 = vmatprep.subr.mxu0 0.0
    %6381 = vmatpush1.msra.mxu0 %v98
    %6382 = vmatprep.subr.mxu0 0.0
    %6383 = vmatpush1.msra.mxu0 0.0
    %6384 = vmatprep.subr.mxu0 0.0
    %6385 = vmatpush1.msra.mxu0 0.0
    %6386 = vmatprep.subr.mxu0 0.0
    %6387 = vmatpush1.msra.mxu0 0.0
    %6388 = vmatprep.subr.mxu0 0.0
    %6389 = vmatpush1.msra.mxu0 0.0
    %6390 = vmatprep.subr.mxu0 0.0
    %6391 = vmatpush1.msra.mxu0 0.0
    %6392 = vmatprep.subr.mxu0 0.0
    %6393 = vmatpush1.msra.mxu0 0.0
    %6394 = vmatprep.subr.mxu0 0.0
    %6395 = vmatpush1.msra.mxu0 0.0
    %6396 = vmatprep.subr.mxu0 0.0
    %6397 = vmatpush1.msra.mxu0 0.0
    %6398 = vmatprep.subr.mxu0 0.0
    %6399 = vmatpush1.msra.mxu0 0.0
    %6400 = vmatprep.subr.mxu0 0.0
    %6401 = vmatpush1.msra.mxu0 0.0
    %6402 = vmatprep.subr.mxu0 0.0
    %6403 = vmatpush1.msra.mxu0 0.0
    %6404 = vmatprep.subr.mxu0 0.0
    %6405 = vmatpush1.msra.mxu0 0.0
    %6406 = vmatprep.subr.mxu0 0.0
    %6407 = vmatpush1.msra.mxu0 0.0
    %6408 = vmatprep.subr.mxu0 0.0
    %6409 = vmatpush1.msra.mxu0 0.0
    %6410 = vmatprep.subr.mxu0 0.0
    %6411 = vmatpush1.msra.mxu0 0.0
    %6412 = vmatprep.subr.mxu0 0.0
    %6413 = vmatpush1.msra.mxu0 0.0
    %6414 = vmatprep.subr.mxu0 0.0
    %6415 = vmatpush1.msra.mxu0 0.0
    %6416 = vmatprep.subr.mxu0 0.0
    %6417 = vmatpush1.msra.mxu0 0.0
    %6418 = vmatprep.subr.mxu0 0.0
    %6419 = vmatpush1.msra.mxu0 0.0
    %6420 = vmatprep.subr.mxu0 0.0
    %6421 = vmatpush1.msra.mxu0 0.0
    %6422 = vmatprep.subr.mxu0 0.0
    %6423 = vmatpush1.msra.mxu0 0.0
    %6424 = vmatprep.subr.mxu0 0.0
    %6425 = vmatpush1.msra.mxu0 0.0
    %6426 = vmatprep.subr.mxu0 0.0
    %6427 = vmatpush1.msra.mxu0 0.0
    %6428 = vmatprep.subr.mxu0 0.0
    %6429 = vmatpush1.msra.mxu0 0.0
    %6430 = vmatprep.subr.mxu0 0.0
    %6431 = vmatpush1.msra.mxu0 0.0
    %6432 = vmatprep.subr.mxu0 0.0
    %6433 = vmatpush1.msra.mxu0 0.0
    %6434 = vmatprep.subr.mxu0 0.0
    %6435 = vmatpush1.msra.mxu0 0.0
    %6436 = vmatprep.subr.mxu0 0.0
    %6437 = vmatpush1.msra.mxu0 0.0
    %6438 = vmatprep.mubr.f32.mxu0 0.0
    %6439 = vmatmul.mubr.f32.gmra.mrb[0].mxu0 %v6372
    %v6440 = vpop.f32.mrb[0].mxu0
    %v6441 = vadd.f32 0.0, %v6440
    %v6442 = vpop.f32.mrb[0].mxu0
    %6443 = vdwg.mxu0
    %v6444 = vlaneseq
    %v6445 = vshrl.u32 %v6444, 7
    %v6446 = vsub.s32 0, %v6445
    %v6447 = vrot.slane %v6441, %v6446
    %v6448 = vadd.f32 %v1713, %v6447
    %v6449 = vadd.f32 %v1718, %v6447
    %v6450 = vtanh.pop %v6448
    %v6451 = vtanh.pop %v6449
    %v6453 = vsel %vm400, %v6450, 0
    %v6456 = vsel %vm400, %v6451, 0
    %6458 = vmatprep.subr.mxu0 0.0
    %6459 = vmatpush1.msra.mxu0 %v99
    %6460 = vmatprep.subr.mxu0 0.0
    %6461 = vmatpush1.msra.mxu0 %v100
    %6462 = vmatprep.subr.mxu0 0.0
    %6463 = vmatpush1.msra.mxu0 %v101
    %6464 = vmatprep.subr.mxu0 0.0
    %6465 = vmatpush1.msra.mxu0 %v102
    %6466 = vmatprep.subr.mxu0 0.0
    %6467 = vmatpush1.msra.mxu0 0.0
    %6468 = vmatprep.subr.mxu0 0.0
    %6469 = vmatpush1.msra.mxu0 0.0
    %6470 = vmatprep.subr.mxu0 0.0
    %6471 = vmatpush1.msra.mxu0 0.0
    %6472 = vmatprep.subr.mxu0 0.0
    %6473 = vmatpush1.msra.mxu0 0.0
    %6474 = vmatprep.subr.mxu0 0.0
    %6475 = vmatpush1.msra.mxu0 0.0
    %6476 = vmatprep.subr.mxu0 0.0
    %6477 = vmatpush1.msra.mxu0 0.0
    %6478 = vmatprep.subr.mxu0 0.0
    %6479 = vmatpush1.msra.mxu0 0.0
    %6480 = vmatprep.subr.mxu0 0.0
    %6481 = vmatpush1.msra.mxu0 0.0
    %6482 = vmatprep.subr.mxu0 0.0
    %6483 = vmatpush1.msra.mxu0 0.0
    %6484 = vmatprep.subr.mxu0 0.0
    %6485 = vmatpush1.msra.mxu0 0.0
    %6486 = vmatprep.subr.mxu0 0.0
    %6487 = vmatpush1.msra.mxu0 0.0
    %6488 = vmatprep.subr.mxu0 0.0
    %6489 = vmatpush1.msra.mxu0 0.0
    %6490 = vmatprep.subr.mxu0 0.0
    %6491 = vmatpush1.msra.mxu0 0.0
    %6492 = vmatprep.subr.mxu0 0.0
    %6493 = vmatpush1.msra.mxu0 0.0
    %6494 = vmatprep.subr.mxu0 0.0
    %6495 = vmatpush1.msra.mxu0 0.0
    %6496 = vmatprep.subr.mxu0 0.0
    %6497 = vmatpush1.msra.mxu0 0.0
    %6498 = vmatprep.subr.mxu0 0.0
    %6499 = vmatpush1.msra.mxu0 0.0
    %6500 = vmatprep.subr.mxu0 0.0
    %6501 = vmatpush1.msra.mxu0 0.0
    %6502 = vmatprep.subr.mxu0 0.0
    %6503 = vmatpush1.msra.mxu0 0.0
    %6504 = vmatprep.subr.mxu0 0.0
    %6505 = vmatpush1.msra.mxu0 0.0
    %6506 = vmatprep.subr.mxu0 0.0
    %6507 = vmatpush1.msra.mxu0 0.0
    %6508 = vmatprep.subr.mxu0 0.0
    %6509 = vmatpush1.msra.mxu0 0.0
    %6510 = vmatprep.subr.mxu0 0.0
    %6511 = vmatpush1.msra.mxu0 0.0
    %6512 = vmatprep.subr.mxu0 0.0
    %6513 = vmatpush1.msra.mxu0 0.0
    %6514 = vmatprep.subr.mxu0 0.0
    %6515 = vmatpush1.msra.mxu0 0.0
    %6516 = vmatprep.subr.mxu0 0.0
    %6517 = vmatpush1.msra.mxu0 0.0
    %6518 = vmatprep.subr.mxu0 0.0
    %6519 = vmatpush1.msra.mxu0 0.0
    %6520 = vmatprep.subr.mxu0 0.0
    %6521 = vmatpush1.msra.mxu0 0.0
    %6522 = vmatprep.mubr.f32.mxu0 0.0
    %6523 = vmatmul.mubr.f32.gmra.mrb[0].mxu0 %v6453
    %v6524 = vpop.f32.mrb[0].mxu0
    %v6525 = vadd.f32 0.0, %v6524
    %v6526 = vpop.f32.mrb[0].mxu0
    %6527 = vmatprep.mubr.f32.mxu0 0.0
    %6528 = vmatmul.mubr.f32.gmra.mrb[0].mxu0 %v6456
    %v6529 = vpop.f32.mrb[0].mxu0
    %v6530 = vadd.f32 0.0, %v6529
    %v6531 = vpop.f32.mrb[0].mxu0
    %6532 = vdwg.mxu0
    %v6533 = vsel %vm1891, %v6525, -inf
    %v6534 = vsel %vm1893, %v6530, -inf
    %v6535 = vmax.f32 %v6533, %v6534
    %v6536 = vrot.slane %v6535, 4
    %v6537 = vmax.f32 %v6535, %v6536
    %v6538 = vrot.slane %v6537, 2
    %v6539 = vmax.f32 %v6537, %v6538
    %v6540 = vrot.slane %v6539, 1
    %v6541 = vmax.f32 %v6539, %v6540
    %v6542 = vsub.f32 %v6525, %v6541
    %v6543 = vsub.f32 %v6530, %v6541
    %v6544 = vmul.f32 %v6542, 1.442695
    %v6545 = vpow.pop %v6544
    %v6546 = vmul.f32 %v6543, 1.442695
    %v6547 = vpow.pop %v6546
    %v6548 = vsel %vm1891, %v6545, 0.0
    %v6549 = vsel %vm1893, %v6547, 0.0
    %v6550 = vadd.f32 %v6548, %v6549
    %v6551 = vrot.slane %v6550, 4
    %v6552 = vadd.f32 %v6550, %v6551
    %v6553 = vrot.slane %v6552, 2
    %v6554 = vadd.f32 %v6552, %v6553
    %v6555 = vrot.slane %v6554, 1
    %v6556 = vadd.f32 %v6554, %v6555
    %v6557 = vrcp.pop %v6556
    %v6558 = vmul.f32 %v6545, %v6557
    %v6559 = vmul.f32 %v6547, %v6557
    %6561 = vset.pattern.permute.xlu0 0
    %6562 = vperm.xlu0 %6561, %v6558
    %v6563 = vpop.permute.xlu0 %6562
    %6566 = vset.pattern.permute.xlu0 0
    %6567 = vperm.xlu0 %6566, %v6559
    %v6568 = vpop.permute.xlu0 %6567
    %v6570 = vmul.f32 %v6563, %v1638
    %v6571 = vmul.f32 %v6568, %v1639
    %v6572 = vsel %vm400, %v6570, 0.0
    %v6573 = vsel %vm1933, %v6571, 0.0
    %v6574 = vadd.f32 %v6572, %v6573
    %v6575 = vrot.slane %v6574, 4
    %v6576 = vadd.f32 %v6574, %v6575
    %v6577 = vrot.slane %v6576, 2
    %v6578 = vadd.f32 %v6576, %v6577
    %v6579 = vrot.slane %v6578, 1
    %v6580 = vadd.f32 %v6578, %v6579
    %6581 = vst.msk [vmem:[#allocation4] sm:$0x3] %vm1943, %v6363
    %v6584 = vcombine.low %v6368, %v6369
    %v6586 = vunpack.c.l.s4 1966171168
    %v6587 = vunpack.c.0.s8 %v6586
    %v6588 = vlaneseq
    %v6589 = vshrl.u32 %v6588, 7
    %v6590 = vsub.s32 %v6587, %v6589
    %v6591 = vrot.slane %v6584, %v6590
    %v6593 = vunpack.c.l.s4 1966171168
    %v6594 = vunpack.c.0.s8 %v6593
    %v6595 = vlaneseq
    %v6596 = vshrl.u32 %v6595, 7
    %v6597 = vsub.s32 %v6594, %v6596
    %v6598 = vrot.slane %v6591, %v6597
    %6600 = vst.msk [vmem:[#allocation4 + $0x2] sm:$0x3] %vm1943, %v6598
    %6601 = vst.msk [vmem:[#allocation4 + $0x4] sm:$0x1] %vm1947, %v6580
    %v6602 = vld [vmem:[#allocation4] sm:$0x1f]
    %v6604 = vlaneseq
    %v6605 = vshrl.u32 %v6604, 7
    %v6606 = vsub.s32 0, %v6605
    %v6607 = vrot.slane %v6602, %v6606
    %v6608 = vlaneseq
    %v6609 = vshrl.u32 %v6608, 7
    %v6610 = vsub.s32 1, %v6609
    %v6611 = vrot.slane %v6602, %v6610
    %v6612 = vlaneseq
    %v6613 = vshrl.u32 %v6612, 7
    %v6614 = vsub.s32 2, %v6613
    %v6615 = vrot.slane %v6602, %v6614
    %v6616 = vlaneseq
    %v6617 = vshrl.u32 %v6616, 7
    %v6618 = vsub.s32 3, %v6617
    %v6619 = vrot.slane %v6602, %v6618
    %v6620 = vlaneseq
    %v6621 = vshrl.u32 %v6620, 7
    %v6622 = vsub.s32 4, %v6621
    %v6623 = vrot.slane %v6602, %v6622
    %6629 = vmatprep.subr.mxu0 0.0
    %6630 = vmatpush1.msra.mxu0 %v103
    %6631 = vmatprep.subr.mxu0 0.0
    %6632 = vmatpush1.msra.mxu0 %v104
    %6633 = vmatprep.subr.mxu0 0.0
    %6634 = vmatpush1.msra.mxu0 %v105
    %6635 = vmatprep.subr.mxu0 0.0
    %6636 = vmatpush1.msra.mxu0 %v106
    %6637 = vmatprep.subr.mxu0 0.0
    %6638 = vmatpush1.msra.mxu0 %v107
    %6639 = vmatprep.subr.mxu0 0.0
    %6640 = vmatpush1.msra.mxu0 %v108
    %6641 = vmatprep.subr.mxu0 0.0
    %6642 = vmatpush1.msra.mxu0 %v109
    %6643 = vmatprep.subr.mxu0 0.0
    %6644 = vmatpush1.msra.mxu0 %v110
    %6645 = vmatprep.subr.mxu0 0.0
    %6646 = vmatpush1.msra.mxu0 %v111
    %6647 = vmatprep.subr.mxu0 0.0
    %6648 = vmatpush1.msra.mxu0 %v112
    %6649 = vmatprep.subr.mxu0 0.0
    %6650 = vmatpush1.msra.mxu0 %v113
    %6651 = vmatprep.subr.mxu0 0.0
    %6652 = vmatpush1.msra.mxu0 %v114
    %6653 = vmatprep.subr.mxu0 0.0
    %6654 = vmatpush1.msra.mxu0 %v115
    %6655 = vmatprep.subr.mxu0 0.0
    %6656 = vmatpush1.msra.mxu0 %v116
    %6657 = vmatprep.subr.mxu0 0.0
    %6658 = vmatpush1.msra.mxu0 %v117
    %6659 = vmatprep.subr.mxu0 0.0
    %6660 = vmatpush1.msra.mxu0 %v118
    %6661 = vmatprep.subr.mxu0 0.0
    %6662 = vmatpush1.msra.mxu0 %v119
    %6663 = vmatprep.subr.mxu0 0.0
    %6664 = vmatpush1.msra.mxu0 %v120
    %6665 = vmatprep.subr.mxu0 0.0
    %6666 = vmatpush1.msra.mxu0 %v121
    %6667 = vmatprep.subr.mxu0 0.0
    %6668 = vmatpush1.msra.mxu0 %v122
    %6669 = vmatprep.subr.mxu0 0.0
    %6670 = vmatpush1.msra.mxu0 %v123
    %6671 = vmatprep.subr.mxu0 0.0
    %6672 = vmatpush1.msra.mxu0 %v124
    %6673 = vmatprep.subr.mxu0 0.0
    %6674 = vmatpush1.msra.mxu0 %v125
    %6675 = vmatprep.subr.mxu0 0.0
    %6676 = vmatpush1.msra.mxu0 %v126
    %6677 = vmatprep.subr.mxu0 0.0
    %6678 = vmatpush1.msra.mxu0 %v127
    %6679 = vmatprep.subr.mxu0 0.0
    %6680 = vmatpush1.msra.mxu0 %v128
    %6681 = vmatprep.subr.mxu0 0.0
    %6682 = vmatpush1.msra.mxu0 %v129
    %6683 = vmatprep.subr.mxu0 0.0
    %6684 = vmatpush1.msra.mxu0 %v130
    %6685 = vmatprep.subr.mxu0 0.0
    %6686 = vmatpush1.msra.mxu0 %v131
    %6687 = vmatprep.subr.mxu0 0.0
    %6688 = vmatpush1.msra.mxu0 %v132
    %6689 = vmatprep.subr.mxu0 0.0
    %6690 = vmatpush1.msra.mxu0 %v133
    %6691 = vmatprep.subr.mxu0 0.0
    %6692 = vmatpush1.msra.mxu0 %v134
    %6693 = vmatprep.mubr.f32.mxu0 %v6611
    %6694 = vmatmul.mubr.f32.gmra.mrb[0].mxu0 %v6607
    %v6695 = vpop.f32.mrb[0].mxu0
    %v6696 = vadd.f32 %v187, %v6695
    %v6697 = vpop.f32.mrb[0].mxu0
    %6698 = vdwg.mxu0
    %6699 = vmatprep.subr.mxu0 0.0
    %6700 = vmatpush1.msra.mxu0 %v135
    %6701 = vmatprep.subr.mxu0 0.0
    %6702 = vmatpush1.msra.mxu0 %v136
    %6703 = vmatprep.subr.mxu0 0.0
    %6704 = vmatpush1.msra.mxu0 %v137
    %6705 = vmatprep.subr.mxu0 0.0
    %6706 = vmatpush1.msra.mxu0 %v138
    %6707 = vmatprep.subr.mxu0 0.0
    %6708 = vmatpush1.msra.mxu0 %v139
    %6709 = vmatprep.subr.mxu0 0.0
    %6710 = vmatpush1.msra.mxu0 %v140
    %6711 = vmatprep.subr.mxu0 0.0
    %6712 = vmatpush1.msra.mxu0 %v141
    %6713 = vmatprep.subr.mxu0 0.0
    %6714 = vmatpush1.msra.mxu0 %v142
    %6715 = vmatprep.subr.mxu0 0.0
    %6716 = vmatpush1.msra.mxu0 %v143
    %6717 = vmatprep.subr.mxu0 0.0
    %6718 = vmatpush1.msra.mxu0 %v144
    %6719 = vmatprep.subr.mxu0 0.0
    %6720 = vmatpush1.msra.mxu0 %v145
    %6721 = vmatprep.subr.mxu0 0.0
    %6722 = vmatpush1.msra.mxu0 %v146
    %6723 = vmatprep.subr.mxu0 0.0
    %6724 = vmatpush1.msra.mxu0 %v147
    %6725 = vmatprep.subr.mxu0 0.0
    %6726 = vmatpush1.msra.mxu0 %v148
    %6727 = vmatprep.subr.mxu0 0.0
    %6728 = vmatpush1.msra.mxu0 %v149
    %6729 = vmatprep.subr.mxu0 0.0
    %6730 = vmatpush1.msra.mxu0 %v150
    %6731 = vmatprep.subr.mxu0 0.0
    %6732 = vmatpush1.msra.mxu0 %v151
    %6733 = vmatprep.subr.mxu0 0.0
    %6734 = vmatpush1.msra.mxu0 %v152
    %6735 = vmatprep.subr.mxu0 0.0
    %6736 = vmatpush1.msra.mxu0 %v153
    %6737 = vmatprep.subr.mxu0 0.0
    %6738 = vmatpush1.msra.mxu0 %v154
    %6739 = vmatprep.subr.mxu0 0.0
    %6740 = vmatpush1.msra.mxu0 %v155
    %6741 = vmatprep.subr.mxu0 0.0
    %6742 = vmatpush1.msra.mxu0 %v156
    %6743 = vmatprep.subr.mxu0 0.0
    %6744 = vmatpush1.msra.mxu0 %v157
    %6745 = vmatprep.subr.mxu0 0.0
    %6746 = vmatpush1.msra.mxu0 %v158
    %6747 = vmatprep.subr.mxu0 0.0
    %6748 = vmatpush1.msra.mxu0 %v159
    %6749 = vmatprep.subr.mxu0 0.0
    %6750 = vmatpush1.msra.mxu0 %v160
    %6751 = vmatprep.subr.mxu0 0.0
    %6752 = vmatpush1.msra.mxu0 %v161
    %6753 = vmatprep.subr.mxu0 0.0
    %6754 = vmatpush1.msra.mxu0 %v162
    %6755 = vmatprep.subr.mxu0 0.0
    %6756 = vmatpush1.msra.mxu0 %v163
    %6757 = vmatprep.subr.mxu0 0.0
    %6758 = vmatpush1.msra.mxu0 %v164
    %6759 = vmatprep.subr.mxu0 0.0
    %6760 = vmatpush1.msra.mxu0 %v165
    %6761 = vmatprep.subr.mxu0 0.0
    %6762 = vmatpush1.msra.mxu0 %v166
    %6763 = vmatprep.mubr.f32.mxu0 %v6619
    %6764 = vmatmul.mubr.f32.gmra.mrb[0].mxu0 %v6615
    %v6765 = vpop.f32.mrb[0].mxu0
    %v6766 = vadd.f32 %v6696, %v6765
    %v6767 = vpop.f32.mrb[0].mxu0
    %6768 = vdwg.mxu0
    %6769 = vmatprep.subr.mxu0 0.0
    %6770 = vmatpush1.msra.mxu0 %v167
    %6771 = vmatprep.subr.mxu0 0.0
    %6772 = vmatpush1.msra.mxu0 %v168
    %6773 = vmatprep.subr.mxu0 0.0
    %6774 = vmatpush1.msra.mxu0 %v169
    %6775 = vmatprep.subr.mxu0 0.0
    %6776 = vmatpush1.msra.mxu0 %v170
    %6777 = vmatprep.subr.mxu0 0.0
    %6778 = vmatpush1.msra.mxu0 %v171
    %6779 = vmatprep.subr.mxu0 0.0
    %6780 = vmatpush1.msra.mxu0 %v172
    %6781 = vmatprep.subr.mxu0 0.0
    %6782 = vmatpush1.msra.mxu0 %v173
    %6783 = vmatprep.subr.mxu0 0.0
    %6784 = vmatpush1.msra.mxu0 %v174
    %6785 = vmatprep.subr.mxu0 0.0
    %6786 = vmatpush1.msra.mxu0 %v175
    %6787 = vmatprep.subr.mxu0 0.0
    %6788 = vmatpush1.msra.mxu0 %v176
    %6789 = vmatprep.subr.mxu0 0.0
    %6790 = vmatpush1.msra.mxu0 %v177
    %6791 = vmatprep.subr.mxu0 0.0
    %6792 = vmatpush1.msra.mxu0 %v178
    %6793 = vmatprep.subr.mxu0 0.0
    %6794 = vmatpush1.msra.mxu0 %v179
    %6795 = vmatprep.subr.mxu0 0.0
    %6796 = vmatpush1.msra.mxu0 %v180
    %6797 = vmatprep.subr.mxu0 0.0
    %6798 = vmatpush1.msra.mxu0 %v181
    %6799 = vmatprep.subr.mxu0 0.0
    %6800 = vmatpush1.msra.mxu0 %v182
    %6801 = vmatprep.subr.mxu0 0.0
    %6802 = vmatpush1.msra.mxu0 0.0
    %6803 = vmatprep.subr.mxu0 0.0
    %6804 = vmatpush1.msra.mxu0 0.0
    %6805 = vmatprep.subr.mxu0 0.0
    %6806 = vmatpush1.msra.mxu0 0.0
    %6807 = vmatprep.subr.mxu0 0.0
    %6808 = vmatpush1.msra.mxu0 0.0
    %6809 = vmatprep.subr.mxu0 0.0
    %6810 = vmatpush1.msra.mxu0 0.0
    %6811 = vmatprep.subr.mxu0 0.0
    %6812 = vmatpush1.msra.mxu0 0.0
    %6813 = vmatprep.subr.mxu0 0.0
    %6814 = vmatpush1.msra.mxu0 0.0
    %6815 = vmatprep.subr.mxu0 0.0
    %6816 = vmatpush1.msra.mxu0 0.0
    %6817 = vmatprep.subr.mxu0 0.0
    %6818 = vmatpush1.msra.mxu0 0.0
    %6819 = vmatprep.subr.mxu0 0.0
    %6820 = vmatpush1.msra.mxu0 0.0
    %6821 = vmatprep.subr.mxu0 0.0
    %6822 = vmatpush1.msra.mxu0 0.0
    %6823 = vmatprep.subr.mxu0 0.0
    %6824 = vmatpush1.msra.mxu0 0.0
    %6825 = vmatprep.subr.mxu0 0.0
    %6826 = vmatpush1.msra.mxu0 0.0
    %6827 = vmatprep.subr.mxu0 0.0
    %6828 = vmatpush1.msra.mxu0 0.0
    %6829 = vmatprep.subr.mxu0 0.0
    %6830 = vmatpush1.msra.mxu0 0.0
    %6831 = vmatprep.subr.mxu0 0.0
    %6832 = vmatpush1.msra.mxu0 0.0
    %6833 = vmatprep.mubr.f32.mxu0 0.0
    %6834 = vmatmul.mubr.f32.gmra.mrb[0].mxu0 %v6623
    %v6835 = vpop.f32.mrb[0].mxu0
    %v6836 = vadd.f32 %v6766, %v6835
    %v6837 = vpop.f32.mrb[0].mxu0
    %6838 = vdwg.mxu0
    %6839 = vmatprep.subr.mxu0 0.0
    %6840 = vmatpush1.msra.mxu0 %v183
    %6841 = vmatprep.subr.mxu0 0.0
    %6842 = vmatpush1.msra.mxu0 %v184
    %6843 = vmatprep.subr.mxu0 0.0
    %6844 = vmatpush1.msra.mxu0 %v185
    %6845 = vmatprep.subr.mxu0 0.0
    %6846 = vmatpush1.msra.mxu0 %v186
    %6847 = vmatprep.subr.mxu0 0.0
    %6848 = vmatpush1.msra.mxu0 0.0
    %6849 = vmatprep.subr.mxu0 0.0
    %6850 = vmatpush1.msra.mxu0 0.0
    %6851 = vmatprep.subr.mxu0 0.0
    %6852 = vmatpush1.msra.mxu0 0.0
    %6853 = vmatprep.subr.mxu0 0.0
    %6854 = vmatpush1.msra.mxu0 0.0
    %6855 = vmatprep.subr.mxu0 0.0
    %6856 = vmatpush1.msra.mxu0 0.0
    %6857 = vmatprep.subr.mxu0 0.0
    %6858 = vmatpush1.msra.mxu0 0.0
    %6859 = vmatprep.subr.mxu0 0.0
    %6860 = vmatpush1.msra.mxu0 0.0
    %6861 = vmatprep.subr.mxu0 0.0
    %6862 = vmatpush1.msra.mxu0 0.0
    %6863 = vmatprep.subr.mxu0 0.0
    %6864 = vmatpush1.msra.mxu0 0.0
    %6865 = vmatprep.subr.mxu0 0.0
    %6866 = vmatpush1.msra.mxu0 0.0
    %6867 = vmatprep.subr.mxu0 0.0
    %6868 = vmatpush1.msra.mxu0 0.0
    %6869 = vmatprep.subr.mxu0 0.0
    %6870 = vmatpush1.msra.mxu0 0.0
    %6871 = vmatprep.subr.mxu0 0.0
    %6872 = vmatpush1.msra.mxu0 0.0
    %6873 = vmatprep.subr.mxu0 0.0
    %6874 = vmatpush1.msra.mxu0 0.0
    %6875 = vmatprep.subr.mxu0 0.0
    %6876 = vmatpush1.msra.mxu0 0.0
    %6877 = vmatprep.subr.mxu0 0.0
    %6878 = vmatpush1.msra.mxu0 0.0
    %6879 = vmatprep.subr.mxu0 0.0
    %6880 = vmatpush1.msra.mxu0 0.0
    %6881 = vmatprep.subr.mxu0 0.0
    %6882 = vmatpush1.msra.mxu0 0.0
    %6883 = vmatprep.subr.mxu0 0.0
    %6884 = vmatpush1.msra.mxu0 0.0
    %6885 = vmatprep.subr.mxu0 0.0
    %6886 = vmatpush1.msra.mxu0 0.0
    %6887 = vmatprep.subr.mxu0 0.0
    %6888 = vmatpush1.msra.mxu0 0.0
    %6889 = vmatprep.subr.mxu0 0.0
    %6890 = vmatpush1.msra.mxu0 0.0
    %6891 = vmatprep.subr.mxu0 0.0
    %6892 = vmatpush1.msra.mxu0 0.0
    %6893 = vmatprep.subr.mxu0 0.0
    %6894 = vmatpush1.msra.mxu0 0.0
    %6895 = vmatprep.subr.mxu0 0.0
    %6896 = vmatpush1.msra.mxu0 0.0
    %6897 = vmatprep.subr.mxu0 0.0
    %6898 = vmatpush1.msra.mxu0 0.0
    %6899 = vmatprep.subr.mxu0 0.0
    %6900 = vmatpush1.msra.mxu0 0.0
    %6901 = vmatprep.subr.mxu0 0.0
    %6902 = vmatpush1.msra.mxu0 0.0
    %6903 = vmatprep.mubr.f32.mxu0 0.0
    %6904 = vmatmul.mubr.f32.gmra.mrb[0].mxu0 %v6372
    %v6905 = vpop.f32.mrb[0].mxu0
    %v6906 = vadd.f32 0.0, %v6905
    %v6907 = vpop.f32.mrb[0].mxu0
    %6908 = vdwg.mxu0
    %v6909 = vadd.f32 %v6836, %v6906
    %v6910 = vxor.u32 %v6909, 2147483648
    %v6911 = vmul.f32 %v6910, 1.442695
    %v6912 = vpow.pop %v6911
    %v6913 = vadd.f32 %v6912, 1.0
    %v6914 = vrcp.pop %v6913
    %v6915 = vmul.f32 1.0, %v6914
    %v6916 = vtanh.pop %v6909
    %v6917 = vmul.f32 %v6915, %v6155
    %6919 = vrot.lane.b32.xlu0 %v6916, 64
    %v6920 = vpop.permute.xlu0 %6919
    %v6922 = vmul.f32 %v6915, %v6920
    %6924 = vrot.lane.b32.xlu0 %v6922, 32
    %v6925 = vpop.permute.xlu0 %6924
    %v6927 = vadd.f32 %v6917, %v6925
    %v6928 = vtanh.pop %v6927
    %6930 = vrot.lane.b32.xlu0 %v6928, 64
    %v6931 = vpop.permute.xlu0 %6930
    %v6933 = vmul.f32 %v6915, %v6931
    %v6936 = vunpack.c.l.s4 1966171168
    %v6937 = vunpack.c.0.s8 %v6936
    %v6938 = vlaneseq
    %v6939 = vshrl.u32 %v6938, 7
    %v6940 = vsub.s32 %v6937, %v6939
    %v6941 = vrot.slane %v6933, %v6940
    %v6943 = vunpack.c.l.s4 1966171168
    %v6944 = vunpack.c.0.s8 %v6943
    %v6945 = vlaneseq
    %v6946 = vshrl.u32 %v6945, 7
    %v6947 = vsub.s32 %v6944, %v6946
    %v6948 = vrot.slane %v6941, %v6947
    %6949 = vrot.lane.b32.xlu0 %v6948, 32
    %v6950 = vpop.permute.xlu0 %6949
    %6952 = vst.msk [vmem:[#allocation5] sm:$0x1] %vm1947, %v6950
    %6953 = vst.msk [vmem:[#allocation5 + $0x1] sm:$0x1] %vm1947, %v6580
    %6954 = vst.msk [vmem:[#allocation5 + $0x2] sm:$0x3] %vm1943, %v6363
    %v6955 = vld [vmem:[#allocation5] sm:$0xf]
    %v6957 = vlaneseq
    %v6958 = vshrl.u32 %v6957, 7
    %v6959 = vsub.s32 0, %v6958
    %v6960 = vrot.slane %v6955, %v6959
    %v6961 = vlaneseq
    %v6962 = vshrl.u32 %v6961, 7
    %v6963 = vsub.s32 1, %v6962
    %v6964 = vrot.slane %v6955, %v6963
    %v6965 = vlaneseq
    %v6966 = vshrl.u32 %v6965, 7
    %v6967 = vsub.s32 2, %v6966
    %v6968 = vrot.slane %v6955, %v6967
    %v6969 = vlaneseq
    %v6970 = vshrl.u32 %v6969, 7
    %v6971 = vsub.s32 3, %v6970
    %v6972 = vrot.slane %v6955, %v6971
    %6977 = vmatprep.subr.mxu0 %v189
    %6978 = vmatpush1.msra.mxu0 %v188
    %6979 = vmatprep.subr.mxu0 %v191
    %6980 = vmatpush1.msra.mxu0 %v190
    %6981 = vmatprep.subr.mxu0 %v193
    %6982 = vmatpush1.msra.mxu0 %v192
    %6983 = vmatprep.subr.mxu0 %v195
    %6984 = vmatpush1.msra.mxu0 %v194
    %6985 = vmatprep.subr.mxu0 %v197
    %6986 = vmatpush1.msra.mxu0 %v196
    %6987 = vmatprep.subr.mxu0 %v199
    %6988 = vmatpush1.msra.mxu0 %v198
    %6989 = vmatprep.subr.mxu0 %v201
    %6990 = vmatpush1.msra.mxu0 %v200
    %6991 = vmatprep.subr.mxu0 %v203
    %6992 = vmatpush1.msra.mxu0 %v202
    %6993 = vmatprep.subr.mxu0 %v205
    %6994 = vmatpush1.msra.mxu0 %v204
    %6995 = vmatprep.subr.mxu0 %v207
    %6996 = vmatpush1.msra.mxu0 %v206
    %6997 = vmatprep.subr.mxu0 %v209
    %6998 = vmatpush1.msra.mxu0 %v208
    %6999 = vmatprep.subr.mxu0 %v211
    %7000 = vmatpush1.msra.mxu0 %v210
    %7001 = vmatprep.subr.mxu0 %v213
    %7002 = vmatpush1.msra.mxu0 %v212
    %7003 = vmatprep.subr.mxu0 %v215
    %7004 = vmatpush1.msra.mxu0 %v214
    %7005 = vmatprep.subr.mxu0 %v217
    %7006 = vmatpush1.msra.mxu0 %v216
    %7007 = vmatprep.subr.mxu0 %v219
    %7008 = vmatpush1.msra.mxu0 %v218
    %7009 = vmatprep.subr.mxu0 %v221
    %7010 = vmatpush1.msra.mxu0 %v220
    %7011 = vmatprep.subr.mxu0 %v223
    %7012 = vmatpush1.msra.mxu0 %v222
    %7013 = vmatprep.subr.mxu0 %v225
    %7014 = vmatpush1.msra.mxu0 %v224
    %7015 = vmatprep.subr.mxu0 %v227
    %7016 = vmatpush1.msra.mxu0 %v226
    %7017 = vmatprep.subr.mxu0 %v229
    %7018 = vmatpush1.msra.mxu0 %v228
    %7019 = vmatprep.subr.mxu0 %v231
    %7020 = vmatpush1.msra.mxu0 %v230
    %7021 = vmatprep.subr.mxu0 %v233
    %7022 = vmatpush1.msra.mxu0 %v232
    %7023 = vmatprep.subr.mxu0 %v235
    %7024 = vmatpush1.msra.mxu0 %v234
    %7025 = vmatprep.subr.mxu0 %v237
    %7026 = vmatpush1.msra.mxu0 %v236
    %7027 = vmatprep.subr.mxu0 %v239
    %7028 = vmatpush1.msra.mxu0 %v238
    %7029 = vmatprep.subr.mxu0 %v241
    %7030 = vmatpush1.msra.mxu0 %v240
    %7031 = vmatprep.subr.mxu0 %v243
    %7032 = vmatpush1.msra.mxu0 %v242
    %7033 = vmatprep.subr.mxu0 %v245
    %7034 = vmatpush1.msra.mxu0 %v244
    %7035 = vmatprep.subr.mxu0 %v247
    %7036 = vmatpush1.msra.mxu0 %v246
    %7037 = vmatprep.subr.mxu0 %v249
    %7038 = vmatpush1.msra.mxu0 %v248
    %7039 = vmatprep.subr.mxu0 %v251
    %7040 = vmatpush1.msra.mxu0 %v250
    %7041 = vmatprep.mubr.f32.mxu0 %v6964
    %7042 = vmatmul.mubr.f32.gmra.mrb[0].mxu0 %v6960
    %v7043 = vpop.f32.mrb[0].mxu0
    %v7044 = vadd.f32 %v2328, %v7043
    %v7045 = vpop.f32.mrb[0].mxu0
    %v7046 = vadd.f32 %v2332, %v7045
    %7047 = vdwg.mxu0
    %7048 = vmatprep.subr.mxu0 %v253
    %7049 = vmatpush1.msra.mxu0 %v252
    %7050 = vmatprep.subr.mxu0 %v255
    %7051 = vmatpush1.msra.mxu0 %v254
    %7052 = vmatprep.subr.mxu0 %v257
    %7053 = vmatpush1.msra.mxu0 %v256
    %7054 = vmatprep.subr.mxu0 %v259
    %7055 = vmatpush1.msra.mxu0 %v258
    %7056 = vmatprep.subr.mxu0 %v261
    %7057 = vmatpush1.msra.mxu0 %v260
    %7058 = vmatprep.subr.mxu0 %v263
    %7059 = vmatpush1.msra.mxu0 %v262
    %7060 = vmatprep.subr.mxu0 %v265
    %7061 = vmatpush1.msra.mxu0 %v264
    %7062 = vmatprep.subr.mxu0 %v267
    %7063 = vmatpush1.msra.mxu0 %v266
    %7064 = vmatprep.subr.mxu0 %v269
    %7065 = vmatpush1.msra.mxu0 %v268
    %7066 = vmatprep.subr.mxu0 %v271
    %7067 = vmatpush1.msra.mxu0 %v270
    %7068 = vmatprep.subr.mxu0 %v273
    %7069 = vmatpush1.msra.mxu0 %v272
    %7070 = vmatprep.subr.mxu0 %v275
    %7071 = vmatpush1.msra.mxu0 %v274
    %7072 = vmatprep.subr.mxu0 %v277
    %7073 = vmatpush1.msra.mxu0 %v276
    %7074 = vmatprep.subr.mxu0 %v279
    %7075 = vmatpush1.msra.mxu0 %v278
    %7076 = vmatprep.subr.mxu0 %v281
    %7077 = vmatpush1.msra.mxu0 %v280
    %7078 = vmatprep.subr.mxu0 %v283
    %7079 = vmatpush1.msra.mxu0 %v282
    %7080 = vmatprep.subr.mxu0 %v285
    %7081 = vmatpush1.msra.mxu0 %v284
    %7082 = vmatprep.subr.mxu0 %v287
    %7083 = vmatpush1.msra.mxu0 %v286
    %7084 = vmatprep.subr.mxu0 %v289
    %7085 = vmatpush1.msra.mxu0 %v288
    %7086 = vmatprep.subr.mxu0 %v291
    %7087 = vmatpush1.msra.mxu0 %v290
    %7088 = vmatprep.subr.mxu0 %v293
    %7089 = vmatpush1.msra.mxu0 %v292
    %7090 = vmatprep.subr.mxu0 %v295
    %7091 = vmatpush1.msra.mxu0 %v294
    %7092 = vmatprep.subr.mxu0 %v297
    %7093 = vmatpush1.msra.mxu0 %v296
    %7094 = vmatprep.subr.mxu0 %v299
    %7095 = vmatpush1.msra.mxu0 %v298
    %7096 = vmatprep.subr.mxu0 %v301
    %7097 = vmatpush1.msra.mxu0 %v300
    %7098 = vmatprep.subr.mxu0 %v303
    %7099 = vmatpush1.msra.mxu0 %v302
    %7100 = vmatprep.subr.mxu0 %v305
    %7101 = vmatpush1.msra.mxu0 %v304
    %7102 = vmatprep.subr.mxu0 %v307
    %7103 = vmatpush1.msra.mxu0 %v306
    %7104 = vmatprep.subr.mxu0 %v309
    %7105 = vmatpush1.msra.mxu0 %v308
    %7106 = vmatprep.subr.mxu0 %v311
    %7107 = vmatpush1.msra.mxu0 %v310
    %7108 = vmatprep.subr.mxu0 %v313
    %7109 = vmatpush1.msra.mxu0 %v312
    %7110 = vmatprep.subr.mxu0 %v315
    %7111 = vmatpush1.msra.mxu0 %v314
    %7112 = vmatprep.mubr.f32.mxu0 %v6972
    %7113 = vmatmul.mubr.f32.gmra.mrb[0].mxu0 %v6968
    %v7114 = vpop.f32.mrb[0].mxu0
    %v7115 = vadd.f32 %v7044, %v7114
    %v7116 = vpop.f32.mrb[0].mxu0
    %v7117 = vadd.f32 %v7046, %v7116
    %7118 = vdwg.mxu0
    %v7121 = vcombine.low %v7115, %v7117
    %v7123 = vunpack.c.l.s4 1966171168
    %v7124 = vunpack.c.0.s8 %v7123
    %v7125 = vlaneseq
    %v7126 = vshrl.u32 %v7125, 7
    %v7127 = vsub.s32 %v7124, %v7126
    %v7128 = vrot.slane %v7121, %v7127
    %v7130 = vunpack.c.l.s4 1966171168
    %v7131 = vunpack.c.0.s8 %v7130
    %v7132 = vlaneseq
    %v7133 = vshrl.u32 %v7132, 7
    %v7134 = vsub.s32 %v7131, %v7133
    %v7135 = vrot.slane %v7128, %v7134
    %s7137 = scalar_lea.vmem [#allocation12], 6
    %7138 = vst.msk [vmem:[%s7137] ss:$8 sm:$0x3] %vm1943, %v7135
    %7139 = vst.msk [vmem:[%s7137] ss:$8 sm:$0x0] %vm1943, %v7135
    // Predicated region
    $region26: #{tpu_custom_call.1} parent=1 // pred_check
      _
    $region27: #{tpu_custom_call.1} parent=1 // pred_check_branch
      %7141 = sbr.rel (0) target = $region29
    $region28: #{tpu_custom_call.1} parent=1 // pred_region
      %s7143 = ssub.s32 256, 256
      %7144 = vsyncadd [#allocation8], %s7143
      %s7146 = sshll.u32 [#allocation12], 4
      %s7147 = int_to_ptr.vmem [resolvable:$true] %s7146
      %7149 = dma.vmem_to_hbm [thread:$0]  %s7147, 256, %s3, [#allocation8]
    $region29: #{tpu_custom_call.1} parent=1 // pred_fallthru
      _
    // Predicated region
    $region30: #{tpu_custom_call.1} parent=1 // pred_check
      _
    $region31: #{tpu_custom_call.1} parent=1 // pred_check_branch
      %7151 = sbr.rel (0) target = $region33
    $region32: #{tpu_custom_call.1} parent=1 // pred_region
      %7152 = dma.done [#allocation8], 256
    $region33: #{tpu_custom_call.1} parent=1 // pred_fallthru
      _
    %7153 = vsyncpa [#allocation7], 1
    %7154 = vsyncpa [#allocation10], 1
    %7155 = vsyncpa [#allocation8], 1

</llo_original>
